<compile_context>
chip_gen: v7x
topology: tpu7x:2x2x1
jax: 0.10.0
libtpu: 0.0.40
codegen_flags: <defaults>
</compile_context>

<pallas_src>
import functools

import jax
import jax.numpy as jnp
import numpy as np
from jax.experimental import pallas as pl
from jax.experimental.pallas import tpu as pltpu

EPS = 1e-5


# --------------------------------------------------------------------------
# hardware-aware knobs
# --------------------------------------------------------------------------
@functools.lru_cache(maxsize=None)
def _device_kind() -> str:
    try:
        return jax.devices()[0].device_kind.lower()
    except Exception:
        return ""


def _is_v5e() -> bool:
    k = _device_kind()
    return ("v5 lite" in k) or ("v5e" in k) or ("v5lite" in k)


@functools.lru_cache(maxsize=None)
def _vmem_limit_bytes() -> int:
    """Generation-aware scoped-VMEM budget (~80% of physical VMEM)."""
    cap = None
    try:
        cap = getattr(pltpu.get_tpu_info(), "vmem_capacity_bytes", None)
    except Exception:
        cap = None
    if not cap or cap <= 0:
        cap = 64 * 1024 * 1024          # conservative fallback (v7x physical)
    return int(cap * 0.80)


def _use_grouped_taps(C: int) -> bool:
    # K=3C tap fusion helps the 256x256 MXU of v6e/v7x; on v5e (4x128x128 MXU)
    # K=C=128 already fills the contraction, so the concat is pure overhead.
    return (C % 128 == 0) and not _is_v5e()


def _act_buffer_depth():
    # v5e has the slowest HBM and 128 MiB VMEM headroom: 3-deep pipeline on the
    # activation input there; keep the default depth-2 on v6e/v7x.
    return 3 if _is_v5e() else None


def _blockspec(block_shape, index_map, depth=None):
    if depth is None:
        return pl.BlockSpec(block_shape, index_map)
    try:
        return pl.BlockSpec(block_shape, index_map,
                            pipeline_mode=pl.Buffered(depth))
    except (TypeError, AttributeError):     # jax without pipeline_mode support
        return pl.BlockSpec(block_shape, index_map)


def _pick_tile_h(H, W, C, vmem_limit):
    """Largest row-tile height dividing H whose working set fits the budget."""
    # per-element estimate: double-buffered in/out + f32 ext + bf16 taps
    # + f32 acc + masks / temporaries ~= 40 B/elem.
    bytes_per_row = 40 * W * C
    budget = max(vmem_limit // 2, 2 * 1024 * 1024)
    max_rows = max(1, budget // bytes_per_row)
    th = 1
    for d in range(1, H + 1):
        if H % d == 0 and d <= max_rows:
            th = d
    return th


# --------------------------------------------------------------------------
# in-kernel conv helper
# --------------------------------------------------------------------------
def _conv3x3_tile(ext, w_ref, *, H, W, C, TH, r0, group_taps):
    """3x3 / stride-1 / pad-1 conv of one row tile.

    ext   : ((TH+2)*W, C) f32 activation rows in raster order: one halo row
            above, TH tile rows, one halo row below (halo rows are clamped
            copies at the image border; their contribution is masked below).
    w_ref : (3, 3*C, C) bf16 weight ref, rows grouped as (kx, c_in).
    r0    : global image row of the first tile row.
    returns (TH*W, C) f32 conv output (bias not added).
    """
    M = TH * W
    Me = (TH + 2) * W
    wv = w_ref[...]                                            # (3, 3C, C) bf16
    # Global row / column index of every output element, shape (M, 1) so the
    # selects broadcast along lanes (no full image-sized int plane).
    grow = jax.lax.broadcasted_iota(jnp.int32, (TH, W, 1), 0).reshape(M, 1) + r0
    col = jax.lax.broadcasted_iota(jnp.int32, (TH, W, 1), 1).reshape(M, 1)

    acc = jnp.zeros((M, C), jnp.float32)
    for ky in range(3):
        dy = ky - 1
        if dy == -1:
            vh = grow >= 1                 # source row h-1 exists in the image
        elif dy == 1:
            vh = grow <= H - 2             # source row h+1 exists
        else:
            vh = None
        taps = []
        for kx in range(3):
            dx = kx - 1
            off = W + dy * W + dx          # ext-row offset of the source pixel
            s = (-off) % Me                # jnp.roll semantics via pltpu.roll
            t = ext if s == 0 else pltpu.roll(ext, shift=s, axis=0)
            t = t[:M]
            if dx == -1:
                vw = col >= 1
            elif dx == 1:
                vw = col <= W - 2
            else:
                vw = None
            if vh is not None and vw is not None:
                valid = vh & vw
            elif vh is not None:
                valid = vh
            else:
                valid = vw
            if valid is not None:
                t = jnp.where(valid, t, 0.0)
            t = t.astype(jnp.bfloat16)     # bf16 MXU operand, f32 accumulate
            if group_taps:
                taps.append(t)
            else:
                acc += jnp.dot(t, wv[ky, kx * C:(kx + 1) * C, :],
                               preferred_element_type=jnp.float32)
        if group_taps:
            lhs = jnp.concatenate(taps, axis=1)                # (M, 3C) bf16
            acc += jnp.dot(lhs, wv[ky], preferred_element_type=jnp.float32)
    return acc


# --------------------------------------------------------------------------
# kernels (one grid step == one row tile of one batch image)
# --------------------------------------------------------------------------
def _conv1_stats_kernel(x_ref, xt_ref, xb_ref, w_ref, b_ref,
                        y_ref, s_ref, q_ref, *, H, W, C, TH, group_taps):
    M = TH * W
    r0 = pl.program_id(1) * TH
    ext = jnp.concatenate([xt_ref[...].reshape(W, C),
                           x_ref[...].reshape(M, C),
                           xb_ref[...].reshape(W, C)], axis=0)
    out = _conv3x3_tile(ext, w_ref, H=H, W=W, C=C, TH=TH, r0=r0,
                        group_taps=group_taps) + b_ref[...]
    # exact per-tile BN statistics in f32, taken before the bf16 store
    s_ref[...] = jnp.sum(out, axis=0).reshape(1, 1, 1, C)
    q_ref[...] = jnp.sum(out * out, axis=0).reshape(1, 1, 1, C)
    y_ref[...] = out.astype(y_ref.dtype).reshape(1, TH, W, C)


def _bn_relu_conv2_stats_kernel(y1_ref, y1t_ref, y1b_ref, scale_ref, shift_ref,
                                w_ref, b_ref, y_ref, s_ref, q_ref,
                                *, H, W, C, TH, group_taps):
    M = TH * W
    r0 = pl.program_id(1) * TH
    ext = jnp.concatenate([y1t_ref[...].reshape(W, C),
                           y1_ref[...].reshape(M, C),
                           y1b_ref[...].reshape(W, C)],
                          axis=0).astype(jnp.float32)
    # BN1 (pre-folded affine) + ReLU in f32 on the VPU, halo rows included.
    ext = jnp.maximum(ext * scale_ref[...] + shift_ref[...], 0.0)
    out = _conv3x3_tile(ext, w_ref, H=H, W=W, C=C, TH=TH, r0=r0,
                        group_taps=group_taps) + b_ref[...]
    s_ref[...] = jnp.sum(out, axis=0).reshape(1, 1, 1, C)
    q_ref[...] = jnp.sum(out * out, axis=0).reshape(1, 1, 1, C)
    y_ref[...] = out.astype(y_ref.dtype).reshape(1, TH, W, C)


def _bn_residual_relu_kernel(y2_ref, x_ref, scale_ref, shift_ref, out_ref,
                             *, W, C, TH):
    M = TH * W
    z = (y2_ref[...].reshape(M, C).astype(jnp.float32) * scale_ref[...]
         + shift_ref[...] + x_ref[...].reshape(M, C))
    out_ref[...] = jnp.maximum(z, 0.0).reshape(1, TH, W, C)


# --------------------------------------------------------------------------
# pallas_call builders
# --------------------------------------------------------------------------
def _compiler_params(vmem_limit):
    return pltpu.CompilerParams(dimension_semantics=("parallel", "parallel"),
                                vmem_limit_bytes=vmem_limit)


def _conv_stage(x, w, b, scale=None, shift=None, *, tile_h, out_dtype,
                vmem_limit, group_taps, buffer_depth=None):
    """One conv3x3 stage (optionally with a fused preceding BN+ReLU)."""
    N, H, W, C = x.shape
    TH = tile_h
    T = H // TH

    idx_main = lambda n, i: (n, i, 0, 0)
    # Halo rows: 1-row blocks at global rows i*TH-1 / i*TH+TH, clamped at the
    # image border (masked in-kernel, so the clamped copy never contributes).
    idx_top = lambda n, i: (n, jnp.maximum(i * TH - 1, 0), 0, 0)
    idx_bot = lambda n, i: (n, jnp.minimum((i + 1) * TH, H - 1), 0, 0)

    img_in = _blockspec((1, TH, W, C), idx_main, buffer_depth)
    halo_top = pl.BlockSpec((1, 1, W, C), idx_top)
    halo_bot = pl.BlockSpec((1, 1, W, C), idx_bot)
    cvec = pl.BlockSpec((1, C), lambda n, i: (0, 0))
    wspec = pl.BlockSpec((3, 3 * C, C), lambda n, i: (0, 0, 0))
    y_out = pl.BlockSpec((1, TH, W, C), idx_main)
    stat = pl.BlockSpec((1, 1, 1, C), lambda n, i: (n, i, 0, 0))

    if scale is None:
        kernel = functools.partial(_conv1_stats_kernel, H=H, W=W, C=C, TH=TH,
                                   group_taps=group_taps)
        operands = (x, x, x, w, b)
        in_specs = [img_in, halo_top, halo_bot, wspec, cvec]
    else:
        kernel = functools.partial(_bn_relu_conv2_stats_kernel, H=H, W=W, C=C,
                                   TH=TH, group_taps=group_taps)
        operands = (x, x, x, scale, shift, w, b)
        in_specs = [img_in, halo_top, halo_bot, cvec, cvec, wspec, cvec]

    return pl.pallas_call(
        kernel,
        grid=(N, T),
        in_specs=in_specs,
        out_specs=[y_out, stat, stat],
        out_shape=(jax.ShapeDtypeStruct((N, H, W, C), out_dtype),
                   jax.ShapeDtypeStruct((N, T, 1, C), jnp.float32),
                   jax.ShapeDtypeStruct((N, T, 1, C), jnp.float32)),
        compiler_params=_compiler_params(vmem_limit),
    )(*operands)


def _finalize_stage(y2, x, scale, shift, *, tile_h, vmem_limit):
    N, H, W, C = x.shape
    TH = tile_h
    T = H // TH
    img = pl.BlockSpec((1, TH, W, C), lambda n, i: (n, i, 0, 0))
    cvec = pl.BlockSpec((1, C), lambda n, i: (0, 0))
    return pl.pallas_call(
        functools.partial(_bn_residual_relu_kernel, W=W, C=C, TH=TH),
        grid=(N, T),
        in_specs=[img, img, cvec, cvec],
        out_specs=img,
        out_shape=jax.ShapeDtypeStruct((N, H, W, C), jnp.float32),
        input_output_aliases={0: 0},        # write in place over y2's buffer
        compiler_params=_compiler_params(vmem_limit),
    )(y2, x, scale, shift)


# --------------------------------------------------------------------------
# BN statistics combine (outside the kernels, exact batch stats)
# --------------------------------------------------------------------------
def _bn_affine(s, q, gamma, beta, tile_count, total_count):
    """Fold training-mode BN (biased variance) into a per-channel scale/shift.

    s, q : (N, T, 1, C) per-tile sum / sum-of-squares.  Per-tile moments are
    centered before the cross-tile (Welford-style) combine, avoiding the
    catastrophic E[x^2]-E[x]^2 cancellation of a single global pass.
    """
    m = jnp.float32(tile_count)
    mean_t = s / m                                            # (N, T, 1, C)
    m2_t = q - s * mean_t                                     # per-tile centered SS
    mean = jnp.mean(mean_t, axis=(0, 1, 2))                   # (C,) equal tiles
    m2 = (jnp.sum(m2_t, axis=(0, 1, 2))
          + m * jnp.sum((mean_t - mean) ** 2, axis=(0, 1, 2)))
    var = m2 / jnp.float32(total_count)                       # biased variance
    scale = gamma.reshape(-1) * jax.lax.rsqrt(var + EPS)
    shift = beta.reshape(-1) - mean * scale
    C = scale.shape[0]
    return scale.reshape(1, C), shift.reshape(1, C)


# --------------------------------------------------------------------------
# forward
# --------------------------------------------------------------------------
def _resblock_nhwc(x, params, tile_h=None):
    """ResBlock forward in NHWC (training-mode BatchNorm)."""
    N, H, W, C = x.shape
    vmem_limit = _vmem_limit_bytes()
    if tile_h is None:
        tile_h = _pick_tile_h(H, W, C, vmem_limit)
    if H % tile_h != 0:
        raise ValueError(f"tile_h={tile_h} must divide H={H}")
    group_taps = _use_grouped_taps(C)
    depth = _act_buffer_depth()

    # Weights pre-cast to bf16 and pre-reshaped to a contiguous (3, 3C, C)
    # MXU RHS so the kernel never reshapes them per grid step.
    w1 = params["w1"].astype(jnp.bfloat16).reshape(3, 3 * C, C)
    w2 = params["w2"].astype(jnp.bfloat16).reshape(3, 3 * C, C)

    # conv1 (+ per-tile BN1 statistics); y1 stored bf16 (stats taken in f32).
    y1, s1, q1 = _conv_stage(x, w1, params["b1"], tile_h=tile_h,
                             out_dtype=jnp.bfloat16, vmem_limit=vmem_limit,
                             group_taps=group_taps, buffer_depth=depth)
    scale1, shift1 = _bn_affine(s1, q1, params["g1"], params["beta1"],
                                tile_h * W, N * H * W)

    # BN1 + ReLU fused into conv2 (+ per-tile BN2 statistics); y2 kept f32 so
    # stage 3 can alias its buffer.
    y2, s2, q2 = _conv_stage(y1, w2, params["b2"], scale1, shift1,
                             tile_h=tile_h, out_dtype=jnp.float32,
                             vmem_limit=vmem_limit, group_taps=group_taps,
                             buffer_depth=depth)
    scale2, shift2 = _bn_affine(s2, q2, params["g2"], params["beta2"],
                                tile_h * W, N * H * W)

    # BN2 + residual + ReLU.
    return _finalize_stage(y2, x, scale2, shift2, tile_h=tile_h,
                           vmem_limit=vmem_limit)


@functools.partial(jax.jit, static_argnames=("tile_h",))
def resblock_forward(x_nchw, params, tile_h=None):
    """ResBlock forward, PyTorch NCHW in/out (training-mode BatchNorm)."""
    x = jnp.transpose(x_nchw, (0, 2, 3, 1)).astype(jnp.float32)   # -> NHWC
    out = _resblock_nhwc(x, params, tile_h)
    return jnp.transpose(out, (0, 3, 1, 2))                       # -> NCHW


# NHWC entry point (no layout transposes) for callers that already hold NHWC.
resblock_forward_nhwc = jax.jit(_resblock_nhwc, static_argnames=("tile_h",))


# --------------------------------------------------------------------------
# params + pure-JAX reference
# --------------------------------------------------------------------------
def init_params(key, channels):
    """Deterministic synthetic params (shapes match ResBlock(C, C, stride=1))."""
    k1, k2, k3, k4 = jax.random.split(key, 4)
    fan_in = channels * 3 * 3
    bound = 1.0 / np.sqrt(fan_in)
    return {
        "w1": jax.random.uniform(k1, (3, 3, channels, channels),
                                 jnp.float32, -bound, bound),
        "b1": jax.random.uniform(k2, (1, channels), jnp.float32, -bound, bound),
        "g1": jnp.ones((1, channels), jnp.float32),
        "beta1": jnp.zeros((1, channels), jnp.float32),
        "w2": jax.random.uniform(k3, (3, 3, channels, channels),
                                 jnp.float32, -bound, bound),
        "b2": jax.random.uniform(k4, (1, channels), jnp.float32, -bound, bound),
        "g2": jnp.ones((1, channels), jnp.float32),
        "beta2": jnp.zeros((1, channels), jnp.float32),
    }


def resblock_reference(x_nchw, params, matmul_dtype=jnp.float32,
                       store_dtype=jnp.float32):
    """Pure-JAX reference.  matmul_dtype / store_dtype = bf16 mirrors the
    kernel's MXU operand dtype and its bf16 y1 intermediate storage."""
    x = jnp.transpose(x_nchw, (0, 2, 3, 1)).astype(jnp.float32)

    def conv(h, w, b):
        y = jax.lax.conv_general_dilated(
            h.astype(matmul_dtype), w.astype(matmul_dtype),
            window_strides=(1, 1), padding="SAME",
            dimension_numbers=("NHWC", "HWIO", "NHWC"),
            preferred_element_type=jnp.float32)
        return y + b.reshape(1, 1, 1, -1)

    def bn_stats(h):
        m = jnp.mean(h, axis=(0, 1, 2), keepdims=True)
        v = jnp.mean((h - m) ** 2, axis=(0, 1, 2), keepdims=True)
        return m, v

    def bn_apply(h, m, v, g, be):
        return (g.reshape(1, 1, 1, -1) * (h - m) * jax.lax.rsqrt(v + EPS)
                + be.reshape(1, 1, 1, -1))

    h1 = conv(x, params["w1"], params["b1"])
    m1, v1 = bn_stats(h1)                                  # stats from f32 conv
    h1 = h1.astype(store_dtype).astype(jnp.float32)        # mirrors y1 storage
    y = jax.nn.relu(bn_apply(h1, m1, v1, params["g1"], params["beta1"]))

    h2 = conv(y, params["w2"], params["b2"])
    m2, v2 = bn_stats(h2)
    z = bn_apply(h2, m2, v2, params["g2"], params["beta2"]) + x
    z = jax.nn.relu(z)
    return jnp.transpose(z, (0, 3, 1, 2))


if __name__ == "__main__":
    key = jax.random.PRNGKey(0)
    kx_, kp = jax.random.split(key)

    N, C, H, W = 2, 4, 16, 16
    x = jax.random.normal(kx_, (N, C, H, W), jnp.float32)   # NCHW like PyTorch
    params = init_params(kp, C)

    # auto tile height (single row tile at this size) + forced 2-tile split
    # (exercises the halo / per-tile-statistics path).
    out_auto = jax.block_until_ready(resblock_forward(x, params))
    out_tiled = jax.block_until_ready(resblock_forward(x, params, tile_h=8))

    # References: one mirroring the kernel's bf16 MXU operands + bf16 y1
    # storage (tight check), one exact f32 PyTorch-style (loose check).
    ref_mirror = jax.block_until_ready(resblock_reference(
        x, params, matmul_dtype=jnp.bfloat16, store_dtype=jnp.bfloat16))
    ref_exact = jax.block_until_ready(resblock_reference(x, params))

    for out in (out_auto, out_tiled):
        np.testing.assert_allclose(np.asarray(out), np.asarray(ref_mirror),
                                   rtol=2e-2, atol=2e-2)
        np.testing.assert_allclose(np.asarray(out), np.asarray(ref_exact),
                                   rtol=5e-2, atol=5e-2)

    assert out_auto.shape == (N, C, H, W) and out_auto.dtype == jnp.float32
    print("KERNEL_OK")
</pallas_src>

<mosaic_0001>
module attributes {stable_mosaic.version = 11 : i64} {
  func.func @_conv1_stats_kernel(%arg0: i32, %arg1: i32, %arg2: memref<1x16x16x4xf32, #tpu.memory_space<vmem>>, %arg3: memref<1x1x16x4xf32, #tpu.memory_space<vmem>>, %arg4: memref<1x1x16x4xf32, #tpu.memory_space<vmem>>, %arg5: memref<3x12x4xbf16, #tpu.memory_space<vmem>>, %arg6: memref<1x4xf32, #tpu.memory_space<vmem>>, %arg7: memref<1x16x16x4xbf16, #tpu.memory_space<vmem>>, %arg8: memref<1x1x1x4xf32, #tpu.memory_space<vmem>>, %arg9: memref<1x1x1x4xf32, #tpu.memory_space<vmem>>) attributes {dimension_semantics = [#tpu.dimension_semantics<parallel>, #tpu.dimension_semantics<parallel>], iteration_bounds = array<i64: 2, 1>, scalar_prefetch = 0 : i64, scratch_operands = 0 : i64, tpu.core_type = #tpu.core_type<tc>, window_params = [{transform_indices = @transform_0, window_bounds = array<i64: 1, 16, 16, 4>}, {transform_indices = @transform_1, window_bounds = array<i64: 1, 1, 16, 4>}, {transform_indices = @transform_2, window_bounds = array<i64: 1, 1, 16, 4>}, {pipeline_mode = #tpu.pipeline_mode<synchronous>, transform_indices = @transform_3, window_bounds = array<i64: 3, 12, 4>}, {pipeline_mode = #tpu.pipeline_mode<synchronous>, transform_indices = @transform_4, window_bounds = array<i64: 1, 4>}, {transform_indices = @transform_5, window_bounds = array<i64: 1, 16, 16, 4>}, {transform_indices = @transform_6, window_bounds = array<i64: 1, 1, 1, 4>}, {transform_indices = @transform_7, window_bounds = array<i64: 1, 1, 1, 4>}]} {
    %c16_i32 = arith.constant 16 : i32
    %0 = arith.muli %arg1, %c16_i32 : i32
    %c0 = arith.constant 0 : index
    %c0_0 = arith.constant 0 : index
    %c0_1 = arith.constant 0 : index
    %c0_2 = arith.constant 0 : index
    %1 = vector.load %arg3[%c0, %c0_0, %c0_1, %c0_2] : memref<1x1x16x4xf32, #tpu.memory_space<vmem>>, vector<1x1x16x4xf32>
    %2 = vector.shape_cast %1 : vector<1x1x16x4xf32> to vector<16x4xf32>
    %c0_3 = arith.constant 0 : index
    %c0_4 = arith.constant 0 : index
    %c0_5 = arith.constant 0 : index
    %c0_6 = arith.constant 0 : index
    %3 = vector.load %arg2[%c0_3, %c0_4, %c0_5, %c0_6] : memref<1x16x16x4xf32, #tpu.memory_space<vmem>>, vector<1x16x16x4xf32>
    %4 = vector.shape_cast %3 : vector<1x16x16x4xf32> to vector<256x4xf32>
    %c0_7 = arith.constant 0 : index
    %c0_8 = arith.constant 0 : index
    %c0_9 = arith.constant 0 : index
    %c0_10 = arith.constant 0 : index
    %5 = vector.load %arg4[%c0_7, %c0_8, %c0_9, %c0_10] : memref<1x1x16x4xf32, #tpu.memory_space<vmem>>, vector<1x1x16x4xf32>
    %6 = vector.shape_cast %5 : vector<1x1x16x4xf32> to vector<16x4xf32>
    %7 = tpu.concatenate %2, %4, %6 in 0 : vector<16x4xf32>, vector<256x4xf32>, vector<16x4xf32> -> vector<288x4xf32>
    %c0_11 = arith.constant 0 : index
    %c0_12 = arith.constant 0 : index
    %c0_13 = arith.constant 0 : index
    %8 = vector.load %arg5[%c0_11, %c0_12, %c0_13] : memref<3x12x4xbf16, #tpu.memory_space<vmem>>, vector<3x12x4xbf16>
    %9 = tpu.iota {dimensions = array<i32: 0>} : vector<16x16x1xi32>
    %10 = vector.shape_cast %9 : vector<16x16x1xi32> to vector<256x1xi32>
    %11 = vector.broadcast %0 : i32 to vector<256x1xi32>
    %12 = arith.addi %10, %11 : vector<256x1xi32>
    %13 = tpu.iota {dimensions = array<i32: 1>} : vector<16x16x1xi32>
    %14 = vector.shape_cast %13 : vector<16x16x1xi32> to vector<256x1xi32>
    %cst = arith.constant 0.000000e+00 : f32
    %15 = vector.broadcast %cst : f32 to vector<256x4xf32>
    %c1_i32 = arith.constant 1 : i32
    %16 = vector.broadcast %c1_i32 : i32 to vector<256x1xi32>
    %17 = arith.cmpi sge, %12, %16 : vector<256x1xi32>
    %c1_i32_14 = arith.constant 1 : i32
    %18 = tpu.dynamic_rotate %7 by %c1_i32_14 dim 0 : vector<288x4xf32>, i32 -> vector<288x4xf32>
    %19 = vector.extract_strided_slice %18 {offsets = [0, 0], sizes = [256, 4], strides = [1, 1]} : vector<288x4xf32> to vector<256x4xf32>
    %c1_i32_15 = arith.constant 1 : i32
    %20 = vector.broadcast %c1_i32_15 : i32 to vector<256x1xi32>
    %21 = arith.cmpi sge, %14, %20 : vector<256x1xi32>
    %22 = arith.andi %17, %21 : vector<256x1xi1>
    %cst_16 = arith.constant 0.000000e+00 : f32
    %23 = vector.shape_cast %22 : vector<256x1xi1> to vector<256x1xi1>
    %24 = vector.broadcast %23 : vector<256x1xi1> to vector<256x4xi1>
    %25 = vector.broadcast %cst_16 : f32 to vector<256x4xf32>
    %26 = arith.select %24, %19, %25 : vector<256x4xi1>, vector<256x4xf32>
    %27 = arith.truncf %26 : vector<256x4xf32> to vector<256x4xbf16>
    %28 = vector.extract_strided_slice %8 {offsets = [0, 0, 0], sizes = [1, 4, 4], strides = [1, 1, 1]} : vector<3x12x4xbf16> to vector<1x4x4xbf16>
    %29 = vector.shape_cast %28 : vector<1x4x4xbf16> to vector<4x4xbf16>
    %cst_17 = arith.constant dense<0.000000e+00> : vector<256x4xf32>
    %30 = tpu.matmul %27, %29, %cst_17 {dimension_numbers = #tpu.dot_dimension_numbers<[1], [0], [0], [1], [0, 0, 1, 1], [], []>} : vector<256x4xbf16>, vector<4x4xbf16>, vector<256x4xf32> -> vector<256x4xf32>
    %31 = arith.addf %15, %30 : vector<256x4xf32>
    %32 = vector.extract_strided_slice %7 {offsets = [0, 0], sizes = [256, 4], strides = [1, 1]} : vector<288x4xf32> to vector<256x4xf32>
    %cst_18 = arith.constant 0.000000e+00 : f32
    %33 = vector.shape_cast %17 : vector<256x1xi1> to vector<256x1xi1>
    %34 = vector.broadcast %33 : vector<256x1xi1> to vector<256x4xi1>
    %35 = vector.broadcast %cst_18 : f32 to vector<256x4xf32>
    %36 = arith.select %34, %32, %35 : vector<256x4xi1>, vector<256x4xf32>
    %37 = arith.truncf %36 : vector<256x4xf32> to vector<256x4xbf16>
    %38 = vector.extract_strided_slice %8 {offsets = [0, 4, 0], sizes = [1, 4, 4], strides = [1, 1, 1]} : vector<3x12x4xbf16> to vector<1x4x4xbf16>
    %39 = vector.shape_cast %38 : vector<1x4x4xbf16> to vector<4x4xbf16>
    %cst_19 = arith.constant dense<0.000000e+00> : vector<256x4xf32>
    %40 = tpu.matmul %37, %39, %cst_19 {dimension_numbers = #tpu.dot_dimension_numbers<[1], [0], [0], [1], [0, 0, 1, 1], [], []>} : vector<256x4xbf16>, vector<4x4xbf16>, vector<256x4xf32> -> vector<256x4xf32>
    %41 = arith.addf %31, %40 : vector<256x4xf32>
    %c287_i32 = arith.constant 287 : i32
    %42 = tpu.dynamic_rotate %7 by %c287_i32 dim 0 : vector<288x4xf32>, i32 -> vector<288x4xf32>
    %43 = vector.extract_strided_slice %42 {offsets = [0, 0], sizes = [256, 4], strides = [1, 1]} : vector<288x4xf32> to vector<256x4xf32>
    %c14_i32 = arith.constant 14 : i32
    %44 = vector.broadcast %c14_i32 : i32 to vector<256x1xi32>
    %45 = arith.cmpi sle, %14, %44 : vector<256x1xi32>
    %46 = arith.andi %17, %45 : vector<256x1xi1>
    %cst_20 = arith.constant 0.000000e+00 : f32
    %47 = vector.shape_cast %46 : vector<256x1xi1> to vector<256x1xi1>
    %48 = vector.broadcast %47 : vector<256x1xi1> to vector<256x4xi1>
    %49 = vector.broadcast %cst_20 : f32 to vector<256x4xf32>
    %50 = arith.select %48, %43, %49 : vector<256x4xi1>, vector<256x4xf32>
    %51 = arith.truncf %50 : vector<256x4xf32> to vector<256x4xbf16>
    %52 = vector.extract_strided_slice %8 {offsets = [0, 8, 0], sizes = [1, 4, 4], strides = [1, 1, 1]} : vector<3x12x4xbf16> to vector<1x4x4xbf16>
    %53 = vector.shape_cast %52 : vector<1x4x4xbf16> to vector<4x4xbf16>
    %cst_21 = arith.constant dense<0.000000e+00> : vector<256x4xf32>
    %54 = tpu.matmul %51, %53, %cst_21 {dimension_numbers = #tpu.dot_dimension_numbers<[1], [0], [0], [1], [0, 0, 1, 1], [], []>} : vector<256x4xbf16>, vector<4x4xbf16>, vector<256x4xf32> -> vector<256x4xf32>
    %55 = arith.addf %41, %54 : vector<256x4xf32>
    %c273_i32 = arith.constant 273 : i32
    %56 = tpu.dynamic_rotate %7 by %c273_i32 dim 0 : vector<288x4xf32>, i32 -> vector<288x4xf32>
    %57 = vector.extract_strided_slice %56 {offsets = [0, 0], sizes = [256, 4], strides = [1, 1]} : vector<288x4xf32> to vector<256x4xf32>
    %c1_i32_22 = arith.constant 1 : i32
    %58 = vector.broadcast %c1_i32_22 : i32 to vector<256x1xi32>
    %59 = arith.cmpi sge, %14, %58 : vector<256x1xi32>
    %cst_23 = arith.constant 0.000000e+00 : f32
    %60 = vector.shape_cast %59 : vector<256x1xi1> to vector<256x1xi1>
    %61 = vector.broadcast %60 : vector<256x1xi1> to vector<256x4xi1>
    %62 = vector.broadcast %cst_23 : f32 to vector<256x4xf32>
    %63 = arith.select %61, %57, %62 : vector<256x4xi1>, vector<256x4xf32>
    %64 = arith.truncf %63 : vector<256x4xf32> to vector<256x4xbf16>
    %65 = vector.extract_strided_slice %8 {offsets = [1, 0, 0], sizes = [1, 4, 4], strides = [1, 1, 1]} : vector<3x12x4xbf16> to vector<1x4x4xbf16>
    %66 = vector.shape_cast %65 : vector<1x4x4xbf16> to vector<4x4xbf16>
    %cst_24 = arith.constant dense<0.000000e+00> : vector<256x4xf32>
    %67 = tpu.matmul %64, %66, %cst_24 {dimension_numbers = #tpu.dot_dimension_numbers<[1], [0], [0], [1], [0, 0, 1, 1], [], []>} : vector<256x4xbf16>, vector<4x4xbf16>, vector<256x4xf32> -> vector<256x4xf32>
    %68 = arith.addf %55, %67 : vector<256x4xf32>
    %c272_i32 = arith.constant 272 : i32
    %69 = tpu.dynamic_rotate %7 by %c272_i32 dim 0 : vector<288x4xf32>, i32 -> vector<288x4xf32>
    %70 = vector.extract_strided_slice %69 {offsets = [0, 0], sizes = [256, 4], strides = [1, 1]} : vector<288x4xf32> to vector<256x4xf32>
    %71 = arith.truncf %70 : vector<256x4xf32> to vector<256x4xbf16>
    %72 = vector.extract_strided_slice %8 {offsets = [1, 4, 0], sizes = [1, 4, 4], strides = [1, 1, 1]} : vector<3x12x4xbf16> to vector<1x4x4xbf16>
    %73 = vector.shape_cast %72 : vector<1x4x4xbf16> to vector<4x4xbf16>
    %cst_25 = arith.constant dense<0.000000e+00> : vector<256x4xf32>
    %74 = tpu.matmul %71, %73, %cst_25 {dimension_numbers = #tpu.dot_dimension_numbers<[1], [0], [0], [1], [0, 0, 1, 1], [], []>} : vector<256x4xbf16>, vector<4x4xbf16>, vector<256x4xf32> -> vector<256x4xf32>
    %75 = arith.addf %68, %74 : vector<256x4xf32>
    %c271_i32 = arith.constant 271 : i32
    %76 = tpu.dynamic_rotate %7 by %c271_i32 dim 0 : vector<288x4xf32>, i32 -> vector<288x4xf32>
    %77 = vector.extract_strided_slice %76 {offsets = [0, 0], sizes = [256, 4], strides = [1, 1]} : vector<288x4xf32> to vector<256x4xf32>
    %c14_i32_26 = arith.constant 14 : i32
    %78 = vector.broadcast %c14_i32_26 : i32 to vector<256x1xi32>
    %79 = arith.cmpi sle, %14, %78 : vector<256x1xi32>
    %cst_27 = arith.constant 0.000000e+00 : f32
    %80 = vector.shape_cast %79 : vector<256x1xi1> to vector<256x1xi1>
    %81 = vector.broadcast %80 : vector<256x1xi1> to vector<256x4xi1>
    %82 = vector.broadcast %cst_27 : f32 to vector<256x4xf32>
    %83 = arith.select %81, %77, %82 : vector<256x4xi1>, vector<256x4xf32>
    %84 = arith.truncf %83 : vector<256x4xf32> to vector<256x4xbf16>
    %85 = vector.extract_strided_slice %8 {offsets = [1, 8, 0], sizes = [1, 4, 4], strides = [1, 1, 1]} : vector<3x12x4xbf16> to vector<1x4x4xbf16>
    %86 = vector.shape_cast %85 : vector<1x4x4xbf16> to vector<4x4xbf16>
    %cst_28 = arith.constant dense<0.000000e+00> : vector<256x4xf32>
    %87 = tpu.matmul %84, %86, %cst_28 {dimension_numbers = #tpu.dot_dimension_numbers<[1], [0], [0], [1], [0, 0, 1, 1], [], []>} : vector<256x4xbf16>, vector<4x4xbf16>, vector<256x4xf32> -> vector<256x4xf32>
    %88 = arith.addf %75, %87 : vector<256x4xf32>
    %c14_i32_29 = arith.constant 14 : i32
    %89 = vector.broadcast %c14_i32_29 : i32 to vector<256x1xi32>
    %90 = arith.cmpi sle, %12, %89 : vector<256x1xi32>
    %c257_i32 = arith.constant 257 : i32
    %91 = tpu.dynamic_rotate %7 by %c257_i32 dim 0 : vector<288x4xf32>, i32 -> vector<288x4xf32>
    %92 = vector.extract_strided_slice %91 {offsets = [0, 0], sizes = [256, 4], strides = [1, 1]} : vector<288x4xf32> to vector<256x4xf32>
    %c1_i32_30 = arith.constant 1 : i32
    %93 = vector.broadcast %c1_i32_30 : i32 to vector<256x1xi32>
    %94 = arith.cmpi sge, %14, %93 : vector<256x1xi32>
    %95 = arith.andi %90, %94 : vector<256x1xi1>
    %cst_31 = arith.constant 0.000000e+00 : f32
    %96 = vector.shape_cast %95 : vector<256x1xi1> to vector<256x1xi1>
    %97 = vector.broadcast %96 : vector<256x1xi1> to vector<256x4xi1>
    %98 = vector.broadcast %cst_31 : f32 to vector<256x4xf32>
    %99 = arith.select %97, %92, %98 : vector<256x4xi1>, vector<256x4xf32>
    %100 = arith.truncf %99 : vector<256x4xf32> to vector<256x4xbf16>
    %101 = vector.extract_strided_slice %8 {offsets = [2, 0, 0], sizes = [1, 4, 4], strides = [1, 1, 1]} : vector<3x12x4xbf16> to vector<1x4x4xbf16>
    %102 = vector.shape_cast %101 : vector<1x4x4xbf16> to vector<4x4xbf16>
    %cst_32 = arith.constant dense<0.000000e+00> : vector<256x4xf32>
    %103 = tpu.matmul %100, %102, %cst_32 {dimension_numbers = #tpu.dot_dimension_numbers<[1], [0], [0], [1], [0, 0, 1, 1], [], []>} : vector<256x4xbf16>, vector<4x4xbf16>, vector<256x4xf32> -> vector<256x4xf32>
    %104 = arith.addf %88, %103 : vector<256x4xf32>
    %c256_i32 = arith.constant 256 : i32
    %105 = tpu.dynamic_rotate %7 by %c256_i32 dim 0 : vector<288x4xf32>, i32 -> vector<288x4xf32>
    %106 = vector.extract_strided_slice %105 {offsets = [0, 0], sizes = [256, 4], strides = [1, 1]} : vector<288x4xf32> to vector<256x4xf32>
    %cst_33 = arith.constant 0.000000e+00 : f32
    %107 = vector.shape_cast %90 : vector<256x1xi1> to vector<256x1xi1>
    %108 = vector.broadcast %107 : vector<256x1xi1> to vector<256x4xi1>
    %109 = vector.broadcast %cst_33 : f32 to vector<256x4xf32>
    %110 = arith.select %108, %106, %109 : vector<256x4xi1>, vector<256x4xf32>
    %111 = arith.truncf %110 : vector<256x4xf32> to vector<256x4xbf16>
    %112 = vector.extract_strided_slice %8 {offsets = [2, 4, 0], sizes = [1, 4, 4], strides = [1, 1, 1]} : vector<3x12x4xbf16> to vector<1x4x4xbf16>
    %113 = vector.shape_cast %112 : vector<1x4x4xbf16> to vector<4x4xbf16>
    %cst_34 = arith.constant dense<0.000000e+00> : vector<256x4xf32>
    %114 = tpu.matmul %111, %113, %cst_34 {dimension_numbers = #tpu.dot_dimension_numbers<[1], [0], [0], [1], [0, 0, 1, 1], [], []>} : vector<256x4xbf16>, vector<4x4xbf16>, vector<256x4xf32> -> vector<256x4xf32>
    %115 = arith.addf %104, %114 : vector<256x4xf32>
    %c255_i32 = arith.constant 255 : i32
    %116 = tpu.dynamic_rotate %7 by %c255_i32 dim 0 : vector<288x4xf32>, i32 -> vector<288x4xf32>
    %117 = vector.extract_strided_slice %116 {offsets = [0, 0], sizes = [256, 4], strides = [1, 1]} : vector<288x4xf32> to vector<256x4xf32>
    %c14_i32_35 = arith.constant 14 : i32
    %118 = vector.broadcast %c14_i32_35 : i32 to vector<256x1xi32>
    %119 = arith.cmpi sle, %14, %118 : vector<256x1xi32>
    %120 = arith.andi %90, %119 : vector<256x1xi1>
    %cst_36 = arith.constant 0.000000e+00 : f32
    %121 = vector.shape_cast %120 : vector<256x1xi1> to vector<256x1xi1>
    %122 = vector.broadcast %121 : vector<256x1xi1> to vector<256x4xi1>
    %123 = vector.broadcast %cst_36 : f32 to vector<256x4xf32>
    %124 = arith.select %122, %117, %123 : vector<256x4xi1>, vector<256x4xf32>
    %125 = arith.truncf %124 : vector<256x4xf32> to vector<256x4xbf16>
    %126 = vector.extract_strided_slice %8 {offsets = [2, 8, 0], sizes = [1, 4, 4], strides = [1, 1, 1]} : vector<3x12x4xbf16> to vector<1x4x4xbf16>
    %127 = vector.shape_cast %126 : vector<1x4x4xbf16> to vector<4x4xbf16>
    %cst_37 = arith.constant dense<0.000000e+00> : vector<256x4xf32>
    %128 = tpu.matmul %125, %127, %cst_37 {dimension_numbers = #tpu.dot_dimension_numbers<[1], [0], [0], [1], [0, 0, 1, 1], [], []>} : vector<256x4xbf16>, vector<4x4xbf16>, vector<256x4xf32> -> vector<256x4xf32>
    %129 = arith.addf %115, %128 : vector<256x4xf32>
    %c0_38 = arith.constant 0 : index
    %c0_39 = arith.constant 0 : index
    %130 = vector.load %arg6[%c0_38, %c0_39] : memref<1x4xf32, #tpu.memory_space<vmem>>, vector<1x4xf32>
    %131 = vector.broadcast %130 : vector<1x4xf32> to vector<256x4xf32>
    %132 = arith.addf %129, %131 : vector<256x4xf32>
    %cst_40 = arith.constant dense<0.000000e+00> : vector<4xf32>
    %133 = vector.multi_reduction <add>, %132, %cst_40 [0] : vector<256x4xf32> to vector<4xf32>
    %134 = vector.shape_cast %133 : vector<4xf32> to vector<1x1x1x4xf32>
    %c0_41 = arith.constant 0 : index
    %c0_42 = arith.constant 0 : index
    %c0_43 = arith.constant 0 : index
    %c0_44 = arith.constant 0 : index
    %135 = vector.load %arg8[%c0_41, %c0_42, %c0_43, %c0_44] : memref<1x1x1x4xf32, #tpu.memory_space<vmem>>, vector<1x1x1x4xf32>
    tpu.vector_store %arg8[%c0_41, %c0_42, %c0_43, %c0_44], %134 {strides = array<i32>} : memref<1x1x1x4xf32, #tpu.memory_space<vmem>>, vector<1x1x1x4xf32>,
    %136 = arith.mulf %132, %132 : vector<256x4xf32>
    %cst_45 = arith.constant dense<0.000000e+00> : vector<4xf32>
    %137 = vector.multi_reduction <add>, %136, %cst_45 [0] : vector<256x4xf32> to vector<4xf32>
    %138 = vector.shape_cast %137 : vector<4xf32> to vector<1x1x1x4xf32>
    %c0_46 = arith.constant 0 : index
    %c0_47 = arith.constant 0 : index
    %c0_48 = arith.constant 0 : index
    %c0_49 = arith.constant 0 : index
    %139 = vector.load %arg9[%c0_46, %c0_47, %c0_48, %c0_49] : memref<1x1x1x4xf32, #tpu.memory_space<vmem>>, vector<1x1x1x4xf32>
    tpu.vector_store %arg9[%c0_46, %c0_47, %c0_48, %c0_49], %138 {strides = array<i32>} : memref<1x1x1x4xf32, #tpu.memory_space<vmem>>, vector<1x1x1x4xf32>,
    %140 = arith.truncf %132 : vector<256x4xf32> to vector<256x4xbf16>
    %141 = vector.shape_cast %140 : vector<256x4xbf16> to vector<1x16x16x4xbf16>
    %c0_50 = arith.constant 0 : index
    %c0_51 = arith.constant 0 : index
    %c0_52 = arith.constant 0 : index
    %c0_53 = arith.constant 0 : index
    %142 = vector.load %arg7[%c0_50, %c0_51, %c0_52, %c0_53] : memref<1x16x16x4xbf16, #tpu.memory_space<vmem>>, vector<1x16x16x4xbf16>
    tpu.vector_store %arg7[%c0_50, %c0_51, %c0_52, %c0_53], %141 {strides = array<i32>} : memref<1x16x16x4xbf16, #tpu.memory_space<vmem>>, vector<1x16x16x4xbf16>,
    return
  }
  func.func @transform_0(%arg0: i32, %arg1: i32) -> (i32, i32, i32, i32) {
    %c0_i32 = arith.constant 0 : i32
    %c0_i32_0 = arith.constant 0 : i32
    %c0_i32_1 = arith.constant 0 : i32
    return %arg0, %arg1, %c0_i32, %c0_i32_0 : i32, i32, i32, i32
  }
  func.func @transform_1(%arg0: i32, %arg1: i32) -> (i32, i32, i32, i32) {
    %c16_i32 = arith.constant 16 : i32
    %0 = arith.muli %arg1, %c16_i32 : i32
    %c1_i32 = arith.constant 1 : i32
    %1 = arith.subi %0, %c1_i32 : i32
    %c0_i32 = arith.constant 0 : i32
    %2 = arith.maxsi %1, %c0_i32 : i32
    %c0_i32_0 = arith.constant 0 : i32
    %c0_i32_1 = arith.constant 0 : i32
    %c0_i32_2 = arith.constant 0 : i32
    return %arg0, %2, %c0_i32_0, %c0_i32_1 : i32, i32, i32, i32
  }
  func.func @transform_2(%arg0: i32, %arg1: i32) -> (i32, i32, i32, i32) {
    %c1_i32 = arith.constant 1 : i32
    %0 = arith.addi %arg1, %c1_i32 : i32
    %c16_i32 = arith.constant 16 : i32
    %1 = arith.muli %0, %c16_i32 : i32
    %c15_i32 = arith.constant 15 : i32
    %2 = arith.minsi %1, %c15_i32 : i32
    %c0_i32 = arith.constant 0 : i32
    %c0_i32_0 = arith.constant 0 : i32
    %c0_i32_1 = arith.constant 0 : i32
    return %arg0, %2, %c0_i32, %c0_i32_0 : i32, i32, i32, i32
  }
  func.func @transform_3(%arg0: i32, %arg1: i32) -> (i32, i32, i32) {
    %c0_i32 = arith.constant 0 : i32
    %c0_i32_0 = arith.constant 0 : i32
    %c0_i32_1 = arith.constant 0 : i32
    %c0_i32_2 = arith.constant 0 : i32
    return %c0_i32, %c0_i32_0, %c0_i32_1 : i32, i32, i32
  }
  func.func @transform_4(%arg0: i32, %arg1: i32) -> (i32, i32) {
    %c0_i32 = arith.constant 0 : i32
    %c0_i32_0 = arith.constant 0 : i32
    %c0_i32_1 = arith.constant 0 : i32
    return %c0_i32, %c0_i32_0 : i32, i32
  }
  func.func @transform_5(%arg0: i32, %arg1: i32) -> (i32, i32, i32, i32) {
    %c0_i32 = arith.constant 0 : i32
    %c0_i32_0 = arith.constant 0 : i32
    %c0_i32_1 = arith.constant 0 : i32
    return %arg0, %arg1, %c0_i32, %c0_i32_0 : i32, i32, i32, i32
  }
  func.func @transform_6(%arg0: i32, %arg1: i32) -> (i32, i32, i32, i32) {
    %c0_i32 = arith.constant 0 : i32
    %c0_i32_0 = arith.constant 0 : i32
    %c0_i32_1 = arith.constant 0 : i32
    return %arg0, %arg1, %c0_i32, %c0_i32_0 : i32, i32, i32, i32
  }
  func.func @transform_7(%arg0: i32, %arg1: i32) -> (i32, i32, i32, i32) {
    %c0_i32 = arith.constant 0 : i32
    %c0_i32_0 = arith.constant 0 : i32
    %c0_i32_1 = arith.constant 0 : i32
    return %arg0, %arg1, %c0_i32, %c0_i32_0 : i32, i32, i32, i32
  }
}

module attributes {stable_mosaic.version = 11 : i64} {
  func.func @_bn_residual_relu_kernel(%arg0: i32, %arg1: i32, %arg2: memref<1x16x16x4xf32, #tpu.memory_space<vmem>>, %arg3: memref<1x16x16x4xf32, #tpu.memory_space<vmem>>, %arg4: memref<1x4xf32, #tpu.memory_space<vmem>>, %arg5: memref<1x4xf32, #tpu.memory_space<vmem>>, %arg6: memref<1x16x16x4xf32, #tpu.memory_space<vmem>>) attributes {dimension_semantics = [#tpu.dimension_semantics<parallel>, #tpu.dimension_semantics<parallel>], iteration_bounds = array<i64: 2, 1>, scalar_prefetch = 0 : i64, scratch_operands = 0 : i64, tpu.core_type = #tpu.core_type<tc>, window_params = [{transform_indices = @transform_0, window_bounds = array<i64: 1, 16, 16, 4>}, {transform_indices = @transform_1, window_bounds = array<i64: 1, 16, 16, 4>}, {pipeline_mode = #tpu.pipeline_mode<synchronous>, transform_indices = @transform_2, window_bounds = array<i64: 1, 4>}, {pipeline_mode = #tpu.pipeline_mode<synchronous>, transform_indices = @transform_3, window_bounds = array<i64: 1, 4>}, {transform_indices = @transform_4, window_bounds = array<i64: 1, 16, 16, 4>}]} {
    %c0 = arith.constant 0 : index
    %c0_0 = arith.constant 0 : index
    %c0_1 = arith.constant 0 : index
    %c0_2 = arith.constant 0 : index
    %0 = vector.load %arg2[%c0, %c0_0, %c0_1, %c0_2] : memref<1x16x16x4xf32, #tpu.memory_space<vmem>>, vector<1x16x16x4xf32>
    %1 = vector.shape_cast %0 : vector<1x16x16x4xf32> to vector<256x4xf32>
    %c0_3 = arith.constant 0 : index
    %c0_4 = arith.constant 0 : index
    %2 = vector.load %arg4[%c0_3, %c0_4] : memref<1x4xf32, #tpu.memory_space<vmem>>, vector<1x4xf32>
    %3 = vector.broadcast %2 : vector<1x4xf32> to vector<256x4xf32>
    %4 = arith.mulf %1, %3 : vector<256x4xf32>
    %c0_5 = arith.constant 0 : index
    %c0_6 = arith.constant 0 : index
    %5 = vector.load %arg5[%c0_5, %c0_6] : memref<1x4xf32, #tpu.memory_space<vmem>>, vector<1x4xf32>
    %6 = vector.broadcast %5 : vector<1x4xf32> to vector<256x4xf32>
    %7 = arith.addf %4, %6 : vector<256x4xf32>
    %c0_7 = arith.constant 0 : index
    %c0_8 = arith.constant 0 : index
    %c0_9 = arith.constant 0 : index
    %c0_10 = arith.constant 0 : index
    %8 = vector.load %arg3[%c0_7, %c0_8, %c0_9, %c0_10] : memref<1x16x16x4xf32, #tpu.memory_space<vmem>>, vector<1x16x16x4xf32>
    %9 = vector.shape_cast %8 : vector<1x16x16x4xf32> to vector<256x4xf32>
    %10 = arith.addf %7, %9 : vector<256x4xf32>
    %cst = arith.constant 0.000000e+00 : f32
    %11 = vector.broadcast %cst : f32 to vector<256x4xf32>
    %12 = arith.maximumf %10, %11 : vector<256x4xf32>
    %13 = vector.shape_cast %12 : vector<256x4xf32> to vector<1x16x16x4xf32>
    %c0_11 = arith.constant 0 : index
    %c0_12 = arith.constant 0 : index
    %c0_13 = arith.constant 0 : index
    %c0_14 = arith.constant 0 : index
    %14 = vector.load %arg6[%c0_11, %c0_12, %c0_13, %c0_14] : memref<1x16x16x4xf32, #tpu.memory_space<vmem>>, vector<1x16x16x4xf32>
    tpu.vector_store %arg6[%c0_11, %c0_12, %c0_13, %c0_14], %13 {strides = array<i32>} : memref<1x16x16x4xf32, #tpu.memory_space<vmem>>, vector<1x16x16x4xf32>,
    return
  }
  func.func @transform_0(%arg0: i32, %arg1: i32) -> (i32, i32, i32, i32) {
    %c0_i32 = arith.constant 0 : i32
    %c0_i32_0 = arith.constant 0 : i32
    %c0_i32_1 = arith.constant 0 : i32
    return %arg0, %arg1, %c0_i32, %c0_i32_0 : i32, i32, i32, i32
  }
  func.func @transform_1(%arg0: i32, %arg1: i32) -> (i32, i32, i32, i32) {
    %c0_i32 = arith.constant 0 : i32
    %c0_i32_0 = arith.constant 0 : i32
    %c0_i32_1 = arith.constant 0 : i32
    return %arg0, %arg1, %c0_i32, %c0_i32_0 : i32, i32, i32, i32
  }
  func.func @transform_2(%arg0: i32, %arg1: i32) -> (i32, i32) {
    %c0_i32 = arith.constant 0 : i32
    %c0_i32_0 = arith.constant 0 : i32
    %c0_i32_1 = arith.constant 0 : i32
    return %c0_i32, %c0_i32_0 : i32, i32
  }
  func.func @transform_3(%arg0: i32, %arg1: i32) -> (i32, i32) {
    %c0_i32 = arith.constant 0 : i32
    %c0_i32_0 = arith.constant 0 : i32
    %c0_i32_1 = arith.constant 0 : i32
    return %c0_i32, %c0_i32_0 : i32, i32
  }
  func.func @transform_4(%arg0: i32, %arg1: i32) -> (i32, i32, i32, i32) {
    %c0_i32 = arith.constant 0 : i32
    %c0_i32_0 = arith.constant 0 : i32
    %c0_i32_1 = arith.constant 0 : i32
    return %arg0, %arg1, %c0_i32, %c0_i32_0 : i32, i32, i32, i32
  }
}

module attributes {stable_mosaic.version = 11 : i64} {
  func.func @_bn_relu_conv2_stats_kernel(%arg0: i32, %arg1: i32, %arg2: memref<1x16x16x4xbf16, #tpu.memory_space<vmem>>, %arg3: memref<1x1x16x4xbf16, #tpu.memory_space<vmem>>, %arg4: memref<1x1x16x4xbf16, #tpu.memory_space<vmem>>, %arg5: memref<1x4xf32, #tpu.memory_space<vmem>>, %arg6: memref<1x4xf32, #tpu.memory_space<vmem>>, %arg7: memref<3x12x4xbf16, #tpu.memory_space<vmem>>, %arg8: memref<1x4xf32, #tpu.memory_space<vmem>>, %arg9: memref<1x16x16x4xf32, #tpu.memory_space<vmem>>, %arg10: memref<1x1x1x4xf32, #tpu.memory_space<vmem>>, %arg11: memref<1x1x1x4xf32, #tpu.memory_space<vmem>>) attributes {dimension_semantics = [#tpu.dimension_semantics<parallel>, #tpu.dimension_semantics<parallel>], iteration_bounds = array<i64: 2, 1>, scalar_prefetch = 0 : i64, scratch_operands = 0 : i64, tpu.core_type = #tpu.core_type<tc>, window_params = [{transform_indices = @transform_0, window_bounds = array<i64: 1, 16, 16, 4>}, {transform_indices = @transform_1, window_bounds = array<i64: 1, 1, 16, 4>}, {transform_indices = @transform_2, window_bounds = array<i64: 1, 1, 16, 4>}, {pipeline_mode = #tpu.pipeline_mode<synchronous>, transform_indices = @transform_3, window_bounds = array<i64: 1, 4>}, {pipeline_mode = #tpu.pipeline_mode<synchronous>, transform_indices = @transform_4, window_bounds = array<i64: 1, 4>}, {pipeline_mode = #tpu.pipeline_mode<synchronous>, transform_indices = @transform_5, window_bounds = array<i64: 3, 12, 4>}, {pipeline_mode = #tpu.pipeline_mode<synchronous>, transform_indices = @transform_6, window_bounds = array<i64: 1, 4>}, {transform_indices = @transform_7, window_bounds = array<i64: 1, 16, 16, 4>}, {transform_indices = @transform_8, window_bounds = array<i64: 1, 1, 1, 4>}, {transform_indices = @transform_9, window_bounds = array<i64: 1, 1, 1, 4>}]} {
    %c16_i32 = arith.constant 16 : i32
    %0 = arith.muli %arg1, %c16_i32 : i32
    %c0 = arith.constant 0 : index
    %c0_0 = arith.constant 0 : index
    %c0_1 = arith.constant 0 : index
    %c0_2 = arith.constant 0 : index
    %1 = vector.load %arg3[%c0, %c0_0, %c0_1, %c0_2] : memref<1x1x16x4xbf16, #tpu.memory_space<vmem>>, vector<1x1x16x4xbf16>
    %2 = vector.shape_cast %1 : vector<1x1x16x4xbf16> to vector<16x4xbf16>
    %c0_3 = arith.constant 0 : index
    %c0_4 = arith.constant 0 : index
    %c0_5 = arith.constant 0 : index
    %c0_6 = arith.constant 0 : index
    %3 = vector.load %arg2[%c0_3, %c0_4, %c0_5, %c0_6] : memref<1x16x16x4xbf16, #tpu.memory_space<vmem>>, vector<1x16x16x4xbf16>
    %4 = vector.shape_cast %3 : vector<1x16x16x4xbf16> to vector<256x4xbf16>
    %c0_7 = arith.constant 0 : index
    %c0_8 = arith.constant 0 : index
    %c0_9 = arith.constant 0 : index
    %c0_10 = arith.constant 0 : index
    %5 = vector.load %arg4[%c0_7, %c0_8, %c0_9, %c0_10] : memref<1x1x16x4xbf16, #tpu.memory_space<vmem>>, vector<1x1x16x4xbf16>
    %6 = vector.shape_cast %5 : vector<1x1x16x4xbf16> to vector<16x4xbf16>
    %7 = tpu.concatenate %2, %4, %6 in 0 : vector<16x4xbf16>, vector<256x4xbf16>, vector<16x4xbf16> -> vector<288x4xbf16>
    %8 = arith.extf %7 : vector<288x4xbf16> to vector<288x4xf32>
    %c0_11 = arith.constant 0 : index
    %c0_12 = arith.constant 0 : index
    %9 = vector.load %arg5[%c0_11, %c0_12] : memref<1x4xf32, #tpu.memory_space<vmem>>, vector<1x4xf32>
    %10 = vector.broadcast %9 : vector<1x4xf32> to vector<288x4xf32>
    %11 = arith.mulf %8, %10 : vector<288x4xf32>
    %c0_13 = arith.constant 0 : index
    %c0_14 = arith.constant 0 : index
    %12 = vector.load %arg6[%c0_13, %c0_14] : memref<1x4xf32, #tpu.memory_space<vmem>>, vector<1x4xf32>
    %13 = vector.broadcast %12 : vector<1x4xf32> to vector<288x4xf32>
    %14 = arith.addf %11, %13 : vector<288x4xf32>
    %cst = arith.constant 0.000000e+00 : f32
    %15 = vector.broadcast %cst : f32 to vector<288x4xf32>
    %16 = arith.maximumf %14, %15 : vector<288x4xf32>
    %c0_15 = arith.constant 0 : index
    %c0_16 = arith.constant 0 : index
    %c0_17 = arith.constant 0 : index
    %17 = vector.load %arg7[%c0_15, %c0_16, %c0_17] : memref<3x12x4xbf16, #tpu.memory_space<vmem>>, vector<3x12x4xbf16>
    %18 = tpu.iota {dimensions = array<i32: 0>} : vector<16x16x1xi32>
    %19 = vector.shape_cast %18 : vector<16x16x1xi32> to vector<256x1xi32>
    %20 = vector.broadcast %0 : i32 to vector<256x1xi32>
    %21 = arith.addi %19, %20 : vector<256x1xi32>
    %22 = tpu.iota {dimensions = array<i32: 1>} : vector<16x16x1xi32>
    %23 = vector.shape_cast %22 : vector<16x16x1xi32> to vector<256x1xi32>
    %cst_18 = arith.constant 0.000000e+00 : f32
    %24 = vector.broadcast %cst_18 : f32 to vector<256x4xf32>
    %c1_i32 = arith.constant 1 : i32
    %25 = vector.broadcast %c1_i32 : i32 to vector<256x1xi32>
    %26 = arith.cmpi sge, %21, %25 : vector<256x1xi32>
    %c1_i32_19 = arith.constant 1 : i32
    %27 = tpu.dynamic_rotate %16 by %c1_i32_19 dim 0 : vector<288x4xf32>, i32 -> vector<288x4xf32>
    %28 = vector.extract_strided_slice %27 {offsets = [0, 0], sizes = [256, 4], strides = [1, 1]} : vector<288x4xf32> to vector<256x4xf32>
    %c1_i32_20 = arith.constant 1 : i32
    %29 = vector.broadcast %c1_i32_20 : i32 to vector<256x1xi32>
    %30 = arith.cmpi sge, %23, %29 : vector<256x1xi32>
    %31 = arith.andi %26, %30 : vector<256x1xi1>
    %cst_21 = arith.constant 0.000000e+00 : f32
    %32 = vector.shape_cast %31 : vector<256x1xi1> to vector<256x1xi1>
    %33 = vector.broadcast %32 : vector<256x1xi1> to vector<256x4xi1>
    %34 = vector.broadcast %cst_21 : f32 to vector<256x4xf32>
    %35 = arith.select %33, %28, %34 : vector<256x4xi1>, vector<256x4xf32>
    %36 = arith.truncf %35 : vector<256x4xf32> to vector<256x4xbf16>
    %37 = vector.extract_strided_slice %17 {offsets = [0, 0, 0], sizes = [1, 4, 4], strides = [1, 1, 1]} : vector<3x12x4xbf16> to vector<1x4x4xbf16>
    %38 = vector.shape_cast %37 : vector<1x4x4xbf16> to vector<4x4xbf16>
    %cst_22 = arith.constant dense<0.000000e+00> : vector<256x4xf32>
    %39 = tpu.matmul %36, %38, %cst_22 {dimension_numbers = #tpu.dot_dimension_numbers<[1], [0], [0], [1], [0, 0, 1, 1], [], []>} : vector<256x4xbf16>, vector<4x4xbf16>, vector<256x4xf32> -> vector<256x4xf32>
    %40 = arith.addf %24, %39 : vector<256x4xf32>
    %41 = vector.extract_strided_slice %16 {offsets = [0, 0], sizes = [256, 4], strides = [1, 1]} : vector<288x4xf32> to vector<256x4xf32>
    %cst_23 = arith.constant 0.000000e+00 : f32
    %42 = vector.shape_cast %26 : vector<256x1xi1> to vector<256x1xi1>
    %43 = vector.broadcast %42 : vector<256x1xi1> to vector<256x4xi1>
    %44 = vector.broadcast %cst_23 : f32 to vector<256x4xf32>
    %45 = arith.select %43, %41, %44 : vector<256x4xi1>, vector<256x4xf32>
    %46 = arith.truncf %45 : vector<256x4xf32> to vector<256x4xbf16>
    %47 = vector.extract_strided_slice %17 {offsets = [0, 4, 0], sizes = [1, 4, 4], strides = [1, 1, 1]} : vector<3x12x4xbf16> to vector<1x4x4xbf16>
    %48 = vector.shape_cast %47 : vector<1x4x4xbf16> to vector<4x4xbf16>
    %cst_24 = arith.constant dense<0.000000e+00> : vector<256x4xf32>
    %49 = tpu.matmul %46, %48, %cst_24 {dimension_numbers = #tpu.dot_dimension_numbers<[1], [0], [0], [1], [0, 0, 1, 1], [], []>} : vector<256x4xbf16>, vector<4x4xbf16>, vector<256x4xf32> -> vector<256x4xf32>
    %50 = arith.addf %40, %49 : vector<256x4xf32>
    %c287_i32 = arith.constant 287 : i32
    %51 = tpu.dynamic_rotate %16 by %c287_i32 dim 0 : vector<288x4xf32>, i32 -> vector<288x4xf32>
    %52 = vector.extract_strided_slice %51 {offsets = [0, 0], sizes = [256, 4], strides = [1, 1]} : vector<288x4xf32> to vector<256x4xf32>
    %c14_i32 = arith.constant 14 : i32
    %53 = vector.broadcast %c14_i32 : i32 to vector<256x1xi32>
    %54 = arith.cmpi sle, %23, %53 : vector<256x1xi32>
    %55 = arith.andi %26, %54 : vector<256x1xi1>
    %cst_25 = arith.constant 0.000000e+00 : f32
    %56 = vector.shape_cast %55 : vector<256x1xi1> to vector<256x1xi1>
    %57 = vector.broadcast %56 : vector<256x1xi1> to vector<256x4xi1>
    %58 = vector.broadcast %cst_25 : f32 to vector<256x4xf32>
    %59 = arith.select %57, %52, %58 : vector<256x4xi1>, vector<256x4xf32>
    %60 = arith.truncf %59 : vector<256x4xf32> to vector<256x4xbf16>
    %61 = vector.extract_strided_slice %17 {offsets = [0, 8, 0], sizes = [1, 4, 4], strides = [1, 1, 1]} : vector<3x12x4xbf16> to vector<1x4x4xbf16>
    %62 = vector.shape_cast %61 : vector<1x4x4xbf16> to vector<4x4xbf16>
    %cst_26 = arith.constant dense<0.000000e+00> : vector<256x4xf32>
    %63 = tpu.matmul %60, %62, %cst_26 {dimension_numbers = #tpu.dot_dimension_numbers<[1], [0], [0], [1], [0, 0, 1, 1], [], []>} : vector<256x4xbf16>, vector<4x4xbf16>, vector<256x4xf32> -> vector<256x4xf32>
    %64 = arith.addf %50, %63 : vector<256x4xf32>
    %c273_i32 = arith.constant 273 : i32
    %65 = tpu.dynamic_rotate %16 by %c273_i32 dim 0 : vector<288x4xf32>, i32 -> vector<288x4xf32>
    %66 = vector.extract_strided_slice %65 {offsets = [0, 0], sizes = [256, 4], strides = [1, 1]} : vector<288x4xf32> to vector<256x4xf32>
    %c1_i32_27 = arith.constant 1 : i32
    %67 = vector.broadcast %c1_i32_27 : i32 to vector<256x1xi32>
    %68 = arith.cmpi sge, %23, %67 : vector<256x1xi32>
    %cst_28 = arith.constant 0.000000e+00 : f32
    %69 = vector.shape_cast %68 : vector<256x1xi1> to vector<256x1xi1>
    %70 = vector.broadcast %69 : vector<256x1xi1> to vector<256x4xi1>
    %71 = vector.broadcast %cst_28 : f32 to vector<256x4xf32>
    %72 = arith.select %70, %66, %71 : vector<256x4xi1>, vector<256x4xf32>
    %73 = arith.truncf %72 : vector<256x4xf32> to vector<256x4xbf16>
    %74 = vector.extract_strided_slice %17 {offsets = [1, 0, 0], sizes = [1, 4, 4], strides = [1, 1, 1]} : vector<3x12x4xbf16> to vector<1x4x4xbf16>
    %75 = vector.shape_cast %74 : vector<1x4x4xbf16> to vector<4x4xbf16>
    %cst_29 = arith.constant dense<0.000000e+00> : vector<256x4xf32>
    %76 = tpu.matmul %73, %75, %cst_29 {dimension_numbers = #tpu.dot_dimension_numbers<[1], [0], [0], [1], [0, 0, 1, 1], [], []>} : vector<256x4xbf16>, vector<4x4xbf16>, vector<256x4xf32> -> vector<256x4xf32>
    %77 = arith.addf %64, %76 : vector<256x4xf32>
    %c272_i32 = arith.constant 272 : i32
    %78 = tpu.dynamic_rotate %16 by %c272_i32 dim 0 : vector<288x4xf32>, i32 -> vector<288x4xf32>
    %79 = vector.extract_strided_slice %78 {offsets = [0, 0], sizes = [256, 4], strides = [1, 1]} : vector<288x4xf32> to vector<256x4xf32>
    %80 = arith.truncf %79 : vector<256x4xf32> to vector<256x4xbf16>
    %81 = vector.extract_strided_slice %17 {offsets = [1, 4, 0], sizes = [1, 4, 4], strides = [1, 1, 1]} : vector<3x12x4xbf16> to vector<1x4x4xbf16>
    %82 = vector.shape_cast %81 : vector<1x4x4xbf16> to vector<4x4xbf16>
    %cst_30 = arith.constant dense<0.000000e+00> : vector<256x4xf32>
    %83 = tpu.matmul %80, %82, %cst_30 {dimension_numbers = #tpu.dot_dimension_numbers<[1], [0], [0], [1], [0, 0, 1, 1], [], []>} : vector<256x4xbf16>, vector<4x4xbf16>, vector<256x4xf32> -> vector<256x4xf32>
    %84 = arith.addf %77, %83 : vector<256x4xf32>
    %c271_i32 = arith.constant 271 : i32
    %85 = tpu.dynamic_rotate %16 by %c271_i32 dim 0 : vector<288x4xf32>, i32 -> vector<288x4xf32>
    %86 = vector.extract_strided_slice %85 {offsets = [0, 0], sizes = [256, 4], strides = [1, 1]} : vector<288x4xf32> to vector<256x4xf32>
    %c14_i32_31 = arith.constant 14 : i32
    %87 = vector.broadcast %c14_i32_31 : i32 to vector<256x1xi32>
    %88 = arith.cmpi sle, %23, %87 : vector<256x1xi32>
    %cst_32 = arith.constant 0.000000e+00 : f32
    %89 = vector.shape_cast %88 : vector<256x1xi1> to vector<256x1xi1>
    %90 = vector.broadcast %89 : vector<256x1xi1> to vector<256x4xi1>
    %91 = vector.broadcast %cst_32 : f32 to vector<256x4xf32>
    %92 = arith.select %90, %86, %91 : vector<256x4xi1>, vector<256x4xf32>
    %93 = arith.truncf %92 : vector<256x4xf32> to vector<256x4xbf16>
    %94 = vector.extract_strided_slice %17 {offsets = [1, 8, 0], sizes = [1, 4, 4], strides = [1, 1, 1]} : vector<3x12x4xbf16> to vector<1x4x4xbf16>
    %95 = vector.shape_cast %94 : vector<1x4x4xbf16> to vector<4x4xbf16>
    %cst_33 = arith.constant dense<0.000000e+00> : vector<256x4xf32>
    %96 = tpu.matmul %93, %95, %cst_33 {dimension_numbers = #tpu.dot_dimension_numbers<[1], [0], [0], [1], [0, 0, 1, 1], [], []>} : vector<256x4xbf16>, vector<4x4xbf16>, vector<256x4xf32> -> vector<256x4xf32>
    %97 = arith.addf %84, %96 : vector<256x4xf32>
    %c14_i32_34 = arith.constant 14 : i32
    %98 = vector.broadcast %c14_i32_34 : i32 to vector<256x1xi32>
    %99 = arith.cmpi sle, %21, %98 : vector<256x1xi32>
    %c257_i32 = arith.constant 257 : i32
    %100 = tpu.dynamic_rotate %16 by %c257_i32 dim 0 : vector<288x4xf32>, i32 -> vector<288x4xf32>
    %101 = vector.extract_strided_slice %100 {offsets = [0, 0], sizes = [256, 4], strides = [1, 1]} : vector<288x4xf32> to vector<256x4xf32>
    %c1_i32_35 = arith.constant 1 : i32
    %102 = vector.broadcast %c1_i32_35 : i32 to vector<256x1xi32>
    %103 = arith.cmpi sge, %23, %102 : vector<256x1xi32>
    %104 = arith.andi %99, %103 : vector<256x1xi1>
    %cst_36 = arith.constant 0.000000e+00 : f32
    %105 = vector.shape_cast %104 : vector<256x1xi1> to vector<256x1xi1>
    %106 = vector.broadcast %105 : vector<256x1xi1> to vector<256x4xi1>
    %107 = vector.broadcast %cst_36 : f32 to vector<256x4xf32>
    %108 = arith.select %106, %101, %107 : vector<256x4xi1>, vector<256x4xf32>
    %109 = arith.truncf %108 : vector<256x4xf32> to vector<256x4xbf16>
    %110 = vector.extract_strided_slice %17 {offsets = [2, 0, 0], sizes = [1, 4, 4], strides = [1, 1, 1]} : vector<3x12x4xbf16> to vector<1x4x4xbf16>
    %111 = vector.shape_cast %110 : vector<1x4x4xbf16> to vector<4x4xbf16>
    %cst_37 = arith.constant dense<0.000000e+00> : vector<256x4xf32>
    %112 = tpu.matmul %109, %111, %cst_37 {dimension_numbers = #tpu.dot_dimension_numbers<[1], [0], [0], [1], [0, 0, 1, 1], [], []>} : vector<256x4xbf16>, vector<4x4xbf16>, vector<256x4xf32> -> vector<256x4xf32>
    %113 = arith.addf %97, %112 : vector<256x4xf32>
    %c256_i32 = arith.constant 256 : i32
    %114 = tpu.dynamic_rotate %16 by %c256_i32 dim 0 : vector<288x4xf32>, i32 -> vector<288x4xf32>
    %115 = vector.extract_strided_slice %114 {offsets = [0, 0], sizes = [256, 4], strides = [1, 1]} : vector<288x4xf32> to vector<256x4xf32>
    %cst_38 = arith.constant 0.000000e+00 : f32
    %116 = vector.shape_cast %99 : vector<256x1xi1> to vector<256x1xi1>
    %117 = vector.broadcast %116 : vector<256x1xi1> to vector<256x4xi1>
    %118 = vector.broadcast %cst_38 : f32 to vector<256x4xf32>
    %119 = arith.select %117, %115, %118 : vector<256x4xi1>, vector<256x4xf32>
    %120 = arith.truncf %119 : vector<256x4xf32> to vector<256x4xbf16>
    %121 = vector.extract_strided_slice %17 {offsets = [2, 4, 0], sizes = [1, 4, 4], strides = [1, 1, 1]} : vector<3x12x4xbf16> to vector<1x4x4xbf16>
    %122 = vector.shape_cast %121 : vector<1x4x4xbf16> to vector<4x4xbf16>
    %cst_39 = arith.constant dense<0.000000e+00> : vector<256x4xf32>
    %123 = tpu.matmul %120, %122, %cst_39 {dimension_numbers = #tpu.dot_dimension_numbers<[1], [0], [0], [1], [0, 0, 1, 1], [], []>} : vector<256x4xbf16>, vector<4x4xbf16>, vector<256x4xf32> -> vector<256x4xf32>
    %124 = arith.addf %113, %123 : vector<256x4xf32>
    %c255_i32 = arith.constant 255 : i32
    %125 = tpu.dynamic_rotate %16 by %c255_i32 dim 0 : vector<288x4xf32>, i32 -> vector<288x4xf32>
    %126 = vector.extract_strided_slice %125 {offsets = [0, 0], sizes = [256, 4], strides = [1, 1]} : vector<288x4xf32> to vector<256x4xf32>
    %c14_i32_40 = arith.constant 14 : i32
    %127 = vector.broadcast %c14_i32_40 : i32 to vector<256x1xi32>
    %128 = arith.cmpi sle, %23, %127 : vector<256x1xi32>
    %129 = arith.andi %99, %128 : vector<256x1xi1>
    %cst_41 = arith.constant 0.000000e+00 : f32
    %130 = vector.shape_cast %129 : vector<256x1xi1> to vector<256x1xi1>
    %131 = vector.broadcast %130 : vector<256x1xi1> to vector<256x4xi1>
    %132 = vector.broadcast %cst_41 : f32 to vector<256x4xf32>
    %133 = arith.select %131, %126, %132 : vector<256x4xi1>, vector<256x4xf32>
    %134 = arith.truncf %133 : vector<256x4xf32> to vector<256x4xbf16>
    %135 = vector.extract_strided_slice %17 {offsets = [2, 8, 0], sizes = [1, 4, 4], strides = [1, 1, 1]} : vector<3x12x4xbf16> to vector<1x4x4xbf16>
    %136 = vector.shape_cast %135 : vector<1x4x4xbf16> to vector<4x4xbf16>
    %cst_42 = arith.constant dense<0.000000e+00> : vector<256x4xf32>
    %137 = tpu.matmul %134, %136, %cst_42 {dimension_numbers = #tpu.dot_dimension_numbers<[1], [0], [0], [1], [0, 0, 1, 1], [], []>} : vector<256x4xbf16>, vector<4x4xbf16>, vector<256x4xf32> -> vector<256x4xf32>
    %138 = arith.addf %124, %137 : vector<256x4xf32>
    %c0_43 = arith.constant 0 : index
    %c0_44 = arith.constant 0 : index
    %139 = vector.load %arg8[%c0_43, %c0_44] : memref<1x4xf32, #tpu.memory_space<vmem>>, vector<1x4xf32>
    %140 = vector.broadcast %139 : vector<1x4xf32> to vector<256x4xf32>
    %141 = arith.addf %138, %140 : vector<256x4xf32>
    %cst_45 = arith.constant dense<0.000000e+00> : vector<4xf32>
    %142 = vector.multi_reduction <add>, %141, %cst_45 [0] : vector<256x4xf32> to vector<4xf32>
    %143 = vector.shape_cast %142 : vector<4xf32> to vector<1x1x1x4xf32>
    %c0_46 = arith.constant 0 : index
    %c0_47 = arith.constant 0 : index
    %c0_48 = arith.constant 0 : index
    %c0_49 = arith.constant 0 : index
    %144 = vector.load %arg10[%c0_46, %c0_47, %c0_48, %c0_49] : memref<1x1x1x4xf32, #tpu.memory_space<vmem>>, vector<1x1x1x4xf32>
    tpu.vector_store %arg10[%c0_46, %c0_47, %c0_48, %c0_49], %143 {strides = array<i32>} : memref<1x1x1x4xf32, #tpu.memory_space<vmem>>, vector<1x1x1x4xf32>,
    %145 = arith.mulf %141, %141 : vector<256x4xf32>
    %cst_50 = arith.constant dense<0.000000e+00> : vector<4xf32>
    %146 = vector.multi_reduction <add>, %145, %cst_50 [0] : vector<256x4xf32> to vector<4xf32>
    %147 = vector.shape_cast %146 : vector<4xf32> to vector<1x1x1x4xf32>
    %c0_51 = arith.constant 0 : index
    %c0_52 = arith.constant 0 : index
    %c0_53 = arith.constant 0 : index
    %c0_54 = arith.constant 0 : index
    %148 = vector.load %arg11[%c0_51, %c0_52, %c0_53, %c0_54] : memref<1x1x1x4xf32, #tpu.memory_space<vmem>>, vector<1x1x1x4xf32>
    tpu.vector_store %arg11[%c0_51, %c0_52, %c0_53, %c0_54], %147 {strides = array<i32>} : memref<1x1x1x4xf32, #tpu.memory_space<vmem>>, vector<1x1x1x4xf32>,
    %149 = vector.shape_cast %141 : vector<256x4xf32> to vector<1x16x16x4xf32>
    %c0_55 = arith.constant 0 : index
    %c0_56 = arith.constant 0 : index
    %c0_57 = arith.constant 0 : index
    %c0_58 = arith.constant 0 : index
    %150 = vector.load %arg9[%c0_55, %c0_56, %c0_57, %c0_58] : memref<1x16x16x4xf32, #tpu.memory_space<vmem>>, vector<1x16x16x4xf32>
    tpu.vector_store %arg9[%c0_55, %c0_56, %c0_57, %c0_58], %149 {strides = array<i32>} : memref<1x16x16x4xf32, #tpu.memory_space<vmem>>, vector<1x16x16x4xf32>,
    return
  }
  func.func @transform_0(%arg0: i32, %arg1: i32) -> (i32, i32, i32, i32) {
    %c0_i32 = arith.constant 0 : i32
    %c0_i32_0 = arith.constant 0 : i32
    %c0_i32_1 = arith.constant 0 : i32
    return %arg0, %arg1, %c0_i32, %c0_i32_0 : i32, i32, i32, i32
  }
  func.func @transform_1(%arg0: i32, %arg1: i32) -> (i32, i32, i32, i32) {
    %c16_i32 = arith.constant 16 : i32
    %0 = arith.muli %arg1, %c16_i32 : i32
    %c1_i32 = arith.constant 1 : i32
    %1 = arith.subi %0, %c1_i32 : i32
    %c0_i32 = arith.constant 0 : i32
    %2 = arith.maxsi %1, %c0_i32 : i32
    %c0_i32_0 = arith.constant 0 : i32
    %c0_i32_1 = arith.constant 0 : i32
    %c0_i32_2 = arith.constant 0 : i32
    return %arg0, %2, %c0_i32_0, %c0_i32_1 : i32, i32, i32, i32
  }
  func.func @transform_2(%arg0: i32, %arg1: i32) -> (i32, i32, i32, i32) {
    %c1_i32 = arith.constant 1 : i32
    %0 = arith.addi %arg1, %c1_i32 : i32
    %c16_i32 = arith.constant 16 : i32
    %1 = arith.muli %0, %c16_i32 : i32
    %c15_i32 = arith.constant 15 : i32
    %2 = arith.minsi %1, %c15_i32 : i32
    %c0_i32 = arith.constant 0 : i32
    %c0_i32_0 = arith.constant 0 : i32
    %c0_i32_1 = arith.constant 0 : i32
    return %arg0, %2, %c0_i32, %c0_i32_0 : i32, i32, i32, i32
  }
  func.func @transform_3(%arg0: i32, %arg1: i32) -> (i32, i32) {
    %c0_i32 = arith.constant 0 : i32
    %c0_i32_0 = arith.constant 0 : i32
    %c0_i32_1 = arith.constant 0 : i32
    return %c0_i32, %c0_i32_0 : i32, i32
  }
  func.func @transform_4(%arg0: i32, %arg1: i32) -> (i32, i32) {
    %c0_i32 = arith.constant 0 : i32
    %c0_i32_0 = arith.constant 0 : i32
    %c0_i32_1 = arith.constant 0 : i32
    return %c0_i32, %c0_i32_0 : i32, i32
  }
  func.func @transform_5(%arg0: i32, %arg1: i32) -> (i32, i32, i32) {
    %c0_i32 = arith.constant 0 : i32
    %c0_i32_0 = arith.constant 0 : i32
    %c0_i32_1 = arith.constant 0 : i32
    %c0_i32_2 = arith.constant 0 : i32
    return %c0_i32, %c0_i32_0, %c0_i32_1 : i32, i32, i32
  }
  func.func @transform_6(%arg0: i32, %arg1: i32) -> (i32, i32) {
    %c0_i32 = arith.constant 0 : i32
    %c0_i32_0 = arith.constant 0 : i32
    %c0_i32_1 = arith.constant 0 : i32
    return %c0_i32, %c0_i32_0 : i32, i32
  }
  func.func @transform_7(%arg0: i32, %arg1: i32) -> (i32, i32, i32, i32) {
    %c0_i32 = arith.constant 0 : i32
    %c0_i32_0 = arith.constant 0 : i32
    %c0_i32_1 = arith.constant 0 : i32
    return %arg0, %arg1, %c0_i32, %c0_i32_0 : i32, i32, i32, i32
  }
  func.func @transform_8(%arg0: i32, %arg1: i32) -> (i32, i32, i32, i32) {
    %c0_i32 = arith.constant 0 : i32
    %c0_i32_0 = arith.constant 0 : i32
    %c0_i32_1 = arith.constant 0 : i32
    return %arg0, %arg1, %c0_i32, %c0_i32_0 : i32, i32, i32, i32
  }
  func.func @transform_9(%arg0: i32, %arg1: i32) -> (i32, i32, i32, i32) {
    %c0_i32 = arith.constant 0 : i32
    %c0_i32_0 = arith.constant 0 : i32
    %c0_i32_1 = arith.constant 0 : i32
    return %arg0, %arg1, %c0_i32, %c0_i32_0 : i32, i32, i32, i32
  }
}

</mosaic_0001>

<llo_original>
// kernel: resblock_forward.5
$region0: #{resblock_forward.5}
  #allocation0 [shape = 'u32[]', space=smem, size = 0x4, offset = 0x4, fixed_abs, tag = 'smem constant byte address 0x4 - core index']
  #allocation1 [shape = 'u32[144,128]{1,0:T(1,128)}', space=vmem, size = 0x12000, scoped, tag = 'internal scratch']
  %s0 = inlined_call_operand.vmem [shape: f32[2,16,16,4], index: 0, kind: input, shape index: {}, may-alias: {0,4}]
  %s1 = inlined_call_operand.vmem [shape: f32[2,16,16,4], index: 1, kind: input, shape index: {}]
  %s2 = inlined_call_operand.vmem [shape: f32[1,4], index: 2, kind: input, shape index: {}]
  %s3 = inlined_call_operand.vmem [shape: f32[1,4], index: 3, kind: input, shape index: {}]
  %s4 = inlined_call_operand.vmem [shape: f32[2,16,16,4], index: 4, kind: output, shape index: {}, may-alias: {0,4}]
  %s5 = sld [smem:[#allocation0]]
  $region49: #{resblock_forward.5} parent=0
    _
  %s7 = ssub.s32 1, %s5
  %s8 = scalar_select 0, %s7, %s5
  loop: start=0, step=1, limit=4
  $region2: #{resblock_forward.5} parent=0 // loop_pre_header
    _
  $region3: #{resblock_forward.5} parent=0 // loop_header
    %s10 = sphi 0, %s14
    %p11 = scmp.ge.s32.totalorder %s10, 4
    %s17 = sphi 0, %s29
    %s18 = sphi 0, %s25
    %s19 = sphi 0, %s17
    %s20 = sphi 0, %s18
    %s21 = sphi 0, %s19
    %s22 = sphi 0, %s20
    %s34 = sphi 0, %s36
    %s37 = sphi 0, %s34
    %s38 = sphi 0, %s37
    %s54 = sphi 0, %s38
    %s62 = sphi 0, %s64
    %s65 = sphi 0, %s62
    %s66 = sphi 0, %s65
    %s82 = sphi 0, %s66
    %s86 = sphi 0, %s86
    %s88 = sphi 0, %s86
    %s89 = sphi 0, %s88
    %s103 = sphi 0, %s89
    %s107 = sphi 0, %s107
    %s109 = sphi 0, %s107
    %s110 = sphi 0, %s109
    %s124 = sphi 0, %s110
    %s132 = sphi 0, %s134
    %s135 = sphi 0, %s132
    %s136 = sphi 0, %s135
    %s152 = sphi 0, %s136
  $region4: #{resblock_forward.5} parent=0 // loop_header_branch
    %13 = sbr.rel (%p11) target = $region8
  $region5: #{resblock_forward.5} parent=0 // loop_body
    %s15 = ssub.s32 %s10, 1
    %s16 = ssub.s32 %s10, 2
    %s23 = sadd.s32 1, %s18
    %p24 = scmp.ge.s32.totalorder %s23, 1
    %s25 = scalar_select %p24, 0, %s23
    %s26 = sadd.s32 1, %s17
    %s27 = scalar_select %p24, %s26, %s17
    %p28 = scmp.ge.s32.totalorder %s27, 2
    %s29 = scalar_select %p28, 0, %s27
    %s30 = ssub.s32 %s17, %s29
    %s31 = ssub.s32 %s18, %s25
    %s32 = sor.u32 %s30, %s31
    %p33 = scmp.eq.s32.totalorder %s32, 0
    %s35 = sadd.s32 %s34, 1
    %s36 = scalar_select %p33, %s34, %s35
    %p39 = pneg %p33
    %p40 = scmp.eq.s32.totalorder %s10, 1
    %p41 = por %p39, %p40
    %p42 = scmp.ne.s32.totalorder %s34, %s37
    %p43 = scmp.eq.s32.totalorder %s10, 0
    %p44 = por %p42, %p43
    %p45 = scmp.ne.s32.totalorder %s34, %s37
    %p46 = scmp.eq.s32.totalorder %s15, 1
    %p47 = por %p45, %p46
    %p48 = scmp.ne.s32.totalorder %s37, %s38
    %p49 = scmp.eq.s32.totalorder %s15, 0
    %p50 = por %p48, %p49
    %p51 = scmp.ne.s32.totalorder %s37, %s38
    %p52 = scmp.eq.s32.totalorder %s16, 1
    %p53 = por %p51, %p52
    %p55 = scmp.ne.s32.totalorder %s38, %s54
    %p56 = scmp.eq.s32.totalorder %s16, 0
    %p57 = por %p55, %p56
    %s58 = ssub.s32 %s17, %s29
    %s59 = ssub.s32 %s18, %s25
    %s60 = sor.u32 %s58, %s59
    %p61 = scmp.eq.s32.totalorder %s60, 0
    %s63 = sadd.s32 %s62, 1
    %s64 = scalar_select %p61, %s62, %s63
    %p67 = pneg %p61
    %p68 = scmp.eq.s32.totalorder %s10, 1
    %p69 = por %p67, %p68
    %p70 = scmp.ne.s32.totalorder %s62, %s65
    %p71 = scmp.eq.s32.totalorder %s10, 0
    %p72 = por %p70, %p71
    %p73 = scmp.ne.s32.totalorder %s62, %s65
    %p74 = scmp.eq.s32.totalorder %s15, 1
    %p75 = por %p73, %p74
    %p76 = scmp.ne.s32.totalorder %s65, %s66
    %p77 = scmp.eq.s32.totalorder %s15, 0
    %p78 = por %p76, %p77
    %p79 = scmp.ne.s32.totalorder %s65, %s66
    %p80 = scmp.eq.s32.totalorder %s16, 1
    %p81 = por %p79, %p80
    %p83 = scmp.ne.s32.totalorder %s66, %s82
    %p84 = scmp.eq.s32.totalorder %s16, 0
    %p85 = por %p83, %p84
    %s87 = sadd.s32 %s86, 1
    %p90 = scmp.eq.s32.totalorder %s10, 1
    %p91 = scmp.ne.s32.totalorder %s86, %s88
    %p92 = scmp.eq.s32.totalorder %s10, 0
    %p93 = por %p91, %p92
    %p94 = scmp.ne.s32.totalorder %s86, %s88
    %p95 = scmp.eq.s32.totalorder %s15, 1
    %p96 = por %p94, %p95
    %p97 = scmp.ne.s32.totalorder %s88, %s89
    %p98 = scmp.eq.s32.totalorder %s15, 0
    %p99 = por %p97, %p98
    %p100 = scmp.ne.s32.totalorder %s88, %s89
    %p101 = scmp.eq.s32.totalorder %s16, 1
    %p102 = por %p100, %p101
    %p104 = scmp.ne.s32.totalorder %s89, %s103
    %p105 = scmp.eq.s32.totalorder %s16, 0
    %p106 = por %p104, %p105
    %s108 = sadd.s32 %s107, 1
    %p111 = scmp.eq.s32.totalorder %s10, 1
    %p112 = scmp.ne.s32.totalorder %s107, %s109
    %p113 = scmp.eq.s32.totalorder %s10, 0
    %p114 = por %p112, %p113
    %p115 = scmp.ne.s32.totalorder %s107, %s109
    %p116 = scmp.eq.s32.totalorder %s15, 1
    %p117 = por %p115, %p116
    %p118 = scmp.ne.s32.totalorder %s109, %s110
    %p119 = scmp.eq.s32.totalorder %s15, 0
    %p120 = por %p118, %p119
    %p121 = scmp.ne.s32.totalorder %s109, %s110
    %p122 = scmp.eq.s32.totalorder %s16, 1
    %p123 = por %p121, %p122
    %p125 = scmp.ne.s32.totalorder %s110, %s124
    %p126 = scmp.eq.s32.totalorder %s16, 0
    %p127 = por %p125, %p126
    %s128 = ssub.s32 %s17, %s29
    %s129 = ssub.s32 %s18, %s25
    %s130 = sor.u32 %s128, %s129
    %p131 = scmp.eq.s32.totalorder %s130, 0
    %s133 = sadd.s32 %s132, 1
    %s134 = scalar_select %p131, %s132, %s133
    %p137 = pneg %p131
    %p138 = scmp.eq.s32.totalorder %s10, 1
    %p139 = por %p137, %p138
    %p140 = scmp.ne.s32.totalorder %s132, %s135
    %p141 = scmp.eq.s32.totalorder %s10, 0
    %p142 = por %p140, %p141
    %p143 = scmp.ne.s32.totalorder %s132, %s135
    %p144 = scmp.eq.s32.totalorder %s15, 1
    %p145 = por %p143, %p144
    %p146 = scmp.ne.s32.totalorder %s135, %s136
    %p147 = scmp.eq.s32.totalorder %s15, 0
    %p148 = por %p146, %p147
    %p149 = scmp.ne.s32.totalorder %s135, %s136
    %p150 = scmp.eq.s32.totalorder %s16, 1
    %p151 = por %p149, %p150
    %p153 = scmp.ne.s32.totalorder %s136, %s152
    %p154 = scmp.eq.s32.totalorder %s16, 0
    %p155 = por %p153, %p154
    %p156 = scmp.le.s32.totalorder 1, %s10
    %p157 = scmp.lt.s32.totalorder %s10, 3
    %p158 = pnand %p156, %p157
    %p159 = pneg %p158
    // Predicated region
    $region9: #{resblock_forward.5} parent=5 // pred_check
      _
    $region10: #{resblock_forward.5} parent=5 // pred_check_branch
      %161 = sbr.rel (%p158) target = $region12
    $region11: #{resblock_forward.5} parent=5 // pred_region
      %s162 = ssub.s32 %s10, 1
      // Predicated region
      $region13: #{resblock_forward.5} parent=11 // pred_check
        %p163 = pneg %p99
      $region14: #{resblock_forward.5} parent=11 // pred_check_branch
        %165 = sbr.rel (%p163) target = $region16
      $region15: #{resblock_forward.5} parent=11 // pred_region
        _
      $region16: #{resblock_forward.5} parent=11 // pred_fallthru
        _
      // Predicated region
      $region17: #{resblock_forward.5} parent=11 // pred_check
        %p166 = pneg %p120
      $region18: #{resblock_forward.5} parent=11 // pred_check_branch
        %168 = sbr.rel (%p166) target = $region20
      $region19: #{resblock_forward.5} parent=11 // pred_region
        _
      $region20: #{resblock_forward.5} parent=11 // pred_fallthru
        _
    $region12: #{resblock_forward.5} parent=5 // pred_fallthru
      _
    %p169 = scmp.lt.s32.totalorder %s10, 2
    // Predicated region
    $region21: #{resblock_forward.5} parent=5 // pred_check
      %p170 = pneg %p169
    $region22: #{resblock_forward.5} parent=5 // pred_check_branch
      %172 = sbr.rel (%p170) target = $region24
    $region23: #{resblock_forward.5} parent=5 // pred_region
      // Predicated region
      $region25: #{resblock_forward.5} parent=23 // pred_check
        %p173 = pneg %p44
      $region26: #{resblock_forward.5} parent=23 // pred_check_branch
        %175 = sbr.rel (%p173) target = $region28
      $region27: #{resblock_forward.5} parent=23 // pred_region
        %s176 = smul.u32 16, %s18
        %p177 = scmp.lt.s32.totalorder %s17, 1
        %s178 = scalar_select %p177, %s17, 1
        %p179 = scmp.lt.s32.totalorder %s176, 15
        %s180 = scalar_select %p179, %s176, 15
        %s181 = smul.addr %s180, 2
        %s182 = smul.addr %s178, 32
        %s183 = sadd.s32 %s181, %s182
        %s184 = smul.addr %s183, 8
        %s185 = scalar_lea.vmem %s0, %s184
        %s186 = smul.u32 16, %s18
      $region28: #{resblock_forward.5} parent=23 // pred_fallthru
        _
      // Predicated region
      $region29: #{resblock_forward.5} parent=23 // pred_check
        %p187 = pneg %p72
      $region30: #{resblock_forward.5} parent=23 // pred_check_branch
        %189 = sbr.rel (%p187) target = $region32
      $region31: #{resblock_forward.5} parent=23 // pred_region
        %s190 = smul.u32 16, %s18
        %p191 = scmp.lt.s32.totalorder %s17, 1
        %s192 = scalar_select %p191, %s17, 1
        %p193 = scmp.lt.s32.totalorder %s190, 15
        %s194 = scalar_select %p193, %s190, 15
        %s195 = smul.addr %s194, 2
        %s196 = smul.addr %s192, 32
        %s197 = sadd.s32 %s195, %s196
        %s198 = smul.addr %s197, 8
        %s199 = scalar_lea.vmem %s1, %s198
        %s200 = smul.u32 16, %s18
      $region32: #{resblock_forward.5} parent=23 // pred_fallthru
        _
    $region24: #{resblock_forward.5} parent=5 // pred_fallthru
      _
    %p201 = scmp.le.s32.totalorder 1, %s10
    %p202 = scmp.lt.s32.totalorder %s10, 3
    %p203 = pnand %p201, %p202
    %p204 = pneg %p203
    // Predicated region
    $region33: #{resblock_forward.5} parent=5 // pred_check
      _
    $region34: #{resblock_forward.5} parent=5 // pred_check_branch
      %206 = sbr.rel (%p203) target = $region36
    $region35: #{resblock_forward.5} parent=5 // pred_region
      %s207 = ssub.s32 %s10, 1
      %s208 = smul.u32 16, %s20
      %p209 = scmp.lt.s32.totalorder %s19, 1
      %s210 = scalar_select %p209, %s19, 1
      %p211 = scmp.lt.s32.totalorder %s208, 15
      %s212 = scalar_select %p211, %s208, 15
      %s213 = smul.addr %s212, 2
      %s214 = smul.addr %s210, 32
      %s215 = sadd.s32 %s213, %s214
      %s216 = smul.addr %s215, 8
      %s217 = scalar_lea.vmem %s0, %s216
      %p218 = pneg %p50
      %p219 = pneg %p47
      %s220 = smul.u32 16, %s20
      %p221 = scmp.lt.s32.totalorder %s19, 1
      %s222 = scalar_select %p221, %s19, 1
      %p223 = scmp.lt.s32.totalorder %s220, 15
      %s224 = scalar_select %p223, %s220, 15
      %s225 = smul.addr %s224, 2
      %s226 = smul.addr %s222, 32
      %s227 = sadd.s32 %s225, %s226
      %s228 = smul.addr %s227, 8
      %s229 = scalar_lea.vmem %s1, %s228
      %p230 = pneg %p78
      %p231 = pneg %p75
      %p232 = pneg %p99
      %p233 = pneg %p96
      %p234 = pneg %p120
      %p235 = pneg %p117
      %p236 = pneg %p148
      %p237 = pneg %p145
      %s238 = smul.u32 16, %s20
      %p239 = scmp.lt.s32.totalorder %s19, 1
      %s240 = scalar_select %p239, %s19, 1
      %p241 = scmp.lt.s32.totalorder %s238, 15
      %s242 = scalar_select %p241, %s238, 15
      %s243 = smul.addr %s242, 2
      %s244 = smul.addr %s240, 32
      %s245 = sadd.s32 %s243, %s244
      %s246 = smul.addr %s245, 8
      %s247 = scalar_lea.vmem %s4, %s246
      %s248 = smul.u32 16, %s20
      %p249 = scmp.lt.s32.totalorder %s19, 1
      %s250 = scalar_select %p249, %s19, 1
      %p251 = scmp.lt.s32.totalorder %s248, 15
      %s252 = scalar_select %p251, %s248, 15
      %s253 = smul.addr %s252, 2
      %s254 = smul.addr %s250, 32
      %s255 = sadd.s32 %s253, %s254
      %s256 = smul.addr %s255, 8
      %s257 = scalar_lea.vmem %s0, %s256
      %s258 = smul.u32 16, %s20
      %s259 = smul.u32 16, %s20
      %p260 = scmp.lt.s32.totalorder %s19, 1
      %s261 = scalar_select %p260, %s19, 1
      %p262 = scmp.lt.s32.totalorder %s259, 15
      %s263 = scalar_select %p262, %s259, 15
      %s264 = smul.addr %s263, 2
      %s265 = smul.addr %s261, 32
      %s266 = sadd.s32 %s264, %s265
      %s267 = smul.addr %s266, 8
      %s268 = scalar_lea.vmem %s1, %s267
      %s269 = smul.u32 16, %s20
      %s270 = smul.u32 16, %s20
      %p271 = scmp.lt.s32.totalorder %s19, 1
      %s272 = scalar_select %p271, %s19, 1
      %p273 = scmp.lt.s32.totalorder %s270, 15
      %s274 = scalar_select %p273, %s270, 15
      %s275 = smul.addr %s274, 2
      %s276 = smul.addr %s272, 32
      %s277 = sadd.s32 %s275, %s276
      %s278 = smul.addr %s277, 8
      %s279 = scalar_lea.vmem %s4, %s278
      %s280 = smul.u32 16, %s20
      %v281 = vld [vmem:[%s257] sm:$0xff]
      %v282 = vld [vmem:[%s257 + $0x8] sm:$0xff]
      %v283 = vld [vmem:[%s257 + $0x10] sm:$0xff]
      %v284 = vld [vmem:[%s257 + $0x18] sm:$0xff]
      %v285 = vld [vmem:[%s257 + $0x20] sm:$0xff]
      %v286 = vld [vmem:[%s257 + $0x28] sm:$0xff]
      %v287 = vld [vmem:[%s257 + $0x30] sm:$0xff]
      %v288 = vld [vmem:[%s257 + $0x38] sm:$0xff]
      %v289 = vld [vmem:[%s257 + $0x40] sm:$0xff]
      %v290 = vld [vmem:[%s257 + $0x48] sm:$0xff]
      %v291 = vld [vmem:[%s257 + $0x50] sm:$0xff]
      %v292 = vld [vmem:[%s257 + $0x58] sm:$0xff]
      %v293 = vld [vmem:[%s257 + $0x60] sm:$0xff]
      %v294 = vld [vmem:[%s257 + $0x68] sm:$0xff]
      %v295 = vld [vmem:[%s257 + $0x70] sm:$0xff]
      %v296 = vld [vmem:[%s257 + $0x78] sm:$0xff]
      %v297 = vld [vmem:[%s257 + $0x80] sm:$0xff]
      %v298 = vld [vmem:[%s257 + $0x88] sm:$0xff]
      %v299 = vld [vmem:[%s257 + $0x90] sm:$0xff]
      %v300 = vld [vmem:[%s257 + $0x98] sm:$0xff]
      %v301 = vld [vmem:[%s257 + $0xa0] sm:$0xff]
      %v302 = vld [vmem:[%s257 + $0xa8] sm:$0xff]
      %v303 = vld [vmem:[%s257 + $0xb0] sm:$0xff]
      %v304 = vld [vmem:[%s257 + $0xb8] sm:$0xff]
      %v305 = vld [vmem:[%s257 + $0xc0] sm:$0xff]
      %v306 = vld [vmem:[%s257 + $0xc8] sm:$0xff]
      %v307 = vld [vmem:[%s257 + $0xd0] sm:$0xff]
      %v308 = vld [vmem:[%s257 + $0xd8] sm:$0xff]
      %v309 = vld [vmem:[%s257 + $0xe0] sm:$0xff]
      %v310 = vld [vmem:[%s257 + $0xe8] sm:$0xff]
      %v311 = vld [vmem:[%s257 + $0xf0] sm:$0xff]
      %v312 = vld [vmem:[%s257 + $0xf8] sm:$0xff]
      %v313 = vld [vmem:[%s2] sm:$0x1]
      %v315 = vlaneseq
      %v316 = vshrl.u32 %v315, 7
      %v317 = vsub.s32 0, %v316
      %v318 = vrot.slane %v313, %v317
      %v320 = vmul.f32 %v281, %v318
      %v321 = vmul.f32 %v282, %v318
      %v322 = vmul.f32 %v283, %v318
      %v323 = vmul.f32 %v284, %v318
      %v324 = vmul.f32 %v285, %v318
      %v325 = vmul.f32 %v286, %v318
      %v326 = vmul.f32 %v287, %v318
      %v327 = vmul.f32 %v288, %v318
      %v328 = vmul.f32 %v289, %v318
      %v329 = vmul.f32 %v290, %v318
      %v330 = vmul.f32 %v291, %v318
      %v331 = vmul.f32 %v292, %v318
      %v332 = vmul.f32 %v293, %v318
      %v333 = vmul.f32 %v294, %v318
      %v334 = vmul.f32 %v295, %v318
      %v335 = vmul.f32 %v296, %v318
      %v336 = vmul.f32 %v297, %v318
      %v337 = vmul.f32 %v298, %v318
      %v338 = vmul.f32 %v299, %v318
      %v339 = vmul.f32 %v300, %v318
      %v340 = vmul.f32 %v301, %v318
      %v341 = vmul.f32 %v302, %v318
      %v342 = vmul.f32 %v303, %v318
      %v343 = vmul.f32 %v304, %v318
      %v344 = vmul.f32 %v305, %v318
      %v345 = vmul.f32 %v306, %v318
      %v346 = vmul.f32 %v307, %v318
      %v347 = vmul.f32 %v308, %v318
      %v348 = vmul.f32 %v309, %v318
      %v349 = vmul.f32 %v310, %v318
      %v350 = vmul.f32 %v311, %v318
      %v351 = vmul.f32 %v312, %v318
      %v352 = vld [vmem:[%s3] sm:$0x1]
      %v354 = vlaneseq
      %v355 = vshrl.u32 %v354, 7
      %v356 = vsub.s32 0, %v355
      %v357 = vrot.slane %v352, %v356
      %v359 = vadd.f32 %v320, %v357
      %v360 = vadd.f32 %v321, %v357
      %v361 = vadd.f32 %v322, %v357
      %v362 = vadd.f32 %v323, %v357
      %v363 = vadd.f32 %v324, %v357
      %v364 = vadd.f32 %v325, %v357
      %v365 = vadd.f32 %v326, %v357
      %v366 = vadd.f32 %v327, %v357
      %v367 = vadd.f32 %v328, %v357
      %v368 = vadd.f32 %v329, %v357
      %v369 = vadd.f32 %v330, %v357
      %v370 = vadd.f32 %v331, %v357
      %v371 = vadd.f32 %v332, %v357
      %v372 = vadd.f32 %v333, %v357
      %v373 = vadd.f32 %v334, %v357
      %v374 = vadd.f32 %v335, %v357
      %v375 = vadd.f32 %v336, %v357
      %v376 = vadd.f32 %v337, %v357
      %v377 = vadd.f32 %v338, %v357
      %v378 = vadd.f32 %v339, %v357
      %v379 = vadd.f32 %v340, %v357
      %v380 = vadd.f32 %v341, %v357
      %v381 = vadd.f32 %v342, %v357
      %v382 = vadd.f32 %v343, %v357
      %v383 = vadd.f32 %v344, %v357
      %v384 = vadd.f32 %v345, %v357
      %v385 = vadd.f32 %v346, %v357
      %v386 = vadd.f32 %v347, %v357
      %v387 = vadd.f32 %v348, %v357
      %v388 = vadd.f32 %v349, %v357
      %v389 = vadd.f32 %v350, %v357
      %v390 = vadd.f32 %v351, %v357
      %v391 = vld [vmem:[%s268] sm:$0xff]
      %v392 = vld [vmem:[%s268 + $0x8] sm:$0xff]
      %v393 = vld [vmem:[%s268 + $0x10] sm:$0xff]
      %v394 = vld [vmem:[%s268 + $0x18] sm:$0xff]
      %v395 = vld [vmem:[%s268 + $0x20] sm:$0xff]
      %v396 = vld [vmem:[%s268 + $0x28] sm:$0xff]
      %v397 = vld [vmem:[%s268 + $0x30] sm:$0xff]
      %v398 = vld [vmem:[%s268 + $0x38] sm:$0xff]
      %v399 = vld [vmem:[%s268 + $0x40] sm:$0xff]
      %v400 = vld [vmem:[%s268 + $0x48] sm:$0xff]
      %v401 = vld [vmem:[%s268 + $0x50] sm:$0xff]
      %v402 = vld [vmem:[%s268 + $0x58] sm:$0xff]
      %v403 = vld [vmem:[%s268 + $0x60] sm:$0xff]
      %v404 = vld [vmem:[%s268 + $0x68] sm:$0xff]
      %v405 = vld [vmem:[%s268 + $0x70] sm:$0xff]
      %v406 = vld [vmem:[%s268 + $0x78] sm:$0xff]
      %v407 = vld [vmem:[%s268 + $0x80] sm:$0xff]
      %v408 = vld [vmem:[%s268 + $0x88] sm:$0xff]
      %v409 = vld [vmem:[%s268 + $0x90] sm:$0xff]
      %v410 = vld [vmem:[%s268 + $0x98] sm:$0xff]
      %v411 = vld [vmem:[%s268 + $0xa0] sm:$0xff]
      %v412 = vld [vmem:[%s268 + $0xa8] sm:$0xff]
      %v413 = vld [vmem:[%s268 + $0xb0] sm:$0xff]
      %v414 = vld [vmem:[%s268 + $0xb8] sm:$0xff]
      %v415 = vld [vmem:[%s268 + $0xc0] sm:$0xff]
      %v416 = vld [vmem:[%s268 + $0xc8] sm:$0xff]
      %v417 = vld [vmem:[%s268 + $0xd0] sm:$0xff]
      %v418 = vld [vmem:[%s268 + $0xd8] sm:$0xff]
      %v419 = vld [vmem:[%s268 + $0xe0] sm:$0xff]
      %v420 = vld [vmem:[%s268 + $0xe8] sm:$0xff]
      %v421 = vld [vmem:[%s268 + $0xf0] sm:$0xff]
      %v422 = vld [vmem:[%s268 + $0xf8] sm:$0xff]
      %v423 = vadd.f32 %v359, %v391
      %v424 = vadd.f32 %v360, %v392
      %v425 = vadd.f32 %v361, %v393
      %v426 = vadd.f32 %v362, %v394
      %v427 = vadd.f32 %v363, %v395
      %v428 = vadd.f32 %v364, %v396
      %v429 = vadd.f32 %v365, %v397
      %v430 = vadd.f32 %v366, %v398
      %v431 = vadd.f32 %v367, %v399
      %v432 = vadd.f32 %v368, %v400
      %v433 = vadd.f32 %v369, %v401
      %v434 = vadd.f32 %v370, %v402
      %v435 = vadd.f32 %v371, %v403
      %v436 = vadd.f32 %v372, %v404
      %v437 = vadd.f32 %v373, %v405
      %v438 = vadd.f32 %v374, %v406
      %v439 = vadd.f32 %v375, %v407
      %v440 = vadd.f32 %v376, %v408
      %v441 = vadd.f32 %v377, %v409
      %v442 = vadd.f32 %v378, %v410
      %v443 = vadd.f32 %v379, %v411
      %v444 = vadd.f32 %v380, %v412
      %v445 = vadd.f32 %v381, %v413
      %v446 = vadd.f32 %v382, %v414
      %v447 = vadd.f32 %v383, %v415
      %v448 = vadd.f32 %v384, %v416
      %v449 = vadd.f32 %v385, %v417
      %v450 = vadd.f32 %v386, %v418
      %v451 = vadd.f32 %v387, %v419
      %v452 = vadd.f32 %v388, %v420
      %v453 = vadd.f32 %v389, %v421
      %v454 = vadd.f32 %v390, %v422
      %v455 = vmax.f32 %v423, 0.0
      %v456 = vmax.f32 %v424, 0.0
      %v457 = vmax.f32 %v425, 0.0
      %v458 = vmax.f32 %v426, 0.0
      %v459 = vmax.f32 %v427, 0.0
      %v460 = vmax.f32 %v428, 0.0
      %v461 = vmax.f32 %v429, 0.0
      %v462 = vmax.f32 %v430, 0.0
      %v463 = vmax.f32 %v431, 0.0
      %v464 = vmax.f32 %v432, 0.0
      %v465 = vmax.f32 %v433, 0.0
      %v466 = vmax.f32 %v434, 0.0
      %v467 = vmax.f32 %v435, 0.0
      %v468 = vmax.f32 %v436, 0.0
      %v469 = vmax.f32 %v437, 0.0
      %v470 = vmax.f32 %v438, 0.0
      %v471 = vmax.f32 %v439, 0.0
      %v472 = vmax.f32 %v440, 0.0
      %v473 = vmax.f32 %v441, 0.0
      %v474 = vmax.f32 %v442, 0.0
      %v475 = vmax.f32 %v443, 0.0
      %v476 = vmax.f32 %v444, 0.0
      %v477 = vmax.f32 %v445, 0.0
      %v478 = vmax.f32 %v446, 0.0
      %v479 = vmax.f32 %v447, 0.0
      %v480 = vmax.f32 %v448, 0.0
      %v481 = vmax.f32 %v449, 0.0
      %v482 = vmax.f32 %v450, 0.0
      %v483 = vmax.f32 %v451, 0.0
      %v484 = vmax.f32 %v452, 0.0
      %v485 = vmax.f32 %v453, 0.0
      %v486 = vmax.f32 %v454, 0.0
      %vm487 = vcmask 31744
      %488 = vst.msk [vmem:[%s279] sm:$0xff] %vm487, %v455
      %489 = vst.msk [vmem:[%s279 + $0x8] sm:$0xff] %vm487, %v456
      %490 = vst.msk [vmem:[%s279 + $0x10] sm:$0xff] %vm487, %v457
      %491 = vst.msk [vmem:[%s279 + $0x18] sm:$0xff] %vm487, %v458
      %492 = vst.msk [vmem:[%s279 + $0x20] sm:$0xff] %vm487, %v459
      %493 = vst.msk [vmem:[%s279 + $0x28] sm:$0xff] %vm487, %v460
      %494 = vst.msk [vmem:[%s279 + $0x30] sm:$0xff] %vm487, %v461
      %495 = vst.msk [vmem:[%s279 + $0x38] sm:$0xff] %vm487, %v462
      %496 = vst.msk [vmem:[%s279 + $0x40] sm:$0xff] %vm487, %v463
      %497 = vst.msk [vmem:[%s279 + $0x48] sm:$0xff] %vm487, %v464
      %498 = vst.msk [vmem:[%s279 + $0x50] sm:$0xff] %vm487, %v465
      %499 = vst.msk [vmem:[%s279 + $0x58] sm:$0xff] %vm487, %v466
      %500 = vst.msk [vmem:[%s279 + $0x60] sm:$0xff] %vm487, %v467
      %501 = vst.msk [vmem:[%s279 + $0x68] sm:$0xff] %vm487, %v468
      %502 = vst.msk [vmem:[%s279 + $0x70] sm:$0xff] %vm487, %v469
      %503 = vst.msk [vmem:[%s279 + $0x78] sm:$0xff] %vm487, %v470
      %504 = vst.msk [vmem:[%s279 + $0x80] sm:$0xff] %vm487, %v471
      %505 = vst.msk [vmem:[%s279 + $0x88] sm:$0xff] %vm487, %v472
      %506 = vst.msk [vmem:[%s279 + $0x90] sm:$0xff] %vm487, %v473
      %507 = vst.msk [vmem:[%s279 + $0x98] sm:$0xff] %vm487, %v474
      %508 = vst.msk [vmem:[%s279 + $0xa0] sm:$0xff] %vm487, %v475
      %509 = vst.msk [vmem:[%s279 + $0xa8] sm:$0xff] %vm487, %v476
      %510 = vst.msk [vmem:[%s279 + $0xb0] sm:$0xff] %vm487, %v477
      %511 = vst.msk [vmem:[%s279 + $0xb8] sm:$0xff] %vm487, %v478
      %512 = vst.msk [vmem:[%s279 + $0xc0] sm:$0xff] %vm487, %v479
      %513 = vst.msk [vmem:[%s279 + $0xc8] sm:$0xff] %vm487, %v480
      %514 = vst.msk [vmem:[%s279 + $0xd0] sm:$0xff] %vm487, %v481
      %515 = vst.msk [vmem:[%s279 + $0xd8] sm:$0xff] %vm487, %v482
      %516 = vst.msk [vmem:[%s279 + $0xe0] sm:$0xff] %vm487, %v483
      %517 = vst.msk [vmem:[%s279 + $0xe8] sm:$0xff] %vm487, %v484
      %518 = vst.msk [vmem:[%s279 + $0xf0] sm:$0xff] %vm487, %v485
      %519 = vst.msk [vmem:[%s279 + $0xf8] sm:$0xff] %vm487, %v486
      %s520 = smul.u32 16, %s20
      %p521 = scmp.lt.s32.totalorder %s19, 1
      %s522 = scalar_select %p521, %s19, 1
      %p523 = scmp.lt.s32.totalorder %s520, 15
      %s524 = scalar_select %p523, %s520, 15
      %s525 = smul.addr %s524, 2
      %s526 = smul.addr %s522, 32
      %s527 = sadd.s32 %s525, %s526
      %s528 = smul.addr %s527, 8
      %s529 = scalar_lea.vmem %s4, %s528
      // Predicated region
      $region37: #{resblock_forward.5} parent=35 // pred_check
        %p530 = pneg %p145
      $region38: #{resblock_forward.5} parent=35 // pred_check_branch
        %532 = sbr.rel (%p530) target = $region40
      $region39: #{resblock_forward.5} parent=35 // pred_region
        %s533 = smul.u32 16, %s20
      $region40: #{resblock_forward.5} parent=35 // pred_fallthru
        _
    $region36: #{resblock_forward.5} parent=5 // pred_fallthru
      _
    %p534 = scmp.le.s32.totalorder 2, %s10
    // Predicated region
    $region41: #{resblock_forward.5} parent=5 // pred_check
      %p535 = pneg %p534
    $region42: #{resblock_forward.5} parent=5 // pred_check_branch
      %537 = sbr.rel (%p535) target = $region44
    $region43: #{resblock_forward.5} parent=5 // pred_region
      %s538 = ssub.s32 %s10, 2
      // Predicated region
      $region45: #{resblock_forward.5} parent=43 // pred_check
        %p539 = pneg %p151
      $region46: #{resblock_forward.5} parent=43 // pred_check_branch
        %541 = sbr.rel (%p539) target = $region48
      $region47: #{resblock_forward.5} parent=43 // pred_region
        %s542 = smul.u32 16, %s22
        %p543 = scmp.lt.s32.totalorder %s21, 1
        %s544 = scalar_select %p543, %s21, 1
        %p545 = scmp.lt.s32.totalorder %s542, 15
        %s546 = scalar_select %p545, %s542, 15
        %s547 = smul.addr %s546, 2
        %s548 = smul.addr %s544, 32
        %s549 = sadd.s32 %s547, %s548
        %s550 = smul.addr %s549, 8
        %s551 = scalar_lea.vmem %s4, %s550
      $region48: #{resblock_forward.5} parent=43 // pred_fallthru
        _
    $region44: #{resblock_forward.5} parent=5 // pred_fallthru
      _
  $region6: #{resblock_forward.5} parent=0 // loop_footer
    %s14 = sadd.s32 1, %s10
  $region7: #{resblock_forward.5} parent=0 // loop_footer_branch
    %9 = sbr.rel target = $region3
  $region8: #{resblock_forward.5} parent=0 // loop_exit
    _

// kernel: resblock_forward.4
$region0: #{resblock_forward.4}
  #allocation0 [shape = 'u32[]', space=smem, size = 0x4, offset = 0x4, fixed_abs, tag = 'smem constant byte address 0x4 - core index']
  #allocation1 [shape = 'u32[144,128]{1,0:T(1,128)}', space=vmem, size = 0x12000, scoped, tag = 'internal scratch']
  %s0 = inlined_call_operand.vmem [shape: bf16[2,16,16,4], index: 0, kind: input, shape index: {}, may-alias: {0,1,2}]
  %s1 = inlined_call_operand.vmem [shape: bf16[2,16,16,4], index: 1, kind: input, shape index: {}, may-alias: {0,1,2}]
  %s2 = inlined_call_operand.vmem [shape: bf16[2,16,16,4], index: 2, kind: input, shape index: {}, may-alias: {0,1,2}]
  %s3 = inlined_call_operand.vmem [shape: f32[1,4], index: 3, kind: input, shape index: {}]
  %s4 = inlined_call_operand.vmem [shape: f32[1,4], index: 4, kind: input, shape index: {}]
  %s5 = inlined_call_operand.vmem [shape: bf16[3,12,4], index: 5, kind: input, shape index: {}]
  %s6 = inlined_call_operand.vmem [shape: f32[1,4], index: 6, kind: input, shape index: {}]
  %s7 = inlined_call_operand.vmem [shape: f32[2,16,16,4], index: 7, kind: output, shape index: {0}]
  %s8 = inlined_call_operand.vmem [shape: f32[2,1,1,4], index: 8, kind: output, shape index: {1}]
  %s9 = inlined_call_operand.vmem [shape: f32[2,1,1,4], index: 9, kind: output, shape index: {2}]
  %10 = xla_tuple %s7, %s8, %s9
  %s11 = sld [smem:[#allocation0]]
  $region77: #{resblock_forward.4} parent=0
    _
  %s13 = ssub.s32 1, %s11
  %s14 = scalar_select 0, %s13, %s11
  loop: start=0, step=1, limit=4
  $region2: #{resblock_forward.4} parent=0 // loop_pre_header
    _
  $region3: #{resblock_forward.4} parent=0 // loop_header
    %s16 = sphi 0, %s20
    %p17 = scmp.ge.s32.totalorder %s16, 4
    %s23 = sphi 0, %s35
    %s24 = sphi 0, %s31
    %s25 = sphi 0, %s23
    %s26 = sphi 0, %s24
    %s27 = sphi 0, %s25
    %s28 = sphi 0, %s26
    %s40 = sphi 0, %s42
    %s43 = sphi 0, %s40
    %s44 = sphi 0, %s43
    %s60 = sphi 0, %s44
    %s76 = sphi 0, %s78
    %s79 = sphi 0, %s76
    %s80 = sphi 0, %s79
    %s96 = sphi 0, %s80
    %s112 = sphi 0, %s114
    %s115 = sphi 0, %s112
    %s116 = sphi 0, %s115
    %s132 = sphi 0, %s116
    %s136 = sphi 0, %s136
    %s138 = sphi 0, %s136
    %s139 = sphi 0, %s138
    %s153 = sphi 0, %s139
    %s157 = sphi 0, %s157
    %s159 = sphi 0, %s157
    %s160 = sphi 0, %s159
    %s174 = sphi 0, %s160
    %s178 = sphi 0, %s178
    %s180 = sphi 0, %s178
    %s181 = sphi 0, %s180
    %s195 = sphi 0, %s181
    %s199 = sphi 0, %s199
    %s201 = sphi 0, %s199
    %s202 = sphi 0, %s201
    %s216 = sphi 0, %s202
    %s224 = sphi 0, %s226
    %s227 = sphi 0, %s224
    %s228 = sphi 0, %s227
    %s244 = sphi 0, %s228
    %s252 = sphi 0, %s254
    %s255 = sphi 0, %s252
    %s256 = sphi 0, %s255
    %s272 = sphi 0, %s256
    %s280 = sphi 0, %s282
    %s283 = sphi 0, %s280
    %s284 = sphi 0, %s283
    %s300 = sphi 0, %s284
  $region4: #{resblock_forward.4} parent=0 // loop_header_branch
    %19 = sbr.rel (%p17) target = $region8
  $region5: #{resblock_forward.4} parent=0 // loop_body
    %s21 = ssub.s32 %s16, 1
    %s22 = ssub.s32 %s16, 2
    %s29 = sadd.s32 1, %s24
    %p30 = scmp.ge.s32.totalorder %s29, 1
    %s31 = scalar_select %p30, 0, %s29
    %s32 = sadd.s32 1, %s23
    %s33 = scalar_select %p30, %s32, %s23
    %p34 = scmp.ge.s32.totalorder %s33, 2
    %s35 = scalar_select %p34, 0, %s33
    %s36 = ssub.s32 %s23, %s35
    %s37 = ssub.s32 %s24, %s31
    %s38 = sor.u32 %s36, %s37
    %p39 = scmp.eq.s32.totalorder %s38, 0
    %s41 = sadd.s32 %s40, 1
    %s42 = scalar_select %p39, %s40, %s41
    %p45 = pneg %p39
    %p46 = scmp.eq.s32.totalorder %s16, 1
    %p47 = por %p45, %p46
    %p48 = scmp.ne.s32.totalorder %s40, %s43
    %p49 = scmp.eq.s32.totalorder %s16, 0
    %p50 = por %p48, %p49
    %p51 = scmp.ne.s32.totalorder %s40, %s43
    %p52 = scmp.eq.s32.totalorder %s21, 1
    %p53 = por %p51, %p52
    %p54 = scmp.ne.s32.totalorder %s43, %s44
    %p55 = scmp.eq.s32.totalorder %s21, 0
    %p56 = por %p54, %p55
    %p57 = scmp.ne.s32.totalorder %s43, %s44
    %p58 = scmp.eq.s32.totalorder %s22, 1
    %p59 = por %p57, %p58
    %p61 = scmp.ne.s32.totalorder %s44, %s60
    %p62 = scmp.eq.s32.totalorder %s22, 0
    %p63 = por %p61, %p62
    %s64 = smul.u32 %s24, 16
    %s65 = ssub.s32 %s64, 1
    %p66 = scmp.gt.s32.totalorder %s65, 0
    %s67 = scalar_select %p66, %s65, 0
    %s68 = smul.u32 %s31, 16
    %s69 = ssub.s32 %s68, 1
    %p70 = scmp.gt.s32.totalorder %s69, 0
    %s71 = scalar_select %p70, %s69, 0
    %s72 = ssub.s32 %s23, %s35
    %s73 = ssub.s32 %s67, %s71
    %s74 = sor.u32 %s72, %s73
    %p75 = scmp.eq.s32.totalorder %s74, 0
    %s77 = sadd.s32 %s76, 1
    %s78 = scalar_select %p75, %s76, %s77
    %p81 = pneg %p75
    %p82 = scmp.eq.s32.totalorder %s16, 1
    %p83 = por %p81, %p82
    %p84 = scmp.ne.s32.totalorder %s76, %s79
    %p85 = scmp.eq.s32.totalorder %s16, 0
    %p86 = por %p84, %p85
    %p87 = scmp.ne.s32.totalorder %s76, %s79
    %p88 = scmp.eq.s32.totalorder %s21, 1
    %p89 = por %p87, %p88
    %p90 = scmp.ne.s32.totalorder %s79, %s80
    %p91 = scmp.eq.s32.totalorder %s21, 0
    %p92 = por %p90, %p91
    %p93 = scmp.ne.s32.totalorder %s79, %s80
    %p94 = scmp.eq.s32.totalorder %s22, 1
    %p95 = por %p93, %p94
    %p97 = scmp.ne.s32.totalorder %s80, %s96
    %p98 = scmp.eq.s32.totalorder %s22, 0
    %p99 = por %p97, %p98
    %s100 = sadd.s32 %s24, 1
    %s101 = smul.u32 %s100, 16
    %p102 = scmp.lt.s32.totalorder %s101, 15
    %s103 = scalar_select %p102, %s101, 15
    %s104 = sadd.s32 %s31, 1
    %s105 = smul.u32 %s104, 16
    %p106 = scmp.lt.s32.totalorder %s105, 15
    %s107 = scalar_select %p106, %s105, 15
    %s108 = ssub.s32 %s23, %s35
    %s109 = ssub.s32 %s103, %s107
    %s110 = sor.u32 %s108, %s109
    %p111 = scmp.eq.s32.totalorder %s110, 0
    %s113 = sadd.s32 %s112, 1
    %s114 = scalar_select %p111, %s112, %s113
    %p117 = pneg %p111
    %p118 = scmp.eq.s32.totalorder %s16, 1
    %p119 = por %p117, %p118
    %p120 = scmp.ne.s32.totalorder %s112, %s115
    %p121 = scmp.eq.s32.totalorder %s16, 0
    %p122 = por %p120, %p121
    %p123 = scmp.ne.s32.totalorder %s112, %s115
    %p124 = scmp.eq.s32.totalorder %s21, 1
    %p125 = por %p123, %p124
    %p126 = scmp.ne.s32.totalorder %s115, %s116
    %p127 = scmp.eq.s32.totalorder %s21, 0
    %p128 = por %p126, %p127
    %p129 = scmp.ne.s32.totalorder %s115, %s116
    %p130 = scmp.eq.s32.totalorder %s22, 1
    %p131 = por %p129, %p130
    %p133 = scmp.ne.s32.totalorder %s116, %s132
    %p134 = scmp.eq.s32.totalorder %s22, 0
    %p135 = por %p133, %p134
    %s137 = sadd.s32 %s136, 1
    %p140 = scmp.eq.s32.totalorder %s16, 1
    %p141 = scmp.ne.s32.totalorder %s136, %s138
    %p142 = scmp.eq.s32.totalorder %s16, 0
    %p143 = por %p141, %p142
    %p144 = scmp.ne.s32.totalorder %s136, %s138
    %p145 = scmp.eq.s32.totalorder %s21, 1
    %p146 = por %p144, %p145
    %p147 = scmp.ne.s32.totalorder %s138, %s139
    %p148 = scmp.eq.s32.totalorder %s21, 0
    %p149 = por %p147, %p148
    %p150 = scmp.ne.s32.totalorder %s138, %s139
    %p151 = scmp.eq.s32.totalorder %s22, 1
    %p152 = por %p150, %p151
    %p154 = scmp.ne.s32.totalorder %s139, %s153
    %p155 = scmp.eq.s32.totalorder %s22, 0
    %p156 = por %p154, %p155
    %s158 = sadd.s32 %s157, 1
    %p161 = scmp.eq.s32.totalorder %s16, 1
    %p162 = scmp.ne.s32.totalorder %s157, %s159
    %p163 = scmp.eq.s32.totalorder %s16, 0
    %p164 = por %p162, %p163
    %p165 = scmp.ne.s32.totalorder %s157, %s159
    %p166 = scmp.eq.s32.totalorder %s21, 1
    %p167 = por %p165, %p166
    %p168 = scmp.ne.s32.totalorder %s159, %s160
    %p169 = scmp.eq.s32.totalorder %s21, 0
    %p170 = por %p168, %p169
    %p171 = scmp.ne.s32.totalorder %s159, %s160
    %p172 = scmp.eq.s32.totalorder %s22, 1
    %p173 = por %p171, %p172
    %p175 = scmp.ne.s32.totalorder %s160, %s174
    %p176 = scmp.eq.s32.totalorder %s22, 0
    %p177 = por %p175, %p176
    %s179 = sadd.s32 %s178, 1
    %p182 = scmp.eq.s32.totalorder %s16, 1
    %p183 = scmp.ne.s32.totalorder %s178, %s180
    %p184 = scmp.eq.s32.totalorder %s16, 0
    %p185 = por %p183, %p184
    %p186 = scmp.ne.s32.totalorder %s178, %s180
    %p187 = scmp.eq.s32.totalorder %s21, 1
    %p188 = por %p186, %p187
    %p189 = scmp.ne.s32.totalorder %s180, %s181
    %p190 = scmp.eq.s32.totalorder %s21, 0
    %p191 = por %p189, %p190
    %p192 = scmp.ne.s32.totalorder %s180, %s181
    %p193 = scmp.eq.s32.totalorder %s22, 1
    %p194 = por %p192, %p193
    %p196 = scmp.ne.s32.totalorder %s181, %s195
    %p197 = scmp.eq.s32.totalorder %s22, 0
    %p198 = por %p196, %p197
    %s200 = sadd.s32 %s199, 1
    %p203 = scmp.eq.s32.totalorder %s16, 1
    %p204 = scmp.ne.s32.totalorder %s199, %s201
    %p205 = scmp.eq.s32.totalorder %s16, 0
    %p206 = por %p204, %p205
    %p207 = scmp.ne.s32.totalorder %s199, %s201
    %p208 = scmp.eq.s32.totalorder %s21, 1
    %p209 = por %p207, %p208
    %p210 = scmp.ne.s32.totalorder %s201, %s202
    %p211 = scmp.eq.s32.totalorder %s21, 0
    %p212 = por %p210, %p211
    %p213 = scmp.ne.s32.totalorder %s201, %s202
    %p214 = scmp.eq.s32.totalorder %s22, 1
    %p215 = por %p213, %p214
    %p217 = scmp.ne.s32.totalorder %s202, %s216
    %p218 = scmp.eq.s32.totalorder %s22, 0
    %p219 = por %p217, %p218
    %s220 = ssub.s32 %s23, %s35
    %s221 = ssub.s32 %s24, %s31
    %s222 = sor.u32 %s220, %s221
    %p223 = scmp.eq.s32.totalorder %s222, 0
    %s225 = sadd.s32 %s224, 1
    %s226 = scalar_select %p223, %s224, %s225
    %p229 = pneg %p223
    %p230 = scmp.eq.s32.totalorder %s16, 1
    %p231 = por %p229, %p230
    %p232 = scmp.ne.s32.totalorder %s224, %s227
    %p233 = scmp.eq.s32.totalorder %s16, 0
    %p234 = por %p232, %p233
    %p235 = scmp.ne.s32.totalorder %s224, %s227
    %p236 = scmp.eq.s32.totalorder %s21, 1
    %p237 = por %p235, %p236
    %p238 = scmp.ne.s32.totalorder %s227, %s228
    %p239 = scmp.eq.s32.totalorder %s21, 0
    %p240 = por %p238, %p239
    %p241 = scmp.ne.s32.totalorder %s227, %s228
    %p242 = scmp.eq.s32.totalorder %s22, 1
    %p243 = por %p241, %p242
    %p245 = scmp.ne.s32.totalorder %s228, %s244
    %p246 = scmp.eq.s32.totalorder %s22, 0
    %p247 = por %p245, %p246
    %s248 = ssub.s32 %s23, %s35
    %s249 = ssub.s32 %s24, %s31
    %s250 = sor.u32 %s248, %s249
    %p251 = scmp.eq.s32.totalorder %s250, 0
    %s253 = sadd.s32 %s252, 1
    %s254 = scalar_select %p251, %s252, %s253
    %p257 = pneg %p251
    %p258 = scmp.eq.s32.totalorder %s16, 1
    %p259 = por %p257, %p258
    %p260 = scmp.ne.s32.totalorder %s252, %s255
    %p261 = scmp.eq.s32.totalorder %s16, 0
    %p262 = por %p260, %p261
    %p263 = scmp.ne.s32.totalorder %s252, %s255
    %p264 = scmp.eq.s32.totalorder %s21, 1
    %p265 = por %p263, %p264
    %p266 = scmp.ne.s32.totalorder %s255, %s256
    %p267 = scmp.eq.s32.totalorder %s21, 0
    %p268 = por %p266, %p267
    %p269 = scmp.ne.s32.totalorder %s255, %s256
    %p270 = scmp.eq.s32.totalorder %s22, 1
    %p271 = por %p269, %p270
    %p273 = scmp.ne.s32.totalorder %s256, %s272
    %p274 = scmp.eq.s32.totalorder %s22, 0
    %p275 = por %p273, %p274
    %s276 = ssub.s32 %s23, %s35
    %s277 = ssub.s32 %s24, %s31
    %s278 = sor.u32 %s276, %s277
    %p279 = scmp.eq.s32.totalorder %s278, 0
    %s281 = sadd.s32 %s280, 1
    %s282 = scalar_select %p279, %s280, %s281
    %p285 = pneg %p279
    %p286 = scmp.eq.s32.totalorder %s16, 1
    %p287 = por %p285, %p286
    %p288 = scmp.ne.s32.totalorder %s280, %s283
    %p289 = scmp.eq.s32.totalorder %s16, 0
    %p290 = por %p288, %p289
    %p291 = scmp.ne.s32.totalorder %s280, %s283
    %p292 = scmp.eq.s32.totalorder %s21, 1
    %p293 = por %p291, %p292
    %p294 = scmp.ne.s32.totalorder %s283, %s284
    %p295 = scmp.eq.s32.totalorder %s21, 0
    %p296 = por %p294, %p295
    %p297 = scmp.ne.s32.totalorder %s283, %s284
    %p298 = scmp.eq.s32.totalorder %s22, 1
    %p299 = por %p297, %p298
    %p301 = scmp.ne.s32.totalorder %s284, %s300
    %p302 = scmp.eq.s32.totalorder %s22, 0
    %p303 = por %p301, %p302
    %p304 = scmp.le.s32.totalorder 1, %s16
    %p305 = scmp.lt.s32.totalorder %s16, 3
    %p306 = pnand %p304, %p305
    %p307 = pneg %p306
    // Predicated region
    $region9: #{resblock_forward.4} parent=5 // pred_check
      _
    $region10: #{resblock_forward.4} parent=5 // pred_check_branch
      %309 = sbr.rel (%p306) target = $region12
    $region11: #{resblock_forward.4} parent=5 // pred_region
      %s310 = ssub.s32 %s16, 1
      // Predicated region
      $region13: #{resblock_forward.4} parent=11 // pred_check
        %p311 = pneg %p149
      $region14: #{resblock_forward.4} parent=11 // pred_check_branch
        %313 = sbr.rel (%p311) target = $region16
      $region15: #{resblock_forward.4} parent=11 // pred_region
        _
      $region16: #{resblock_forward.4} parent=11 // pred_fallthru
        _
      // Predicated region
      $region17: #{resblock_forward.4} parent=11 // pred_check
        %p314 = pneg %p170
      $region18: #{resblock_forward.4} parent=11 // pred_check_branch
        %316 = sbr.rel (%p314) target = $region20
      $region19: #{resblock_forward.4} parent=11 // pred_region
        _
      $region20: #{resblock_forward.4} parent=11 // pred_fallthru
        _
      // Predicated region
      $region21: #{resblock_forward.4} parent=11 // pred_check
        %p317 = pneg %p191
      $region22: #{resblock_forward.4} parent=11 // pred_check_branch
        %319 = sbr.rel (%p317) target = $region24
      $region23: #{resblock_forward.4} parent=11 // pred_region
        _
      $region24: #{resblock_forward.4} parent=11 // pred_fallthru
        _
      // Predicated region
      $region25: #{resblock_forward.4} parent=11 // pred_check
        %p320 = pneg %p212
      $region26: #{resblock_forward.4} parent=11 // pred_check_branch
        %322 = sbr.rel (%p320) target = $region28
      $region27: #{resblock_forward.4} parent=11 // pred_region
        _
      $region28: #{resblock_forward.4} parent=11 // pred_fallthru
        _
    $region12: #{resblock_forward.4} parent=5 // pred_fallthru
      _
    %p323 = scmp.lt.s32.totalorder %s16, 2
    // Predicated region
    $region29: #{resblock_forward.4} parent=5 // pred_check
      %p324 = pneg %p323
    $region30: #{resblock_forward.4} parent=5 // pred_check_branch
      %326 = sbr.rel (%p324) target = $region32
    $region31: #{resblock_forward.4} parent=5 // pred_region
      // Predicated region
      $region33: #{resblock_forward.4} parent=31 // pred_check
        %p327 = pneg %p50
      $region34: #{resblock_forward.4} parent=31 // pred_check_branch
        %329 = sbr.rel (%p327) target = $region36
      $region35: #{resblock_forward.4} parent=31 // pred_region
        %s330 = smul.u32 16, %s24
        %p331 = scmp.lt.s32.totalorder %s23, 1
        %s332 = scalar_select %p331, %s23, 1
        %p333 = scmp.lt.s32.totalorder %s330, 15
        %s334 = scalar_select %p333, %s330, 15
        %s335 = smul.addr %s334, 2
        %s336 = smul.addr %s332, 32
        %s337 = sadd.s32 %s335, %s336
        %s338 = smul.addr %s337, 4
        %s339 = scalar_lea.vmem %s0, %s338
        %s340 = smul.u32 16, %s24
      $region36: #{resblock_forward.4} parent=31 // pred_fallthru
        _
      // Predicated region
      $region37: #{resblock_forward.4} parent=31 // pred_check
        %p341 = pneg %p86
      $region38: #{resblock_forward.4} parent=31 // pred_check_branch
        %343 = sbr.rel (%p341) target = $region40
      $region39: #{resblock_forward.4} parent=31 // pred_region
        %s344 = smul.u32 %s24, 16
        %s345 = ssub.s32 %s344, 1
        %p346 = scmp.gt.s32.totalorder %s345, 0
        %s347 = scalar_select %p346, %s345, 0
        %p348 = scmp.lt.s32.totalorder %s23, 1
        %s349 = scalar_select %p348, %s23, 1
        %p350 = scmp.lt.s32.totalorder %s347, 15
        %s351 = scalar_select %p350, %s347, 15
        %s352 = smul.addr %s351, 2
        %s353 = smul.addr %s349, 32
        %s354 = sadd.s32 %s352, %s353
        %s355 = smul.addr %s354, 4
        %s356 = scalar_lea.vmem %s1, %s355
        %s357 = smul.u32 %s24, 16
        %s358 = ssub.s32 %s357, 1
        %p359 = scmp.gt.s32.totalorder %s358, 0
        %s360 = scalar_select %p359, %s358, 0
      $region40: #{resblock_forward.4} parent=31 // pred_fallthru
        _
      // Predicated region
      $region41: #{resblock_forward.4} parent=31 // pred_check
        %p361 = pneg %p122
      $region42: #{resblock_forward.4} parent=31 // pred_check_branch
        %363 = sbr.rel (%p361) target = $region44
      $region43: #{resblock_forward.4} parent=31 // pred_region
        %s364 = sadd.s32 %s24, 1
        %s365 = smul.u32 %s364, 16
        %p366 = scmp.lt.s32.totalorder %s365, 15
        %s367 = scalar_select %p366, %s365, 15
        %p368 = scmp.lt.s32.totalorder %s23, 1
        %s369 = scalar_select %p368, %s23, 1
        %p370 = scmp.lt.s32.totalorder %s367, 15
        %s371 = scalar_select %p370, %s367, 15
        %s372 = smul.addr %s371, 2
        %s373 = smul.addr %s369, 32
        %s374 = sadd.s32 %s372, %s373
        %s375 = smul.addr %s374, 4
        %s376 = scalar_lea.vmem %s2, %s375
        %s377 = sadd.s32 %s24, 1
        %s378 = smul.u32 %s377, 16
        %p379 = scmp.lt.s32.totalorder %s378, 15
        %s380 = scalar_select %p379, %s378, 15
      $region44: #{resblock_forward.4} parent=31 // pred_fallthru
        _
    $region32: #{resblock_forward.4} parent=5 // pred_fallthru
      _
    %p381 = scmp.le.s32.totalorder 1, %s16
    %p382 = scmp.lt.s32.totalorder %s16, 3
    %p383 = pnand %p381, %p382
    %p384 = pneg %p383
    // Predicated region
    $region45: #{resblock_forward.4} parent=5 // pred_check
      _
    $region46: #{resblock_forward.4} parent=5 // pred_check_branch
      %386 = sbr.rel (%p383) target = $region48
    $region47: #{resblock_forward.4} parent=5 // pred_region
      %s387 = ssub.s32 %s16, 1
      %s388 = smul.u32 16, %s26
      %p389 = scmp.lt.s32.totalorder %s25, 1
      %s390 = scalar_select %p389, %s25, 1
      %p391 = scmp.lt.s32.totalorder %s388, 15
      %s392 = scalar_select %p391, %s388, 15
      %s393 = smul.addr %s392, 2
      %s394 = smul.addr %s390, 32
      %s395 = sadd.s32 %s393, %s394
      %s396 = smul.addr %s395, 4
      %s397 = scalar_lea.vmem %s0, %s396
      %p398 = pneg %p56
      %p399 = pneg %p53
      %s400 = smul.u32 %s26, 16
      %s401 = ssub.s32 %s400, 1
      %p402 = scmp.gt.s32.totalorder %s401, 0
      %s403 = scalar_select %p402, %s401, 0
      %p404 = scmp.lt.s32.totalorder %s25, 1
      %s405 = scalar_select %p404, %s25, 1
      %p406 = scmp.lt.s32.totalorder %s403, 15
      %s407 = scalar_select %p406, %s403, 15
      %s408 = smul.addr %s407, 2
      %s409 = smul.addr %s405, 32
      %s410 = sadd.s32 %s408, %s409
      %s411 = smul.addr %s410, 4
      %s412 = scalar_lea.vmem %s1, %s411
      %p413 = pneg %p92
      %p414 = pneg %p89
      %s415 = sadd.s32 %s26, 1
      %s416 = smul.u32 %s415, 16
      %p417 = scmp.lt.s32.totalorder %s416, 15
      %s418 = scalar_select %p417, %s416, 15
      %p419 = scmp.lt.s32.totalorder %s25, 1
      %s420 = scalar_select %p419, %s25, 1
      %p421 = scmp.lt.s32.totalorder %s418, 15
      %s422 = scalar_select %p421, %s418, 15
      %s423 = smul.addr %s422, 2
      %s424 = smul.addr %s420, 32
      %s425 = sadd.s32 %s423, %s424
      %s426 = smul.addr %s425, 4
      %s427 = scalar_lea.vmem %s2, %s426
      %p428 = pneg %p128
      %p429 = pneg %p125
      %p430 = pneg %p149
      %p431 = pneg %p146
      %p432 = pneg %p170
      %p433 = pneg %p167
      %p434 = pneg %p191
      %p435 = pneg %p188
      %p436 = pneg %p212
      %p437 = pneg %p209
      %p438 = pneg %p240
      %p439 = pneg %p237
      %s440 = smul.u32 16, %s26
      %p441 = scmp.lt.s32.totalorder %s25, 1
      %s442 = scalar_select %p441, %s25, 1
      %p443 = scmp.lt.s32.totalorder %s440, 15
      %s444 = scalar_select %p443, %s440, 15
      %s445 = smul.addr %s444, 2
      %s446 = smul.addr %s442, 32
      %s447 = sadd.s32 %s445, %s446
      %s448 = smul.addr %s447, 8
      %s449 = scalar_lea.vmem %s7, %s448
      %p450 = pneg %p268
      %p451 = pneg %p265
      %p452 = scmp.lt.s32.totalorder %s25, 1
      %s453 = scalar_select %p452, %s25, 1
      %p454 = scmp.lt.s32.totalorder %s26, 0
      %s455 = scalar_select %p454, %s26, 0
      %s456 = sadd.s32 %s455, %s453
      %s457 = scalar_lea.vmem %s8, %s456
      %p458 = pneg %p296
      %p459 = pneg %p293
      %p460 = scmp.lt.s32.totalorder %s25, 1
      %s461 = scalar_select %p460, %s25, 1
      %p462 = scmp.lt.s32.totalorder %s26, 0
      %s463 = scalar_select %p462, %s26, 0
      %s464 = sadd.s32 %s463, %s461
      %s465 = scalar_lea.vmem %s9, %s464
      %s466 = smul.u32 16, %s26
      %p467 = scmp.lt.s32.totalorder %s25, 1
      %s468 = scalar_select %p467, %s25, 1
      %p469 = scmp.lt.s32.totalorder %s466, 15
      %s470 = scalar_select %p469, %s466, 15
      %s471 = smul.addr %s470, 2
      %s472 = smul.addr %s468, 32
      %s473 = sadd.s32 %s471, %s472
      %s474 = smul.addr %s473, 4
      %s475 = scalar_lea.vmem %s0, %s474
      %s476 = smul.u32 16, %s26
      %s477 = smul.u32 %s26, 16
      %s478 = ssub.s32 %s477, 1
      %p479 = scmp.gt.s32.totalorder %s478, 0
      %s480 = scalar_select %p479, %s478, 0
      %p481 = scmp.lt.s32.totalorder %s25, 1
      %s482 = scalar_select %p481, %s25, 1
      %p483 = scmp.lt.s32.totalorder %s480, 15
      %s484 = scalar_select %p483, %s480, 15
      %s485 = smul.addr %s484, 2
      %s486 = smul.addr %s482, 32
      %s487 = sadd.s32 %s485, %s486
      %s488 = smul.addr %s487, 4
      %s489 = scalar_lea.vmem %s1, %s488
      %s490 = smul.u32 %s26, 16
      %s491 = ssub.s32 %s490, 1
      %p492 = scmp.gt.s32.totalorder %s491, 0
      %s493 = scalar_select %p492, %s491, 0
      %s494 = sadd.s32 %s26, 1
      %s495 = smul.u32 %s494, 16
      %p496 = scmp.lt.s32.totalorder %s495, 15
      %s497 = scalar_select %p496, %s495, 15
      %p498 = scmp.lt.s32.totalorder %s25, 1
      %s499 = scalar_select %p498, %s25, 1
      %p500 = scmp.lt.s32.totalorder %s497, 15
      %s501 = scalar_select %p500, %s497, 15
      %s502 = smul.addr %s501, 2
      %s503 = smul.addr %s499, 32
      %s504 = sadd.s32 %s502, %s503
      %s505 = smul.addr %s504, 4
      %s506 = scalar_lea.vmem %s2, %s505
      %s507 = sadd.s32 %s26, 1
      %s508 = smul.u32 %s507, 16
      %p509 = scmp.lt.s32.totalorder %s508, 15
      %s510 = scalar_select %p509, %s508, 15
      %s511 = smul.u32 16, %s26
      %p512 = scmp.lt.s32.totalorder %s25, 1
      %s513 = scalar_select %p512, %s25, 1
      %p514 = scmp.lt.s32.totalorder %s511, 15
      %s515 = scalar_select %p514, %s511, 15
      %s516 = smul.addr %s515, 2
      %s517 = smul.addr %s513, 32
      %s518 = sadd.s32 %s516, %s517
      %s519 = smul.addr %s518, 8
      %s520 = scalar_lea.vmem %s7, %s519
      %s521 = smul.u32 16, %s26
      %p522 = scmp.lt.s32.totalorder %s25, 1
      %s523 = scalar_select %p522, %s25, 1
      %p524 = scmp.lt.s32.totalorder %s26, 0
      %s525 = scalar_select %p524, %s26, 0
      %s526 = sadd.s32 %s525, %s523
      %s527 = scalar_lea.vmem %s8, %s526
      %p528 = scmp.lt.s32.totalorder %s25, 1
      %s529 = scalar_select %p528, %s25, 1
      %p530 = scmp.lt.s32.totalorder %s26, 0
      %s531 = scalar_select %p530, %s26, 0
      %s532 = sadd.s32 %s531, %s529
      %s533 = scalar_lea.vmem %s9, %s532
      %s535 = smul.u32 %s26, 16
      %v536 = vld [vmem:[%s489] sm:$0xf]
      %v537 = vld [vmem:[%s489 + $0x4] sm:$0xf]
      %v538 = vld [vmem:[%s475] sm:$0xf]
      %v539 = vld [vmem:[%s475 + $0x4] sm:$0xf]
      %v540 = vld [vmem:[%s475 + $0x8] sm:$0xf]
      %v541 = vld [vmem:[%s475 + $0xc] sm:$0xf]
      %v542 = vld [vmem:[%s475 + $0x10] sm:$0xf]
      %v543 = vld [vmem:[%s475 + $0x14] sm:$0xf]
      %v544 = vld [vmem:[%s475 + $0x18] sm:$0xf]
      %v545 = vld [vmem:[%s475 + $0x1c] sm:$0xf]
      %v546 = vld [vmem:[%s475 + $0x20] sm:$0xf]
      %v547 = vld [vmem:[%s475 + $0x24] sm:$0xf]
      %v548 = vld [vmem:[%s475 + $0x28] sm:$0xf]
      %v549 = vld [vmem:[%s475 + $0x2c] sm:$0xf]
      %v550 = vld [vmem:[%s475 + $0x30] sm:$0xf]
      %v551 = vld [vmem:[%s475 + $0x34] sm:$0xf]
      %v552 = vld [vmem:[%s475 + $0x38] sm:$0xf]
      %v553 = vld [vmem:[%s475 + $0x3c] sm:$0xf]
      %v554 = vld [vmem:[%s475 + $0x40] sm:$0xf]
      %v555 = vld [vmem:[%s475 + $0x44] sm:$0xf]
      %v556 = vld [vmem:[%s475 + $0x48] sm:$0xf]
      %v557 = vld [vmem:[%s475 + $0x4c] sm:$0xf]
      %v558 = vld [vmem:[%s475 + $0x50] sm:$0xf]
      %v559 = vld [vmem:[%s475 + $0x54] sm:$0xf]
      %v560 = vld [vmem:[%s475 + $0x58] sm:$0xf]
      %v561 = vld [vmem:[%s475 + $0x5c] sm:$0xf]
      %v562 = vld [vmem:[%s475 + $0x60] sm:$0xf]
      %v563 = vld [vmem:[%s475 + $0x64] sm:$0xf]
      %v564 = vld [vmem:[%s475 + $0x68] sm:$0xf]
      %v565 = vld [vmem:[%s475 + $0x6c] sm:$0xf]
      %v566 = vld [vmem:[%s475 + $0x70] sm:$0xf]
      %v567 = vld [vmem:[%s475 + $0x74] sm:$0xf]
      %v568 = vld [vmem:[%s475 + $0x78] sm:$0xf]
      %v569 = vld [vmem:[%s475 + $0x7c] sm:$0xf]
      %v570 = vld [vmem:[%s506] sm:$0xf]
      %v571 = vld [vmem:[%s506 + $0x4] sm:$0xf]
      %v574 = vunpack.c.l.b16 %v536
      %v575 = vunpack.c.l.b16 %v537
      %v576 = vpack.c.b16 %v575, %v574
      %v610 = vunpack.c.l.b16 %v538
      %v611 = vunpack.c.l.b16 %v539
      %v612 = vunpack.c.l.b16 %v540
      %v613 = vunpack.c.l.b16 %v541
      %v614 = vunpack.c.l.b16 %v542
      %v615 = vunpack.c.l.b16 %v543
      %v616 = vunpack.c.l.b16 %v544
      %v617 = vunpack.c.l.b16 %v545
      %v618 = vunpack.c.l.b16 %v546
      %v619 = vunpack.c.l.b16 %v547
      %v620 = vunpack.c.l.b16 %v548
      %v621 = vunpack.c.l.b16 %v549
      %v622 = vunpack.c.l.b16 %v550
      %v623 = vunpack.c.l.b16 %v551
      %v624 = vunpack.c.l.b16 %v552
      %v625 = vunpack.c.l.b16 %v553
      %v626 = vunpack.c.l.b16 %v554
      %v627 = vunpack.c.l.b16 %v555
      %v628 = vunpack.c.l.b16 %v556
      %v629 = vunpack.c.l.b16 %v557
      %v630 = vunpack.c.l.b16 %v558
      %v631 = vunpack.c.l.b16 %v559
      %v632 = vunpack.c.l.b16 %v560
      %v633 = vunpack.c.l.b16 %v561
      %v634 = vunpack.c.l.b16 %v562
      %v635 = vunpack.c.l.b16 %v563
      %v636 = vunpack.c.l.b16 %v564
      %v637 = vunpack.c.l.b16 %v565
      %v638 = vunpack.c.l.b16 %v566
      %v639 = vunpack.c.l.b16 %v567
      %v640 = vunpack.c.l.b16 %v568
      %v641 = vunpack.c.l.b16 %v569
      %v642 = vpack.c.b16 %v611, %v610
      %v643 = vpack.c.b16 %v613, %v612
      %v644 = vpack.c.b16 %v615, %v614
      %v645 = vpack.c.b16 %v617, %v616
      %v646 = vpack.c.b16 %v619, %v618
      %v647 = vpack.c.b16 %v621, %v620
      %v648 = vpack.c.b16 %v623, %v622
      %v649 = vpack.c.b16 %v625, %v624
      %v650 = vpack.c.b16 %v627, %v626
      %v651 = vpack.c.b16 %v629, %v628
      %v652 = vpack.c.b16 %v631, %v630
      %v653 = vpack.c.b16 %v633, %v632
      %v654 = vpack.c.b16 %v635, %v634
      %v655 = vpack.c.b16 %v637, %v636
      %v656 = vpack.c.b16 %v639, %v638
      %v657 = vpack.c.b16 %v641, %v640
      %v676 = vunpack.c.l.b16 %v570
      %v677 = vunpack.c.l.b16 %v571
      %v678 = vpack.c.b16 %v677, %v676
      %v680 = vunpack.c.l.bf16 %v576
      %v681 = vunpack.c.h.bf16 %v576
      %v682 = vunpack.c.l.bf16 %v642
      %v683 = vunpack.c.h.bf16 %v642
      %v684 = vunpack.c.l.bf16 %v643
      %v685 = vunpack.c.h.bf16 %v643
      %v686 = vunpack.c.l.bf16 %v644
      %v687 = vunpack.c.h.bf16 %v644
      %v688 = vunpack.c.l.bf16 %v645
      %v689 = vunpack.c.h.bf16 %v645
      %v690 = vunpack.c.l.bf16 %v646
      %v691 = vunpack.c.h.bf16 %v646
      %v692 = vunpack.c.l.bf16 %v647
      %v693 = vunpack.c.h.bf16 %v647
      %v694 = vunpack.c.l.bf16 %v648
      %v695 = vunpack.c.h.bf16 %v648
      %v696 = vunpack.c.l.bf16 %v649
      %v697 = vunpack.c.h.bf16 %v649
      %v698 = vunpack.c.l.bf16 %v650
      %v699 = vunpack.c.h.bf16 %v650
      %v700 = vunpack.c.l.bf16 %v651
      %v701 = vunpack.c.h.bf16 %v651
      %v702 = vunpack.c.l.bf16 %v652
      %v703 = vunpack.c.h.bf16 %v652
      %v704 = vunpack.c.l.bf16 %v653
      %v705 = vunpack.c.h.bf16 %v653
      %v706 = vunpack.c.l.bf16 %v654
      %v707 = vunpack.c.h.bf16 %v654
      %v708 = vunpack.c.l.bf16 %v655
      %v709 = vunpack.c.h.bf16 %v655
      %v710 = vunpack.c.l.bf16 %v656
      %v711 = vunpack.c.h.bf16 %v656
      %v712 = vunpack.c.l.bf16 %v657
      %v713 = vunpack.c.h.bf16 %v657
      %v714 = vunpack.c.l.bf16 %v678
      %v715 = vunpack.c.h.bf16 %v678
      %v716 = vld [vmem:[%s3] sm:$0x1]
      %v718 = vlaneseq
      %v719 = vshrl.u32 %v718, 7
      %v720 = vsub.s32 0, %v719
      %v721 = vrot.slane %v716, %v720
      %v723 = vmul.f32 %v680, %v721
      %v724 = vmul.f32 %v681, %v721
      %v725 = vmul.f32 %v682, %v721
      %v726 = vmul.f32 %v683, %v721
      %v727 = vmul.f32 %v684, %v721
      %v728 = vmul.f32 %v685, %v721
      %v729 = vmul.f32 %v686, %v721
      %v730 = vmul.f32 %v687, %v721
      %v731 = vmul.f32 %v688, %v721
      %v732 = vmul.f32 %v689, %v721
      %v733 = vmul.f32 %v690, %v721
      %v734 = vmul.f32 %v691, %v721
      %v735 = vmul.f32 %v692, %v721
      %v736 = vmul.f32 %v693, %v721
      %v737 = vmul.f32 %v694, %v721
      %v738 = vmul.f32 %v695, %v721
      %v739 = vmul.f32 %v696, %v721
      %v740 = vmul.f32 %v697, %v721
      %v741 = vmul.f32 %v698, %v721
      %v742 = vmul.f32 %v699, %v721
      %v743 = vmul.f32 %v700, %v721
      %v744 = vmul.f32 %v701, %v721
      %v745 = vmul.f32 %v702, %v721
      %v746 = vmul.f32 %v703, %v721
      %v747 = vmul.f32 %v704, %v721
      %v748 = vmul.f32 %v705, %v721
      %v749 = vmul.f32 %v706, %v721
      %v750 = vmul.f32 %v707, %v721
      %v751 = vmul.f32 %v708, %v721
      %v752 = vmul.f32 %v709, %v721
      %v753 = vmul.f32 %v710, %v721
      %v754 = vmul.f32 %v711, %v721
      %v755 = vmul.f32 %v712, %v721
      %v756 = vmul.f32 %v713, %v721
      %v757 = vmul.f32 %v714, %v721
      %v758 = vmul.f32 %v715, %v721
      %v759 = vld [vmem:[%s4] sm:$0x1]
      %v761 = vlaneseq
      %v762 = vshrl.u32 %v761, 7
      %v763 = vsub.s32 0, %v762
      %v764 = vrot.slane %v759, %v763
      %v766 = vadd.f32 %v723, %v764
      %v767 = vadd.f32 %v724, %v764
      %v768 = vadd.f32 %v725, %v764
      %v769 = vadd.f32 %v726, %v764
      %v770 = vadd.f32 %v727, %v764
      %v771 = vadd.f32 %v728, %v764
      %v772 = vadd.f32 %v729, %v764
      %v773 = vadd.f32 %v730, %v764
      %v774 = vadd.f32 %v731, %v764
      %v775 = vadd.f32 %v732, %v764
      %v776 = vadd.f32 %v733, %v764
      %v777 = vadd.f32 %v734, %v764
      %v778 = vadd.f32 %v735, %v764
      %v779 = vadd.f32 %v736, %v764
      %v780 = vadd.f32 %v737, %v764
      %v781 = vadd.f32 %v738, %v764
      %v782 = vadd.f32 %v739, %v764
      %v783 = vadd.f32 %v740, %v764
      %v784 = vadd.f32 %v741, %v764
      %v785 = vadd.f32 %v742, %v764
      %v786 = vadd.f32 %v743, %v764
      %v787 = vadd.f32 %v744, %v764
      %v788 = vadd.f32 %v745, %v764
      %v789 = vadd.f32 %v746, %v764
      %v790 = vadd.f32 %v747, %v764
      %v791 = vadd.f32 %v748, %v764
      %v792 = vadd.f32 %v749, %v764
      %v793 = vadd.f32 %v750, %v764
      %v794 = vadd.f32 %v751, %v764
      %v795 = vadd.f32 %v752, %v764
      %v796 = vadd.f32 %v753, %v764
      %v797 = vadd.f32 %v754, %v764
      %v798 = vadd.f32 %v755, %v764
      %v799 = vadd.f32 %v756, %v764
      %v800 = vadd.f32 %v757, %v764
      %v801 = vadd.f32 %v758, %v764
      %v802 = vmax.f32 %v766, 0.0
      %v803 = vmax.f32 %v767, 0.0
      %v804 = vmax.f32 %v768, 0.0
      %v805 = vmax.f32 %v769, 0.0
      %v806 = vmax.f32 %v770, 0.0
      %v807 = vmax.f32 %v771, 0.0
      %v808 = vmax.f32 %v772, 0.0
      %v809 = vmax.f32 %v773, 0.0
      %v810 = vmax.f32 %v774, 0.0
      %v811 = vmax.f32 %v775, 0.0
      %v812 = vmax.f32 %v776, 0.0
      %v813 = vmax.f32 %v777, 0.0
      %v814 = vmax.f32 %v778, 0.0
      %v815 = vmax.f32 %v779, 0.0
      %v816 = vmax.f32 %v780, 0.0
      %v817 = vmax.f32 %v781, 0.0
      %v818 = vmax.f32 %v782, 0.0
      %v819 = vmax.f32 %v783, 0.0
      %v820 = vmax.f32 %v784, 0.0
      %v821 = vmax.f32 %v785, 0.0
      %v822 = vmax.f32 %v786, 0.0
      %v823 = vmax.f32 %v787, 0.0
      %v824 = vmax.f32 %v788, 0.0
      %v825 = vmax.f32 %v789, 0.0
      %v826 = vmax.f32 %v790, 0.0
      %v827 = vmax.f32 %v791, 0.0
      %v828 = vmax.f32 %v792, 0.0
      %v829 = vmax.f32 %v793, 0.0
      %v830 = vmax.f32 %v794, 0.0
      %v831 = vmax.f32 %v795, 0.0
      %v832 = vmax.f32 %v796, 0.0
      %v833 = vmax.f32 %v797, 0.0
      %v834 = vmax.f32 %v798, 0.0
      %v835 = vmax.f32 %v799, 0.0
      %v836 = vmax.f32 %v800, 0.0
      %v837 = vmax.f32 %v801, 0.0
      %v838 = vld [vmem:[%s5] sm:$0xf]
      %v839 = vld [vmem:[%s5 + $0x4] sm:$0x3]
      %v840 = vld [vmem:[%s5 + $0x8] sm:$0xf]
      %v841 = vld [vmem:[%s5 + $0xc] sm:$0x3]
      %v842 = vld [vmem:[%s5 + $0x10] sm:$0xf]
      %v843 = vld [vmem:[%s5 + $0x14] sm:$0x3]
      %v844 = vstv %s535
      %v845 = vadd.s32 %v844, 1
      %v846 = vadd.s32 %v844, 2
      %v847 = vadd.s32 %v844, 3
      %v848 = vadd.s32 %v844, 4
      %v849 = vadd.s32 %v844, 5
      %v850 = vadd.s32 %v844, 6
      %v851 = vadd.s32 %v844, 7
      %v852 = vadd.s32 %v844, 8
      %v853 = vadd.s32 %v844, 9
      %v854 = vadd.s32 %v844, 10
      %v855 = vadd.s32 %v844, 11
      %v856 = vadd.s32 %v844, 12
      %v857 = vadd.s32 %v844, 13
      %v858 = vadd.s32 %v844, 14
      %v859 = vadd.s32 %v844, 15
      %v860 = vlaneseq
      %v861 = vshrl.u32 %v860, 7
      %v862 = vadd.s32 %v861, 8
      %vm863 = vcmp.ge.s32.totalorder %v844, 1
      %vm864 = vcmp.ge.s32.totalorder %v845, 1
      %vm865 = vcmp.ge.s32.totalorder %v846, 1
      %vm866 = vcmp.ge.s32.totalorder %v847, 1
      %vm867 = vcmp.ge.s32.totalorder %v848, 1
      %vm868 = vcmp.ge.s32.totalorder %v849, 1
      %vm869 = vcmp.ge.s32.totalorder %v850, 1
      %vm870 = vcmp.ge.s32.totalorder %v851, 1
      %vm871 = vcmp.ge.s32.totalorder %v852, 1
      %vm872 = vcmp.ge.s32.totalorder %v853, 1
      %vm873 = vcmp.ge.s32.totalorder %v854, 1
      %vm874 = vcmp.ge.s32.totalorder %v855, 1
      %vm875 = vcmp.ge.s32.totalorder %v856, 1
      %vm876 = vcmp.ge.s32.totalorder %v857, 1
      %vm877 = vcmp.ge.s32.totalorder %v858, 1
      %vm878 = vcmp.ge.s32.totalorder %v859, 1
      %v879 = vrot.slane %v802, 7
      %v880 = vrot.slane %v803, 7
      %v881 = vrot.slane %v804, 7
      %v882 = vrot.slane %v805, 7
      %v883 = vrot.slane %v806, 7
      %v884 = vrot.slane %v807, 7
      %v885 = vrot.slane %v808, 7
      %v886 = vrot.slane %v809, 7
      %v887 = vrot.slane %v810, 7
      %v888 = vrot.slane %v811, 7
      %v889 = vrot.slane %v812, 7
      %v890 = vrot.slane %v813, 7
      %v891 = vrot.slane %v814, 7
      %v892 = vrot.slane %v815, 7
      %v893 = vrot.slane %v816, 7
      %v894 = vrot.slane %v817, 7
      %v895 = vrot.slane %v818, 7
      %v896 = vrot.slane %v819, 7
      %v897 = vrot.slane %v820, 7
      %v898 = vrot.slane %v821, 7
      %v899 = vrot.slane %v822, 7
      %v900 = vrot.slane %v823, 7
      %v901 = vrot.slane %v824, 7
      %v902 = vrot.slane %v825, 7
      %v903 = vrot.slane %v826, 7
      %v904 = vrot.slane %v827, 7
      %v905 = vrot.slane %v828, 7
      %v906 = vrot.slane %v829, 7
      %v907 = vrot.slane %v830, 7
      %v908 = vrot.slane %v831, 7
      %v909 = vrot.slane %v832, 7
      %v910 = vrot.slane %v833, 7
      %v911 = vrot.slane %v837, 7
      %vm912 = vcmp.lt.s32.totalorder %v861, 1
      %v913 = vsel %vm912, %v909, %v910
      %v914 = vsel %vm912, %v908, %v909
      %v915 = vsel %vm912, %v907, %v908
      %v916 = vsel %vm912, %v906, %v907
      %v917 = vsel %vm912, %v905, %v906
      %v918 = vsel %vm912, %v904, %v905
      %v919 = vsel %vm912, %v903, %v904
      %v920 = vsel %vm912, %v902, %v903
      %v921 = vsel %vm912, %v901, %v902
      %v922 = vsel %vm912, %v900, %v901
      %v923 = vsel %vm912, %v899, %v900
      %v924 = vsel %vm912, %v898, %v899
      %v925 = vsel %vm912, %v897, %v898
      %v926 = vsel %vm912, %v896, %v897
      %v927 = vsel %vm912, %v895, %v896
      %v928 = vsel %vm912, %v894, %v895
      %v929 = vsel %vm912, %v893, %v894
      %v930 = vsel %vm912, %v892, %v893
      %v931 = vsel %vm912, %v891, %v892
      %v932 = vsel %vm912, %v890, %v891
      %v933 = vsel %vm912, %v889, %v890
      %v934 = vsel %vm912, %v888, %v889
      %v935 = vsel %vm912, %v887, %v888
      %v936 = vsel %vm912, %v886, %v887
      %v937 = vsel %vm912, %v885, %v886
      %v938 = vsel %vm912, %v884, %v885
      %v939 = vsel %vm912, %v883, %v884
      %v940 = vsel %vm912, %v882, %v883
      %v941 = vsel %vm912, %v881, %v882
      %v942 = vsel %vm912, %v880, %v881
      %v943 = vsel %vm912, %v879, %v880
      %v944 = vsel %vm912, %v911, %v879
      %vm945 = vcmp.ge.s32.totalorder %v861, 1
      %vm946 = vcmp.ge.s32.totalorder %v862, 1
      %vm947 = vmand %vm863, %vm945
      %vm948 = vmand %vm863, %vm946
      %vm949 = vmand %vm864, %vm945
      %vm950 = vmand %vm864, %vm946
      %vm951 = vmand %vm865, %vm945
      %vm952 = vmand %vm865, %vm946
      %vm953 = vmand %vm866, %vm945
      %vm954 = vmand %vm866, %vm946
      %vm955 = vmand %vm867, %vm945
      %vm956 = vmand %vm867, %vm946
      %vm957 = vmand %vm868, %vm945
      %vm958 = vmand %vm868, %vm946
      %vm959 = vmand %vm869, %vm945
      %vm960 = vmand %vm869, %vm946
      %vm961 = vmand %vm870, %vm945
      %vm962 = vmand %vm870, %vm946
      %vm963 = vmand %vm871, %vm945
      %vm964 = vmand %vm871, %vm946
      %vm965 = vmand %vm872, %vm945
      %vm966 = vmand %vm872, %vm946
      %vm967 = vmand %vm873, %vm945
      %vm968 = vmand %vm873, %vm946
      %vm969 = vmand %vm874, %vm945
      %vm970 = vmand %vm874, %vm946
      %vm971 = vmand %vm875, %vm945
      %vm972 = vmand %vm875, %vm946
      %vm973 = vmand %vm876, %vm945
      %vm974 = vmand %vm876, %vm946
      %vm975 = vmand %vm877, %vm945
      %vm976 = vmand %vm877, %vm946
      %vm977 = vmand %vm878, %vm945
      %vm978 = vmand %vm878, %vm946
      %v979 = vsel %vm947, 1, 0
      %v980 = vsel %vm948, 1, 0
      %v981 = vsel %vm949, 1, 0
      %v982 = vsel %vm950, 1, 0
      %v983 = vsel %vm951, 1, 0
      %v984 = vsel %vm952, 1, 0
      %v985 = vsel %vm953, 1, 0
      %v986 = vsel %vm954, 1, 0
      %v987 = vsel %vm955, 1, 0
      %v988 = vsel %vm956, 1, 0
      %v989 = vsel %vm957, 1, 0
      %v990 = vsel %vm958, 1, 0
      %v991 = vsel %vm959, 1, 0
      %v992 = vsel %vm960, 1, 0
      %v993 = vsel %vm961, 1, 0
      %v994 = vsel %vm962, 1, 0
      %v995 = vsel %vm963, 1, 0
      %v996 = vsel %vm964, 1, 0
      %v997 = vsel %vm965, 1, 0
      %v998 = vsel %vm966, 1, 0
      %v999 = vsel %vm967, 1, 0
      %v1000 = vsel %vm968, 1, 0
      %v1001 = vsel %vm969, 1, 0
      %v1002 = vsel %vm970, 1, 0
      %v1003 = vsel %vm971, 1, 0
      %v1004 = vsel %vm972, 1, 0
      %v1005 = vsel %vm973, 1, 0
      %v1006 = vsel %vm974, 1, 0
      %v1007 = vsel %vm975, 1, 0
      %v1008 = vsel %vm976, 1, 0
      %v1009 = vsel %vm977, 1, 0
      %v1010 = vsel %vm978, 1, 0
      %vm1011 = vcmp.eq.s32.totalorder %v979, 1
      %vm1012 = vcmp.eq.s32.totalorder %v980, 1
      %vm1013 = vcmp.eq.s32.totalorder %v981, 1
      %vm1014 = vcmp.eq.s32.totalorder %v982, 1
      %vm1015 = vcmp.eq.s32.totalorder %v983, 1
      %vm1016 = vcmp.eq.s32.totalorder %v984, 1
      %vm1017 = vcmp.eq.s32.totalorder %v985, 1
      %vm1018 = vcmp.eq.s32.totalorder %v986, 1
      %vm1019 = vcmp.eq.s32.totalorder %v987, 1
      %vm1020 = vcmp.eq.s32.totalorder %v988, 1
      %vm1021 = vcmp.eq.s32.totalorder %v989, 1
      %vm1022 = vcmp.eq.s32.totalorder %v990, 1
      %vm1023 = vcmp.eq.s32.totalorder %v991, 1
      %vm1024 = vcmp.eq.s32.totalorder %v992, 1
      %vm1025 = vcmp.eq.s32.totalorder %v993, 1
      %vm1026 = vcmp.eq.s32.totalorder %v994, 1
      %vm1027 = vcmp.eq.s32.totalorder %v995, 1
      %vm1028 = vcmp.eq.s32.totalorder %v996, 1
      %vm1029 = vcmp.eq.s32.totalorder %v997, 1
      %vm1030 = vcmp.eq.s32.totalorder %v998, 1
      %vm1031 = vcmp.eq.s32.totalorder %v999, 1
      %vm1032 = vcmp.eq.s32.totalorder %v1000, 1
      %vm1033 = vcmp.eq.s32.totalorder %v1001, 1
      %vm1034 = vcmp.eq.s32.totalorder %v1002, 1
      %vm1035 = vcmp.eq.s32.totalorder %v1003, 1
      %vm1036 = vcmp.eq.s32.totalorder %v1004, 1
      %vm1037 = vcmp.eq.s32.totalorder %v1005, 1
      %vm1038 = vcmp.eq.s32.totalorder %v1006, 1
      %vm1039 = vcmp.eq.s32.totalorder %v1007, 1
      %vm1040 = vcmp.eq.s32.totalorder %v1008, 1
      %vm1041 = vcmp.eq.s32.totalorder %v1009, 1
      %vm1042 = vcmp.eq.s32.totalorder %v1010, 1
      %v1043 = vsel %vm1011, %v944, 0.0
      %v1044 = vsel %vm1012, %v943, 0.0
      %v1045 = vsel %vm1013, %v942, 0.0
      %v1046 = vsel %vm1014, %v941, 0.0
      %v1047 = vsel %vm1015, %v940, 0.0
      %v1048 = vsel %vm1016, %v939, 0.0
      %v1049 = vsel %vm1017, %v938, 0.0
      %v1050 = vsel %vm1018, %v937, 0.0
      %v1051 = vsel %vm1019, %v936, 0.0
      %v1052 = vsel %vm1020, %v935, 0.0
      %v1053 = vsel %vm1021, %v934, 0.0
      %v1054 = vsel %vm1022, %v933, 0.0
      %v1055 = vsel %vm1023, %v932, 0.0
      %v1056 = vsel %vm1024, %v931, 0.0
      %v1057 = vsel %vm1025, %v930, 0.0
      %v1058 = vsel %vm1026, %v929, 0.0
      %v1059 = vsel %vm1027, %v928, 0.0
      %v1060 = vsel %vm1028, %v927, 0.0
      %v1061 = vsel %vm1029, %v926, 0.0
      %v1062 = vsel %vm1030, %v925, 0.0
      %v1063 = vsel %vm1031, %v924, 0.0
      %v1064 = vsel %vm1032, %v923, 0.0
      %v1065 = vsel %vm1033, %v922, 0.0
      %v1066 = vsel %vm1034, %v921, 0.0
      %v1067 = vsel %vm1035, %v920, 0.0
      %v1068 = vsel %vm1036, %v919, 0.0
      %v1069 = vsel %vm1037, %v918, 0.0
      %v1070 = vsel %vm1038, %v917, 0.0
      %v1071 = vsel %vm1039, %v916, 0.0
      %v1072 = vsel %vm1040, %v915, 0.0
      %v1073 = vsel %vm1041, %v914, 0.0
      %v1074 = vsel %vm1042, %v913, 0.0
      %v1075 = vpack.c.bf16 %v1044, %v1043
      %v1076 = vpack.c.bf16 %v1046, %v1045
      %v1077 = vpack.c.bf16 %v1048, %v1047
      %v1078 = vpack.c.bf16 %v1050, %v1049
      %v1079 = vpack.c.bf16 %v1052, %v1051
      %v1080 = vpack.c.bf16 %v1054, %v1053
      %v1081 = vpack.c.bf16 %v1056, %v1055
      %v1082 = vpack.c.bf16 %v1058, %v1057
      %v1083 = vpack.c.bf16 %v1060, %v1059
      %v1084 = vpack.c.bf16 %v1062, %v1061
      %v1085 = vpack.c.bf16 %v1064, %v1063
      %v1086 = vpack.c.bf16 %v1066, %v1065
      %v1087 = vpack.c.bf16 %v1068, %v1067
      %v1088 = vpack.c.bf16 %v1070, %v1069
      %v1089 = vpack.c.bf16 %v1072, %v1071
      %v1090 = vpack.c.bf16 %v1074, %v1073
      %v1091 = vsel %vm863, 1, 0
      %v1092 = vsel %vm864, 1, 0
      %v1093 = vsel %vm865, 1, 0
      %v1094 = vsel %vm866, 1, 0
      %v1095 = vsel %vm867, 1, 0
      %v1096 = vsel %vm868, 1, 0
      %v1097 = vsel %vm869, 1, 0
      %v1098 = vsel %vm870, 1, 0
      %v1099 = vsel %vm871, 1, 0
      %v1100 = vsel %vm872, 1, 0
      %v1101 = vsel %vm873, 1, 0
      %v1102 = vsel %vm874, 1, 0
      %v1103 = vsel %vm875, 1, 0
      %v1104 = vsel %vm876, 1, 0
      %v1105 = vsel %vm877, 1, 0
      %v1106 = vsel %vm878, 1, 0
      %vm1107 = vcmp.eq.s32.totalorder %v1091, 1
      %vm1108 = vcmp.eq.s32.totalorder %v1092, 1
      %vm1109 = vcmp.eq.s32.totalorder %v1093, 1
      %vm1110 = vcmp.eq.s32.totalorder %v1094, 1
      %vm1111 = vcmp.eq.s32.totalorder %v1095, 1
      %vm1112 = vcmp.eq.s32.totalorder %v1096, 1
      %vm1113 = vcmp.eq.s32.totalorder %v1097, 1
      %vm1114 = vcmp.eq.s32.totalorder %v1098, 1
      %vm1115 = vcmp.eq.s32.totalorder %v1099, 1
      %vm1116 = vcmp.eq.s32.totalorder %v1100, 1
      %vm1117 = vcmp.eq.s32.totalorder %v1101, 1
      %vm1118 = vcmp.eq.s32.totalorder %v1102, 1
      %vm1119 = vcmp.eq.s32.totalorder %v1103, 1
      %vm1120 = vcmp.eq.s32.totalorder %v1104, 1
      %vm1121 = vcmp.eq.s32.totalorder %v1105, 1
      %vm1122 = vcmp.eq.s32.totalorder %v1106, 1
      %v1123 = vsel %vm1107, %v802, 0.0
      %v1124 = vsel %vm1107, %v803, 0.0
      %v1125 = vsel %vm1108, %v804, 0.0
      %v1126 = vsel %vm1108, %v805, 0.0
      %v1127 = vsel %vm1109, %v806, 0.0
      %v1128 = vsel %vm1109, %v807, 0.0
      %v1129 = vsel %vm1110, %v808, 0.0
      %v1130 = vsel %vm1110, %v809, 0.0
      %v1131 = vsel %vm1111, %v810, 0.0
      %v1132 = vsel %vm1111, %v811, 0.0
      %v1133 = vsel %vm1112, %v812, 0.0
      %v1134 = vsel %vm1112, %v813, 0.0
      %v1135 = vsel %vm1113, %v814, 0.0
      %v1136 = vsel %vm1113, %v815, 0.0
      %v1137 = vsel %vm1114, %v816, 0.0
      %v1138 = vsel %vm1114, %v817, 0.0
      %v1139 = vsel %vm1115, %v818, 0.0
      %v1140 = vsel %vm1115, %v819, 0.0
      %v1141 = vsel %vm1116, %v820, 0.0
      %v1142 = vsel %vm1116, %v821, 0.0
      %v1143 = vsel %vm1117, %v822, 0.0
      %v1144 = vsel %vm1117, %v823, 0.0
      %v1145 = vsel %vm1118, %v824, 0.0
      %v1146 = vsel %vm1118, %v825, 0.0
      %v1147 = vsel %vm1119, %v826, 0.0
      %v1148 = vsel %vm1119, %v827, 0.0
      %v1149 = vsel %vm1120, %v828, 0.0
      %v1150 = vsel %vm1120, %v829, 0.0
      %v1151 = vsel %vm1121, %v830, 0.0
      %v1152 = vsel %vm1121, %v831, 0.0
      %v1153 = vsel %vm1122, %v832, 0.0
      %v1154 = vsel %vm1122, %v833, 0.0
      %v1155 = vpack.c.bf16 %v1124, %v1123
      %v1156 = vpack.c.bf16 %v1126, %v1125
      %v1157 = vpack.c.bf16 %v1128, %v1127
      %v1158 = vpack.c.bf16 %v1130, %v1129
      %v1159 = vpack.c.bf16 %v1132, %v1131
      %v1160 = vpack.c.bf16 %v1134, %v1133
      %v1161 = vpack.c.bf16 %v1136, %v1135
      %v1162 = vpack.c.bf16 %v1138, %v1137
      %v1163 = vpack.c.bf16 %v1140, %v1139
      %v1164 = vpack.c.bf16 %v1142, %v1141
      %v1165 = vpack.c.bf16 %v1144, %v1143
      %v1166 = vpack.c.bf16 %v1146, %v1145
      %v1167 = vpack.c.bf16 %v1148, %v1147
      %v1168 = vpack.c.bf16 %v1150, %v1149
      %v1169 = vpack.c.bf16 %v1152, %v1151
      %v1170 = vpack.c.bf16 %v1154, %v1153
      %v1172 = vunpack.c.l.b16 %v838
      %v1173 = vpack.c.b16 %v1172, %v1172
      %v1174 = vrot.slane %v1173, 2
      %vm1175 = vcmask 31744
      %v1177 = vsel %vm1175, %v1155, 0
      %v1180 = vsel %vm1175, %v1156, 0
      %v1183 = vsel %vm1175, %v1157, 0
      %v1186 = vsel %vm1175, %v1158, 0
      %v1189 = vsel %vm1175, %v1159, 0
      %v1192 = vsel %vm1175, %v1160, 0
      %v1195 = vsel %vm1175, %v1161, 0
      %v1198 = vsel %vm1175, %v1162, 0
      %v1201 = vsel %vm1175, %v1163, 0
      %v1204 = vsel %vm1175, %v1164, 0
      %v1207 = vsel %vm1175, %v1165, 0
      %v1210 = vsel %vm1175, %v1166, 0
      %v1213 = vsel %vm1175, %v1167, 0
      %v1216 = vsel %vm1175, %v1168, 0
      %v1219 = vsel %vm1175, %v1169, 0
      %v1222 = vsel %vm1175, %v1170, 0
      %vm1224 = vcmask 1041408
      %v1226 = vsel %vm1224, %v1174, 0
      %1228 = vmatprep.subr.bf16.mxu0 0
      %1229 = vmatpush1.bf16.msra.mxu0 %v1226
      %1230 = vmatprep.subr.bf16.mxu0 0
      %1231 = vmatpush1.bf16.msra.mxu0 0
      %1232 = vmatprep.subr.bf16.mxu0 0
      %1233 = vmatpush1.bf16.msra.mxu0 0
      %1234 = vmatprep.subr.bf16.mxu0 0
      %1235 = vmatpush1.bf16.msra.mxu0 0
      %1236 = vmatprep.subr.bf16.mxu0 0
      %1237 = vmatpush1.bf16.msra.mxu0 0
      %1238 = vmatprep.subr.bf16.mxu0 0
      %1239 = vmatpush1.bf16.msra.mxu0 0
      %1240 = vmatprep.subr.bf16.mxu0 0
      %1241 = vmatpush1.bf16.msra.mxu0 0
      %1242 = vmatprep.subr.bf16.mxu0 0
      %1243 = vmatpush1.bf16.msra.mxu0 0
      %1244 = vmatprep.subr.bf16.mxu0 0
      %1245 = vmatpush1.bf16.msra.mxu0 0
      %1246 = vmatprep.subr.bf16.mxu0 0
      %1247 = vmatpush1.bf16.msra.mxu0 0
      %1248 = vmatprep.subr.bf16.mxu0 0
      %1249 = vmatpush1.bf16.msra.mxu0 0
      %1250 = vmatprep.subr.bf16.mxu0 0
      %1251 = vmatpush1.bf16.msra.mxu0 0
      %1252 = vmatprep.subr.bf16.mxu0 0
      %1253 = vmatpush1.bf16.msra.mxu0 0
      %1254 = vmatprep.subr.bf16.mxu0 0
      %1255 = vmatpush1.bf16.msra.mxu0 0
      %1256 = vmatprep.subr.bf16.mxu0 0
      %1257 = vmatpush1.bf16.msra.mxu0 0
      %1258 = vmatprep.subr.bf16.mxu0 0
      %1259 = vmatpush1.bf16.msra.mxu0 0
      %1260 = vmatprep.mubr.bf16.mxu0 0
      %1261 = vmatmul.mubr.bf16.gmra.mrb[0].mxu0 %v1177
      %v1262 = vpop.f32.mrb[0].mxu0
      %v1263 = vadd.f32 0.0, %v1262
      %v1264 = vpop.f32.mrb[0].mxu0
      %v1265 = vpop.f32.mrb[0].mxu0
      %v1266 = vadd.f32 0.0, %v1265
      %v1267 = vpop.f32.mrb[0].mxu0
      %1268 = vmatprep.mubr.bf16.mxu0 0
      %1269 = vmatmul.mubr.bf16.gmra.mrb[0].mxu0 %v1180
      %v1270 = vpop.f32.mrb[0].mxu0
      %v1271 = vadd.f32 0.0, %v1270
      %v1272 = vpop.f32.mrb[0].mxu0
      %v1273 = vpop.f32.mrb[0].mxu0
      %v1274 = vadd.f32 0.0, %v1273
      %v1275 = vpop.f32.mrb[0].mxu0
      %1276 = vmatprep.mubr.bf16.mxu0 0
      %1277 = vmatmul.mubr.bf16.gmra.mrb[0].mxu0 %v1183
      %v1278 = vpop.f32.mrb[0].mxu0
      %v1279 = vadd.f32 0.0, %v1278
      %v1280 = vpop.f32.mrb[0].mxu0
      %v1281 = vpop.f32.mrb[0].mxu0
      %v1282 = vadd.f32 0.0, %v1281
      %v1283 = vpop.f32.mrb[0].mxu0
      %1284 = vmatprep.mubr.bf16.mxu0 0
      %1285 = vmatmul.mubr.bf16.gmra.mrb[0].mxu0 %v1186
      %v1286 = vpop.f32.mrb[0].mxu0
      %v1287 = vadd.f32 0.0, %v1286
      %v1288 = vpop.f32.mrb[0].mxu0
      %v1289 = vpop.f32.mrb[0].mxu0
      %v1290 = vadd.f32 0.0, %v1289
      %v1291 = vpop.f32.mrb[0].mxu0
      %1292 = vmatprep.mubr.bf16.mxu0 0
      %1293 = vmatmul.mubr.bf16.gmra.mrb[0].mxu0 %v1189
      %v1294 = vpop.f32.mrb[0].mxu0
      %v1295 = vadd.f32 0.0, %v1294
      %v1296 = vpop.f32.mrb[0].mxu0
      %v1297 = vpop.f32.mrb[0].mxu0
      %v1298 = vadd.f32 0.0, %v1297
      %v1299 = vpop.f32.mrb[0].mxu0
      %1300 = vmatprep.mubr.bf16.mxu0 0
      %1301 = vmatmul.mubr.bf16.gmra.mrb[0].mxu0 %v1192
      %v1302 = vpop.f32.mrb[0].mxu0
      %v1303 = vadd.f32 0.0, %v1302
      %v1304 = vpop.f32.mrb[0].mxu0
      %v1305 = vpop.f32.mrb[0].mxu0
      %v1306 = vadd.f32 0.0, %v1305
      %v1307 = vpop.f32.mrb[0].mxu0
      %1308 = vmatprep.mubr.bf16.mxu0 0
      %1309 = vmatmul.mubr.bf16.gmra.mrb[0].mxu0 %v1195
      %v1310 = vpop.f32.mrb[0].mxu0
      %v1311 = vadd.f32 0.0, %v1310
      %v1312 = vpop.f32.mrb[0].mxu0
      %v1313 = vpop.f32.mrb[0].mxu0
      %v1314 = vadd.f32 0.0, %v1313
      %v1315 = vpop.f32.mrb[0].mxu0
      %1316 = vmatprep.mubr.bf16.mxu0 0
      %1317 = vmatmul.mubr.bf16.gmra.mrb[0].mxu0 %v1198
      %v1318 = vpop.f32.mrb[0].mxu0
      %v1319 = vadd.f32 0.0, %v1318
      %v1320 = vpop.f32.mrb[0].mxu0
      %v1321 = vpop.f32.mrb[0].mxu0
      %v1322 = vadd.f32 0.0, %v1321
      %v1323 = vpop.f32.mrb[0].mxu0
      %1324 = vmatprep.mubr.bf16.mxu0 0
      %1325 = vmatmul.mubr.bf16.gmra.mrb[0].mxu0 %v1201
      %v1326 = vpop.f32.mrb[0].mxu0
      %v1327 = vadd.f32 0.0, %v1326
      %v1328 = vpop.f32.mrb[0].mxu0
      %v1329 = vpop.f32.mrb[0].mxu0
      %v1330 = vadd.f32 0.0, %v1329
      %v1331 = vpop.f32.mrb[0].mxu0
      %1332 = vmatprep.mubr.bf16.mxu0 0
      %1333 = vmatmul.mubr.bf16.gmra.mrb[0].mxu0 %v1204
      %v1334 = vpop.f32.mrb[0].mxu0
      %v1335 = vadd.f32 0.0, %v1334
      %v1336 = vpop.f32.mrb[0].mxu0
      %v1337 = vpop.f32.mrb[0].mxu0
      %v1338 = vadd.f32 0.0, %v1337
      %v1339 = vpop.f32.mrb[0].mxu0
      %1340 = vmatprep.mubr.bf16.mxu0 0
      %1341 = vmatmul.mubr.bf16.gmra.mrb[0].mxu0 %v1207
      %v1342 = vpop.f32.mrb[0].mxu0
      %v1343 = vadd.f32 0.0, %v1342
      %v1344 = vpop.f32.mrb[0].mxu0
      %v1345 = vpop.f32.mrb[0].mxu0
      %v1346 = vadd.f32 0.0, %v1345
      %v1347 = vpop.f32.mrb[0].mxu0
      %1348 = vmatprep.mubr.bf16.mxu0 0
      %1349 = vmatmul.mubr.bf16.gmra.mrb[0].mxu0 %v1210
      %v1350 = vpop.f32.mrb[0].mxu0
      %v1351 = vadd.f32 0.0, %v1350
      %v1352 = vpop.f32.mrb[0].mxu0
      %v1353 = vpop.f32.mrb[0].mxu0
      %v1354 = vadd.f32 0.0, %v1353
      %v1355 = vpop.f32.mrb[0].mxu0
      %1356 = vmatprep.mubr.bf16.mxu0 0
      %1357 = vmatmul.mubr.bf16.gmra.mrb[0].mxu0 %v1213
      %v1358 = vpop.f32.mrb[0].mxu0
      %v1359 = vadd.f32 0.0, %v1358
      %v1360 = vpop.f32.mrb[0].mxu0
      %v1361 = vpop.f32.mrb[0].mxu0
      %v1362 = vadd.f32 0.0, %v1361
      %v1363 = vpop.f32.mrb[0].mxu0
      %1364 = vmatprep.mubr.bf16.mxu0 0
      %1365 = vmatmul.mubr.bf16.gmra.mrb[0].mxu0 %v1216
      %v1366 = vpop.f32.mrb[0].mxu0
      %v1367 = vadd.f32 0.0, %v1366
      %v1368 = vpop.f32.mrb[0].mxu0
      %v1369 = vpop.f32.mrb[0].mxu0
      %v1370 = vadd.f32 0.0, %v1369
      %v1371 = vpop.f32.mrb[0].mxu0
      %1372 = vmatprep.mubr.bf16.mxu0 0
      %1373 = vmatmul.mubr.bf16.gmra.mrb[0].mxu0 %v1219
      %v1374 = vpop.f32.mrb[0].mxu0
      %v1375 = vadd.f32 0.0, %v1374
      %v1376 = vpop.f32.mrb[0].mxu0
      %v1377 = vpop.f32.mrb[0].mxu0
      %v1378 = vadd.f32 0.0, %v1377
      %v1379 = vpop.f32.mrb[0].mxu0
      %1380 = vmatprep.mubr.bf16.mxu0 0
      %1381 = vmatmul.mubr.bf16.gmra.mrb[0].mxu0 %v1222
      %v1382 = vpop.f32.mrb[0].mxu0
      %v1383 = vadd.f32 0.0, %v1382
      %v1384 = vpop.f32.mrb[0].mxu0
      %v1385 = vpop.f32.mrb[0].mxu0
      %v1386 = vadd.f32 0.0, %v1385
      %v1387 = vpop.f32.mrb[0].mxu0
      %1388 = vdwg.mxu0
      %v1390 = vsel %vm1175, %v1075, 0
      %v1393 = vsel %vm1175, %v1076, 0
      %v1396 = vsel %vm1175, %v1077, 0
      %v1399 = vsel %vm1175, %v1078, 0
      %v1402 = vsel %vm1175, %v1079, 0
      %v1405 = vsel %vm1175, %v1080, 0
      %v1408 = vsel %vm1175, %v1081, 0
      %v1411 = vsel %vm1175, %v1082, 0
      %v1414 = vsel %vm1175, %v1083, 0
      %v1417 = vsel %vm1175, %v1084, 0
      %v1420 = vsel %vm1175, %v1085, 0
      %v1423 = vsel %vm1175, %v1086, 0
      %v1426 = vsel %vm1175, %v1087, 0
      %v1429 = vsel %vm1175, %v1088, 0
      %v1432 = vsel %vm1175, %v1089, 0
      %v1435 = vsel %vm1175, %v1090, 0
      %v1438 = vsel %vm1224, %v838, 0
      %1440 = vmatprep.subr.bf16.mxu0 0
      %1441 = vmatpush1.bf16.msra.mxu0 %v1438
      %1442 = vmatprep.subr.bf16.mxu0 0
      %1443 = vmatpush1.bf16.msra.mxu0 0
      %1444 = vmatprep.subr.bf16.mxu0 0
      %1445 = vmatpush1.bf16.msra.mxu0 0
      %1446 = vmatprep.subr.bf16.mxu0 0
      %1447 = vmatpush1.bf16.msra.mxu0 0
      %1448 = vmatprep.subr.bf16.mxu0 0
      %1449 = vmatpush1.bf16.msra.mxu0 0
      %1450 = vmatprep.subr.bf16.mxu0 0
      %1451 = vmatpush1.bf16.msra.mxu0 0
      %1452 = vmatprep.subr.bf16.mxu0 0
      %1453 = vmatpush1.bf16.msra.mxu0 0
      %1454 = vmatprep.subr.bf16.mxu0 0
      %1455 = vmatpush1.bf16.msra.mxu0 0
      %1456 = vmatprep.subr.bf16.mxu0 0
      %1457 = vmatpush1.bf16.msra.mxu0 0
      %1458 = vmatprep.subr.bf16.mxu0 0
      %1459 = vmatpush1.bf16.msra.mxu0 0
      %1460 = vmatprep.subr.bf16.mxu0 0
      %1461 = vmatpush1.bf16.msra.mxu0 0
      %1462 = vmatprep.subr.bf16.mxu0 0
      %1463 = vmatpush1.bf16.msra.mxu0 0
      %1464 = vmatprep.subr.bf16.mxu0 0
      %1465 = vmatpush1.bf16.msra.mxu0 0
      %1466 = vmatprep.subr.bf16.mxu0 0
      %1467 = vmatpush1.bf16.msra.mxu0 0
      %1468 = vmatprep.subr.bf16.mxu0 0
      %1469 = vmatpush1.bf16.msra.mxu0 0
      %1470 = vmatprep.subr.bf16.mxu0 0
      %1471 = vmatpush1.bf16.msra.mxu0 0
      %1472 = vmatprep.mubr.bf16.mxu0 0
      %1473 = vmatmul.mubr.bf16.gmra.mrb[0].mxu0 %v1390
      %v1474 = vpop.f32.mrb[0].mxu0
      %v1475 = vadd.f32 %v1263, %v1474
      %v1476 = vpop.f32.mrb[0].mxu0
      %v1477 = vpop.f32.mrb[0].mxu0
      %v1478 = vadd.f32 %v1266, %v1477
      %v1479 = vpop.f32.mrb[0].mxu0
      %1480 = vmatprep.mubr.bf16.mxu0 0
      %1481 = vmatmul.mubr.bf16.gmra.mrb[0].mxu0 %v1393
      %v1482 = vpop.f32.mrb[0].mxu0
      %v1483 = vadd.f32 %v1271, %v1482
      %v1484 = vpop.f32.mrb[0].mxu0
      %v1485 = vpop.f32.mrb[0].mxu0
      %v1486 = vadd.f32 %v1274, %v1485
      %v1487 = vpop.f32.mrb[0].mxu0
      %1488 = vmatprep.mubr.bf16.mxu0 0
      %1489 = vmatmul.mubr.bf16.gmra.mrb[0].mxu0 %v1396
      %v1490 = vpop.f32.mrb[0].mxu0
      %v1491 = vadd.f32 %v1279, %v1490
      %v1492 = vpop.f32.mrb[0].mxu0
      %v1493 = vpop.f32.mrb[0].mxu0
      %v1494 = vadd.f32 %v1282, %v1493
      %v1495 = vpop.f32.mrb[0].mxu0
      %1496 = vmatprep.mubr.bf16.mxu0 0
      %1497 = vmatmul.mubr.bf16.gmra.mrb[0].mxu0 %v1399
      %v1498 = vpop.f32.mrb[0].mxu0
      %v1499 = vadd.f32 %v1287, %v1498
      %v1500 = vpop.f32.mrb[0].mxu0
      %v1501 = vpop.f32.mrb[0].mxu0
      %v1502 = vadd.f32 %v1290, %v1501
      %v1503 = vpop.f32.mrb[0].mxu0
      %1504 = vmatprep.mubr.bf16.mxu0 0
      %1505 = vmatmul.mubr.bf16.gmra.mrb[0].mxu0 %v1402
      %v1506 = vpop.f32.mrb[0].mxu0
      %v1507 = vadd.f32 %v1295, %v1506
      %v1508 = vpop.f32.mrb[0].mxu0
      %v1509 = vpop.f32.mrb[0].mxu0
      %v1510 = vadd.f32 %v1298, %v1509
      %v1511 = vpop.f32.mrb[0].mxu0
      %1512 = vmatprep.mubr.bf16.mxu0 0
      %1513 = vmatmul.mubr.bf16.gmra.mrb[0].mxu0 %v1405
      %v1514 = vpop.f32.mrb[0].mxu0
      %v1515 = vadd.f32 %v1303, %v1514
      %v1516 = vpop.f32.mrb[0].mxu0
      %v1517 = vpop.f32.mrb[0].mxu0
      %v1518 = vadd.f32 %v1306, %v1517
      %v1519 = vpop.f32.mrb[0].mxu0
      %1520 = vmatprep.mubr.bf16.mxu0 0
      %1521 = vmatmul.mubr.bf16.gmra.mrb[0].mxu0 %v1408
      %v1522 = vpop.f32.mrb[0].mxu0
      %v1523 = vadd.f32 %v1311, %v1522
      %v1524 = vpop.f32.mrb[0].mxu0
      %v1525 = vpop.f32.mrb[0].mxu0
      %v1526 = vadd.f32 %v1314, %v1525
      %v1527 = vpop.f32.mrb[0].mxu0
      %1528 = vmatprep.mubr.bf16.mxu0 0
      %1529 = vmatmul.mubr.bf16.gmra.mrb[0].mxu0 %v1411
      %v1530 = vpop.f32.mrb[0].mxu0
      %v1531 = vadd.f32 %v1319, %v1530
      %v1532 = vpop.f32.mrb[0].mxu0
      %v1533 = vpop.f32.mrb[0].mxu0
      %v1534 = vadd.f32 %v1322, %v1533
      %v1535 = vpop.f32.mrb[0].mxu0
      %1536 = vmatprep.mubr.bf16.mxu0 0
      %1537 = vmatmul.mubr.bf16.gmra.mrb[0].mxu0 %v1414
      %v1538 = vpop.f32.mrb[0].mxu0
      %v1539 = vadd.f32 %v1327, %v1538
      %v1540 = vpop.f32.mrb[0].mxu0
      %v1541 = vpop.f32.mrb[0].mxu0
      %v1542 = vadd.f32 %v1330, %v1541
      %v1543 = vpop.f32.mrb[0].mxu0
      %1544 = vmatprep.mubr.bf16.mxu0 0
      %1545 = vmatmul.mubr.bf16.gmra.mrb[0].mxu0 %v1417
      %v1546 = vpop.f32.mrb[0].mxu0
      %v1547 = vadd.f32 %v1335, %v1546
      %v1548 = vpop.f32.mrb[0].mxu0
      %v1549 = vpop.f32.mrb[0].mxu0
      %v1550 = vadd.f32 %v1338, %v1549
      %v1551 = vpop.f32.mrb[0].mxu0
      %1552 = vmatprep.mubr.bf16.mxu0 0
      %1553 = vmatmul.mubr.bf16.gmra.mrb[0].mxu0 %v1420
      %v1554 = vpop.f32.mrb[0].mxu0
      %v1555 = vadd.f32 %v1343, %v1554
      %v1556 = vpop.f32.mrb[0].mxu0
      %v1557 = vpop.f32.mrb[0].mxu0
      %v1558 = vadd.f32 %v1346, %v1557
      %v1559 = vpop.f32.mrb[0].mxu0
      %1560 = vmatprep.mubr.bf16.mxu0 0
      %1561 = vmatmul.mubr.bf16.gmra.mrb[0].mxu0 %v1423
      %v1562 = vpop.f32.mrb[0].mxu0
      %v1563 = vadd.f32 %v1351, %v1562
      %v1564 = vpop.f32.mrb[0].mxu0
      %v1565 = vpop.f32.mrb[0].mxu0
      %v1566 = vadd.f32 %v1354, %v1565
      %v1567 = vpop.f32.mrb[0].mxu0
      %1568 = vmatprep.mubr.bf16.mxu0 0
      %1569 = vmatmul.mubr.bf16.gmra.mrb[0].mxu0 %v1426
      %v1570 = vpop.f32.mrb[0].mxu0
      %v1571 = vadd.f32 %v1359, %v1570
      %v1572 = vpop.f32.mrb[0].mxu0
      %v1573 = vpop.f32.mrb[0].mxu0
      %v1574 = vadd.f32 %v1362, %v1573
      %v1575 = vpop.f32.mrb[0].mxu0
      %1576 = vmatprep.mubr.bf16.mxu0 0
      %1577 = vmatmul.mubr.bf16.gmra.mrb[0].mxu0 %v1429
      %v1578 = vpop.f32.mrb[0].mxu0
      %v1579 = vadd.f32 %v1367, %v1578
      %v1580 = vpop.f32.mrb[0].mxu0
      %v1581 = vpop.f32.mrb[0].mxu0
      %v1582 = vadd.f32 %v1370, %v1581
      %v1583 = vpop.f32.mrb[0].mxu0
      %1584 = vmatprep.mubr.bf16.mxu0 0
      %1585 = vmatmul.mubr.bf16.gmra.mrb[0].mxu0 %v1432
      %v1586 = vpop.f32.mrb[0].mxu0
      %v1587 = vadd.f32 %v1375, %v1586
      %v1588 = vpop.f32.mrb[0].mxu0
      %v1589 = vpop.f32.mrb[0].mxu0
      %v1590 = vadd.f32 %v1378, %v1589
      %v1591 = vpop.f32.mrb[0].mxu0
      %1592 = vmatprep.mubr.bf16.mxu0 0
      %1593 = vmatmul.mubr.bf16.gmra.mrb[0].mxu0 %v1435
      %v1594 = vpop.f32.mrb[0].mxu0
      %v1595 = vadd.f32 %v1383, %v1594
      %v1596 = vpop.f32.mrb[0].mxu0
      %v1597 = vpop.f32.mrb[0].mxu0
      %v1598 = vadd.f32 %v1386, %v1597
      %v1599 = vpop.f32.mrb[0].mxu0
      %1600 = vdwg.mxu0
      %v1601 = vrot.slane %v802, 1
      %v1602 = vrot.slane %v803, 1
      %v1603 = vrot.slane %v804, 1
      %v1604 = vrot.slane %v805, 1
      %v1605 = vrot.slane %v806, 1
      %v1606 = vrot.slane %v807, 1
      %v1607 = vrot.slane %v808, 1
      %v1608 = vrot.slane %v809, 1
      %v1609 = vrot.slane %v810, 1
      %v1610 = vrot.slane %v811, 1
      %v1611 = vrot.slane %v812, 1
      %v1612 = vrot.slane %v813, 1
      %v1613 = vrot.slane %v814, 1
      %v1614 = vrot.slane %v815, 1
      %v1615 = vrot.slane %v816, 1
      %v1616 = vrot.slane %v817, 1
      %v1617 = vrot.slane %v818, 1
      %v1618 = vrot.slane %v819, 1
      %v1619 = vrot.slane %v820, 1
      %v1620 = vrot.slane %v821, 1
      %v1621 = vrot.slane %v822, 1
      %v1622 = vrot.slane %v823, 1
      %v1623 = vrot.slane %v824, 1
      %v1624 = vrot.slane %v825, 1
      %v1625 = vrot.slane %v826, 1
      %v1626 = vrot.slane %v827, 1
      %v1627 = vrot.slane %v828, 1
      %v1628 = vrot.slane %v829, 1
      %v1629 = vrot.slane %v830, 1
      %v1630 = vrot.slane %v831, 1
      %v1631 = vrot.slane %v832, 1
      %v1632 = vrot.slane %v833, 1
      %v1633 = vrot.slane %v834, 1
      %vm1634 = vcmp.lt.s32.totalorder %v861, 7
      %v1635 = vsel %vm1634, %v1632, %v1633
      %v1636 = vsel %vm1634, %v1631, %v1632
      %v1637 = vsel %vm1634, %v1630, %v1631
      %v1638 = vsel %vm1634, %v1629, %v1630
      %v1639 = vsel %vm1634, %v1628, %v1629
      %v1640 = vsel %vm1634, %v1627, %v1628
      %v1641 = vsel %vm1634, %v1626, %v1627
      %v1642 = vsel %vm1634, %v1625, %v1626
      %v1643 = vsel %vm1634, %v1624, %v1625
      %v1644 = vsel %vm1634, %v1623, %v1624
      %v1645 = vsel %vm1634, %v1622, %v1623
      %v1646 = vsel %vm1634, %v1621, %v1622
      %v1647 = vsel %vm1634, %v1620, %v1621
      %v1648 = vsel %vm1634, %v1619, %v1620
      %v1649 = vsel %vm1634, %v1618, %v1619
      %v1650 = vsel %vm1634, %v1617, %v1618
      %v1651 = vsel %vm1634, %v1616, %v1617
      %v1652 = vsel %vm1634, %v1615, %v1616
      %v1653 = vsel %vm1634, %v1614, %v1615
      %v1654 = vsel %vm1634, %v1613, %v1614
      %v1655 = vsel %vm1634, %v1612, %v1613
      %v1656 = vsel %vm1634, %v1611, %v1612
      %v1657 = vsel %vm1634, %v1610, %v1611
      %v1658 = vsel %vm1634, %v1609, %v1610
      %v1659 = vsel %vm1634, %v1608, %v1609
      %v1660 = vsel %vm1634, %v1607, %v1608
      %v1661 = vsel %vm1634, %v1606, %v1607
      %v1662 = vsel %vm1634, %v1605, %v1606
      %v1663 = vsel %vm1634, %v1604, %v1605
      %v1664 = vsel %vm1634, %v1603, %v1604
      %v1665 = vsel %vm1634, %v1602, %v1603
      %v1666 = vsel %vm1634, %v1601, %v1602
      %vm1667 = vcmp.le.s32.totalorder %v861, 14
      %vm1668 = vcmp.le.s32.totalorder %v862, 14
      %vm1669 = vmand %vm863, %vm1667
      %vm1670 = vmand %vm863, %vm1668
      %vm1671 = vmand %vm864, %vm1667
      %vm1672 = vmand %vm864, %vm1668
      %vm1673 = vmand %vm865, %vm1667
      %vm1674 = vmand %vm865, %vm1668
      %vm1675 = vmand %vm866, %vm1667
      %vm1676 = vmand %vm866, %vm1668
      %vm1677 = vmand %vm867, %vm1667
      %vm1678 = vmand %vm867, %vm1668
      %vm1679 = vmand %vm868, %vm1667
      %vm1680 = vmand %vm868, %vm1668
      %vm1681 = vmand %vm869, %vm1667
      %vm1682 = vmand %vm869, %vm1668
      %vm1683 = vmand %vm870, %vm1667
      %vm1684 = vmand %vm870, %vm1668
      %vm1685 = vmand %vm871, %vm1667
      %vm1686 = vmand %vm871, %vm1668
      %vm1687 = vmand %vm872, %vm1667
      %vm1688 = vmand %vm872, %vm1668
      %vm1689 = vmand %vm873, %vm1667
      %vm1690 = vmand %vm873, %vm1668
      %vm1691 = vmand %vm874, %vm1667
      %vm1692 = vmand %vm874, %vm1668
      %vm1693 = vmand %vm875, %vm1667
      %vm1694 = vmand %vm875, %vm1668
      %vm1695 = vmand %vm876, %vm1667
      %vm1696 = vmand %vm876, %vm1668
      %vm1697 = vmand %vm877, %vm1667
      %vm1698 = vmand %vm877, %vm1668
      %vm1699 = vmand %vm878, %vm1667
      %vm1700 = vmand %vm878, %vm1668
      %v1701 = vsel %vm1669, 1, 0
      %v1702 = vsel %vm1670, 1, 0
      %v1703 = vsel %vm1671, 1, 0
      %v1704 = vsel %vm1672, 1, 0
      %v1705 = vsel %vm1673, 1, 0
      %v1706 = vsel %vm1674, 1, 0
      %v1707 = vsel %vm1675, 1, 0
      %v1708 = vsel %vm1676, 1, 0
      %v1709 = vsel %vm1677, 1, 0
      %v1710 = vsel %vm1678, 1, 0
      %v1711 = vsel %vm1679, 1, 0
      %v1712 = vsel %vm1680, 1, 0
      %v1713 = vsel %vm1681, 1, 0
      %v1714 = vsel %vm1682, 1, 0
      %v1715 = vsel %vm1683, 1, 0
      %v1716 = vsel %vm1684, 1, 0
      %v1717 = vsel %vm1685, 1, 0
      %v1718 = vsel %vm1686, 1, 0
      %v1719 = vsel %vm1687, 1, 0
      %v1720 = vsel %vm1688, 1, 0
      %v1721 = vsel %vm1689, 1, 0
      %v1722 = vsel %vm1690, 1, 0
      %v1723 = vsel %vm1691, 1, 0
      %v1724 = vsel %vm1692, 1, 0
      %v1725 = vsel %vm1693, 1, 0
      %v1726 = vsel %vm1694, 1, 0
      %v1727 = vsel %vm1695, 1, 0
      %v1728 = vsel %vm1696, 1, 0
      %v1729 = vsel %vm1697, 1, 0
      %v1730 = vsel %vm1698, 1, 0
      %v1731 = vsel %vm1699, 1, 0
      %v1732 = vsel %vm1700, 1, 0
      %vm1733 = vcmp.eq.s32.totalorder %v1701, 1
      %vm1734 = vcmp.eq.s32.totalorder %v1702, 1
      %vm1735 = vcmp.eq.s32.totalorder %v1703, 1
      %vm1736 = vcmp.eq.s32.totalorder %v1704, 1
      %vm1737 = vcmp.eq.s32.totalorder %v1705, 1
      %vm1738 = vcmp.eq.s32.totalorder %v1706, 1
      %vm1739 = vcmp.eq.s32.totalorder %v1707, 1
      %vm1740 = vcmp.eq.s32.totalorder %v1708, 1
      %vm1741 = vcmp.eq.s32.totalorder %v1709, 1
      %vm1742 = vcmp.eq.s32.totalorder %v1710, 1
      %vm1743 = vcmp.eq.s32.totalorder %v1711, 1
      %vm1744 = vcmp.eq.s32.totalorder %v1712, 1
      %vm1745 = vcmp.eq.s32.totalorder %v1713, 1
      %vm1746 = vcmp.eq.s32.totalorder %v1714, 1
      %vm1747 = vcmp.eq.s32.totalorder %v1715, 1
      %vm1748 = vcmp.eq.s32.totalorder %v1716, 1
      %vm1749 = vcmp.eq.s32.totalorder %v1717, 1
      %vm1750 = vcmp.eq.s32.totalorder %v1718, 1
      %vm1751 = vcmp.eq.s32.totalorder %v1719, 1
      %vm1752 = vcmp.eq.s32.totalorder %v1720, 1
      %vm1753 = vcmp.eq.s32.totalorder %v1721, 1
      %vm1754 = vcmp.eq.s32.totalorder %v1722, 1
      %vm1755 = vcmp.eq.s32.totalorder %v1723, 1
      %vm1756 = vcmp.eq.s32.totalorder %v1724, 1
      %vm1757 = vcmp.eq.s32.totalorder %v1725, 1
      %vm1758 = vcmp.eq.s32.totalorder %v1726, 1
      %vm1759 = vcmp.eq.s32.totalorder %v1727, 1
      %vm1760 = vcmp.eq.s32.totalorder %v1728, 1
      %vm1761 = vcmp.eq.s32.totalorder %v1729, 1
      %vm1762 = vcmp.eq.s32.totalorder %v1730, 1
      %vm1763 = vcmp.eq.s32.totalorder %v1731, 1
      %vm1764 = vcmp.eq.s32.totalorder %v1732, 1
      %v1765 = vsel %vm1733, %v1666, 0.0
      %v1766 = vsel %vm1734, %v1665, 0.0
      %v1767 = vsel %vm1735, %v1664, 0.0
      %v1768 = vsel %vm1736, %v1663, 0.0
      %v1769 = vsel %vm1737, %v1662, 0.0
      %v1770 = vsel %vm1738, %v1661, 0.0
      %v1771 = vsel %vm1739, %v1660, 0.0
      %v1772 = vsel %vm1740, %v1659, 0.0
      %v1773 = vsel %vm1741, %v1658, 0.0
      %v1774 = vsel %vm1742, %v1657, 0.0
      %v1775 = vsel %vm1743, %v1656, 0.0
      %v1776 = vsel %vm1744, %v1655, 0.0
      %v1777 = vsel %vm1745, %v1654, 0.0
      %v1778 = vsel %vm1746, %v1653, 0.0
      %v1779 = vsel %vm1747, %v1652, 0.0
      %v1780 = vsel %vm1748, %v1651, 0.0
      %v1781 = vsel %vm1749, %v1650, 0.0
      %v1782 = vsel %vm1750, %v1649, 0.0
      %v1783 = vsel %vm1751, %v1648, 0.0
      %v1784 = vsel %vm1752, %v1647, 0.0
      %v1785 = vsel %vm1753, %v1646, 0.0
      %v1786 = vsel %vm1754, %v1645, 0.0
      %v1787 = vsel %vm1755, %v1644, 0.0
      %v1788 = vsel %vm1756, %v1643, 0.0
      %v1789 = vsel %vm1757, %v1642, 0.0
      %v1790 = vsel %vm1758, %v1641, 0.0
      %v1791 = vsel %vm1759, %v1640, 0.0
      %v1792 = vsel %vm1760, %v1639, 0.0
      %v1793 = vsel %vm1761, %v1638, 0.0
      %v1794 = vsel %vm1762, %v1637, 0.0
      %v1795 = vsel %vm1763, %v1636, 0.0
      %v1796 = vsel %vm1764, %v1635, 0.0
      %v1797 = vpack.c.bf16 %v1766, %v1765
      %v1798 = vpack.c.bf16 %v1768, %v1767
      %v1799 = vpack.c.bf16 %v1770, %v1769
      %v1800 = vpack.c.bf16 %v1772, %v1771
      %v1801 = vpack.c.bf16 %v1774, %v1773
      %v1802 = vpack.c.bf16 %v1776, %v1775
      %v1803 = vpack.c.bf16 %v1778, %v1777
      %v1804 = vpack.c.bf16 %v1780, %v1779
      %v1805 = vpack.c.bf16 %v1782, %v1781
      %v1806 = vpack.c.bf16 %v1784, %v1783
      %v1807 = vpack.c.bf16 %v1786, %v1785
      %v1808 = vpack.c.bf16 %v1788, %v1787
      %v1809 = vpack.c.bf16 %v1790, %v1789
      %v1810 = vpack.c.bf16 %v1792, %v1791
      %v1811 = vpack.c.bf16 %v1794, %v1793
      %v1812 = vpack.c.bf16 %v1796, %v1795
      %v1814 = vsel %vm1175, %v1797, 0
      %v1817 = vsel %vm1175, %v1798, 0
      %v1820 = vsel %vm1175, %v1799, 0
      %v1823 = vsel %vm1175, %v1800, 0
      %v1826 = vsel %vm1175, %v1801, 0
      %v1829 = vsel %vm1175, %v1802, 0
      %v1832 = vsel %vm1175, %v1803, 0
      %v1835 = vsel %vm1175, %v1804, 0
      %v1838 = vsel %vm1175, %v1805, 0
      %v1841 = vsel %vm1175, %v1806, 0
      %v1844 = vsel %vm1175, %v1807, 0
      %v1847 = vsel %vm1175, %v1808, 0
      %v1850 = vsel %vm1175, %v1809, 0
      %v1853 = vsel %vm1175, %v1810, 0
      %v1856 = vsel %vm1175, %v1811, 0
      %v1859 = vsel %vm1175, %v1812, 0
      %v1862 = vsel %vm1224, %v839, 0
      %1864 = vmatprep.subr.bf16.mxu0 0
      %1865 = vmatpush1.bf16.msra.mxu0 %v1862
      %1866 = vmatprep.subr.bf16.mxu0 0
      %1867 = vmatpush1.bf16.msra.mxu0 0
      %1868 = vmatprep.subr.bf16.mxu0 0
      %1869 = vmatpush1.bf16.msra.mxu0 0
      %1870 = vmatprep.subr.bf16.mxu0 0
      %1871 = vmatpush1.bf16.msra.mxu0 0
      %1872 = vmatprep.subr.bf16.mxu0 0
      %1873 = vmatpush1.bf16.msra.mxu0 0
      %1874 = vmatprep.subr.bf16.mxu0 0
      %1875 = vmatpush1.bf16.msra.mxu0 0
      %1876 = vmatprep.subr.bf16.mxu0 0
      %1877 = vmatpush1.bf16.msra.mxu0 0
      %1878 = vmatprep.subr.bf16.mxu0 0
      %1879 = vmatpush1.bf16.msra.mxu0 0
      %1880 = vmatprep.subr.bf16.mxu0 0
      %1881 = vmatpush1.bf16.msra.mxu0 0
      %1882 = vmatprep.subr.bf16.mxu0 0
      %1883 = vmatpush1.bf16.msra.mxu0 0
      %1884 = vmatprep.subr.bf16.mxu0 0
      %1885 = vmatpush1.bf16.msra.mxu0 0
      %1886 = vmatprep.subr.bf16.mxu0 0
      %1887 = vmatpush1.bf16.msra.mxu0 0
      %1888 = vmatprep.subr.bf16.mxu0 0
      %1889 = vmatpush1.bf16.msra.mxu0 0
      %1890 = vmatprep.subr.bf16.mxu0 0
      %1891 = vmatpush1.bf16.msra.mxu0 0
      %1892 = vmatprep.subr.bf16.mxu0 0
      %1893 = vmatpush1.bf16.msra.mxu0 0
      %1894 = vmatprep.subr.bf16.mxu0 0
      %1895 = vmatpush1.bf16.msra.mxu0 0
      %1896 = vmatprep.mubr.bf16.mxu0 0
      %1897 = vmatmul.mubr.bf16.gmra.mrb[0].mxu0 %v1814
      %v1898 = vpop.f32.mrb[0].mxu0
      %v1899 = vadd.f32 0.0, %v1898
      %v1900 = vpop.f32.mrb[0].mxu0
      %v1901 = vpop.f32.mrb[0].mxu0
      %v1902 = vadd.f32 0.0, %v1901
      %v1903 = vpop.f32.mrb[0].mxu0
      %1904 = vmatprep.mubr.bf16.mxu0 0
      %1905 = vmatmul.mubr.bf16.gmra.mrb[0].mxu0 %v1817
      %v1906 = vpop.f32.mrb[0].mxu0
      %v1907 = vadd.f32 0.0, %v1906
      %v1908 = vpop.f32.mrb[0].mxu0
      %v1909 = vpop.f32.mrb[0].mxu0
      %v1910 = vadd.f32 0.0, %v1909
      %v1911 = vpop.f32.mrb[0].mxu0
      %1912 = vmatprep.mubr.bf16.mxu0 0
      %1913 = vmatmul.mubr.bf16.gmra.mrb[0].mxu0 %v1820
      %v1914 = vpop.f32.mrb[0].mxu0
      %v1915 = vadd.f32 0.0, %v1914
      %v1916 = vpop.f32.mrb[0].mxu0
      %v1917 = vpop.f32.mrb[0].mxu0
      %v1918 = vadd.f32 0.0, %v1917
      %v1919 = vpop.f32.mrb[0].mxu0
      %1920 = vmatprep.mubr.bf16.mxu0 0
      %1921 = vmatmul.mubr.bf16.gmra.mrb[0].mxu0 %v1823
      %v1922 = vpop.f32.mrb[0].mxu0
      %v1923 = vadd.f32 0.0, %v1922
      %v1924 = vpop.f32.mrb[0].mxu0
      %v1925 = vpop.f32.mrb[0].mxu0
      %v1926 = vadd.f32 0.0, %v1925
      %v1927 = vpop.f32.mrb[0].mxu0
      %1928 = vmatprep.mubr.bf16.mxu0 0
      %1929 = vmatmul.mubr.bf16.gmra.mrb[0].mxu0 %v1826
      %v1930 = vpop.f32.mrb[0].mxu0
      %v1931 = vadd.f32 0.0, %v1930
      %v1932 = vpop.f32.mrb[0].mxu0
      %v1933 = vpop.f32.mrb[0].mxu0
      %v1934 = vadd.f32 0.0, %v1933
      %v1935 = vpop.f32.mrb[0].mxu0
      %1936 = vmatprep.mubr.bf16.mxu0 0
      %1937 = vmatmul.mubr.bf16.gmra.mrb[0].mxu0 %v1829
      %v1938 = vpop.f32.mrb[0].mxu0
      %v1939 = vadd.f32 0.0, %v1938
      %v1940 = vpop.f32.mrb[0].mxu0
      %v1941 = vpop.f32.mrb[0].mxu0
      %v1942 = vadd.f32 0.0, %v1941
      %v1943 = vpop.f32.mrb[0].mxu0
      %1944 = vmatprep.mubr.bf16.mxu0 0
      %1945 = vmatmul.mubr.bf16.gmra.mrb[0].mxu0 %v1832
      %v1946 = vpop.f32.mrb[0].mxu0
      %v1947 = vadd.f32 0.0, %v1946
      %v1948 = vpop.f32.mrb[0].mxu0
      %v1949 = vpop.f32.mrb[0].mxu0
      %v1950 = vadd.f32 0.0, %v1949
      %v1951 = vpop.f32.mrb[0].mxu0
      %1952 = vmatprep.mubr.bf16.mxu0 0
      %1953 = vmatmul.mubr.bf16.gmra.mrb[0].mxu0 %v1835
      %v1954 = vpop.f32.mrb[0].mxu0
      %v1955 = vadd.f32 0.0, %v1954
      %v1956 = vpop.f32.mrb[0].mxu0
      %v1957 = vpop.f32.mrb[0].mxu0
      %v1958 = vadd.f32 0.0, %v1957
      %v1959 = vpop.f32.mrb[0].mxu0
      %1960 = vmatprep.mubr.bf16.mxu0 0
      %1961 = vmatmul.mubr.bf16.gmra.mrb[0].mxu0 %v1838
      %v1962 = vpop.f32.mrb[0].mxu0
      %v1963 = vadd.f32 0.0, %v1962
      %v1964 = vpop.f32.mrb[0].mxu0
      %v1965 = vpop.f32.mrb[0].mxu0
      %v1966 = vadd.f32 0.0, %v1965
      %v1967 = vpop.f32.mrb[0].mxu0
      %1968 = vmatprep.mubr.bf16.mxu0 0
      %1969 = vmatmul.mubr.bf16.gmra.mrb[0].mxu0 %v1841
      %v1970 = vpop.f32.mrb[0].mxu0
      %v1971 = vadd.f32 0.0, %v1970
      %v1972 = vpop.f32.mrb[0].mxu0
      %v1973 = vpop.f32.mrb[0].mxu0
      %v1974 = vadd.f32 0.0, %v1973
      %v1975 = vpop.f32.mrb[0].mxu0
      %1976 = vmatprep.mubr.bf16.mxu0 0
      %1977 = vmatmul.mubr.bf16.gmra.mrb[0].mxu0 %v1844
      %v1978 = vpop.f32.mrb[0].mxu0
      %v1979 = vadd.f32 0.0, %v1978
      %v1980 = vpop.f32.mrb[0].mxu0
      %v1981 = vpop.f32.mrb[0].mxu0
      %v1982 = vadd.f32 0.0, %v1981
      %v1983 = vpop.f32.mrb[0].mxu0
      %1984 = vmatprep.mubr.bf16.mxu0 0
      %1985 = vmatmul.mubr.bf16.gmra.mrb[0].mxu0 %v1847
      %v1986 = vpop.f32.mrb[0].mxu0
      %v1987 = vadd.f32 0.0, %v1986
      %v1988 = vpop.f32.mrb[0].mxu0
      %v1989 = vpop.f32.mrb[0].mxu0
      %v1990 = vadd.f32 0.0, %v1989
      %v1991 = vpop.f32.mrb[0].mxu0
      %1992 = vmatprep.mubr.bf16.mxu0 0
      %1993 = vmatmul.mubr.bf16.gmra.mrb[0].mxu0 %v1850
      %v1994 = vpop.f32.mrb[0].mxu0
      %v1995 = vadd.f32 0.0, %v1994
      %v1996 = vpop.f32.mrb[0].mxu0
      %v1997 = vpop.f32.mrb[0].mxu0
      %v1998 = vadd.f32 0.0, %v1997
      %v1999 = vpop.f32.mrb[0].mxu0
      %2000 = vmatprep.mubr.bf16.mxu0 0
      %2001 = vmatmul.mubr.bf16.gmra.mrb[0].mxu0 %v1853
      %v2002 = vpop.f32.mrb[0].mxu0
      %v2003 = vadd.f32 0.0, %v2002
      %v2004 = vpop.f32.mrb[0].mxu0
      %v2005 = vpop.f32.mrb[0].mxu0
      %v2006 = vadd.f32 0.0, %v2005
      %v2007 = vpop.f32.mrb[0].mxu0
      %2008 = vmatprep.mubr.bf16.mxu0 0
      %2009 = vmatmul.mubr.bf16.gmra.mrb[0].mxu0 %v1856
      %v2010 = vpop.f32.mrb[0].mxu0
      %v2011 = vadd.f32 0.0, %v2010
      %v2012 = vpop.f32.mrb[0].mxu0
      %v2013 = vpop.f32.mrb[0].mxu0
      %v2014 = vadd.f32 0.0, %v2013
      %v2015 = vpop.f32.mrb[0].mxu0
      %2016 = vmatprep.mubr.bf16.mxu0 0
      %2017 = vmatmul.mubr.bf16.gmra.mrb[0].mxu0 %v1859
      %v2018 = vpop.f32.mrb[0].mxu0
      %v2019 = vadd.f32 0.0, %v2018
      %v2020 = vpop.f32.mrb[0].mxu0
      %v2021 = vpop.f32.mrb[0].mxu0
      %v2022 = vadd.f32 0.0, %v2021
      %v2023 = vpop.f32.mrb[0].mxu0
      %2024 = vdwg.mxu0
      %v2025 = vadd.f32 %v1475, %v1899
      %v2026 = vadd.f32 %v1478, %v1902
      %v2027 = vadd.f32 %v1483, %v1907
      %v2028 = vadd.f32 %v1486, %v1910
      %v2029 = vadd.f32 %v1491, %v1915
      %v2030 = vadd.f32 %v1494, %v1918
      %v2031 = vadd.f32 %v1499, %v1923
      %v2032 = vadd.f32 %v1502, %v1926
      %v2033 = vadd.f32 %v1507, %v1931
      %v2034 = vadd.f32 %v1510, %v1934
      %v2035 = vadd.f32 %v1515, %v1939
      %v2036 = vadd.f32 %v1518, %v1942
      %v2037 = vadd.f32 %v1523, %v1947
      %v2038 = vadd.f32 %v1526, %v1950
      %v2039 = vadd.f32 %v1531, %v1955
      %v2040 = vadd.f32 %v1534, %v1958
      %v2041 = vadd.f32 %v1539, %v1963
      %v2042 = vadd.f32 %v1542, %v1966
      %v2043 = vadd.f32 %v1547, %v1971
      %v2044 = vadd.f32 %v1550, %v1974
      %v2045 = vadd.f32 %v1555, %v1979
      %v2046 = vadd.f32 %v1558, %v1982
      %v2047 = vadd.f32 %v1563, %v1987
      %v2048 = vadd.f32 %v1566, %v1990
      %v2049 = vadd.f32 %v1571, %v1995
      %v2050 = vadd.f32 %v1574, %v1998
      %v2051 = vadd.f32 %v1579, %v2003
      %v2052 = vadd.f32 %v1582, %v2006
      %v2053 = vadd.f32 %v1587, %v2011
      %v2054 = vadd.f32 %v1590, %v2014
      %v2055 = vadd.f32 %v1595, %v2019
      %v2056 = vadd.f32 %v1598, %v2022
      %v2057 = vrot.slane %v834, 7
      %v2058 = vrot.slane %v835, 7
      %v2059 = vsel %vm912, %v2057, %v2058
      %v2060 = vsel %vm912, %v910, %v2057
      %v2061 = vsel %vm945, 1, 0
      %v2062 = vsel %vm946, 1, 0
      %vm2063 = vcmp.eq.s32.totalorder %v2061, 1
      %vm2064 = vcmp.eq.s32.totalorder %v2062, 1
      %v2065 = vsel %vm2063, %v942, 0.0
      %v2066 = vsel %vm2064, %v941, 0.0
      %v2067 = vsel %vm2063, %v940, 0.0
      %v2068 = vsel %vm2064, %v939, 0.0
      %v2069 = vsel %vm2063, %v938, 0.0
      %v2070 = vsel %vm2064, %v937, 0.0
      %v2071 = vsel %vm2063, %v936, 0.0
      %v2072 = vsel %vm2064, %v935, 0.0
      %v2073 = vsel %vm2063, %v934, 0.0
      %v2074 = vsel %vm2064, %v933, 0.0
      %v2075 = vsel %vm2063, %v932, 0.0
      %v2076 = vsel %vm2064, %v931, 0.0
      %v2077 = vsel %vm2063, %v930, 0.0
      %v2078 = vsel %vm2064, %v929, 0.0
      %v2079 = vsel %vm2063, %v928, 0.0
      %v2080 = vsel %vm2064, %v927, 0.0
      %v2081 = vsel %vm2063, %v926, 0.0
      %v2082 = vsel %vm2064, %v925, 0.0
      %v2083 = vsel %vm2063, %v924, 0.0
      %v2084 = vsel %vm2064, %v923, 0.0
      %v2085 = vsel %vm2063, %v922, 0.0
      %v2086 = vsel %vm2064, %v921, 0.0
      %v2087 = vsel %vm2063, %v920, 0.0
      %v2088 = vsel %vm2064, %v919, 0.0
      %v2089 = vsel %vm2063, %v918, 0.0
      %v2090 = vsel %vm2064, %v917, 0.0
      %v2091 = vsel %vm2063, %v916, 0.0
      %v2092 = vsel %vm2064, %v915, 0.0
      %v2093 = vsel %vm2063, %v914, 0.0
      %v2094 = vsel %vm2064, %v913, 0.0
      %v2095 = vsel %vm2063, %v2060, 0.0
      %v2096 = vsel %vm2064, %v2059, 0.0
      %v2097 = vpack.c.bf16 %v2066, %v2065
      %v2098 = vpack.c.bf16 %v2068, %v2067
      %v2099 = vpack.c.bf16 %v2070, %v2069
      %v2100 = vpack.c.bf16 %v2072, %v2071
      %v2101 = vpack.c.bf16 %v2074, %v2073
      %v2102 = vpack.c.bf16 %v2076, %v2075
      %v2103 = vpack.c.bf16 %v2078, %v2077
      %v2104 = vpack.c.bf16 %v2080, %v2079
      %v2105 = vpack.c.bf16 %v2082, %v2081
      %v2106 = vpack.c.bf16 %v2084, %v2083
      %v2107 = vpack.c.bf16 %v2086, %v2085
      %v2108 = vpack.c.bf16 %v2088, %v2087
      %v2109 = vpack.c.bf16 %v2090, %v2089
      %v2110 = vpack.c.bf16 %v2092, %v2091
      %v2111 = vpack.c.bf16 %v2094, %v2093
      %v2112 = vpack.c.bf16 %v2096, %v2095
      %v2114 = vsel %vm1175, %v2097, 0
      %v2117 = vsel %vm1175, %v2098, 0
      %v2120 = vsel %vm1175, %v2099, 0
      %v2123 = vsel %vm1175, %v2100, 0
      %v2126 = vsel %vm1175, %v2101, 0
      %v2129 = vsel %vm1175, %v2102, 0
      %v2132 = vsel %vm1175, %v2103, 0
      %v2135 = vsel %vm1175, %v2104, 0
      %v2138 = vsel %vm1175, %v2105, 0
      %v2141 = vsel %vm1175, %v2106, 0
      %v2144 = vsel %vm1175, %v2107, 0
      %v2147 = vsel %vm1175, %v2108, 0
      %v2150 = vsel %vm1175, %v2109, 0
      %v2153 = vsel %vm1175, %v2110, 0
      %v2156 = vsel %vm1175, %v2111, 0
      %v2159 = vsel %vm1175, %v2112, 0
      %v2162 = vsel %vm1224, %v840, 0
      %2164 = vmatprep.subr.bf16.mxu0 0
      %2165 = vmatpush1.bf16.msra.mxu0 %v2162
      %2166 = vmatprep.subr.bf16.mxu0 0
      %2167 = vmatpush1.bf16.msra.mxu0 0
      %2168 = vmatprep.subr.bf16.mxu0 0
      %2169 = vmatpush1.bf16.msra.mxu0 0
      %2170 = vmatprep.subr.bf16.mxu0 0
      %2171 = vmatpush1.bf16.msra.mxu0 0
      %2172 = vmatprep.subr.bf16.mxu0 0
      %2173 = vmatpush1.bf16.msra.mxu0 0
      %2174 = vmatprep.subr.bf16.mxu0 0
      %2175 = vmatpush1.bf16.msra.mxu0 0
      %2176 = vmatprep.subr.bf16.mxu0 0
      %2177 = vmatpush1.bf16.msra.mxu0 0
      %2178 = vmatprep.subr.bf16.mxu0 0
      %2179 = vmatpush1.bf16.msra.mxu0 0
      %2180 = vmatprep.subr.bf16.mxu0 0
      %2181 = vmatpush1.bf16.msra.mxu0 0
      %2182 = vmatprep.subr.bf16.mxu0 0
      %2183 = vmatpush1.bf16.msra.mxu0 0
      %2184 = vmatprep.subr.bf16.mxu0 0
      %2185 = vmatpush1.bf16.msra.mxu0 0
      %2186 = vmatprep.subr.bf16.mxu0 0
      %2187 = vmatpush1.bf16.msra.mxu0 0
      %2188 = vmatprep.subr.bf16.mxu0 0
      %2189 = vmatpush1.bf16.msra.mxu0 0
      %2190 = vmatprep.subr.bf16.mxu0 0
      %2191 = vmatpush1.bf16.msra.mxu0 0
      %2192 = vmatprep.subr.bf16.mxu0 0
      %2193 = vmatpush1.bf16.msra.mxu0 0
      %2194 = vmatprep.subr.bf16.mxu0 0
      %2195 = vmatpush1.bf16.msra.mxu0 0
      %2196 = vmatprep.mubr.bf16.mxu0 0
      %2197 = vmatmul.mubr.bf16.gmra.mrb[0].mxu0 %v2114
      %v2198 = vpop.f32.mrb[0].mxu0
      %v2199 = vadd.f32 0.0, %v2198
      %v2200 = vpop.f32.mrb[0].mxu0
      %v2201 = vpop.f32.mrb[0].mxu0
      %v2202 = vadd.f32 0.0, %v2201
      %v2203 = vpop.f32.mrb[0].mxu0
      %2204 = vmatprep.mubr.bf16.mxu0 0
      %2205 = vmatmul.mubr.bf16.gmra.mrb[0].mxu0 %v2117
      %v2206 = vpop.f32.mrb[0].mxu0
      %v2207 = vadd.f32 0.0, %v2206
      %v2208 = vpop.f32.mrb[0].mxu0
      %v2209 = vpop.f32.mrb[0].mxu0
      %v2210 = vadd.f32 0.0, %v2209
      %v2211 = vpop.f32.mrb[0].mxu0
      %2212 = vmatprep.mubr.bf16.mxu0 0
      %2213 = vmatmul.mubr.bf16.gmra.mrb[0].mxu0 %v2120
      %v2214 = vpop.f32.mrb[0].mxu0
      %v2215 = vadd.f32 0.0, %v2214
      %v2216 = vpop.f32.mrb[0].mxu0
      %v2217 = vpop.f32.mrb[0].mxu0
      %v2218 = vadd.f32 0.0, %v2217
      %v2219 = vpop.f32.mrb[0].mxu0
      %2220 = vmatprep.mubr.bf16.mxu0 0
      %2221 = vmatmul.mubr.bf16.gmra.mrb[0].mxu0 %v2123
      %v2222 = vpop.f32.mrb[0].mxu0
      %v2223 = vadd.f32 0.0, %v2222
      %v2224 = vpop.f32.mrb[0].mxu0
      %v2225 = vpop.f32.mrb[0].mxu0
      %v2226 = vadd.f32 0.0, %v2225
      %v2227 = vpop.f32.mrb[0].mxu0
      %2228 = vmatprep.mubr.bf16.mxu0 0
      %2229 = vmatmul.mubr.bf16.gmra.mrb[0].mxu0 %v2126
      %v2230 = vpop.f32.mrb[0].mxu0
      %v2231 = vadd.f32 0.0, %v2230
      %v2232 = vpop.f32.mrb[0].mxu0
      %v2233 = vpop.f32.mrb[0].mxu0
      %v2234 = vadd.f32 0.0, %v2233
      %v2235 = vpop.f32.mrb[0].mxu0
      %2236 = vmatprep.mubr.bf16.mxu0 0
      %2237 = vmatmul.mubr.bf16.gmra.mrb[0].mxu0 %v2129
      %v2238 = vpop.f32.mrb[0].mxu0
      %v2239 = vadd.f32 0.0, %v2238
      %v2240 = vpop.f32.mrb[0].mxu0
      %v2241 = vpop.f32.mrb[0].mxu0
      %v2242 = vadd.f32 0.0, %v2241
      %v2243 = vpop.f32.mrb[0].mxu0
      %2244 = vmatprep.mubr.bf16.mxu0 0
      %2245 = vmatmul.mubr.bf16.gmra.mrb[0].mxu0 %v2132
      %v2246 = vpop.f32.mrb[0].mxu0
      %v2247 = vadd.f32 0.0, %v2246
      %v2248 = vpop.f32.mrb[0].mxu0
      %v2249 = vpop.f32.mrb[0].mxu0
      %v2250 = vadd.f32 0.0, %v2249
      %v2251 = vpop.f32.mrb[0].mxu0
      %2252 = vmatprep.mubr.bf16.mxu0 0
      %2253 = vmatmul.mubr.bf16.gmra.mrb[0].mxu0 %v2135
      %v2254 = vpop.f32.mrb[0].mxu0
      %v2255 = vadd.f32 0.0, %v2254
      %v2256 = vpop.f32.mrb[0].mxu0
      %v2257 = vpop.f32.mrb[0].mxu0
      %v2258 = vadd.f32 0.0, %v2257
      %v2259 = vpop.f32.mrb[0].mxu0
      %2260 = vmatprep.mubr.bf16.mxu0 0
      %2261 = vmatmul.mubr.bf16.gmra.mrb[0].mxu0 %v2138
      %v2262 = vpop.f32.mrb[0].mxu0
      %v2263 = vadd.f32 0.0, %v2262
      %v2264 = vpop.f32.mrb[0].mxu0
      %v2265 = vpop.f32.mrb[0].mxu0
      %v2266 = vadd.f32 0.0, %v2265
      %v2267 = vpop.f32.mrb[0].mxu0
      %2268 = vmatprep.mubr.bf16.mxu0 0
      %2269 = vmatmul.mubr.bf16.gmra.mrb[0].mxu0 %v2141
      %v2270 = vpop.f32.mrb[0].mxu0
      %v2271 = vadd.f32 0.0, %v2270
      %v2272 = vpop.f32.mrb[0].mxu0
      %v2273 = vpop.f32.mrb[0].mxu0
      %v2274 = vadd.f32 0.0, %v2273
      %v2275 = vpop.f32.mrb[0].mxu0
      %2276 = vmatprep.mubr.bf16.mxu0 0
      %2277 = vmatmul.mubr.bf16.gmra.mrb[0].mxu0 %v2144
      %v2278 = vpop.f32.mrb[0].mxu0
      %v2279 = vadd.f32 0.0, %v2278
      %v2280 = vpop.f32.mrb[0].mxu0
      %v2281 = vpop.f32.mrb[0].mxu0
      %v2282 = vadd.f32 0.0, %v2281
      %v2283 = vpop.f32.mrb[0].mxu0
      %2284 = vmatprep.mubr.bf16.mxu0 0
      %2285 = vmatmul.mubr.bf16.gmra.mrb[0].mxu0 %v2147
      %v2286 = vpop.f32.mrb[0].mxu0
      %v2287 = vadd.f32 0.0, %v2286
      %v2288 = vpop.f32.mrb[0].mxu0
      %v2289 = vpop.f32.mrb[0].mxu0
      %v2290 = vadd.f32 0.0, %v2289
      %v2291 = vpop.f32.mrb[0].mxu0
      %2292 = vmatprep.mubr.bf16.mxu0 0
      %2293 = vmatmul.mubr.bf16.gmra.mrb[0].mxu0 %v2150
      %v2294 = vpop.f32.mrb[0].mxu0
      %v2295 = vadd.f32 0.0, %v2294
      %v2296 = vpop.f32.mrb[0].mxu0
      %v2297 = vpop.f32.mrb[0].mxu0
      %v2298 = vadd.f32 0.0, %v2297
      %v2299 = vpop.f32.mrb[0].mxu0
      %2300 = vmatprep.mubr.bf16.mxu0 0
      %2301 = vmatmul.mubr.bf16.gmra.mrb[0].mxu0 %v2153
      %v2302 = vpop.f32.mrb[0].mxu0
      %v2303 = vadd.f32 0.0, %v2302
      %v2304 = vpop.f32.mrb[0].mxu0
      %v2305 = vpop.f32.mrb[0].mxu0
      %v2306 = vadd.f32 0.0, %v2305
      %v2307 = vpop.f32.mrb[0].mxu0
      %2308 = vmatprep.mubr.bf16.mxu0 0
      %2309 = vmatmul.mubr.bf16.gmra.mrb[0].mxu0 %v2156
      %v2310 = vpop.f32.mrb[0].mxu0
      %v2311 = vadd.f32 0.0, %v2310
      %v2312 = vpop.f32.mrb[0].mxu0
      %v2313 = vpop.f32.mrb[0].mxu0
      %v2314 = vadd.f32 0.0, %v2313
      %v2315 = vpop.f32.mrb[0].mxu0
      %2316 = vmatprep.mubr.bf16.mxu0 0
      %2317 = vmatmul.mubr.bf16.gmra.mrb[0].mxu0 %v2159
      %v2318 = vpop.f32.mrb[0].mxu0
      %v2319 = vadd.f32 0.0, %v2318
      %v2320 = vpop.f32.mrb[0].mxu0
      %v2321 = vpop.f32.mrb[0].mxu0
      %v2322 = vadd.f32 0.0, %v2321
      %v2323 = vpop.f32.mrb[0].mxu0
      %2324 = vdwg.mxu0
      %v2325 = vadd.f32 %v2025, %v2199
      %v2326 = vadd.f32 %v2026, %v2202
      %v2327 = vadd.f32 %v2027, %v2207
      %v2328 = vadd.f32 %v2028, %v2210
      %v2329 = vadd.f32 %v2029, %v2215
      %v2330 = vadd.f32 %v2030, %v2218
      %v2331 = vadd.f32 %v2031, %v2223
      %v2332 = vadd.f32 %v2032, %v2226
      %v2333 = vadd.f32 %v2033, %v2231
      %v2334 = vadd.f32 %v2034, %v2234
      %v2335 = vadd.f32 %v2035, %v2239
      %v2336 = vadd.f32 %v2036, %v2242
      %v2337 = vadd.f32 %v2037, %v2247
      %v2338 = vadd.f32 %v2038, %v2250
      %v2339 = vadd.f32 %v2039, %v2255
      %v2340 = vadd.f32 %v2040, %v2258
      %v2341 = vadd.f32 %v2041, %v2263
      %v2342 = vadd.f32 %v2042, %v2266
      %v2343 = vadd.f32 %v2043, %v2271
      %v2344 = vadd.f32 %v2044, %v2274
      %v2345 = vadd.f32 %v2045, %v2279
      %v2346 = vadd.f32 %v2046, %v2282
      %v2347 = vadd.f32 %v2047, %v2287
      %v2348 = vadd.f32 %v2048, %v2290
      %v2349 = vadd.f32 %v2049, %v2295
      %v2350 = vadd.f32 %v2050, %v2298
      %v2351 = vadd.f32 %v2051, %v2303
      %v2352 = vadd.f32 %v2052, %v2306
      %v2353 = vadd.f32 %v2053, %v2311
      %v2354 = vadd.f32 %v2054, %v2314
      %v2355 = vadd.f32 %v2055, %v2319
      %v2356 = vadd.f32 %v2056, %v2322
      %v2357 = vpack.c.bf16 %v805, %v804
      %v2358 = vpack.c.bf16 %v807, %v806
      %v2359 = vpack.c.bf16 %v809, %v808
      %v2360 = vpack.c.bf16 %v811, %v810
      %v2361 = vpack.c.bf16 %v813, %v812
      %v2362 = vpack.c.bf16 %v815, %v814
      %v2363 = vpack.c.bf16 %v817, %v816
      %v2364 = vpack.c.bf16 %v819, %v818
      %v2365 = vpack.c.bf16 %v821, %v820
      %v2366 = vpack.c.bf16 %v823, %v822
      %v2367 = vpack.c.bf16 %v825, %v824
      %v2368 = vpack.c.bf16 %v827, %v826
      %v2369 = vpack.c.bf16 %v829, %v828
      %v2370 = vpack.c.bf16 %v831, %v830
      %v2371 = vpack.c.bf16 %v833, %v832
      %v2372 = vpack.c.bf16 %v835, %v834
      %v2374 = vunpack.c.l.b16 %v840
      %v2375 = vpack.c.b16 %v2374, %v2374
      %v2376 = vrot.slane %v2375, 2
      %v2378 = vsel %vm1175, %v2357, 0
      %v2381 = vsel %vm1175, %v2358, 0
      %v2384 = vsel %vm1175, %v2359, 0
      %v2387 = vsel %vm1175, %v2360, 0
      %v2390 = vsel %vm1175, %v2361, 0
      %v2393 = vsel %vm1175, %v2362, 0
      %v2396 = vsel %vm1175, %v2363, 0
      %v2399 = vsel %vm1175, %v2364, 0
      %v2402 = vsel %vm1175, %v2365, 0
      %v2405 = vsel %vm1175, %v2366, 0
      %v2408 = vsel %vm1175, %v2367, 0
      %v2411 = vsel %vm1175, %v2368, 0
      %v2414 = vsel %vm1175, %v2369, 0
      %v2417 = vsel %vm1175, %v2370, 0
      %v2420 = vsel %vm1175, %v2371, 0
      %v2423 = vsel %vm1175, %v2372, 0
      %v2426 = vsel %vm1224, %v2376, 0
      %2428 = vmatprep.subr.bf16.mxu0 0
      %2429 = vmatpush1.bf16.msra.mxu0 %v2426
      %2430 = vmatprep.subr.bf16.mxu0 0
      %2431 = vmatpush1.bf16.msra.mxu0 0
      %2432 = vmatprep.subr.bf16.mxu0 0
      %2433 = vmatpush1.bf16.msra.mxu0 0
      %2434 = vmatprep.subr.bf16.mxu0 0
      %2435 = vmatpush1.bf16.msra.mxu0 0
      %2436 = vmatprep.subr.bf16.mxu0 0
      %2437 = vmatpush1.bf16.msra.mxu0 0
      %2438 = vmatprep.subr.bf16.mxu0 0
      %2439 = vmatpush1.bf16.msra.mxu0 0
      %2440 = vmatprep.subr.bf16.mxu0 0
      %2441 = vmatpush1.bf16.msra.mxu0 0
      %2442 = vmatprep.subr.bf16.mxu0 0
      %2443 = vmatpush1.bf16.msra.mxu0 0
      %2444 = vmatprep.subr.bf16.mxu0 0
      %2445 = vmatpush1.bf16.msra.mxu0 0
      %2446 = vmatprep.subr.bf16.mxu0 0
      %2447 = vmatpush1.bf16.msra.mxu0 0
      %2448 = vmatprep.subr.bf16.mxu0 0
      %2449 = vmatpush1.bf16.msra.mxu0 0
      %2450 = vmatprep.subr.bf16.mxu0 0
      %2451 = vmatpush1.bf16.msra.mxu0 0
      %2452 = vmatprep.subr.bf16.mxu0 0
      %2453 = vmatpush1.bf16.msra.mxu0 0
      %2454 = vmatprep.subr.bf16.mxu0 0
      %2455 = vmatpush1.bf16.msra.mxu0 0
      %2456 = vmatprep.subr.bf16.mxu0 0
      %2457 = vmatpush1.bf16.msra.mxu0 0
      %2458 = vmatprep.subr.bf16.mxu0 0
      %2459 = vmatpush1.bf16.msra.mxu0 0
      %2460 = vmatprep.mubr.bf16.mxu0 0
      %2461 = vmatmul.mubr.bf16.gmra.mrb[0].mxu0 %v2378
      %v2462 = vpop.f32.mrb[0].mxu0
      %v2463 = vadd.f32 0.0, %v2462
      %v2464 = vpop.f32.mrb[0].mxu0
      %v2465 = vpop.f32.mrb[0].mxu0
      %v2466 = vadd.f32 0.0, %v2465
      %v2467 = vpop.f32.mrb[0].mxu0
      %2468 = vmatprep.mubr.bf16.mxu0 0
      %2469 = vmatmul.mubr.bf16.gmra.mrb[0].mxu0 %v2381
      %v2470 = vpop.f32.mrb[0].mxu0
      %v2471 = vadd.f32 0.0, %v2470
      %v2472 = vpop.f32.mrb[0].mxu0
      %v2473 = vpop.f32.mrb[0].mxu0
      %v2474 = vadd.f32 0.0, %v2473
      %v2475 = vpop.f32.mrb[0].mxu0
      %2476 = vmatprep.mubr.bf16.mxu0 0
      %2477 = vmatmul.mubr.bf16.gmra.mrb[0].mxu0 %v2384
      %v2478 = vpop.f32.mrb[0].mxu0
      %v2479 = vadd.f32 0.0, %v2478
      %v2480 = vpop.f32.mrb[0].mxu0
      %v2481 = vpop.f32.mrb[0].mxu0
      %v2482 = vadd.f32 0.0, %v2481
      %v2483 = vpop.f32.mrb[0].mxu0
      %2484 = vmatprep.mubr.bf16.mxu0 0
      %2485 = vmatmul.mubr.bf16.gmra.mrb[0].mxu0 %v2387
      %v2486 = vpop.f32.mrb[0].mxu0
      %v2487 = vadd.f32 0.0, %v2486
      %v2488 = vpop.f32.mrb[0].mxu0
      %v2489 = vpop.f32.mrb[0].mxu0
      %v2490 = vadd.f32 0.0, %v2489
      %v2491 = vpop.f32.mrb[0].mxu0
      %2492 = vmatprep.mubr.bf16.mxu0 0
      %2493 = vmatmul.mubr.bf16.gmra.mrb[0].mxu0 %v2390
      %v2494 = vpop.f32.mrb[0].mxu0
      %v2495 = vadd.f32 0.0, %v2494
      %v2496 = vpop.f32.mrb[0].mxu0
      %v2497 = vpop.f32.mrb[0].mxu0
      %v2498 = vadd.f32 0.0, %v2497
      %v2499 = vpop.f32.mrb[0].mxu0
      %2500 = vmatprep.mubr.bf16.mxu0 0
      %2501 = vmatmul.mubr.bf16.gmra.mrb[0].mxu0 %v2393
      %v2502 = vpop.f32.mrb[0].mxu0
      %v2503 = vadd.f32 0.0, %v2502
      %v2504 = vpop.f32.mrb[0].mxu0
      %v2505 = vpop.f32.mrb[0].mxu0
      %v2506 = vadd.f32 0.0, %v2505
      %v2507 = vpop.f32.mrb[0].mxu0
      %2508 = vmatprep.mubr.bf16.mxu0 0
      %2509 = vmatmul.mubr.bf16.gmra.mrb[0].mxu0 %v2396
      %v2510 = vpop.f32.mrb[0].mxu0
      %v2511 = vadd.f32 0.0, %v2510
      %v2512 = vpop.f32.mrb[0].mxu0
      %v2513 = vpop.f32.mrb[0].mxu0
      %v2514 = vadd.f32 0.0, %v2513
      %v2515 = vpop.f32.mrb[0].mxu0
      %2516 = vmatprep.mubr.bf16.mxu0 0
      %2517 = vmatmul.mubr.bf16.gmra.mrb[0].mxu0 %v2399
      %v2518 = vpop.f32.mrb[0].mxu0
      %v2519 = vadd.f32 0.0, %v2518
      %v2520 = vpop.f32.mrb[0].mxu0
      %v2521 = vpop.f32.mrb[0].mxu0
      %v2522 = vadd.f32 0.0, %v2521
      %v2523 = vpop.f32.mrb[0].mxu0
      %2524 = vmatprep.mubr.bf16.mxu0 0
      %2525 = vmatmul.mubr.bf16.gmra.mrb[0].mxu0 %v2402
      %v2526 = vpop.f32.mrb[0].mxu0
      %v2527 = vadd.f32 0.0, %v2526
      %v2528 = vpop.f32.mrb[0].mxu0
      %v2529 = vpop.f32.mrb[0].mxu0
      %v2530 = vadd.f32 0.0, %v2529
      %v2531 = vpop.f32.mrb[0].mxu0
      %2532 = vmatprep.mubr.bf16.mxu0 0
      %2533 = vmatmul.mubr.bf16.gmra.mrb[0].mxu0 %v2405
      %v2534 = vpop.f32.mrb[0].mxu0
      %v2535 = vadd.f32 0.0, %v2534
      %v2536 = vpop.f32.mrb[0].mxu0
      %v2537 = vpop.f32.mrb[0].mxu0
      %v2538 = vadd.f32 0.0, %v2537
      %v2539 = vpop.f32.mrb[0].mxu0
      %2540 = vmatprep.mubr.bf16.mxu0 0
      %2541 = vmatmul.mubr.bf16.gmra.mrb[0].mxu0 %v2408
      %v2542 = vpop.f32.mrb[0].mxu0
      %v2543 = vadd.f32 0.0, %v2542
      %v2544 = vpop.f32.mrb[0].mxu0
      %v2545 = vpop.f32.mrb[0].mxu0
      %v2546 = vadd.f32 0.0, %v2545
      %v2547 = vpop.f32.mrb[0].mxu0
      %2548 = vmatprep.mubr.bf16.mxu0 0
      %2549 = vmatmul.mubr.bf16.gmra.mrb[0].mxu0 %v2411
      %v2550 = vpop.f32.mrb[0].mxu0
      %v2551 = vadd.f32 0.0, %v2550
      %v2552 = vpop.f32.mrb[0].mxu0
      %v2553 = vpop.f32.mrb[0].mxu0
      %v2554 = vadd.f32 0.0, %v2553
      %v2555 = vpop.f32.mrb[0].mxu0
      %2556 = vmatprep.mubr.bf16.mxu0 0
      %2557 = vmatmul.mubr.bf16.gmra.mrb[0].mxu0 %v2414
      %v2558 = vpop.f32.mrb[0].mxu0
      %v2559 = vadd.f32 0.0, %v2558
      %v2560 = vpop.f32.mrb[0].mxu0
      %v2561 = vpop.f32.mrb[0].mxu0
      %v2562 = vadd.f32 0.0, %v2561
      %v2563 = vpop.f32.mrb[0].mxu0
      %2564 = vmatprep.mubr.bf16.mxu0 0
      %2565 = vmatmul.mubr.bf16.gmra.mrb[0].mxu0 %v2417
      %v2566 = vpop.f32.mrb[0].mxu0
      %v2567 = vadd.f32 0.0, %v2566
      %v2568 = vpop.f32.mrb[0].mxu0
      %v2569 = vpop.f32.mrb[0].mxu0
      %v2570 = vadd.f32 0.0, %v2569
      %v2571 = vpop.f32.mrb[0].mxu0
      %2572 = vmatprep.mubr.bf16.mxu0 0
      %2573 = vmatmul.mubr.bf16.gmra.mrb[0].mxu0 %v2420
      %v2574 = vpop.f32.mrb[0].mxu0
      %v2575 = vadd.f32 0.0, %v2574
      %v2576 = vpop.f32.mrb[0].mxu0
      %v2577 = vpop.f32.mrb[0].mxu0
      %v2578 = vadd.f32 0.0, %v2577
      %v2579 = vpop.f32.mrb[0].mxu0
      %2580 = vmatprep.mubr.bf16.mxu0 0
      %2581 = vmatmul.mubr.bf16.gmra.mrb[0].mxu0 %v2423
      %v2582 = vpop.f32.mrb[0].mxu0
      %v2583 = vadd.f32 0.0, %v2582
      %v2584 = vpop.f32.mrb[0].mxu0
      %v2585 = vpop.f32.mrb[0].mxu0
      %v2586 = vadd.f32 0.0, %v2585
      %v2587 = vpop.f32.mrb[0].mxu0
      %2588 = vdwg.mxu0
      %v2589 = vadd.f32 %v2325, %v2463
      %v2590 = vadd.f32 %v2326, %v2466
      %v2591 = vadd.f32 %v2327, %v2471
      %v2592 = vadd.f32 %v2328, %v2474
      %v2593 = vadd.f32 %v2329, %v2479
      %v2594 = vadd.f32 %v2330, %v2482
      %v2595 = vadd.f32 %v2331, %v2487
      %v2596 = vadd.f32 %v2332, %v2490
      %v2597 = vadd.f32 %v2333, %v2495
      %v2598 = vadd.f32 %v2334, %v2498
      %v2599 = vadd.f32 %v2335, %v2503
      %v2600 = vadd.f32 %v2336, %v2506
      %v2601 = vadd.f32 %v2337, %v2511
      %v2602 = vadd.f32 %v2338, %v2514
      %v2603 = vadd.f32 %v2339, %v2519
      %v2604 = vadd.f32 %v2340, %v2522
      %v2605 = vadd.f32 %v2341, %v2527
      %v2606 = vadd.f32 %v2342, %v2530
      %v2607 = vadd.f32 %v2343, %v2535
      %v2608 = vadd.f32 %v2344, %v2538
      %v2609 = vadd.f32 %v2345, %v2543
      %v2610 = vadd.f32 %v2346, %v2546
      %v2611 = vadd.f32 %v2347, %v2551
      %v2612 = vadd.f32 %v2348, %v2554
      %v2613 = vadd.f32 %v2349, %v2559
      %v2614 = vadd.f32 %v2350, %v2562
      %v2615 = vadd.f32 %v2351, %v2567
      %v2616 = vadd.f32 %v2352, %v2570
      %v2617 = vadd.f32 %v2353, %v2575
      %v2618 = vadd.f32 %v2354, %v2578
      %v2619 = vadd.f32 %v2355, %v2583
      %v2620 = vadd.f32 %v2356, %v2586
      %v2621 = vrot.slane %v835, 1
      %v2622 = vrot.slane %v836, 1
      %v2623 = vsel %vm1634, %v2621, %v2622
      %v2624 = vsel %vm1634, %v1633, %v2621
      %v2625 = vsel %vm1667, 1, 0
      %v2626 = vsel %vm1668, 1, 0
      %vm2627 = vcmp.eq.s32.totalorder %v2625, 1
      %vm2628 = vcmp.eq.s32.totalorder %v2626, 1
      %v2629 = vsel %vm2627, %v1664, 0.0
      %v2630 = vsel %vm2628, %v1663, 0.0
      %v2631 = vsel %vm2627, %v1662, 0.0
      %v2632 = vsel %vm2628, %v1661, 0.0
      %v2633 = vsel %vm2627, %v1660, 0.0
      %v2634 = vsel %vm2628, %v1659, 0.0
      %v2635 = vsel %vm2627, %v1658, 0.0
      %v2636 = vsel %vm2628, %v1657, 0.0
      %v2637 = vsel %vm2627, %v1656, 0.0
      %v2638 = vsel %vm2628, %v1655, 0.0
      %v2639 = vsel %vm2627, %v1654, 0.0
      %v2640 = vsel %vm2628, %v1653, 0.0
      %v2641 = vsel %vm2627, %v1652, 0.0
      %v2642 = vsel %vm2628, %v1651, 0.0
      %v2643 = vsel %vm2627, %v1650, 0.0
      %v2644 = vsel %vm2628, %v1649, 0.0
      %v2645 = vsel %vm2627, %v1648, 0.0
      %v2646 = vsel %vm2628, %v1647, 0.0
      %v2647 = vsel %vm2627, %v1646, 0.0
      %v2648 = vsel %vm2628, %v1645, 0.0
      %v2649 = vsel %vm2627, %v1644, 0.0
      %v2650 = vsel %vm2628, %v1643, 0.0
      %v2651 = vsel %vm2627, %v1642, 0.0
      %v2652 = vsel %vm2628, %v1641, 0.0
      %v2653 = vsel %vm2627, %v1640, 0.0
      %v2654 = vsel %vm2628, %v1639, 0.0
      %v2655 = vsel %vm2627, %v1638, 0.0
      %v2656 = vsel %vm2628, %v1637, 0.0
      %v2657 = vsel %vm2627, %v1636, 0.0
      %v2658 = vsel %vm2628, %v1635, 0.0
      %v2659 = vsel %vm2627, %v2624, 0.0
      %v2660 = vsel %vm2628, %v2623, 0.0
      %v2661 = vpack.c.bf16 %v2630, %v2629
      %v2662 = vpack.c.bf16 %v2632, %v2631
      %v2663 = vpack.c.bf16 %v2634, %v2633
      %v2664 = vpack.c.bf16 %v2636, %v2635
      %v2665 = vpack.c.bf16 %v2638, %v2637
      %v2666 = vpack.c.bf16 %v2640, %v2639
      %v2667 = vpack.c.bf16 %v2642, %v2641
      %v2668 = vpack.c.bf16 %v2644, %v2643
      %v2669 = vpack.c.bf16 %v2646, %v2645
      %v2670 = vpack.c.bf16 %v2648, %v2647
      %v2671 = vpack.c.bf16 %v2650, %v2649
      %v2672 = vpack.c.bf16 %v2652, %v2651
      %v2673 = vpack.c.bf16 %v2654, %v2653
      %v2674 = vpack.c.bf16 %v2656, %v2655
      %v2675 = vpack.c.bf16 %v2658, %v2657
      %v2676 = vpack.c.bf16 %v2660, %v2659
      %v2678 = vsel %vm1175, %v2661, 0
      %v2681 = vsel %vm1175, %v2662, 0
      %v2684 = vsel %vm1175, %v2663, 0
      %v2687 = vsel %vm1175, %v2664, 0
      %v2690 = vsel %vm1175, %v2665, 0
      %v2693 = vsel %vm1175, %v2666, 0
      %v2696 = vsel %vm1175, %v2667, 0
      %v2699 = vsel %vm1175, %v2668, 0
      %v2702 = vsel %vm1175, %v2669, 0
      %v2705 = vsel %vm1175, %v2670, 0
      %v2708 = vsel %vm1175, %v2671, 0
      %v2711 = vsel %vm1175, %v2672, 0
      %v2714 = vsel %vm1175, %v2673, 0
      %v2717 = vsel %vm1175, %v2674, 0
      %v2720 = vsel %vm1175, %v2675, 0
      %v2723 = vsel %vm1175, %v2676, 0
      %v2726 = vsel %vm1224, %v841, 0
      %2728 = vmatprep.subr.bf16.mxu0 0
      %2729 = vmatpush1.bf16.msra.mxu0 %v2726
      %2730 = vmatprep.subr.bf16.mxu0 0
      %2731 = vmatpush1.bf16.msra.mxu0 0
      %2732 = vmatprep.subr.bf16.mxu0 0
      %2733 = vmatpush1.bf16.msra.mxu0 0
      %2734 = vmatprep.subr.bf16.mxu0 0
      %2735 = vmatpush1.bf16.msra.mxu0 0
      %2736 = vmatprep.subr.bf16.mxu0 0
      %2737 = vmatpush1.bf16.msra.mxu0 0
      %2738 = vmatprep.subr.bf16.mxu0 0
      %2739 = vmatpush1.bf16.msra.mxu0 0
      %2740 = vmatprep.subr.bf16.mxu0 0
      %2741 = vmatpush1.bf16.msra.mxu0 0
      %2742 = vmatprep.subr.bf16.mxu0 0
      %2743 = vmatpush1.bf16.msra.mxu0 0
      %2744 = vmatprep.subr.bf16.mxu0 0
      %2745 = vmatpush1.bf16.msra.mxu0 0
      %2746 = vmatprep.subr.bf16.mxu0 0
      %2747 = vmatpush1.bf16.msra.mxu0 0
      %2748 = vmatprep.subr.bf16.mxu0 0
      %2749 = vmatpush1.bf16.msra.mxu0 0
      %2750 = vmatprep.subr.bf16.mxu0 0
      %2751 = vmatpush1.bf16.msra.mxu0 0
      %2752 = vmatprep.subr.bf16.mxu0 0
      %2753 = vmatpush1.bf16.msra.mxu0 0
      %2754 = vmatprep.subr.bf16.mxu0 0
      %2755 = vmatpush1.bf16.msra.mxu0 0
      %2756 = vmatprep.subr.bf16.mxu0 0
      %2757 = vmatpush1.bf16.msra.mxu0 0
      %2758 = vmatprep.subr.bf16.mxu0 0
      %2759 = vmatpush1.bf16.msra.mxu0 0
      %2760 = vmatprep.mubr.bf16.mxu0 0
      %2761 = vmatmul.mubr.bf16.gmra.mrb[0].mxu0 %v2678
      %v2762 = vpop.f32.mrb[0].mxu0
      %v2763 = vadd.f32 0.0, %v2762
      %v2764 = vpop.f32.mrb[0].mxu0
      %v2765 = vpop.f32.mrb[0].mxu0
      %v2766 = vadd.f32 0.0, %v2765
      %v2767 = vpop.f32.mrb[0].mxu0
      %2768 = vmatprep.mubr.bf16.mxu0 0
      %2769 = vmatmul.mubr.bf16.gmra.mrb[0].mxu0 %v2681
      %v2770 = vpop.f32.mrb[0].mxu0
      %v2771 = vadd.f32 0.0, %v2770
      %v2772 = vpop.f32.mrb[0].mxu0
      %v2773 = vpop.f32.mrb[0].mxu0
      %v2774 = vadd.f32 0.0, %v2773
      %v2775 = vpop.f32.mrb[0].mxu0
      %2776 = vmatprep.mubr.bf16.mxu0 0
      %2777 = vmatmul.mubr.bf16.gmra.mrb[0].mxu0 %v2684
      %v2778 = vpop.f32.mrb[0].mxu0
      %v2779 = vadd.f32 0.0, %v2778
      %v2780 = vpop.f32.mrb[0].mxu0
      %v2781 = vpop.f32.mrb[0].mxu0
      %v2782 = vadd.f32 0.0, %v2781
      %v2783 = vpop.f32.mrb[0].mxu0
      %2784 = vmatprep.mubr.bf16.mxu0 0
      %2785 = vmatmul.mubr.bf16.gmra.mrb[0].mxu0 %v2687
      %v2786 = vpop.f32.mrb[0].mxu0
      %v2787 = vadd.f32 0.0, %v2786
      %v2788 = vpop.f32.mrb[0].mxu0
      %v2789 = vpop.f32.mrb[0].mxu0
      %v2790 = vadd.f32 0.0, %v2789
      %v2791 = vpop.f32.mrb[0].mxu0
      %2792 = vmatprep.mubr.bf16.mxu0 0
      %2793 = vmatmul.mubr.bf16.gmra.mrb[0].mxu0 %v2690
      %v2794 = vpop.f32.mrb[0].mxu0
      %v2795 = vadd.f32 0.0, %v2794
      %v2796 = vpop.f32.mrb[0].mxu0
      %v2797 = vpop.f32.mrb[0].mxu0
      %v2798 = vadd.f32 0.0, %v2797
      %v2799 = vpop.f32.mrb[0].mxu0
      %2800 = vmatprep.mubr.bf16.mxu0 0
      %2801 = vmatmul.mubr.bf16.gmra.mrb[0].mxu0 %v2693
      %v2802 = vpop.f32.mrb[0].mxu0
      %v2803 = vadd.f32 0.0, %v2802
      %v2804 = vpop.f32.mrb[0].mxu0
      %v2805 = vpop.f32.mrb[0].mxu0
      %v2806 = vadd.f32 0.0, %v2805
      %v2807 = vpop.f32.mrb[0].mxu0
      %2808 = vmatprep.mubr.bf16.mxu0 0
      %2809 = vmatmul.mubr.bf16.gmra.mrb[0].mxu0 %v2696
      %v2810 = vpop.f32.mrb[0].mxu0
      %v2811 = vadd.f32 0.0, %v2810
      %v2812 = vpop.f32.mrb[0].mxu0
      %v2813 = vpop.f32.mrb[0].mxu0
      %v2814 = vadd.f32 0.0, %v2813
      %v2815 = vpop.f32.mrb[0].mxu0
      %2816 = vmatprep.mubr.bf16.mxu0 0
      %2817 = vmatmul.mubr.bf16.gmra.mrb[0].mxu0 %v2699
      %v2818 = vpop.f32.mrb[0].mxu0
      %v2819 = vadd.f32 0.0, %v2818
      %v2820 = vpop.f32.mrb[0].mxu0
      %v2821 = vpop.f32.mrb[0].mxu0
      %v2822 = vadd.f32 0.0, %v2821
      %v2823 = vpop.f32.mrb[0].mxu0
      %2824 = vmatprep.mubr.bf16.mxu0 0
      %2825 = vmatmul.mubr.bf16.gmra.mrb[0].mxu0 %v2702
      %v2826 = vpop.f32.mrb[0].mxu0
      %v2827 = vadd.f32 0.0, %v2826
      %v2828 = vpop.f32.mrb[0].mxu0
      %v2829 = vpop.f32.mrb[0].mxu0
      %v2830 = vadd.f32 0.0, %v2829
      %v2831 = vpop.f32.mrb[0].mxu0
      %2832 = vmatprep.mubr.bf16.mxu0 0
      %2833 = vmatmul.mubr.bf16.gmra.mrb[0].mxu0 %v2705
      %v2834 = vpop.f32.mrb[0].mxu0
      %v2835 = vadd.f32 0.0, %v2834
      %v2836 = vpop.f32.mrb[0].mxu0
      %v2837 = vpop.f32.mrb[0].mxu0
      %v2838 = vadd.f32 0.0, %v2837
      %v2839 = vpop.f32.mrb[0].mxu0
      %2840 = vmatprep.mubr.bf16.mxu0 0
      %2841 = vmatmul.mubr.bf16.gmra.mrb[0].mxu0 %v2708
      %v2842 = vpop.f32.mrb[0].mxu0
      %v2843 = vadd.f32 0.0, %v2842
      %v2844 = vpop.f32.mrb[0].mxu0
      %v2845 = vpop.f32.mrb[0].mxu0
      %v2846 = vadd.f32 0.0, %v2845
      %v2847 = vpop.f32.mrb[0].mxu0
      %2848 = vmatprep.mubr.bf16.mxu0 0
      %2849 = vmatmul.mubr.bf16.gmra.mrb[0].mxu0 %v2711
      %v2850 = vpop.f32.mrb[0].mxu0
      %v2851 = vadd.f32 0.0, %v2850
      %v2852 = vpop.f32.mrb[0].mxu0
      %v2853 = vpop.f32.mrb[0].mxu0
      %v2854 = vadd.f32 0.0, %v2853
      %v2855 = vpop.f32.mrb[0].mxu0
      %2856 = vmatprep.mubr.bf16.mxu0 0
      %2857 = vmatmul.mubr.bf16.gmra.mrb[0].mxu0 %v2714
      %v2858 = vpop.f32.mrb[0].mxu0
      %v2859 = vadd.f32 0.0, %v2858
      %v2860 = vpop.f32.mrb[0].mxu0
      %v2861 = vpop.f32.mrb[0].mxu0
      %v2862 = vadd.f32 0.0, %v2861
      %v2863 = vpop.f32.mrb[0].mxu0
      %2864 = vmatprep.mubr.bf16.mxu0 0
      %2865 = vmatmul.mubr.bf16.gmra.mrb[0].mxu0 %v2717
      %v2866 = vpop.f32.mrb[0].mxu0
      %v2867 = vadd.f32 0.0, %v2866
      %v2868 = vpop.f32.mrb[0].mxu0
      %v2869 = vpop.f32.mrb[0].mxu0
      %v2870 = vadd.f32 0.0, %v2869
      %v2871 = vpop.f32.mrb[0].mxu0
      %2872 = vmatprep.mubr.bf16.mxu0 0
      %2873 = vmatmul.mubr.bf16.gmra.mrb[0].mxu0 %v2720
      %v2874 = vpop.f32.mrb[0].mxu0
      %v2875 = vadd.f32 0.0, %v2874
      %v2876 = vpop.f32.mrb[0].mxu0
      %v2877 = vpop.f32.mrb[0].mxu0
      %v2878 = vadd.f32 0.0, %v2877
      %v2879 = vpop.f32.mrb[0].mxu0
      %2880 = vmatprep.mubr.bf16.mxu0 0
      %2881 = vmatmul.mubr.bf16.gmra.mrb[0].mxu0 %v2723
      %v2882 = vpop.f32.mrb[0].mxu0
      %v2883 = vadd.f32 0.0, %v2882
      %v2884 = vpop.f32.mrb[0].mxu0
      %v2885 = vpop.f32.mrb[0].mxu0
      %v2886 = vadd.f32 0.0, %v2885
      %v2887 = vpop.f32.mrb[0].mxu0
      %2888 = vdwg.mxu0
      %v2889 = vadd.f32 %v2589, %v2763
      %v2890 = vadd.f32 %v2590, %v2766
      %v2891 = vadd.f32 %v2591, %v2771
      %v2892 = vadd.f32 %v2592, %v2774
      %v2893 = vadd.f32 %v2593, %v2779
      %v2894 = vadd.f32 %v2594, %v2782
      %v2895 = vadd.f32 %v2595, %v2787
      %v2896 = vadd.f32 %v2596, %v2790
      %v2897 = vadd.f32 %v2597, %v2795
      %v2898 = vadd.f32 %v2598, %v2798
      %v2899 = vadd.f32 %v2599, %v2803
      %v2900 = vadd.f32 %v2600, %v2806
      %v2901 = vadd.f32 %v2601, %v2811
      %v2902 = vadd.f32 %v2602, %v2814
      %v2903 = vadd.f32 %v2603, %v2819
      %v2904 = vadd.f32 %v2604, %v2822
      %v2905 = vadd.f32 %v2605, %v2827
      %v2906 = vadd.f32 %v2606, %v2830
      %v2907 = vadd.f32 %v2607, %v2835
      %v2908 = vadd.f32 %v2608, %v2838
      %v2909 = vadd.f32 %v2609, %v2843
      %v2910 = vadd.f32 %v2610, %v2846
      %v2911 = vadd.f32 %v2611, %v2851
      %v2912 = vadd.f32 %v2612, %v2854
      %v2913 = vadd.f32 %v2613, %v2859
      %v2914 = vadd.f32 %v2614, %v2862
      %v2915 = vadd.f32 %v2615, %v2867
      %v2916 = vadd.f32 %v2616, %v2870
      %v2917 = vadd.f32 %v2617, %v2875
      %v2918 = vadd.f32 %v2618, %v2878
      %v2919 = vadd.f32 %v2619, %v2883
      %v2920 = vadd.f32 %v2620, %v2886
      %vm2921 = vcmp.le.s32.totalorder %v844, 14
      %vm2922 = vcmp.le.s32.totalorder %v845, 14
      %vm2923 = vcmp.le.s32.totalorder %v846, 14
      %vm2924 = vcmp.le.s32.totalorder %v847, 14
      %vm2925 = vcmp.le.s32.totalorder %v848, 14
      %vm2926 = vcmp.le.s32.totalorder %v849, 14
      %vm2927 = vcmp.le.s32.totalorder %v850, 14
      %vm2928 = vcmp.le.s32.totalorder %v851, 14
      %vm2929 = vcmp.le.s32.totalorder %v852, 14
      %vm2930 = vcmp.le.s32.totalorder %v853, 14
      %vm2931 = vcmp.le.s32.totalorder %v854, 14
      %vm2932 = vcmp.le.s32.totalorder %v855, 14
      %vm2933 = vcmp.le.s32.totalorder %v856, 14
      %vm2934 = vcmp.le.s32.totalorder %v857, 14
      %vm2935 = vcmp.le.s32.totalorder %v858, 14
      %vm2936 = vcmp.le.s32.totalorder %v859, 14
      %v2937 = vrot.slane %v836, 7
      %v2938 = vsel %vm912, %v2937, %v911
      %v2939 = vsel %vm912, %v2058, %v2937
      %vm2940 = vmand %vm2921, %vm945
      %vm2941 = vmand %vm2921, %vm946
      %vm2942 = vmand %vm2922, %vm945
      %vm2943 = vmand %vm2922, %vm946
      %vm2944 = vmand %vm2923, %vm945
      %vm2945 = vmand %vm2923, %vm946
      %vm2946 = vmand %vm2924, %vm945
      %vm2947 = vmand %vm2924, %vm946
      %vm2948 = vmand %vm2925, %vm945
      %vm2949 = vmand %vm2925, %vm946
      %vm2950 = vmand %vm2926, %vm945
      %vm2951 = vmand %vm2926, %vm946
      %vm2952 = vmand %vm2927, %vm945
      %vm2953 = vmand %vm2927, %vm946
      %vm2954 = vmand %vm2928, %vm945
      %vm2955 = vmand %vm2928, %vm946
      %vm2956 = vmand %vm2929, %vm945
      %vm2957 = vmand %vm2929, %vm946
      %vm2958 = vmand %vm2930, %vm945
      %vm2959 = vmand %vm2930, %vm946
      %vm2960 = vmand %vm2931, %vm945
      %vm2961 = vmand %vm2931, %vm946
      %vm2962 = vmand %vm2932, %vm945
      %vm2963 = vmand %vm2932, %vm946
      %vm2964 = vmand %vm2933, %vm945
      %vm2965 = vmand %vm2933, %vm946
      %vm2966 = vmand %vm2934, %vm945
      %vm2967 = vmand %vm2934, %vm946
      %vm2968 = vmand %vm2935, %vm945
      %vm2969 = vmand %vm2935, %vm946
      %vm2970 = vmand %vm2936, %vm945
      %vm2971 = vmand %vm2936, %vm946
      %v2972 = vsel %vm2940, 1, 0
      %v2973 = vsel %vm2941, 1, 0
      %v2974 = vsel %vm2942, 1, 0
      %v2975 = vsel %vm2943, 1, 0
      %v2976 = vsel %vm2944, 1, 0
      %v2977 = vsel %vm2945, 1, 0
      %v2978 = vsel %vm2946, 1, 0
      %v2979 = vsel %vm2947, 1, 0
      %v2980 = vsel %vm2948, 1, 0
      %v2981 = vsel %vm2949, 1, 0
      %v2982 = vsel %vm2950, 1, 0
      %v2983 = vsel %vm2951, 1, 0
      %v2984 = vsel %vm2952, 1, 0
      %v2985 = vsel %vm2953, 1, 0
      %v2986 = vsel %vm2954, 1, 0
      %v2987 = vsel %vm2955, 1, 0
      %v2988 = vsel %vm2956, 1, 0
      %v2989 = vsel %vm2957, 1, 0
      %v2990 = vsel %vm2958, 1, 0
      %v2991 = vsel %vm2959, 1, 0
      %v2992 = vsel %vm2960, 1, 0
      %v2993 = vsel %vm2961, 1, 0
      %v2994 = vsel %vm2962, 1, 0
      %v2995 = vsel %vm2963, 1, 0
      %v2996 = vsel %vm2964, 1, 0
      %v2997 = vsel %vm2965, 1, 0
      %v2998 = vsel %vm2966, 1, 0
      %v2999 = vsel %vm2967, 1, 0
      %v3000 = vsel %vm2968, 1, 0
      %v3001 = vsel %vm2969, 1, 0
      %v3002 = vsel %vm2970, 1, 0
      %v3003 = vsel %vm2971, 1, 0
      %vm3004 = vcmp.eq.s32.totalorder %v2972, 1
      %vm3005 = vcmp.eq.s32.totalorder %v2973, 1
      %vm3006 = vcmp.eq.s32.totalorder %v2974, 1
      %vm3007 = vcmp.eq.s32.totalorder %v2975, 1
      %vm3008 = vcmp.eq.s32.totalorder %v2976, 1
      %vm3009 = vcmp.eq.s32.totalorder %v2977, 1
      %vm3010 = vcmp.eq.s32.totalorder %v2978, 1
      %vm3011 = vcmp.eq.s32.totalorder %v2979, 1
      %vm3012 = vcmp.eq.s32.totalorder %v2980, 1
      %vm3013 = vcmp.eq.s32.totalorder %v2981, 1
      %vm3014 = vcmp.eq.s32.totalorder %v2982, 1
      %vm3015 = vcmp.eq.s32.totalorder %v2983, 1
      %vm3016 = vcmp.eq.s32.totalorder %v2984, 1
      %vm3017 = vcmp.eq.s32.totalorder %v2985, 1
      %vm3018 = vcmp.eq.s32.totalorder %v2986, 1
      %vm3019 = vcmp.eq.s32.totalorder %v2987, 1
      %vm3020 = vcmp.eq.s32.totalorder %v2988, 1
      %vm3021 = vcmp.eq.s32.totalorder %v2989, 1
      %vm3022 = vcmp.eq.s32.totalorder %v2990, 1
      %vm3023 = vcmp.eq.s32.totalorder %v2991, 1
      %vm3024 = vcmp.eq.s32.totalorder %v2992, 1
      %vm3025 = vcmp.eq.s32.totalorder %v2993, 1
      %vm3026 = vcmp.eq.s32.totalorder %v2994, 1
      %vm3027 = vcmp.eq.s32.totalorder %v2995, 1
      %vm3028 = vcmp.eq.s32.totalorder %v2996, 1
      %vm3029 = vcmp.eq.s32.totalorder %v2997, 1
      %vm3030 = vcmp.eq.s32.totalorder %v2998, 1
      %vm3031 = vcmp.eq.s32.totalorder %v2999, 1
      %vm3032 = vcmp.eq.s32.totalorder %v3000, 1
      %vm3033 = vcmp.eq.s32.totalorder %v3001, 1
      %vm3034 = vcmp.eq.s32.totalorder %v3002, 1
      %vm3035 = vcmp.eq.s32.totalorder %v3003, 1
      %v3036 = vsel %vm3004, %v940, 0.0
      %v3037 = vsel %vm3005, %v939, 0.0
      %v3038 = vsel %vm3006, %v938, 0.0
      %v3039 = vsel %vm3007, %v937, 0.0
      %v3040 = vsel %vm3008, %v936, 0.0
      %v3041 = vsel %vm3009, %v935, 0.0
      %v3042 = vsel %vm3010, %v934, 0.0
      %v3043 = vsel %vm3011, %v933, 0.0
      %v3044 = vsel %vm3012, %v932, 0.0
      %v3045 = vsel %vm3013, %v931, 0.0
      %v3046 = vsel %vm3014, %v930, 0.0
      %v3047 = vsel %vm3015, %v929, 0.0
      %v3048 = vsel %vm3016, %v928, 0.0
      %v3049 = vsel %vm3017, %v927, 0.0
      %v3050 = vsel %vm3018, %v926, 0.0
      %v3051 = vsel %vm3019, %v925, 0.0
      %v3052 = vsel %vm3020, %v924, 0.0
      %v3053 = vsel %vm3021, %v923, 0.0
      %v3054 = vsel %vm3022, %v922, 0.0
      %v3055 = vsel %vm3023, %v921, 0.0
      %v3056 = vsel %vm3024, %v920, 0.0
      %v3057 = vsel %vm3025, %v919, 0.0
      %v3058 = vsel %vm3026, %v918, 0.0
      %v3059 = vsel %vm3027, %v917, 0.0
      %v3060 = vsel %vm3028, %v916, 0.0
      %v3061 = vsel %vm3029, %v915, 0.0
      %v3062 = vsel %vm3030, %v914, 0.0
      %v3063 = vsel %vm3031, %v913, 0.0
      %v3064 = vsel %vm3032, %v2060, 0.0
      %v3065 = vsel %vm3033, %v2059, 0.0
      %v3066 = vsel %vm3034, %v2939, 0.0
      %v3067 = vsel %vm3035, %v2938, 0.0
      %v3068 = vpack.c.bf16 %v3037, %v3036
      %v3069 = vpack.c.bf16 %v3039, %v3038
      %v3070 = vpack.c.bf16 %v3041, %v3040
      %v3071 = vpack.c.bf16 %v3043, %v3042
      %v3072 = vpack.c.bf16 %v3045, %v3044
      %v3073 = vpack.c.bf16 %v3047, %v3046
      %v3074 = vpack.c.bf16 %v3049, %v3048
      %v3075 = vpack.c.bf16 %v3051, %v3050
      %v3076 = vpack.c.bf16 %v3053, %v3052
      %v3077 = vpack.c.bf16 %v3055, %v3054
      %v3078 = vpack.c.bf16 %v3057, %v3056
      %v3079 = vpack.c.bf16 %v3059, %v3058
      %v3080 = vpack.c.bf16 %v3061, %v3060
      %v3081 = vpack.c.bf16 %v3063, %v3062
      %v3082 = vpack.c.bf16 %v3065, %v3064
      %v3083 = vpack.c.bf16 %v3067, %v3066
      %v3085 = vsel %vm1175, %v3068, 0
      %v3088 = vsel %vm1175, %v3069, 0
      %v3091 = vsel %vm1175, %v3070, 0
      %v3094 = vsel %vm1175, %v3071, 0
      %v3097 = vsel %vm1175, %v3072, 0
      %v3100 = vsel %vm1175, %v3073, 0
      %v3103 = vsel %vm1175, %v3074, 0
      %v3106 = vsel %vm1175, %v3075, 0
      %v3109 = vsel %vm1175, %v3076, 0
      %v3112 = vsel %vm1175, %v3077, 0
      %v3115 = vsel %vm1175, %v3078, 0
      %v3118 = vsel %vm1175, %v3079, 0
      %v3121 = vsel %vm1175, %v3080, 0
      %v3124 = vsel %vm1175, %v3081, 0
      %v3127 = vsel %vm1175, %v3082, 0
      %v3130 = vsel %vm1175, %v3083, 0
      %v3133 = vsel %vm1224, %v842, 0
      %3135 = vmatprep.subr.bf16.mxu0 0
      %3136 = vmatpush1.bf16.msra.mxu0 %v3133
      %3137 = vmatprep.subr.bf16.mxu0 0
      %3138 = vmatpush1.bf16.msra.mxu0 0
      %3139 = vmatprep.subr.bf16.mxu0 0
      %3140 = vmatpush1.bf16.msra.mxu0 0
      %3141 = vmatprep.subr.bf16.mxu0 0
      %3142 = vmatpush1.bf16.msra.mxu0 0
      %3143 = vmatprep.subr.bf16.mxu0 0
      %3144 = vmatpush1.bf16.msra.mxu0 0
      %3145 = vmatprep.subr.bf16.mxu0 0
      %3146 = vmatpush1.bf16.msra.mxu0 0
      %3147 = vmatprep.subr.bf16.mxu0 0
      %3148 = vmatpush1.bf16.msra.mxu0 0
      %3149 = vmatprep.subr.bf16.mxu0 0
      %3150 = vmatpush1.bf16.msra.mxu0 0
      %3151 = vmatprep.subr.bf16.mxu0 0
      %3152 = vmatpush1.bf16.msra.mxu0 0
      %3153 = vmatprep.subr.bf16.mxu0 0
      %3154 = vmatpush1.bf16.msra.mxu0 0
      %3155 = vmatprep.subr.bf16.mxu0 0
      %3156 = vmatpush1.bf16.msra.mxu0 0
      %3157 = vmatprep.subr.bf16.mxu0 0
      %3158 = vmatpush1.bf16.msra.mxu0 0
      %3159 = vmatprep.subr.bf16.mxu0 0
      %3160 = vmatpush1.bf16.msra.mxu0 0
      %3161 = vmatprep.subr.bf16.mxu0 0
      %3162 = vmatpush1.bf16.msra.mxu0 0
      %3163 = vmatprep.subr.bf16.mxu0 0
      %3164 = vmatpush1.bf16.msra.mxu0 0
      %3165 = vmatprep.subr.bf16.mxu0 0
      %3166 = vmatpush1.bf16.msra.mxu0 0
      %3167 = vmatprep.mubr.bf16.mxu0 0
      %3168 = vmatmul.mubr.bf16.gmra.mrb[0].mxu0 %v3085
      %v3169 = vpop.f32.mrb[0].mxu0
      %v3170 = vadd.f32 0.0, %v3169
      %v3171 = vpop.f32.mrb[0].mxu0
      %v3172 = vpop.f32.mrb[0].mxu0
      %v3173 = vadd.f32 0.0, %v3172
      %v3174 = vpop.f32.mrb[0].mxu0
      %3175 = vmatprep.mubr.bf16.mxu0 0
      %3176 = vmatmul.mubr.bf16.gmra.mrb[0].mxu0 %v3088
      %v3177 = vpop.f32.mrb[0].mxu0
      %v3178 = vadd.f32 0.0, %v3177
      %v3179 = vpop.f32.mrb[0].mxu0
      %v3180 = vpop.f32.mrb[0].mxu0
      %v3181 = vadd.f32 0.0, %v3180
      %v3182 = vpop.f32.mrb[0].mxu0
      %3183 = vmatprep.mubr.bf16.mxu0 0
      %3184 = vmatmul.mubr.bf16.gmra.mrb[0].mxu0 %v3091
      %v3185 = vpop.f32.mrb[0].mxu0
      %v3186 = vadd.f32 0.0, %v3185
      %v3187 = vpop.f32.mrb[0].mxu0
      %v3188 = vpop.f32.mrb[0].mxu0
      %v3189 = vadd.f32 0.0, %v3188
      %v3190 = vpop.f32.mrb[0].mxu0
      %3191 = vmatprep.mubr.bf16.mxu0 0
      %3192 = vmatmul.mubr.bf16.gmra.mrb[0].mxu0 %v3094
      %v3193 = vpop.f32.mrb[0].mxu0
      %v3194 = vadd.f32 0.0, %v3193
      %v3195 = vpop.f32.mrb[0].mxu0
      %v3196 = vpop.f32.mrb[0].mxu0
      %v3197 = vadd.f32 0.0, %v3196
      %v3198 = vpop.f32.mrb[0].mxu0
      %3199 = vmatprep.mubr.bf16.mxu0 0
      %3200 = vmatmul.mubr.bf16.gmra.mrb[0].mxu0 %v3097
      %v3201 = vpop.f32.mrb[0].mxu0
      %v3202 = vadd.f32 0.0, %v3201
      %v3203 = vpop.f32.mrb[0].mxu0
      %v3204 = vpop.f32.mrb[0].mxu0
      %v3205 = vadd.f32 0.0, %v3204
      %v3206 = vpop.f32.mrb[0].mxu0
      %3207 = vmatprep.mubr.bf16.mxu0 0
      %3208 = vmatmul.mubr.bf16.gmra.mrb[0].mxu0 %v3100
      %v3209 = vpop.f32.mrb[0].mxu0
      %v3210 = vadd.f32 0.0, %v3209
      %v3211 = vpop.f32.mrb[0].mxu0
      %v3212 = vpop.f32.mrb[0].mxu0
      %v3213 = vadd.f32 0.0, %v3212
      %v3214 = vpop.f32.mrb[0].mxu0
      %3215 = vmatprep.mubr.bf16.mxu0 0
      %3216 = vmatmul.mubr.bf16.gmra.mrb[0].mxu0 %v3103
      %v3217 = vpop.f32.mrb[0].mxu0
      %v3218 = vadd.f32 0.0, %v3217
      %v3219 = vpop.f32.mrb[0].mxu0
      %v3220 = vpop.f32.mrb[0].mxu0
      %v3221 = vadd.f32 0.0, %v3220
      %v3222 = vpop.f32.mrb[0].mxu0
      %3223 = vmatprep.mubr.bf16.mxu0 0
      %3224 = vmatmul.mubr.bf16.gmra.mrb[0].mxu0 %v3106
      %v3225 = vpop.f32.mrb[0].mxu0
      %v3226 = vadd.f32 0.0, %v3225
      %v3227 = vpop.f32.mrb[0].mxu0
      %v3228 = vpop.f32.mrb[0].mxu0
      %v3229 = vadd.f32 0.0, %v3228
      %v3230 = vpop.f32.mrb[0].mxu0
      %3231 = vmatprep.mubr.bf16.mxu0 0
      %3232 = vmatmul.mubr.bf16.gmra.mrb[0].mxu0 %v3109
      %v3233 = vpop.f32.mrb[0].mxu0
      %v3234 = vadd.f32 0.0, %v3233
      %v3235 = vpop.f32.mrb[0].mxu0
      %v3236 = vpop.f32.mrb[0].mxu0
      %v3237 = vadd.f32 0.0, %v3236
      %v3238 = vpop.f32.mrb[0].mxu0
      %3239 = vmatprep.mubr.bf16.mxu0 0
      %3240 = vmatmul.mubr.bf16.gmra.mrb[0].mxu0 %v3112
      %v3241 = vpop.f32.mrb[0].mxu0
      %v3242 = vadd.f32 0.0, %v3241
      %v3243 = vpop.f32.mrb[0].mxu0
      %v3244 = vpop.f32.mrb[0].mxu0
      %v3245 = vadd.f32 0.0, %v3244
      %v3246 = vpop.f32.mrb[0].mxu0
      %3247 = vmatprep.mubr.bf16.mxu0 0
      %3248 = vmatmul.mubr.bf16.gmra.mrb[0].mxu0 %v3115
      %v3249 = vpop.f32.mrb[0].mxu0
      %v3250 = vadd.f32 0.0, %v3249
      %v3251 = vpop.f32.mrb[0].mxu0
      %v3252 = vpop.f32.mrb[0].mxu0
      %v3253 = vadd.f32 0.0, %v3252
      %v3254 = vpop.f32.mrb[0].mxu0
      %3255 = vmatprep.mubr.bf16.mxu0 0
      %3256 = vmatmul.mubr.bf16.gmra.mrb[0].mxu0 %v3118
      %v3257 = vpop.f32.mrb[0].mxu0
      %v3258 = vadd.f32 0.0, %v3257
      %v3259 = vpop.f32.mrb[0].mxu0
      %v3260 = vpop.f32.mrb[0].mxu0
      %v3261 = vadd.f32 0.0, %v3260
      %v3262 = vpop.f32.mrb[0].mxu0
      %3263 = vmatprep.mubr.bf16.mxu0 0
      %3264 = vmatmul.mubr.bf16.gmra.mrb[0].mxu0 %v3121
      %v3265 = vpop.f32.mrb[0].mxu0
      %v3266 = vadd.f32 0.0, %v3265
      %v3267 = vpop.f32.mrb[0].mxu0
      %v3268 = vpop.f32.mrb[0].mxu0
      %v3269 = vadd.f32 0.0, %v3268
      %v3270 = vpop.f32.mrb[0].mxu0
      %3271 = vmatprep.mubr.bf16.mxu0 0
      %3272 = vmatmul.mubr.bf16.gmra.mrb[0].mxu0 %v3124
      %v3273 = vpop.f32.mrb[0].mxu0
      %v3274 = vadd.f32 0.0, %v3273
      %v3275 = vpop.f32.mrb[0].mxu0
      %v3276 = vpop.f32.mrb[0].mxu0
      %v3277 = vadd.f32 0.0, %v3276
      %v3278 = vpop.f32.mrb[0].mxu0
      %3279 = vmatprep.mubr.bf16.mxu0 0
      %3280 = vmatmul.mubr.bf16.gmra.mrb[0].mxu0 %v3127
      %v3281 = vpop.f32.mrb[0].mxu0
      %v3282 = vadd.f32 0.0, %v3281
      %v3283 = vpop.f32.mrb[0].mxu0
      %v3284 = vpop.f32.mrb[0].mxu0
      %v3285 = vadd.f32 0.0, %v3284
      %v3286 = vpop.f32.mrb[0].mxu0
      %3287 = vmatprep.mubr.bf16.mxu0 0
      %3288 = vmatmul.mubr.bf16.gmra.mrb[0].mxu0 %v3130
      %v3289 = vpop.f32.mrb[0].mxu0
      %v3290 = vadd.f32 0.0, %v3289
      %v3291 = vpop.f32.mrb[0].mxu0
      %v3292 = vpop.f32.mrb[0].mxu0
      %v3293 = vadd.f32 0.0, %v3292
      %v3294 = vpop.f32.mrb[0].mxu0
      %3295 = vdwg.mxu0
      %v3296 = vadd.f32 %v2889, %v3170
      %v3297 = vadd.f32 %v2890, %v3173
      %v3298 = vadd.f32 %v2891, %v3178
      %v3299 = vadd.f32 %v2892, %v3181
      %v3300 = vadd.f32 %v2893, %v3186
      %v3301 = vadd.f32 %v2894, %v3189
      %v3302 = vadd.f32 %v2895, %v3194
      %v3303 = vadd.f32 %v2896, %v3197
      %v3304 = vadd.f32 %v2897, %v3202
      %v3305 = vadd.f32 %v2898, %v3205
      %v3306 = vadd.f32 %v2899, %v3210
      %v3307 = vadd.f32 %v2900, %v3213
      %v3308 = vadd.f32 %v2901, %v3218
      %v3309 = vadd.f32 %v2902, %v3221
      %v3310 = vadd.f32 %v2903, %v3226
      %v3311 = vadd.f32 %v2904, %v3229
      %v3312 = vadd.f32 %v2905, %v3234
      %v3313 = vadd.f32 %v2906, %v3237
      %v3314 = vadd.f32 %v2907, %v3242
      %v3315 = vadd.f32 %v2908, %v3245
      %v3316 = vadd.f32 %v2909, %v3250
      %v3317 = vadd.f32 %v2910, %v3253
      %v3318 = vadd.f32 %v2911, %v3258
      %v3319 = vadd.f32 %v2912, %v3261
      %v3320 = vadd.f32 %v2913, %v3266
      %v3321 = vadd.f32 %v2914, %v3269
      %v3322 = vadd.f32 %v2915, %v3274
      %v3323 = vadd.f32 %v2916, %v3277
      %v3324 = vadd.f32 %v2917, %v3282
      %v3325 = vadd.f32 %v2918, %v3285
      %v3326 = vadd.f32 %v2919, %v3290
      %v3327 = vadd.f32 %v2920, %v3293
      %v3328 = vsel %vm2921, 1, 0
      %v3329 = vsel %vm2922, 1, 0
      %v3330 = vsel %vm2923, 1, 0
      %v3331 = vsel %vm2924, 1, 0
      %v3332 = vsel %vm2925, 1, 0
      %v3333 = vsel %vm2926, 1, 0
      %v3334 = vsel %vm2927, 1, 0
      %v3335 = vsel %vm2928, 1, 0
      %v3336 = vsel %vm2929, 1, 0
      %v3337 = vsel %vm2930, 1, 0
      %v3338 = vsel %vm2931, 1, 0
      %v3339 = vsel %vm2932, 1, 0
      %v3340 = vsel %vm2933, 1, 0
      %v3341 = vsel %vm2934, 1, 0
      %v3342 = vsel %vm2935, 1, 0
      %v3343 = vsel %vm2936, 1, 0
      %vm3344 = vcmp.eq.s32.totalorder %v3328, 1
      %vm3345 = vcmp.eq.s32.totalorder %v3329, 1
      %vm3346 = vcmp.eq.s32.totalorder %v3330, 1
      %vm3347 = vcmp.eq.s32.totalorder %v3331, 1
      %vm3348 = vcmp.eq.s32.totalorder %v3332, 1
      %vm3349 = vcmp.eq.s32.totalorder %v3333, 1
      %vm3350 = vcmp.eq.s32.totalorder %v3334, 1
      %vm3351 = vcmp.eq.s32.totalorder %v3335, 1
      %vm3352 = vcmp.eq.s32.totalorder %v3336, 1
      %vm3353 = vcmp.eq.s32.totalorder %v3337, 1
      %vm3354 = vcmp.eq.s32.totalorder %v3338, 1
      %vm3355 = vcmp.eq.s32.totalorder %v3339, 1
      %vm3356 = vcmp.eq.s32.totalorder %v3340, 1
      %vm3357 = vcmp.eq.s32.totalorder %v3341, 1
      %vm3358 = vcmp.eq.s32.totalorder %v3342, 1
      %vm3359 = vcmp.eq.s32.totalorder %v3343, 1
      %v3360 = vsel %vm3344, %v806, 0.0
      %v3361 = vsel %vm3344, %v807, 0.0
      %v3362 = vsel %vm3345, %v808, 0.0
      %v3363 = vsel %vm3345, %v809, 0.0
      %v3364 = vsel %vm3346, %v810, 0.0
      %v3365 = vsel %vm3346, %v811, 0.0
      %v3366 = vsel %vm3347, %v812, 0.0
      %v3367 = vsel %vm3347, %v813, 0.0
      %v3368 = vsel %vm3348, %v814, 0.0
      %v3369 = vsel %vm3348, %v815, 0.0
      %v3370 = vsel %vm3349, %v816, 0.0
      %v3371 = vsel %vm3349, %v817, 0.0
      %v3372 = vsel %vm3350, %v818, 0.0
      %v3373 = vsel %vm3350, %v819, 0.0
      %v3374 = vsel %vm3351, %v820, 0.0
      %v3375 = vsel %vm3351, %v821, 0.0
      %v3376 = vsel %vm3352, %v822, 0.0
      %v3377 = vsel %vm3352, %v823, 0.0
      %v3378 = vsel %vm3353, %v824, 0.0
      %v3379 = vsel %vm3353, %v825, 0.0
      %v3380 = vsel %vm3354, %v826, 0.0
      %v3381 = vsel %vm3354, %v827, 0.0
      %v3382 = vsel %vm3355, %v828, 0.0
      %v3383 = vsel %vm3355, %v829, 0.0
      %v3384 = vsel %vm3356, %v830, 0.0
      %v3385 = vsel %vm3356, %v831, 0.0
      %v3386 = vsel %vm3357, %v832, 0.0
      %v3387 = vsel %vm3357, %v833, 0.0
      %v3388 = vsel %vm3358, %v834, 0.0
      %v3389 = vsel %vm3358, %v835, 0.0
      %v3390 = vsel %vm3359, %v836, 0.0
      %v3391 = vsel %vm3359, %v837, 0.0
      %v3392 = vpack.c.bf16 %v3361, %v3360
      %v3393 = vpack.c.bf16 %v3363, %v3362
      %v3394 = vpack.c.bf16 %v3365, %v3364
      %v3395 = vpack.c.bf16 %v3367, %v3366
      %v3396 = vpack.c.bf16 %v3369, %v3368
      %v3397 = vpack.c.bf16 %v3371, %v3370
      %v3398 = vpack.c.bf16 %v3373, %v3372
      %v3399 = vpack.c.bf16 %v3375, %v3374
      %v3400 = vpack.c.bf16 %v3377, %v3376
      %v3401 = vpack.c.bf16 %v3379, %v3378
      %v3402 = vpack.c.bf16 %v3381, %v3380
      %v3403 = vpack.c.bf16 %v3383, %v3382
      %v3404 = vpack.c.bf16 %v3385, %v3384
      %v3405 = vpack.c.bf16 %v3387, %v3386
      %v3406 = vpack.c.bf16 %v3389, %v3388
      %v3407 = vpack.c.bf16 %v3391, %v3390
      %v3409 = vunpack.c.l.b16 %v842
      %v3410 = vpack.c.b16 %v3409, %v3409
      %v3411 = vrot.slane %v3410, 2
      %v3413 = vsel %vm1175, %v3392, 0
      %v3416 = vsel %vm1175, %v3393, 0
      %v3419 = vsel %vm1175, %v3394, 0
      %v3422 = vsel %vm1175, %v3395, 0
      %v3425 = vsel %vm1175, %v3396, 0
      %v3428 = vsel %vm1175, %v3397, 0
      %v3431 = vsel %vm1175, %v3398, 0
      %v3434 = vsel %vm1175, %v3399, 0
      %v3437 = vsel %vm1175, %v3400, 0
      %v3440 = vsel %vm1175, %v3401, 0
      %v3443 = vsel %vm1175, %v3402, 0
      %v3446 = vsel %vm1175, %v3403, 0
      %v3449 = vsel %vm1175, %v3404, 0
      %v3452 = vsel %vm1175, %v3405, 0
      %v3455 = vsel %vm1175, %v3406, 0
      %v3458 = vsel %vm1175, %v3407, 0
      %v3461 = vsel %vm1224, %v3411, 0
      %3463 = vmatprep.subr.bf16.mxu0 0
      %3464 = vmatpush1.bf16.msra.mxu0 %v3461
      %3465 = vmatprep.subr.bf16.mxu0 0
      %3466 = vmatpush1.bf16.msra.mxu0 0
      %3467 = vmatprep.subr.bf16.mxu0 0
      %3468 = vmatpush1.bf16.msra.mxu0 0
      %3469 = vmatprep.subr.bf16.mxu0 0
      %3470 = vmatpush1.bf16.msra.mxu0 0
      %3471 = vmatprep.subr.bf16.mxu0 0
      %3472 = vmatpush1.bf16.msra.mxu0 0
      %3473 = vmatprep.subr.bf16.mxu0 0
      %3474 = vmatpush1.bf16.msra.mxu0 0
      %3475 = vmatprep.subr.bf16.mxu0 0
      %3476 = vmatpush1.bf16.msra.mxu0 0
      %3477 = vmatprep.subr.bf16.mxu0 0
      %3478 = vmatpush1.bf16.msra.mxu0 0
      %3479 = vmatprep.subr.bf16.mxu0 0
      %3480 = vmatpush1.bf16.msra.mxu0 0
      %3481 = vmatprep.subr.bf16.mxu0 0
      %3482 = vmatpush1.bf16.msra.mxu0 0
      %3483 = vmatprep.subr.bf16.mxu0 0
      %3484 = vmatpush1.bf16.msra.mxu0 0
      %3485 = vmatprep.subr.bf16.mxu0 0
      %3486 = vmatpush1.bf16.msra.mxu0 0
      %3487 = vmatprep.subr.bf16.mxu0 0
      %3488 = vmatpush1.bf16.msra.mxu0 0
      %3489 = vmatprep.subr.bf16.mxu0 0
      %3490 = vmatpush1.bf16.msra.mxu0 0
      %3491 = vmatprep.subr.bf16.mxu0 0
      %3492 = vmatpush1.bf16.msra.mxu0 0
      %3493 = vmatprep.subr.bf16.mxu0 0
      %3494 = vmatpush1.bf16.msra.mxu0 0
      %3495 = vmatprep.mubr.bf16.mxu0 0
      %3496 = vmatmul.mubr.bf16.gmra.mrb[0].mxu0 %v3413
      %v3497 = vpop.f32.mrb[0].mxu0
      %v3498 = vadd.f32 0.0, %v3497
      %v3499 = vpop.f32.mrb[0].mxu0
      %v3500 = vpop.f32.mrb[0].mxu0
      %v3501 = vadd.f32 0.0, %v3500
      %v3502 = vpop.f32.mrb[0].mxu0
      %3503 = vmatprep.mubr.bf16.mxu0 0
      %3504 = vmatmul.mubr.bf16.gmra.mrb[0].mxu0 %v3416
      %v3505 = vpop.f32.mrb[0].mxu0
      %v3506 = vadd.f32 0.0, %v3505
      %v3507 = vpop.f32.mrb[0].mxu0
      %v3508 = vpop.f32.mrb[0].mxu0
      %v3509 = vadd.f32 0.0, %v3508
      %v3510 = vpop.f32.mrb[0].mxu0
      %3511 = vmatprep.mubr.bf16.mxu0 0
      %3512 = vmatmul.mubr.bf16.gmra.mrb[0].mxu0 %v3419
      %v3513 = vpop.f32.mrb[0].mxu0
      %v3514 = vadd.f32 0.0, %v3513
      %v3515 = vpop.f32.mrb[0].mxu0
      %v3516 = vpop.f32.mrb[0].mxu0
      %v3517 = vadd.f32 0.0, %v3516
      %v3518 = vpop.f32.mrb[0].mxu0
      %3519 = vmatprep.mubr.bf16.mxu0 0
      %3520 = vmatmul.mubr.bf16.gmra.mrb[0].mxu0 %v3422
      %v3521 = vpop.f32.mrb[0].mxu0
      %v3522 = vadd.f32 0.0, %v3521
      %v3523 = vpop.f32.mrb[0].mxu0
      %v3524 = vpop.f32.mrb[0].mxu0
      %v3525 = vadd.f32 0.0, %v3524
      %v3526 = vpop.f32.mrb[0].mxu0
      %3527 = vmatprep.mubr.bf16.mxu0 0
      %3528 = vmatmul.mubr.bf16.gmra.mrb[0].mxu0 %v3425
      %v3529 = vpop.f32.mrb[0].mxu0
      %v3530 = vadd.f32 0.0, %v3529
      %v3531 = vpop.f32.mrb[0].mxu0
      %v3532 = vpop.f32.mrb[0].mxu0
      %v3533 = vadd.f32 0.0, %v3532
      %v3534 = vpop.f32.mrb[0].mxu0
      %3535 = vmatprep.mubr.bf16.mxu0 0
      %3536 = vmatmul.mubr.bf16.gmra.mrb[0].mxu0 %v3428
      %v3537 = vpop.f32.mrb[0].mxu0
      %v3538 = vadd.f32 0.0, %v3537
      %v3539 = vpop.f32.mrb[0].mxu0
      %v3540 = vpop.f32.mrb[0].mxu0
      %v3541 = vadd.f32 0.0, %v3540
      %v3542 = vpop.f32.mrb[0].mxu0
      %3543 = vmatprep.mubr.bf16.mxu0 0
      %3544 = vmatmul.mubr.bf16.gmra.mrb[0].mxu0 %v3431
      %v3545 = vpop.f32.mrb[0].mxu0
      %v3546 = vadd.f32 0.0, %v3545
      %v3547 = vpop.f32.mrb[0].mxu0
      %v3548 = vpop.f32.mrb[0].mxu0
      %v3549 = vadd.f32 0.0, %v3548
      %v3550 = vpop.f32.mrb[0].mxu0
      %3551 = vmatprep.mubr.bf16.mxu0 0
      %3552 = vmatmul.mubr.bf16.gmra.mrb[0].mxu0 %v3434
      %v3553 = vpop.f32.mrb[0].mxu0
      %v3554 = vadd.f32 0.0, %v3553
      %v3555 = vpop.f32.mrb[0].mxu0
      %v3556 = vpop.f32.mrb[0].mxu0
      %v3557 = vadd.f32 0.0, %v3556
      %v3558 = vpop.f32.mrb[0].mxu0
      %3559 = vmatprep.mubr.bf16.mxu0 0
      %3560 = vmatmul.mubr.bf16.gmra.mrb[0].mxu0 %v3437
      %v3561 = vpop.f32.mrb[0].mxu0
      %v3562 = vadd.f32 0.0, %v3561
      %v3563 = vpop.f32.mrb[0].mxu0
      %v3564 = vpop.f32.mrb[0].mxu0
      %v3565 = vadd.f32 0.0, %v3564
      %v3566 = vpop.f32.mrb[0].mxu0
      %3567 = vmatprep.mubr.bf16.mxu0 0
      %3568 = vmatmul.mubr.bf16.gmra.mrb[0].mxu0 %v3440
      %v3569 = vpop.f32.mrb[0].mxu0
      %v3570 = vadd.f32 0.0, %v3569
      %v3571 = vpop.f32.mrb[0].mxu0
      %v3572 = vpop.f32.mrb[0].mxu0
      %v3573 = vadd.f32 0.0, %v3572
      %v3574 = vpop.f32.mrb[0].mxu0
      %3575 = vmatprep.mubr.bf16.mxu0 0
      %3576 = vmatmul.mubr.bf16.gmra.mrb[0].mxu0 %v3443
      %v3577 = vpop.f32.mrb[0].mxu0
      %v3578 = vadd.f32 0.0, %v3577
      %v3579 = vpop.f32.mrb[0].mxu0
      %v3580 = vpop.f32.mrb[0].mxu0
      %v3581 = vadd.f32 0.0, %v3580
      %v3582 = vpop.f32.mrb[0].mxu0
      %3583 = vmatprep.mubr.bf16.mxu0 0
      %3584 = vmatmul.mubr.bf16.gmra.mrb[0].mxu0 %v3446
      %v3585 = vpop.f32.mrb[0].mxu0
      %v3586 = vadd.f32 0.0, %v3585
      %v3587 = vpop.f32.mrb[0].mxu0
      %v3588 = vpop.f32.mrb[0].mxu0
      %v3589 = vadd.f32 0.0, %v3588
      %v3590 = vpop.f32.mrb[0].mxu0
      %3591 = vmatprep.mubr.bf16.mxu0 0
      %3592 = vmatmul.mubr.bf16.gmra.mrb[0].mxu0 %v3449
      %v3593 = vpop.f32.mrb[0].mxu0
      %v3594 = vadd.f32 0.0, %v3593
      %v3595 = vpop.f32.mrb[0].mxu0
      %v3596 = vpop.f32.mrb[0].mxu0
      %v3597 = vadd.f32 0.0, %v3596
      %v3598 = vpop.f32.mrb[0].mxu0
      %3599 = vmatprep.mubr.bf16.mxu0 0
      %3600 = vmatmul.mubr.bf16.gmra.mrb[0].mxu0 %v3452
      %v3601 = vpop.f32.mrb[0].mxu0
      %v3602 = vadd.f32 0.0, %v3601
      %v3603 = vpop.f32.mrb[0].mxu0
      %v3604 = vpop.f32.mrb[0].mxu0
      %v3605 = vadd.f32 0.0, %v3604
      %v3606 = vpop.f32.mrb[0].mxu0
      %3607 = vmatprep.mubr.bf16.mxu0 0
      %3608 = vmatmul.mubr.bf16.gmra.mrb[0].mxu0 %v3455
      %v3609 = vpop.f32.mrb[0].mxu0
      %v3610 = vadd.f32 0.0, %v3609
      %v3611 = vpop.f32.mrb[0].mxu0
      %v3612 = vpop.f32.mrb[0].mxu0
      %v3613 = vadd.f32 0.0, %v3612
      %v3614 = vpop.f32.mrb[0].mxu0
      %3615 = vmatprep.mubr.bf16.mxu0 0
      %3616 = vmatmul.mubr.bf16.gmra.mrb[0].mxu0 %v3458
      %v3617 = vpop.f32.mrb[0].mxu0
      %v3618 = vadd.f32 0.0, %v3617
      %v3619 = vpop.f32.mrb[0].mxu0
      %v3620 = vpop.f32.mrb[0].mxu0
      %v3621 = vadd.f32 0.0, %v3620
      %v3622 = vpop.f32.mrb[0].mxu0
      %3623 = vdwg.mxu0
      %v3624 = vadd.f32 %v3296, %v3498
      %v3625 = vadd.f32 %v3297, %v3501
      %v3626 = vadd.f32 %v3298, %v3506
      %v3627 = vadd.f32 %v3299, %v3509
      %v3628 = vadd.f32 %v3300, %v3514
      %v3629 = vadd.f32 %v3301, %v3517
      %v3630 = vadd.f32 %v3302, %v3522
      %v3631 = vadd.f32 %v3303, %v3525
      %v3632 = vadd.f32 %v3304, %v3530
      %v3633 = vadd.f32 %v3305, %v3533
      %v3634 = vadd.f32 %v3306, %v3538
      %v3635 = vadd.f32 %v3307, %v3541
      %v3636 = vadd.f32 %v3308, %v3546
      %v3637 = vadd.f32 %v3309, %v3549
      %v3638 = vadd.f32 %v3310, %v3554
      %v3639 = vadd.f32 %v3311, %v3557
      %v3640 = vadd.f32 %v3312, %v3562
      %v3641 = vadd.f32 %v3313, %v3565
      %v3642 = vadd.f32 %v3314, %v3570
      %v3643 = vadd.f32 %v3315, %v3573
      %v3644 = vadd.f32 %v3316, %v3578
      %v3645 = vadd.f32 %v3317, %v3581
      %v3646 = vadd.f32 %v3318, %v3586
      %v3647 = vadd.f32 %v3319, %v3589
      %v3648 = vadd.f32 %v3320, %v3594
      %v3649 = vadd.f32 %v3321, %v3597
      %v3650 = vadd.f32 %v3322, %v3602
      %v3651 = vadd.f32 %v3323, %v3605
      %v3652 = vadd.f32 %v3324, %v3610
      %v3653 = vadd.f32 %v3325, %v3613
      %v3654 = vadd.f32 %v3326, %v3618
      %v3655 = vadd.f32 %v3327, %v3621
      %v3656 = vrot.slane %v837, 1
      %v3657 = vsel %vm1634, %v2622, %v3656
      %v3658 = vsel %vm1634, %v3656, %v1601
      %vm3659 = vmand %vm2921, %vm1667
      %vm3660 = vmand %vm2921, %vm1668
      %vm3661 = vmand %vm2922, %vm1667
      %vm3662 = vmand %vm2922, %vm1668
      %vm3663 = vmand %vm2923, %vm1667
      %vm3664 = vmand %vm2923, %vm1668
      %vm3665 = vmand %vm2924, %vm1667
      %vm3666 = vmand %vm2924, %vm1668
      %vm3667 = vmand %vm2925, %vm1667
      %vm3668 = vmand %vm2925, %vm1668
      %vm3669 = vmand %vm2926, %vm1667
      %vm3670 = vmand %vm2926, %vm1668
      %vm3671 = vmand %vm2927, %vm1667
      %vm3672 = vmand %vm2927, %vm1668
      %vm3673 = vmand %vm2928, %vm1667
      %vm3674 = vmand %vm2928, %vm1668
      %vm3675 = vmand %vm2929, %vm1667
      %vm3676 = vmand %vm2929, %vm1668
      %vm3677 = vmand %vm2930, %vm1667
      %vm3678 = vmand %vm2930, %vm1668
      %vm3679 = vmand %vm2931, %vm1667
      %vm3680 = vmand %vm2931, %vm1668
      %vm3681 = vmand %vm2932, %vm1667
      %vm3682 = vmand %vm2932, %vm1668
      %vm3683 = vmand %vm2933, %vm1667
      %vm3684 = vmand %vm2933, %vm1668
      %vm3685 = vmand %vm2934, %vm1667
      %vm3686 = vmand %vm2934, %vm1668
      %vm3687 = vmand %vm2935, %vm1667
      %vm3688 = vmand %vm2935, %vm1668
      %vm3689 = vmand %vm2936, %vm1667
      %vm3690 = vmand %vm2936, %vm1668
      %v3691 = vsel %vm3659, 1, 0
      %v3692 = vsel %vm3660, 1, 0
      %v3693 = vsel %vm3661, 1, 0
      %v3694 = vsel %vm3662, 1, 0
      %v3695 = vsel %vm3663, 1, 0
      %v3696 = vsel %vm3664, 1, 0
      %v3697 = vsel %vm3665, 1, 0
      %v3698 = vsel %vm3666, 1, 0
      %v3699 = vsel %vm3667, 1, 0
      %v3700 = vsel %vm3668, 1, 0
      %v3701 = vsel %vm3669, 1, 0
      %v3702 = vsel %vm3670, 1, 0
      %v3703 = vsel %vm3671, 1, 0
      %v3704 = vsel %vm3672, 1, 0
      %v3705 = vsel %vm3673, 1, 0
      %v3706 = vsel %vm3674, 1, 0
      %v3707 = vsel %vm3675, 1, 0
      %v3708 = vsel %vm3676, 1, 0
      %v3709 = vsel %vm3677, 1, 0
      %v3710 = vsel %vm3678, 1, 0
      %v3711 = vsel %vm3679, 1, 0
      %v3712 = vsel %vm3680, 1, 0
      %v3713 = vsel %vm3681, 1, 0
      %v3714 = vsel %vm3682, 1, 0
      %v3715 = vsel %vm3683, 1, 0
      %v3716 = vsel %vm3684, 1, 0
      %v3717 = vsel %vm3685, 1, 0
      %v3718 = vsel %vm3686, 1, 0
      %v3719 = vsel %vm3687, 1, 0
      %v3720 = vsel %vm3688, 1, 0
      %v3721 = vsel %vm3689, 1, 0
      %v3722 = vsel %vm3690, 1, 0
      %vm3723 = vcmp.eq.s32.totalorder %v3691, 1
      %vm3724 = vcmp.eq.s32.totalorder %v3692, 1
      %vm3725 = vcmp.eq.s32.totalorder %v3693, 1
      %vm3726 = vcmp.eq.s32.totalorder %v3694, 1
      %vm3727 = vcmp.eq.s32.totalorder %v3695, 1
      %vm3728 = vcmp.eq.s32.totalorder %v3696, 1
      %vm3729 = vcmp.eq.s32.totalorder %v3697, 1
      %vm3730 = vcmp.eq.s32.totalorder %v3698, 1
      %vm3731 = vcmp.eq.s32.totalorder %v3699, 1
      %vm3732 = vcmp.eq.s32.totalorder %v3700, 1
      %vm3733 = vcmp.eq.s32.totalorder %v3701, 1
      %vm3734 = vcmp.eq.s32.totalorder %v3702, 1
      %vm3735 = vcmp.eq.s32.totalorder %v3703, 1
      %vm3736 = vcmp.eq.s32.totalorder %v3704, 1
      %vm3737 = vcmp.eq.s32.totalorder %v3705, 1
      %vm3738 = vcmp.eq.s32.totalorder %v3706, 1
      %vm3739 = vcmp.eq.s32.totalorder %v3707, 1
      %vm3740 = vcmp.eq.s32.totalorder %v3708, 1
      %vm3741 = vcmp.eq.s32.totalorder %v3709, 1
      %vm3742 = vcmp.eq.s32.totalorder %v3710, 1
      %vm3743 = vcmp.eq.s32.totalorder %v3711, 1
      %vm3744 = vcmp.eq.s32.totalorder %v3712, 1
      %vm3745 = vcmp.eq.s32.totalorder %v3713, 1
      %vm3746 = vcmp.eq.s32.totalorder %v3714, 1
      %vm3747 = vcmp.eq.s32.totalorder %v3715, 1
      %vm3748 = vcmp.eq.s32.totalorder %v3716, 1
      %vm3749 = vcmp.eq.s32.totalorder %v3717, 1
      %vm3750 = vcmp.eq.s32.totalorder %v3718, 1
      %vm3751 = vcmp.eq.s32.totalorder %v3719, 1
      %vm3752 = vcmp.eq.s32.totalorder %v3720, 1
      %vm3753 = vcmp.eq.s32.totalorder %v3721, 1
      %vm3754 = vcmp.eq.s32.totalorder %v3722, 1
      %v3755 = vsel %vm3723, %v1662, 0.0
      %v3756 = vsel %vm3724, %v1661, 0.0
      %v3757 = vsel %vm3725, %v1660, 0.0
      %v3758 = vsel %vm3726, %v1659, 0.0
      %v3759 = vsel %vm3727, %v1658, 0.0
      %v3760 = vsel %vm3728, %v1657, 0.0
      %v3761 = vsel %vm3729, %v1656, 0.0
      %v3762 = vsel %vm3730, %v1655, 0.0
      %v3763 = vsel %vm3731, %v1654, 0.0
      %v3764 = vsel %vm3732, %v1653, 0.0
      %v3765 = vsel %vm3733, %v1652, 0.0
      %v3766 = vsel %vm3734, %v1651, 0.0
      %v3767 = vsel %vm3735, %v1650, 0.0
      %v3768 = vsel %vm3736, %v1649, 0.0
      %v3769 = vsel %vm3737, %v1648, 0.0
      %v3770 = vsel %vm3738, %v1647, 0.0
      %v3771 = vsel %vm3739, %v1646, 0.0
      %v3772 = vsel %vm3740, %v1645, 0.0
      %v3773 = vsel %vm3741, %v1644, 0.0
      %v3774 = vsel %vm3742, %v1643, 0.0
      %v3775 = vsel %vm3743, %v1642, 0.0
      %v3776 = vsel %vm3744, %v1641, 0.0
      %v3777 = vsel %vm3745, %v1640, 0.0
      %v3778 = vsel %vm3746, %v1639, 0.0
      %v3779 = vsel %vm3747, %v1638, 0.0
      %v3780 = vsel %vm3748, %v1637, 0.0
      %v3781 = vsel %vm3749, %v1636, 0.0
      %v3782 = vsel %vm3750, %v1635, 0.0
      %v3783 = vsel %vm3751, %v2624, 0.0
      %v3784 = vsel %vm3752, %v2623, 0.0
      %v3785 = vsel %vm3753, %v3657, 0.0
      %v3786 = vsel %vm3754, %v3658, 0.0
      %v3787 = vpack.c.bf16 %v3756, %v3755
      %v3788 = vpack.c.bf16 %v3758, %v3757
      %v3789 = vpack.c.bf16 %v3760, %v3759
      %v3790 = vpack.c.bf16 %v3762, %v3761
      %v3791 = vpack.c.bf16 %v3764, %v3763
      %v3792 = vpack.c.bf16 %v3766, %v3765
      %v3793 = vpack.c.bf16 %v3768, %v3767
      %v3794 = vpack.c.bf16 %v3770, %v3769
      %v3795 = vpack.c.bf16 %v3772, %v3771
      %v3796 = vpack.c.bf16 %v3774, %v3773
      %v3797 = vpack.c.bf16 %v3776, %v3775
      %v3798 = vpack.c.bf16 %v3778, %v3777
      %v3799 = vpack.c.bf16 %v3780, %v3779
      %v3800 = vpack.c.bf16 %v3782, %v3781
      %v3801 = vpack.c.bf16 %v3784, %v3783
      %v3802 = vpack.c.bf16 %v3786, %v3785
      %v3804 = vsel %vm1175, %v3787, 0
      %v3807 = vsel %vm1175, %v3788, 0
      %v3810 = vsel %vm1175, %v3789, 0
      %v3813 = vsel %vm1175, %v3790, 0
      %v3816 = vsel %vm1175, %v3791, 0
      %v3819 = vsel %vm1175, %v3792, 0
      %v3822 = vsel %vm1175, %v3793, 0
      %v3825 = vsel %vm1175, %v3794, 0
      %v3828 = vsel %vm1175, %v3795, 0
      %v3831 = vsel %vm1175, %v3796, 0
      %v3834 = vsel %vm1175, %v3797, 0
      %v3837 = vsel %vm1175, %v3798, 0
      %v3840 = vsel %vm1175, %v3799, 0
      %v3843 = vsel %vm1175, %v3800, 0
      %v3846 = vsel %vm1175, %v3801, 0
      %v3849 = vsel %vm1175, %v3802, 0
      %v3852 = vsel %vm1224, %v843, 0
      %3854 = vmatprep.subr.bf16.mxu0 0
      %3855 = vmatpush1.bf16.msra.mxu0 %v3852
      %3856 = vmatprep.subr.bf16.mxu0 0
      %3857 = vmatpush1.bf16.msra.mxu0 0
      %3858 = vmatprep.subr.bf16.mxu0 0
      %3859 = vmatpush1.bf16.msra.mxu0 0
      %3860 = vmatprep.subr.bf16.mxu0 0
      %3861 = vmatpush1.bf16.msra.mxu0 0
      %3862 = vmatprep.subr.bf16.mxu0 0
      %3863 = vmatpush1.bf16.msra.mxu0 0
      %3864 = vmatprep.subr.bf16.mxu0 0
      %3865 = vmatpush1.bf16.msra.mxu0 0
      %3866 = vmatprep.subr.bf16.mxu0 0
      %3867 = vmatpush1.bf16.msra.mxu0 0
      %3868 = vmatprep.subr.bf16.mxu0 0
      %3869 = vmatpush1.bf16.msra.mxu0 0
      %3870 = vmatprep.subr.bf16.mxu0 0
      %3871 = vmatpush1.bf16.msra.mxu0 0
      %3872 = vmatprep.subr.bf16.mxu0 0
      %3873 = vmatpush1.bf16.msra.mxu0 0
      %3874 = vmatprep.subr.bf16.mxu0 0
      %3875 = vmatpush1.bf16.msra.mxu0 0
      %3876 = vmatprep.subr.bf16.mxu0 0
      %3877 = vmatpush1.bf16.msra.mxu0 0
      %3878 = vmatprep.subr.bf16.mxu0 0
      %3879 = vmatpush1.bf16.msra.mxu0 0
      %3880 = vmatprep.subr.bf16.mxu0 0
      %3881 = vmatpush1.bf16.msra.mxu0 0
      %3882 = vmatprep.subr.bf16.mxu0 0
      %3883 = vmatpush1.bf16.msra.mxu0 0
      %3884 = vmatprep.subr.bf16.mxu0 0
      %3885 = vmatpush1.bf16.msra.mxu0 0
      %3886 = vmatprep.mubr.bf16.mxu0 0
      %3887 = vmatmul.mubr.bf16.gmra.mrb[0].mxu0 %v3804
      %v3888 = vpop.f32.mrb[0].mxu0
      %v3889 = vadd.f32 0.0, %v3888
      %v3890 = vpop.f32.mrb[0].mxu0
      %v3891 = vpop.f32.mrb[0].mxu0
      %v3892 = vadd.f32 0.0, %v3891
      %v3893 = vpop.f32.mrb[0].mxu0
      %3894 = vmatprep.mubr.bf16.mxu0 0
      %3895 = vmatmul.mubr.bf16.gmra.mrb[0].mxu0 %v3807
      %v3896 = vpop.f32.mrb[0].mxu0
      %v3897 = vadd.f32 0.0, %v3896
      %v3898 = vpop.f32.mrb[0].mxu0
      %v3899 = vpop.f32.mrb[0].mxu0
      %v3900 = vadd.f32 0.0, %v3899
      %v3901 = vpop.f32.mrb[0].mxu0
      %3902 = vmatprep.mubr.bf16.mxu0 0
      %3903 = vmatmul.mubr.bf16.gmra.mrb[0].mxu0 %v3810
      %v3904 = vpop.f32.mrb[0].mxu0
      %v3905 = vadd.f32 0.0, %v3904
      %v3906 = vpop.f32.mrb[0].mxu0
      %v3907 = vpop.f32.mrb[0].mxu0
      %v3908 = vadd.f32 0.0, %v3907
      %v3909 = vpop.f32.mrb[0].mxu0
      %3910 = vmatprep.mubr.bf16.mxu0 0
      %3911 = vmatmul.mubr.bf16.gmra.mrb[0].mxu0 %v3813
      %v3912 = vpop.f32.mrb[0].mxu0
      %v3913 = vadd.f32 0.0, %v3912
      %v3914 = vpop.f32.mrb[0].mxu0
      %v3915 = vpop.f32.mrb[0].mxu0
      %v3916 = vadd.f32 0.0, %v3915
      %v3917 = vpop.f32.mrb[0].mxu0
      %3918 = vmatprep.mubr.bf16.mxu0 0
      %3919 = vmatmul.mubr.bf16.gmra.mrb[0].mxu0 %v3816
      %v3920 = vpop.f32.mrb[0].mxu0
      %v3921 = vadd.f32 0.0, %v3920
      %v3922 = vpop.f32.mrb[0].mxu0
      %v3923 = vpop.f32.mrb[0].mxu0
      %v3924 = vadd.f32 0.0, %v3923
      %v3925 = vpop.f32.mrb[0].mxu0
      %3926 = vmatprep.mubr.bf16.mxu0 0
      %3927 = vmatmul.mubr.bf16.gmra.mrb[0].mxu0 %v3819
      %v3928 = vpop.f32.mrb[0].mxu0
      %v3929 = vadd.f32 0.0, %v3928
      %v3930 = vpop.f32.mrb[0].mxu0
      %v3931 = vpop.f32.mrb[0].mxu0
      %v3932 = vadd.f32 0.0, %v3931
      %v3933 = vpop.f32.mrb[0].mxu0
      %3934 = vmatprep.mubr.bf16.mxu0 0
      %3935 = vmatmul.mubr.bf16.gmra.mrb[0].mxu0 %v3822
      %v3936 = vpop.f32.mrb[0].mxu0
      %v3937 = vadd.f32 0.0, %v3936
      %v3938 = vpop.f32.mrb[0].mxu0
      %v3939 = vpop.f32.mrb[0].mxu0
      %v3940 = vadd.f32 0.0, %v3939
      %v3941 = vpop.f32.mrb[0].mxu0
      %3942 = vmatprep.mubr.bf16.mxu0 0
      %3943 = vmatmul.mubr.bf16.gmra.mrb[0].mxu0 %v3825
      %v3944 = vpop.f32.mrb[0].mxu0
      %v3945 = vadd.f32 0.0, %v3944
      %v3946 = vpop.f32.mrb[0].mxu0
      %v3947 = vpop.f32.mrb[0].mxu0
      %v3948 = vadd.f32 0.0, %v3947
      %v3949 = vpop.f32.mrb[0].mxu0
      %3950 = vmatprep.mubr.bf16.mxu0 0
      %3951 = vmatmul.mubr.bf16.gmra.mrb[0].mxu0 %v3828
      %v3952 = vpop.f32.mrb[0].mxu0
      %v3953 = vadd.f32 0.0, %v3952
      %v3954 = vpop.f32.mrb[0].mxu0
      %v3955 = vpop.f32.mrb[0].mxu0
      %v3956 = vadd.f32 0.0, %v3955
      %v3957 = vpop.f32.mrb[0].mxu0
      %3958 = vmatprep.mubr.bf16.mxu0 0
      %3959 = vmatmul.mubr.bf16.gmra.mrb[0].mxu0 %v3831
      %v3960 = vpop.f32.mrb[0].mxu0
      %v3961 = vadd.f32 0.0, %v3960
      %v3962 = vpop.f32.mrb[0].mxu0
      %v3963 = vpop.f32.mrb[0].mxu0
      %v3964 = vadd.f32 0.0, %v3963
      %v3965 = vpop.f32.mrb[0].mxu0
      %3966 = vmatprep.mubr.bf16.mxu0 0
      %3967 = vmatmul.mubr.bf16.gmra.mrb[0].mxu0 %v3834
      %v3968 = vpop.f32.mrb[0].mxu0
      %v3969 = vadd.f32 0.0, %v3968
      %v3970 = vpop.f32.mrb[0].mxu0
      %v3971 = vpop.f32.mrb[0].mxu0
      %v3972 = vadd.f32 0.0, %v3971
      %v3973 = vpop.f32.mrb[0].mxu0
      %3974 = vmatprep.mubr.bf16.mxu0 0
      %3975 = vmatmul.mubr.bf16.gmra.mrb[0].mxu0 %v3837
      %v3976 = vpop.f32.mrb[0].mxu0
      %v3977 = vadd.f32 0.0, %v3976
      %v3978 = vpop.f32.mrb[0].mxu0
      %v3979 = vpop.f32.mrb[0].mxu0
      %v3980 = vadd.f32 0.0, %v3979
      %v3981 = vpop.f32.mrb[0].mxu0
      %3982 = vmatprep.mubr.bf16.mxu0 0
      %3983 = vmatmul.mubr.bf16.gmra.mrb[0].mxu0 %v3840
      %v3984 = vpop.f32.mrb[0].mxu0
      %v3985 = vadd.f32 0.0, %v3984
      %v3986 = vpop.f32.mrb[0].mxu0
      %v3987 = vpop.f32.mrb[0].mxu0
      %v3988 = vadd.f32 0.0, %v3987
      %v3989 = vpop.f32.mrb[0].mxu0
      %3990 = vmatprep.mubr.bf16.mxu0 0
      %3991 = vmatmul.mubr.bf16.gmra.mrb[0].mxu0 %v3843
      %v3992 = vpop.f32.mrb[0].mxu0
      %v3993 = vadd.f32 0.0, %v3992
      %v3994 = vpop.f32.mrb[0].mxu0
      %v3995 = vpop.f32.mrb[0].mxu0
      %v3996 = vadd.f32 0.0, %v3995
      %v3997 = vpop.f32.mrb[0].mxu0
      %3998 = vmatprep.mubr.bf16.mxu0 0
      %3999 = vmatmul.mubr.bf16.gmra.mrb[0].mxu0 %v3846
      %v4000 = vpop.f32.mrb[0].mxu0
      %v4001 = vadd.f32 0.0, %v4000
      %v4002 = vpop.f32.mrb[0].mxu0
      %v4003 = vpop.f32.mrb[0].mxu0
      %v4004 = vadd.f32 0.0, %v4003
      %v4005 = vpop.f32.mrb[0].mxu0
      %4006 = vmatprep.mubr.bf16.mxu0 0
      %4007 = vmatmul.mubr.bf16.gmra.mrb[0].mxu0 %v3849
      %v4008 = vpop.f32.mrb[0].mxu0
      %v4009 = vadd.f32 0.0, %v4008
      %v4010 = vpop.f32.mrb[0].mxu0
      %v4011 = vpop.f32.mrb[0].mxu0
      %v4012 = vadd.f32 0.0, %v4011
      %v4013 = vpop.f32.mrb[0].mxu0
      %4014 = vdwg.mxu0
      %v4015 = vadd.f32 %v3624, %v3889
      %v4016 = vadd.f32 %v3625, %v3892
      %v4017 = vadd.f32 %v3626, %v3897
      %v4018 = vadd.f32 %v3627, %v3900
      %v4019 = vadd.f32 %v3628, %v3905
      %v4020 = vadd.f32 %v3629, %v3908
      %v4021 = vadd.f32 %v3630, %v3913
      %v4022 = vadd.f32 %v3631, %v3916
      %v4023 = vadd.f32 %v3632, %v3921
      %v4024 = vadd.f32 %v3633, %v3924
      %v4025 = vadd.f32 %v3634, %v3929
      %v4026 = vadd.f32 %v3635, %v3932
      %v4027 = vadd.f32 %v3636, %v3937
      %v4028 = vadd.f32 %v3637, %v3940
      %v4029 = vadd.f32 %v3638, %v3945
      %v4030 = vadd.f32 %v3639, %v3948
      %v4031 = vadd.f32 %v3640, %v3953
      %v4032 = vadd.f32 %v3641, %v3956
      %v4033 = vadd.f32 %v3642, %v3961
      %v4034 = vadd.f32 %v3643, %v3964
      %v4035 = vadd.f32 %v3644, %v3969
      %v4036 = vadd.f32 %v3645, %v3972
      %v4037 = vadd.f32 %v3646, %v3977
      %v4038 = vadd.f32 %v3647, %v3980
      %v4039 = vadd.f32 %v3648, %v3985
      %v4040 = vadd.f32 %v3649, %v3988
      %v4041 = vadd.f32 %v3650, %v3993
      %v4042 = vadd.f32 %v3651, %v3996
      %v4043 = vadd.f32 %v3652, %v4001
      %v4044 = vadd.f32 %v3653, %v4004
      %v4045 = vadd.f32 %v3654, %v4009
      %v4046 = vadd.f32 %v3655, %v4012
      %v4047 = vld [vmem:[%s6] sm:$0x1]
      %v4049 = vlaneseq
      %v4050 = vshrl.u32 %v4049, 7
      %v4051 = vsub.s32 0, %v4050
      %v4052 = vrot.slane %v4047, %v4051
      %v4054 = vadd.f32 %v4015, %v4052
      %v4055 = vadd.f32 %v4016, %v4052
      %v4056 = vadd.f32 %v4017, %v4052
      %v4057 = vadd.f32 %v4018, %v4052
      %v4058 = vadd.f32 %v4019, %v4052
      %v4059 = vadd.f32 %v4020, %v4052
      %v4060 = vadd.f32 %v4021, %v4052
      %v4061 = vadd.f32 %v4022, %v4052
      %v4062 = vadd.f32 %v4023, %v4052
      %v4063 = vadd.f32 %v4024, %v4052
      %v4064 = vadd.f32 %v4025, %v4052
      %v4065 = vadd.f32 %v4026, %v4052
      %v4066 = vadd.f32 %v4027, %v4052
      %v4067 = vadd.f32 %v4028, %v4052
      %v4068 = vadd.f32 %v4029, %v4052
      %v4069 = vadd.f32 %v4030, %v4052
      %v4070 = vadd.f32 %v4031, %v4052
      %v4071 = vadd.f32 %v4032, %v4052
      %v4072 = vadd.f32 %v4033, %v4052
      %v4073 = vadd.f32 %v4034, %v4052
      %v4074 = vadd.f32 %v4035, %v4052
      %v4075 = vadd.f32 %v4036, %v4052
      %v4076 = vadd.f32 %v4037, %v4052
      %v4077 = vadd.f32 %v4038, %v4052
      %v4078 = vadd.f32 %v4039, %v4052
      %v4079 = vadd.f32 %v4040, %v4052
      %v4080 = vadd.f32 %v4041, %v4052
      %v4081 = vadd.f32 %v4042, %v4052
      %v4082 = vadd.f32 %v4043, %v4052
      %v4083 = vadd.f32 %v4044, %v4052
      %v4084 = vadd.f32 %v4045, %v4052
      %v4085 = vadd.f32 %v4046, %v4052
      %v4086 = vsel %vm1175, %v4054, 0.0
      %v4087 = vsel %vm1175, %v4055, 0.0
      %v4088 = vadd.f32 %v4086, %v4087
      %v4089 = vsel %vm1175, %v4056, 0.0
      %v4090 = vadd.f32 %v4088, %v4089
      %v4091 = vsel %vm1175, %v4057, 0.0
      %v4092 = vadd.f32 %v4090, %v4091
      %v4093 = vsel %vm1175, %v4058, 0.0
      %v4094 = vadd.f32 %v4092, %v4093
      %v4095 = vsel %vm1175, %v4059, 0.0
      %v4096 = vadd.f32 %v4094, %v4095
      %v4097 = vsel %vm1175, %v4060, 0.0
      %v4098 = vadd.f32 %v4096, %v4097
      %v4099 = vsel %vm1175, %v4061, 0.0
      %v4100 = vadd.f32 %v4098, %v4099
      %v4101 = vsel %vm1175, %v4062, 0.0
      %v4102 = vadd.f32 %v4100, %v4101
      %v4103 = vsel %vm1175, %v4063, 0.0
      %v4104 = vadd.f32 %v4102, %v4103
      %v4105 = vsel %vm1175, %v4064, 0.0
      %v4106 = vadd.f32 %v4104, %v4105
      %v4107 = vsel %vm1175, %v4065, 0.0
      %v4108 = vadd.f32 %v4106, %v4107
      %v4109 = vsel %vm1175, %v4066, 0.0
      %v4110 = vadd.f32 %v4108, %v4109
      %v4111 = vsel %vm1175, %v4067, 0.0
      %v4112 = vadd.f32 %v4110, %v4111
      %v4113 = vsel %vm1175, %v4068, 0.0
      %v4114 = vadd.f32 %v4112, %v4113
      %v4115 = vsel %vm1175, %v4069, 0.0
      %v4116 = vadd.f32 %v4114, %v4115
      %v4117 = vsel %vm1175, %v4070, 0.0
      %v4118 = vadd.f32 %v4116, %v4117
      %v4119 = vsel %vm1175, %v4071, 0.0
      %v4120 = vadd.f32 %v4118, %v4119
      %v4121 = vsel %vm1175, %v4072, 0.0
      %v4122 = vadd.f32 %v4120, %v4121
      %v4123 = vsel %vm1175, %v4073, 0.0
      %v4124 = vadd.f32 %v4122, %v4123
      %v4125 = vsel %vm1175, %v4074, 0.0
      %v4126 = vadd.f32 %v4124, %v4125
      %v4127 = vsel %vm1175, %v4075, 0.0
      %v4128 = vadd.f32 %v4126, %v4127
      %v4129 = vsel %vm1175, %v4076, 0.0
      %v4130 = vadd.f32 %v4128, %v4129
      %v4131 = vsel %vm1175, %v4077, 0.0
      %v4132 = vadd.f32 %v4130, %v4131
      %v4133 = vsel %vm1175, %v4078, 0.0
      %v4134 = vadd.f32 %v4132, %v4133
      %v4135 = vsel %vm1175, %v4079, 0.0
      %v4136 = vadd.f32 %v4134, %v4135
      %v4137 = vsel %vm1175, %v4080, 0.0
      %v4138 = vadd.f32 %v4136, %v4137
      %v4139 = vsel %vm1175, %v4081, 0.0
      %v4140 = vadd.f32 %v4138, %v4139
      %v4141 = vsel %vm1175, %v4082, 0.0
      %v4142 = vadd.f32 %v4140, %v4141
      %v4143 = vsel %vm1175, %v4083, 0.0
      %v4144 = vadd.f32 %v4142, %v4143
      %v4145 = vsel %vm1175, %v4084, 0.0
      %v4146 = vadd.f32 %v4144, %v4145
      %v4147 = vsel %vm1175, %v4085, 0.0
      %v4148 = vadd.f32 %v4146, %v4147
      %v4149 = vrot.slane %v4148, 4
      %v4150 = vadd.f32 %v4148, %v4149
      %v4151 = vrot.slane %v4150, 2
      %v4152 = vadd.f32 %v4150, %v4151
      %v4153 = vrot.slane %v4152, 1
      %v4154 = vadd.f32 %v4152, %v4153
      %vm4155 = vcmask 24576
      %4156 = vst.msk [vmem:[%s527] sm:$0x1] %vm4155, %v4154
      %v4157 = vmul.f32 %v4054, %v4054
      %v4158 = vmul.f32 %v4055, %v4055
      %v4159 = vmul.f32 %v4056, %v4056
      %v4160 = vmul.f32 %v4057, %v4057
      %v4161 = vmul.f32 %v4058, %v4058
      %v4162 = vmul.f32 %v4059, %v4059
      %v4163 = vmul.f32 %v4060, %v4060
      %v4164 = vmul.f32 %v4061, %v4061
      %v4165 = vmul.f32 %v4062, %v4062
      %v4166 = vmul.f32 %v4063, %v4063
      %v4167 = vmul.f32 %v4064, %v4064
      %v4168 = vmul.f32 %v4065, %v4065
      %v4169 = vmul.f32 %v4066, %v4066
      %v4170 = vmul.f32 %v4067, %v4067
      %v4171 = vmul.f32 %v4068, %v4068
      %v4172 = vmul.f32 %v4069, %v4069
      %v4173 = vmul.f32 %v4070, %v4070
      %v4174 = vmul.f32 %v4071, %v4071
      %v4175 = vmul.f32 %v4072, %v4072
      %v4176 = vmul.f32 %v4073, %v4073
      %v4177 = vmul.f32 %v4074, %v4074
      %v4178 = vmul.f32 %v4075, %v4075
      %v4179 = vmul.f32 %v4076, %v4076
      %v4180 = vmul.f32 %v4077, %v4077
      %v4181 = vmul.f32 %v4078, %v4078
      %v4182 = vmul.f32 %v4079, %v4079
      %v4183 = vmul.f32 %v4080, %v4080
      %v4184 = vmul.f32 %v4081, %v4081
      %v4185 = vmul.f32 %v4082, %v4082
      %v4186 = vmul.f32 %v4083, %v4083
      %v4187 = vmul.f32 %v4084, %v4084
      %v4188 = vmul.f32 %v4085, %v4085
      %v4189 = vsel %vm1175, %v4157, 0.0
      %v4190 = vsel %vm1175, %v4158, 0.0
      %v4191 = vadd.f32 %v4189, %v4190
      %v4192 = vsel %vm1175, %v4159, 0.0
      %v4193 = vadd.f32 %v4191, %v4192
      %v4194 = vsel %vm1175, %v4160, 0.0
      %v4195 = vadd.f32 %v4193, %v4194
      %v4196 = vsel %vm1175, %v4161, 0.0
      %v4197 = vadd.f32 %v4195, %v4196
      %v4198 = vsel %vm1175, %v4162, 0.0
      %v4199 = vadd.f32 %v4197, %v4198
      %v4200 = vsel %vm1175, %v4163, 0.0
      %v4201 = vadd.f32 %v4199, %v4200
      %v4202 = vsel %vm1175, %v4164, 0.0
      %v4203 = vadd.f32 %v4201, %v4202
      %v4204 = vsel %vm1175, %v4165, 0.0
      %v4205 = vadd.f32 %v4203, %v4204
      %v4206 = vsel %vm1175, %v4166, 0.0
      %v4207 = vadd.f32 %v4205, %v4206
      %v4208 = vsel %vm1175, %v4167, 0.0
      %v4209 = vadd.f32 %v4207, %v4208
      %v4210 = vsel %vm1175, %v4168, 0.0
      %v4211 = vadd.f32 %v4209, %v4210
      %v4212 = vsel %vm1175, %v4169, 0.0
      %v4213 = vadd.f32 %v4211, %v4212
      %v4214 = vsel %vm1175, %v4170, 0.0
      %v4215 = vadd.f32 %v4213, %v4214
      %v4216 = vsel %vm1175, %v4171, 0.0
      %v4217 = vadd.f32 %v4215, %v4216
      %v4218 = vsel %vm1175, %v4172, 0.0
      %v4219 = vadd.f32 %v4217, %v4218
      %v4220 = vsel %vm1175, %v4173, 0.0
      %v4221 = vadd.f32 %v4219, %v4220
      %v4222 = vsel %vm1175, %v4174, 0.0
      %v4223 = vadd.f32 %v4221, %v4222
      %v4224 = vsel %vm1175, %v4175, 0.0
      %v4225 = vadd.f32 %v4223, %v4224
      %v4226 = vsel %vm1175, %v4176, 0.0
      %v4227 = vadd.f32 %v4225, %v4226
      %v4228 = vsel %vm1175, %v4177, 0.0
      %v4229 = vadd.f32 %v4227, %v4228
      %v4230 = vsel %vm1175, %v4178, 0.0
      %v4231 = vadd.f32 %v4229, %v4230
      %v4232 = vsel %vm1175, %v4179, 0.0
      %v4233 = vadd.f32 %v4231, %v4232
      %v4234 = vsel %vm1175, %v4180, 0.0
      %v4235 = vadd.f32 %v4233, %v4234
      %v4236 = vsel %vm1175, %v4181, 0.0
      %v4237 = vadd.f32 %v4235, %v4236
      %v4238 = vsel %vm1175, %v4182, 0.0
      %v4239 = vadd.f32 %v4237, %v4238
      %v4240 = vsel %vm1175, %v4183, 0.0
      %v4241 = vadd.f32 %v4239, %v4240
      %v4242 = vsel %vm1175, %v4184, 0.0
      %v4243 = vadd.f32 %v4241, %v4242
      %v4244 = vsel %vm1175, %v4185, 0.0
      %v4245 = vadd.f32 %v4243, %v4244
      %v4246 = vsel %vm1175, %v4186, 0.0
      %v4247 = vadd.f32 %v4245, %v4246
      %v4248 = vsel %vm1175, %v4187, 0.0
      %v4249 = vadd.f32 %v4247, %v4248
      %v4250 = vsel %vm1175, %v4188, 0.0
      %v4251 = vadd.f32 %v4249, %v4250
      %v4252 = vrot.slane %v4251, 4
      %v4253 = vadd.f32 %v4251, %v4252
      %v4254 = vrot.slane %v4253, 2
      %v4255 = vadd.f32 %v4253, %v4254
      %v4256 = vrot.slane %v4255, 1
      %v4257 = vadd.f32 %v4255, %v4256
      %4258 = vst.msk [vmem:[%s533] sm:$0x1] %vm4155, %v4257
      %4259 = vst.msk [vmem:[%s520] sm:$0xff] %vm1175, %v4054
      %4260 = vst.msk [vmem:[%s520 + $0x8] sm:$0xff] %vm1175, %v4055
      %4261 = vst.msk [vmem:[%s520 + $0x10] sm:$0xff] %vm1175, %v4056
      %4262 = vst.msk [vmem:[%s520 + $0x18] sm:$0xff] %vm1175, %v4057
      %4263 = vst.msk [vmem:[%s520 + $0x20] sm:$0xff] %vm1175, %v4058
      %4264 = vst.msk [vmem:[%s520 + $0x28] sm:$0xff] %vm1175, %v4059
      %4265 = vst.msk [vmem:[%s520 + $0x30] sm:$0xff] %vm1175, %v4060
      %4266 = vst.msk [vmem:[%s520 + $0x38] sm:$0xff] %vm1175, %v4061
      %4267 = vst.msk [vmem:[%s520 + $0x40] sm:$0xff] %vm1175, %v4062
      %4268 = vst.msk [vmem:[%s520 + $0x48] sm:$0xff] %vm1175, %v4063
      %4269 = vst.msk [vmem:[%s520 + $0x50] sm:$0xff] %vm1175, %v4064
      %4270 = vst.msk [vmem:[%s520 + $0x58] sm:$0xff] %vm1175, %v4065
      %4271 = vst.msk [vmem:[%s520 + $0x60] sm:$0xff] %vm1175, %v4066
      %4272 = vst.msk [vmem:[%s520 + $0x68] sm:$0xff] %vm1175, %v4067
      %4273 = vst.msk [vmem:[%s520 + $0x70] sm:$0xff] %vm1175, %v4068
      %4274 = vst.msk [vmem:[%s520 + $0x78] sm:$0xff] %vm1175, %v4069
      %4275 = vst.msk [vmem:[%s520 + $0x80] sm:$0xff] %vm1175, %v4070
      %4276 = vst.msk [vmem:[%s520 + $0x88] sm:$0xff] %vm1175, %v4071
      %4277 = vst.msk [vmem:[%s520 + $0x90] sm:$0xff] %vm1175, %v4072
      %4278 = vst.msk [vmem:[%s520 + $0x98] sm:$0xff] %vm1175, %v4073
      %4279 = vst.msk [vmem:[%s520 + $0xa0] sm:$0xff] %vm1175, %v4074
      %4280 = vst.msk [vmem:[%s520 + $0xa8] sm:$0xff] %vm1175, %v4075
      %4281 = vst.msk [vmem:[%s520 + $0xb0] sm:$0xff] %vm1175, %v4076
      %4282 = vst.msk [vmem:[%s520 + $0xb8] sm:$0xff] %vm1175, %v4077
      %4283 = vst.msk [vmem:[%s520 + $0xc0] sm:$0xff] %vm1175, %v4078
      %4284 = vst.msk [vmem:[%s520 + $0xc8] sm:$0xff] %vm1175, %v4079
      %4285 = vst.msk [vmem:[%s520 + $0xd0] sm:$0xff] %vm1175, %v4080
      %4286 = vst.msk [vmem:[%s520 + $0xd8] sm:$0xff] %vm1175, %v4081
      %4287 = vst.msk [vmem:[%s520 + $0xe0] sm:$0xff] %vm1175, %v4082
      %4288 = vst.msk [vmem:[%s520 + $0xe8] sm:$0xff] %vm1175, %v4083
      %4289 = vst.msk [vmem:[%s520 + $0xf0] sm:$0xff] %vm1175, %v4084
      %4290 = vst.msk [vmem:[%s520 + $0xf8] sm:$0xff] %vm1175, %v4085
      %s4291 = smul.u32 16, %s26
      %p4292 = scmp.lt.s32.totalorder %s25, 1
      %s4293 = scalar_select %p4292, %s25, 1
      %p4294 = scmp.lt.s32.totalorder %s4291, 15
      %s4295 = scalar_select %p4294, %s4291, 15
      %s4296 = smul.addr %s4295, 2
      %s4297 = smul.addr %s4293, 32
      %s4298 = sadd.s32 %s4296, %s4297
      %s4299 = smul.addr %s4298, 8
      %s4300 = scalar_lea.vmem %s7, %s4299
      %p4301 = scmp.lt.s32.totalorder %s25, 1
      %s4302 = scalar_select %p4301, %s25, 1
      %p4303 = scmp.lt.s32.totalorder %s26, 0
      %s4304 = scalar_select %p4303, %s26, 0
      %s4305 = sadd.s32 %s4304, %s4302
      %s4306 = scalar_lea.vmem %s8, %s4305
      %p4307 = scmp.lt.s32.totalorder %s25, 1
      %s4308 = scalar_select %p4307, %s25, 1
      %p4309 = scmp.lt.s32.totalorder %s26, 0
      %s4310 = scalar_select %p4309, %s26, 0
      %s4311 = sadd.s32 %s4310, %s4308
      %s4312 = scalar_lea.vmem %s9, %s4311
      // Predicated region
      $region49: #{resblock_forward.4} parent=47 // pred_check
        %p4313 = pneg %p237
      $region50: #{resblock_forward.4} parent=47 // pred_check_branch
        %4315 = sbr.rel (%p4313) target = $region52
      $region51: #{resblock_forward.4} parent=47 // pred_region
        %s4316 = smul.u32 16, %s26
      $region52: #{resblock_forward.4} parent=47 // pred_fallthru
        _
      // Predicated region
      $region53: #{resblock_forward.4} parent=47 // pred_check
        %p4317 = pneg %p265
      $region54: #{resblock_forward.4} parent=47 // pred_check_branch
        %4319 = sbr.rel (%p4317) target = $region56
      $region55: #{resblock_forward.4} parent=47 // pred_region
        _
      $region56: #{resblock_forward.4} parent=47 // pred_fallthru
        _
      // Predicated region
      $region57: #{resblock_forward.4} parent=47 // pred_check
        %p4320 = pneg %p293
      $region58: #{resblock_forward.4} parent=47 // pred_check_branch
        %4322 = sbr.rel (%p4320) target = $region60
      $region59: #{resblock_forward.4} parent=47 // pred_region
        _
      $region60: #{resblock_forward.4} parent=47 // pred_fallthru
        _
    $region48: #{resblock_forward.4} parent=5 // pred_fallthru
      _
    %p4323 = scmp.le.s32.totalorder 2, %s16
    // Predicated region
    $region61: #{resblock_forward.4} parent=5 // pred_check
      %p4324 = pneg %p4323
    $region62: #{resblock_forward.4} parent=5 // pred_check_branch
      %4326 = sbr.rel (%p4324) target = $region64
    $region63: #{resblock_forward.4} parent=5 // pred_region
      %s4327 = ssub.s32 %s16, 2
      // Predicated region
      $region65: #{resblock_forward.4} parent=63 // pred_check
        %p4328 = pneg %p243
      $region66: #{resblock_forward.4} parent=63 // pred_check_branch
        %4330 = sbr.rel (%p4328) target = $region68
      $region67: #{resblock_forward.4} parent=63 // pred_region
        %s4331 = smul.u32 16, %s28
        %p4332 = scmp.lt.s32.totalorder %s27, 1
        %s4333 = scalar_select %p4332, %s27, 1
        %p4334 = scmp.lt.s32.totalorder %s4331, 15
        %s4335 = scalar_select %p4334, %s4331, 15
        %s4336 = smul.addr %s4335, 2
        %s4337 = smul.addr %s4333, 32
        %s4338 = sadd.s32 %s4336, %s4337
        %s4339 = smul.addr %s4338, 8
        %s4340 = scalar_lea.vmem %s7, %s4339
      $region68: #{resblock_forward.4} parent=63 // pred_fallthru
        _
      // Predicated region
      $region69: #{resblock_forward.4} parent=63 // pred_check
        %p4341 = pneg %p271
      $region70: #{resblock_forward.4} parent=63 // pred_check_branch
        %4343 = sbr.rel (%p4341) target = $region72
      $region71: #{resblock_forward.4} parent=63 // pred_region
        %p4344 = scmp.lt.s32.totalorder %s27, 1
        %s4345 = scalar_select %p4344, %s27, 1
        %p4346 = scmp.lt.s32.totalorder %s28, 0
        %s4347 = scalar_select %p4346, %s28, 0
        %s4348 = sadd.s32 %s4347, %s4345
        %s4349 = scalar_lea.vmem %s8, %s4348
      $region72: #{resblock_forward.4} parent=63 // pred_fallthru
        _
      // Predicated region
      $region73: #{resblock_forward.4} parent=63 // pred_check
        %p4350 = pneg %p299
      $region74: #{resblock_forward.4} parent=63 // pred_check_branch
        %4352 = sbr.rel (%p4350) target = $region76
      $region75: #{resblock_forward.4} parent=63 // pred_region
        %p4353 = scmp.lt.s32.totalorder %s27, 1
        %s4354 = scalar_select %p4353, %s27, 1
        %p4355 = scmp.lt.s32.totalorder %s28, 0
        %s4356 = scalar_select %p4355, %s28, 0
        %s4357 = sadd.s32 %s4356, %s4354
        %s4358 = scalar_lea.vmem %s9, %s4357
      $region76: #{resblock_forward.4} parent=63 // pred_fallthru
        _
    $region64: #{resblock_forward.4} parent=5 // pred_fallthru
      _
  $region6: #{resblock_forward.4} parent=0 // loop_footer
    %s20 = sadd.s32 1, %s16
  $region7: #{resblock_forward.4} parent=0 // loop_footer_branch
    %15 = sbr.rel target = $region3
  $region8: #{resblock_forward.4} parent=0 // loop_exit
    _

// kernel: resblock_forward.3
$region0: #{resblock_forward.3}
  #allocation0 [shape = 'u32[]', space=smem, size = 0x4, offset = 0x4, fixed_abs, tag = 'smem constant byte address 0x4 - core index']
  #allocation1 [shape = 'u32[144,128]{1,0:T(1,128)}', space=vmem, size = 0x12000, scoped, tag = 'internal scratch']
  %s0 = inlined_call_operand.vmem [shape: f32[2,16,16,4], index: 0, kind: input, shape index: {}, may-alias: {0,1,2}]
  %s1 = inlined_call_operand.vmem [shape: f32[2,16,16,4], index: 1, kind: input, shape index: {}, may-alias: {0,1,2}]
  %s2 = inlined_call_operand.vmem [shape: f32[2,16,16,4], index: 2, kind: input, shape index: {}, may-alias: {0,1,2}]
  %s3 = inlined_call_operand.vmem [shape: bf16[3,12,4], index: 3, kind: input, shape index: {}]
  %s4 = inlined_call_operand.vmem [shape: f32[1,4], index: 4, kind: input, shape index: {}]
  %s5 = inlined_call_operand.vmem [shape: bf16[2,16,16,4], index: 5, kind: output, shape index: {0}]
  %s6 = inlined_call_operand.vmem [shape: f32[2,1,1,4], index: 6, kind: output, shape index: {1}]
  %s7 = inlined_call_operand.vmem [shape: f32[2,1,1,4], index: 7, kind: output, shape index: {2}]
  %8 = xla_tuple %s5, %s6, %s7
  %s9 = sld [smem:[#allocation0]]
  $region69: #{resblock_forward.3} parent=0
    _
  %s11 = ssub.s32 1, %s9
  %s12 = scalar_select 0, %s11, %s9
  loop: start=0, step=1, limit=4
  $region2: #{resblock_forward.3} parent=0 // loop_pre_header
    _
  $region3: #{resblock_forward.3} parent=0 // loop_header
    %s14 = sphi 0, %s18
    %p15 = scmp.ge.s32.totalorder %s14, 4
    %s21 = sphi 0, %s33
    %s22 = sphi 0, %s29
    %s23 = sphi 0, %s21
    %s24 = sphi 0, %s22
    %s25 = sphi 0, %s23
    %s26 = sphi 0, %s24
    %s38 = sphi 0, %s40
    %s41 = sphi 0, %s38
    %s42 = sphi 0, %s41
    %s58 = sphi 0, %s42
    %s74 = sphi 0, %s76
    %s77 = sphi 0, %s74
    %s78 = sphi 0, %s77
    %s94 = sphi 0, %s78
    %s110 = sphi 0, %s112
    %s113 = sphi 0, %s110
    %s114 = sphi 0, %s113
    %s130 = sphi 0, %s114
    %s134 = sphi 0, %s134
    %s136 = sphi 0, %s134
    %s137 = sphi 0, %s136
    %s151 = sphi 0, %s137
    %s155 = sphi 0, %s155
    %s157 = sphi 0, %s155
    %s158 = sphi 0, %s157
    %s172 = sphi 0, %s158
    %s180 = sphi 0, %s182
    %s183 = sphi 0, %s180
    %s184 = sphi 0, %s183
    %s200 = sphi 0, %s184
    %s208 = sphi 0, %s210
    %s211 = sphi 0, %s208
    %s212 = sphi 0, %s211
    %s228 = sphi 0, %s212
    %s236 = sphi 0, %s238
    %s239 = sphi 0, %s236
    %s240 = sphi 0, %s239
    %s256 = sphi 0, %s240
  $region4: #{resblock_forward.3} parent=0 // loop_header_branch
    %17 = sbr.rel (%p15) target = $region8
  $region5: #{resblock_forward.3} parent=0 // loop_body
    %s19 = ssub.s32 %s14, 1
    %s20 = ssub.s32 %s14, 2
    %s27 = sadd.s32 1, %s22
    %p28 = scmp.ge.s32.totalorder %s27, 1
    %s29 = scalar_select %p28, 0, %s27
    %s30 = sadd.s32 1, %s21
    %s31 = scalar_select %p28, %s30, %s21
    %p32 = scmp.ge.s32.totalorder %s31, 2
    %s33 = scalar_select %p32, 0, %s31
    %s34 = ssub.s32 %s21, %s33
    %s35 = ssub.s32 %s22, %s29
    %s36 = sor.u32 %s34, %s35
    %p37 = scmp.eq.s32.totalorder %s36, 0
    %s39 = sadd.s32 %s38, 1
    %s40 = scalar_select %p37, %s38, %s39
    %p43 = pneg %p37
    %p44 = scmp.eq.s32.totalorder %s14, 1
    %p45 = por %p43, %p44
    %p46 = scmp.ne.s32.totalorder %s38, %s41
    %p47 = scmp.eq.s32.totalorder %s14, 0
    %p48 = por %p46, %p47
    %p49 = scmp.ne.s32.totalorder %s38, %s41
    %p50 = scmp.eq.s32.totalorder %s19, 1
    %p51 = por %p49, %p50
    %p52 = scmp.ne.s32.totalorder %s41, %s42
    %p53 = scmp.eq.s32.totalorder %s19, 0
    %p54 = por %p52, %p53
    %p55 = scmp.ne.s32.totalorder %s41, %s42
    %p56 = scmp.eq.s32.totalorder %s20, 1
    %p57 = por %p55, %p56
    %p59 = scmp.ne.s32.totalorder %s42, %s58
    %p60 = scmp.eq.s32.totalorder %s20, 0
    %p61 = por %p59, %p60
    %s62 = smul.u32 %s22, 16
    %s63 = ssub.s32 %s62, 1
    %p64 = scmp.gt.s32.totalorder %s63, 0
    %s65 = scalar_select %p64, %s63, 0
    %s66 = smul.u32 %s29, 16
    %s67 = ssub.s32 %s66, 1
    %p68 = scmp.gt.s32.totalorder %s67, 0
    %s69 = scalar_select %p68, %s67, 0
    %s70 = ssub.s32 %s21, %s33
    %s71 = ssub.s32 %s65, %s69
    %s72 = sor.u32 %s70, %s71
    %p73 = scmp.eq.s32.totalorder %s72, 0
    %s75 = sadd.s32 %s74, 1
    %s76 = scalar_select %p73, %s74, %s75
    %p79 = pneg %p73
    %p80 = scmp.eq.s32.totalorder %s14, 1
    %p81 = por %p79, %p80
    %p82 = scmp.ne.s32.totalorder %s74, %s77
    %p83 = scmp.eq.s32.totalorder %s14, 0
    %p84 = por %p82, %p83
    %p85 = scmp.ne.s32.totalorder %s74, %s77
    %p86 = scmp.eq.s32.totalorder %s19, 1
    %p87 = por %p85, %p86
    %p88 = scmp.ne.s32.totalorder %s77, %s78
    %p89 = scmp.eq.s32.totalorder %s19, 0
    %p90 = por %p88, %p89
    %p91 = scmp.ne.s32.totalorder %s77, %s78
    %p92 = scmp.eq.s32.totalorder %s20, 1
    %p93 = por %p91, %p92
    %p95 = scmp.ne.s32.totalorder %s78, %s94
    %p96 = scmp.eq.s32.totalorder %s20, 0
    %p97 = por %p95, %p96
    %s98 = sadd.s32 %s22, 1
    %s99 = smul.u32 %s98, 16
    %p100 = scmp.lt.s32.totalorder %s99, 15
    %s101 = scalar_select %p100, %s99, 15
    %s102 = sadd.s32 %s29, 1
    %s103 = smul.u32 %s102, 16
    %p104 = scmp.lt.s32.totalorder %s103, 15
    %s105 = scalar_select %p104, %s103, 15
    %s106 = ssub.s32 %s21, %s33
    %s107 = ssub.s32 %s101, %s105
    %s108 = sor.u32 %s106, %s107
    %p109 = scmp.eq.s32.totalorder %s108, 0
    %s111 = sadd.s32 %s110, 1
    %s112 = scalar_select %p109, %s110, %s111
    %p115 = pneg %p109
    %p116 = scmp.eq.s32.totalorder %s14, 1
    %p117 = por %p115, %p116
    %p118 = scmp.ne.s32.totalorder %s110, %s113
    %p119 = scmp.eq.s32.totalorder %s14, 0
    %p120 = por %p118, %p119
    %p121 = scmp.ne.s32.totalorder %s110, %s113
    %p122 = scmp.eq.s32.totalorder %s19, 1
    %p123 = por %p121, %p122
    %p124 = scmp.ne.s32.totalorder %s113, %s114
    %p125 = scmp.eq.s32.totalorder %s19, 0
    %p126 = por %p124, %p125
    %p127 = scmp.ne.s32.totalorder %s113, %s114
    %p128 = scmp.eq.s32.totalorder %s20, 1
    %p129 = por %p127, %p128
    %p131 = scmp.ne.s32.totalorder %s114, %s130
    %p132 = scmp.eq.s32.totalorder %s20, 0
    %p133 = por %p131, %p132
    %s135 = sadd.s32 %s134, 1
    %p138 = scmp.eq.s32.totalorder %s14, 1
    %p139 = scmp.ne.s32.totalorder %s134, %s136
    %p140 = scmp.eq.s32.totalorder %s14, 0
    %p141 = por %p139, %p140
    %p142 = scmp.ne.s32.totalorder %s134, %s136
    %p143 = scmp.eq.s32.totalorder %s19, 1
    %p144 = por %p142, %p143
    %p145 = scmp.ne.s32.totalorder %s136, %s137
    %p146 = scmp.eq.s32.totalorder %s19, 0
    %p147 = por %p145, %p146
    %p148 = scmp.ne.s32.totalorder %s136, %s137
    %p149 = scmp.eq.s32.totalorder %s20, 1
    %p150 = por %p148, %p149
    %p152 = scmp.ne.s32.totalorder %s137, %s151
    %p153 = scmp.eq.s32.totalorder %s20, 0
    %p154 = por %p152, %p153
    %s156 = sadd.s32 %s155, 1
    %p159 = scmp.eq.s32.totalorder %s14, 1
    %p160 = scmp.ne.s32.totalorder %s155, %s157
    %p161 = scmp.eq.s32.totalorder %s14, 0
    %p162 = por %p160, %p161
    %p163 = scmp.ne.s32.totalorder %s155, %s157
    %p164 = scmp.eq.s32.totalorder %s19, 1
    %p165 = por %p163, %p164
    %p166 = scmp.ne.s32.totalorder %s157, %s158
    %p167 = scmp.eq.s32.totalorder %s19, 0
    %p168 = por %p166, %p167
    %p169 = scmp.ne.s32.totalorder %s157, %s158
    %p170 = scmp.eq.s32.totalorder %s20, 1
    %p171 = por %p169, %p170
    %p173 = scmp.ne.s32.totalorder %s158, %s172
    %p174 = scmp.eq.s32.totalorder %s20, 0
    %p175 = por %p173, %p174
    %s176 = ssub.s32 %s21, %s33
    %s177 = ssub.s32 %s22, %s29
    %s178 = sor.u32 %s176, %s177
    %p179 = scmp.eq.s32.totalorder %s178, 0
    %s181 = sadd.s32 %s180, 1
    %s182 = scalar_select %p179, %s180, %s181
    %p185 = pneg %p179
    %p186 = scmp.eq.s32.totalorder %s14, 1
    %p187 = por %p185, %p186
    %p188 = scmp.ne.s32.totalorder %s180, %s183
    %p189 = scmp.eq.s32.totalorder %s14, 0
    %p190 = por %p188, %p189
    %p191 = scmp.ne.s32.totalorder %s180, %s183
    %p192 = scmp.eq.s32.totalorder %s19, 1
    %p193 = por %p191, %p192
    %p194 = scmp.ne.s32.totalorder %s183, %s184
    %p195 = scmp.eq.s32.totalorder %s19, 0
    %p196 = por %p194, %p195
    %p197 = scmp.ne.s32.totalorder %s183, %s184
    %p198 = scmp.eq.s32.totalorder %s20, 1
    %p199 = por %p197, %p198
    %p201 = scmp.ne.s32.totalorder %s184, %s200
    %p202 = scmp.eq.s32.totalorder %s20, 0
    %p203 = por %p201, %p202
    %s204 = ssub.s32 %s21, %s33
    %s205 = ssub.s32 %s22, %s29
    %s206 = sor.u32 %s204, %s205
    %p207 = scmp.eq.s32.totalorder %s206, 0
    %s209 = sadd.s32 %s208, 1
    %s210 = scalar_select %p207, %s208, %s209
    %p213 = pneg %p207
    %p214 = scmp.eq.s32.totalorder %s14, 1
    %p215 = por %p213, %p214
    %p216 = scmp.ne.s32.totalorder %s208, %s211
    %p217 = scmp.eq.s32.totalorder %s14, 0
    %p218 = por %p216, %p217
    %p219 = scmp.ne.s32.totalorder %s208, %s211
    %p220 = scmp.eq.s32.totalorder %s19, 1
    %p221 = por %p219, %p220
    %p222 = scmp.ne.s32.totalorder %s211, %s212
    %p223 = scmp.eq.s32.totalorder %s19, 0
    %p224 = por %p222, %p223
    %p225 = scmp.ne.s32.totalorder %s211, %s212
    %p226 = scmp.eq.s32.totalorder %s20, 1
    %p227 = por %p225, %p226
    %p229 = scmp.ne.s32.totalorder %s212, %s228
    %p230 = scmp.eq.s32.totalorder %s20, 0
    %p231 = por %p229, %p230
    %s232 = ssub.s32 %s21, %s33
    %s233 = ssub.s32 %s22, %s29
    %s234 = sor.u32 %s232, %s233
    %p235 = scmp.eq.s32.totalorder %s234, 0
    %s237 = sadd.s32 %s236, 1
    %s238 = scalar_select %p235, %s236, %s237
    %p241 = pneg %p235
    %p242 = scmp.eq.s32.totalorder %s14, 1
    %p243 = por %p241, %p242
    %p244 = scmp.ne.s32.totalorder %s236, %s239
    %p245 = scmp.eq.s32.totalorder %s14, 0
    %p246 = por %p244, %p245
    %p247 = scmp.ne.s32.totalorder %s236, %s239
    %p248 = scmp.eq.s32.totalorder %s19, 1
    %p249 = por %p247, %p248
    %p250 = scmp.ne.s32.totalorder %s239, %s240
    %p251 = scmp.eq.s32.totalorder %s19, 0
    %p252 = por %p250, %p251
    %p253 = scmp.ne.s32.totalorder %s239, %s240
    %p254 = scmp.eq.s32.totalorder %s20, 1
    %p255 = por %p253, %p254
    %p257 = scmp.ne.s32.totalorder %s240, %s256
    %p258 = scmp.eq.s32.totalorder %s20, 0
    %p259 = por %p257, %p258
    %p260 = scmp.le.s32.totalorder 1, %s14
    %p261 = scmp.lt.s32.totalorder %s14, 3
    %p262 = pnand %p260, %p261
    %p263 = pneg %p262
    // Predicated region
    $region9: #{resblock_forward.3} parent=5 // pred_check
      _
    $region10: #{resblock_forward.3} parent=5 // pred_check_branch
      %265 = sbr.rel (%p262) target = $region12
    $region11: #{resblock_forward.3} parent=5 // pred_region
      %s266 = ssub.s32 %s14, 1
      // Predicated region
      $region13: #{resblock_forward.3} parent=11 // pred_check
        %p267 = pneg %p147
      $region14: #{resblock_forward.3} parent=11 // pred_check_branch
        %269 = sbr.rel (%p267) target = $region16
      $region15: #{resblock_forward.3} parent=11 // pred_region
        _
      $region16: #{resblock_forward.3} parent=11 // pred_fallthru
        _
      // Predicated region
      $region17: #{resblock_forward.3} parent=11 // pred_check
        %p270 = pneg %p168
      $region18: #{resblock_forward.3} parent=11 // pred_check_branch
        %272 = sbr.rel (%p270) target = $region20
      $region19: #{resblock_forward.3} parent=11 // pred_region
        _
      $region20: #{resblock_forward.3} parent=11 // pred_fallthru
        _
    $region12: #{resblock_forward.3} parent=5 // pred_fallthru
      _
    %p273 = scmp.lt.s32.totalorder %s14, 2
    // Predicated region
    $region21: #{resblock_forward.3} parent=5 // pred_check
      %p274 = pneg %p273
    $region22: #{resblock_forward.3} parent=5 // pred_check_branch
      %276 = sbr.rel (%p274) target = $region24
    $region23: #{resblock_forward.3} parent=5 // pred_region
      // Predicated region
      $region25: #{resblock_forward.3} parent=23 // pred_check
        %p277 = pneg %p48
      $region26: #{resblock_forward.3} parent=23 // pred_check_branch
        %279 = sbr.rel (%p277) target = $region28
      $region27: #{resblock_forward.3} parent=23 // pred_region
        %s280 = smul.u32 16, %s22
        %p281 = scmp.lt.s32.totalorder %s21, 1
        %s282 = scalar_select %p281, %s21, 1
        %p283 = scmp.lt.s32.totalorder %s280, 15
        %s284 = scalar_select %p283, %s280, 15
        %s285 = smul.addr %s284, 2
        %s286 = smul.addr %s282, 32
        %s287 = sadd.s32 %s285, %s286
        %s288 = smul.addr %s287, 8
        %s289 = scalar_lea.vmem %s0, %s288
        %s290 = smul.u32 16, %s22
      $region28: #{resblock_forward.3} parent=23 // pred_fallthru
        _
      // Predicated region
      $region29: #{resblock_forward.3} parent=23 // pred_check
        %p291 = pneg %p84
      $region30: #{resblock_forward.3} parent=23 // pred_check_branch
        %293 = sbr.rel (%p291) target = $region32
      $region31: #{resblock_forward.3} parent=23 // pred_region
        %s294 = smul.u32 %s22, 16
        %s295 = ssub.s32 %s294, 1
        %p296 = scmp.gt.s32.totalorder %s295, 0
        %s297 = scalar_select %p296, %s295, 0
        %p298 = scmp.lt.s32.totalorder %s21, 1
        %s299 = scalar_select %p298, %s21, 1
        %p300 = scmp.lt.s32.totalorder %s297, 15
        %s301 = scalar_select %p300, %s297, 15
        %s302 = smul.addr %s301, 2
        %s303 = smul.addr %s299, 32
        %s304 = sadd.s32 %s302, %s303
        %s305 = smul.addr %s304, 8
        %s306 = scalar_lea.vmem %s1, %s305
        %s307 = smul.u32 %s22, 16
        %s308 = ssub.s32 %s307, 1
        %p309 = scmp.gt.s32.totalorder %s308, 0
        %s310 = scalar_select %p309, %s308, 0
      $region32: #{resblock_forward.3} parent=23 // pred_fallthru
        _
      // Predicated region
      $region33: #{resblock_forward.3} parent=23 // pred_check
        %p311 = pneg %p120
      $region34: #{resblock_forward.3} parent=23 // pred_check_branch
        %313 = sbr.rel (%p311) target = $region36
      $region35: #{resblock_forward.3} parent=23 // pred_region
        %s314 = sadd.s32 %s22, 1
        %s315 = smul.u32 %s314, 16
        %p316 = scmp.lt.s32.totalorder %s315, 15
        %s317 = scalar_select %p316, %s315, 15
        %p318 = scmp.lt.s32.totalorder %s21, 1
        %s319 = scalar_select %p318, %s21, 1
        %p320 = scmp.lt.s32.totalorder %s317, 15
        %s321 = scalar_select %p320, %s317, 15
        %s322 = smul.addr %s321, 2
        %s323 = smul.addr %s319, 32
        %s324 = sadd.s32 %s322, %s323
        %s325 = smul.addr %s324, 8
        %s326 = scalar_lea.vmem %s2, %s325
        %s327 = sadd.s32 %s22, 1
        %s328 = smul.u32 %s327, 16
        %p329 = scmp.lt.s32.totalorder %s328, 15
        %s330 = scalar_select %p329, %s328, 15
      $region36: #{resblock_forward.3} parent=23 // pred_fallthru
        _
    $region24: #{resblock_forward.3} parent=5 // pred_fallthru
      _
    %p331 = scmp.le.s32.totalorder 1, %s14
    %p332 = scmp.lt.s32.totalorder %s14, 3
    %p333 = pnand %p331, %p332
    %p334 = pneg %p333
    // Predicated region
    $region37: #{resblock_forward.3} parent=5 // pred_check
      _
    $region38: #{resblock_forward.3} parent=5 // pred_check_branch
      %336 = sbr.rel (%p333) target = $region40
    $region39: #{resblock_forward.3} parent=5 // pred_region
      %s337 = ssub.s32 %s14, 1
      %s338 = smul.u32 16, %s24
      %p339 = scmp.lt.s32.totalorder %s23, 1
      %s340 = scalar_select %p339, %s23, 1
      %p341 = scmp.lt.s32.totalorder %s338, 15
      %s342 = scalar_select %p341, %s338, 15
      %s343 = smul.addr %s342, 2
      %s344 = smul.addr %s340, 32
      %s345 = sadd.s32 %s343, %s344
      %s346 = smul.addr %s345, 8
      %s347 = scalar_lea.vmem %s0, %s346
      %p348 = pneg %p54
      %p349 = pneg %p51
      %s350 = smul.u32 %s24, 16
      %s351 = ssub.s32 %s350, 1
      %p352 = scmp.gt.s32.totalorder %s351, 0
      %s353 = scalar_select %p352, %s351, 0
      %p354 = scmp.lt.s32.totalorder %s23, 1
      %s355 = scalar_select %p354, %s23, 1
      %p356 = scmp.lt.s32.totalorder %s353, 15
      %s357 = scalar_select %p356, %s353, 15
      %s358 = smul.addr %s357, 2
      %s359 = smul.addr %s355, 32
      %s360 = sadd.s32 %s358, %s359
      %s361 = smul.addr %s360, 8
      %s362 = scalar_lea.vmem %s1, %s361
      %p363 = pneg %p90
      %p364 = pneg %p87
      %s365 = sadd.s32 %s24, 1
      %s366 = smul.u32 %s365, 16
      %p367 = scmp.lt.s32.totalorder %s366, 15
      %s368 = scalar_select %p367, %s366, 15
      %p369 = scmp.lt.s32.totalorder %s23, 1
      %s370 = scalar_select %p369, %s23, 1
      %p371 = scmp.lt.s32.totalorder %s368, 15
      %s372 = scalar_select %p371, %s368, 15
      %s373 = smul.addr %s372, 2
      %s374 = smul.addr %s370, 32
      %s375 = sadd.s32 %s373, %s374
      %s376 = smul.addr %s375, 8
      %s377 = scalar_lea.vmem %s2, %s376
      %p378 = pneg %p126
      %p379 = pneg %p123
      %p380 = pneg %p147
      %p381 = pneg %p144
      %p382 = pneg %p168
      %p383 = pneg %p165
      %p384 = pneg %p196
      %p385 = pneg %p193
      %s386 = smul.u32 16, %s24
      %p387 = scmp.lt.s32.totalorder %s23, 1
      %s388 = scalar_select %p387, %s23, 1
      %p389 = scmp.lt.s32.totalorder %s386, 15
      %s390 = scalar_select %p389, %s386, 15
      %s391 = smul.addr %s390, 2
      %s392 = smul.addr %s388, 32
      %s393 = sadd.s32 %s391, %s392
      %s394 = smul.addr %s393, 4
      %s395 = scalar_lea.vmem %s5, %s394
      %p396 = pneg %p224
      %p397 = pneg %p221
      %p398 = scmp.lt.s32.totalorder %s23, 1
      %s399 = scalar_select %p398, %s23, 1
      %p400 = scmp.lt.s32.totalorder %s24, 0
      %s401 = scalar_select %p400, %s24, 0
      %s402 = sadd.s32 %s401, %s399
      %s403 = scalar_lea.vmem %s6, %s402
      %p404 = pneg %p252
      %p405 = pneg %p249
      %p406 = scmp.lt.s32.totalorder %s23, 1
      %s407 = scalar_select %p406, %s23, 1
      %p408 = scmp.lt.s32.totalorder %s24, 0
      %s409 = scalar_select %p408, %s24, 0
      %s410 = sadd.s32 %s409, %s407
      %s411 = scalar_lea.vmem %s7, %s410
      %s412 = smul.u32 16, %s24
      %p413 = scmp.lt.s32.totalorder %s23, 1
      %s414 = scalar_select %p413, %s23, 1
      %p415 = scmp.lt.s32.totalorder %s412, 15
      %s416 = scalar_select %p415, %s412, 15
      %s417 = smul.addr %s416, 2
      %s418 = smul.addr %s414, 32
      %s419 = sadd.s32 %s417, %s418
      %s420 = smul.addr %s419, 8
      %s421 = scalar_lea.vmem %s0, %s420
      %s422 = smul.u32 16, %s24
      %s423 = smul.u32 %s24, 16
      %s424 = ssub.s32 %s423, 1
      %p425 = scmp.gt.s32.totalorder %s424, 0
      %s426 = scalar_select %p425, %s424, 0
      %p427 = scmp.lt.s32.totalorder %s23, 1
      %s428 = scalar_select %p427, %s23, 1
      %p429 = scmp.lt.s32.totalorder %s426, 15
      %s430 = scalar_select %p429, %s426, 15
      %s431 = smul.addr %s430, 2
      %s432 = smul.addr %s428, 32
      %s433 = sadd.s32 %s431, %s432
      %s434 = smul.addr %s433, 8
      %s435 = scalar_lea.vmem %s1, %s434
      %s436 = smul.u32 %s24, 16
      %s437 = ssub.s32 %s436, 1
      %p438 = scmp.gt.s32.totalorder %s437, 0
      %s439 = scalar_select %p438, %s437, 0
      %s440 = sadd.s32 %s24, 1
      %s441 = smul.u32 %s440, 16
      %p442 = scmp.lt.s32.totalorder %s441, 15
      %s443 = scalar_select %p442, %s441, 15
      %p444 = scmp.lt.s32.totalorder %s23, 1
      %s445 = scalar_select %p444, %s23, 1
      %p446 = scmp.lt.s32.totalorder %s443, 15
      %s447 = scalar_select %p446, %s443, 15
      %s448 = smul.addr %s447, 2
      %s449 = smul.addr %s445, 32
      %s450 = sadd.s32 %s448, %s449
      %s451 = smul.addr %s450, 8
      %s452 = scalar_lea.vmem %s2, %s451
      %s453 = sadd.s32 %s24, 1
      %s454 = smul.u32 %s453, 16
      %p455 = scmp.lt.s32.totalorder %s454, 15
      %s456 = scalar_select %p455, %s454, 15
      %s457 = smul.u32 16, %s24
      %p458 = scmp.lt.s32.totalorder %s23, 1
      %s459 = scalar_select %p458, %s23, 1
      %p460 = scmp.lt.s32.totalorder %s457, 15
      %s461 = scalar_select %p460, %s457, 15
      %s462 = smul.addr %s461, 2
      %s463 = smul.addr %s459, 32
      %s464 = sadd.s32 %s462, %s463
      %s465 = smul.addr %s464, 4
      %s466 = scalar_lea.vmem %s5, %s465
      %s467 = smul.u32 16, %s24
      %p468 = scmp.lt.s32.totalorder %s23, 1
      %s469 = scalar_select %p468, %s23, 1
      %p470 = scmp.lt.s32.totalorder %s24, 0
      %s471 = scalar_select %p470, %s24, 0
      %s472 = sadd.s32 %s471, %s469
      %s473 = scalar_lea.vmem %s6, %s472
      %p474 = scmp.lt.s32.totalorder %s23, 1
      %s475 = scalar_select %p474, %s23, 1
      %p476 = scmp.lt.s32.totalorder %s24, 0
      %s477 = scalar_select %p476, %s24, 0
      %s478 = sadd.s32 %s477, %s475
      %s479 = scalar_lea.vmem %s7, %s478
      %s481 = smul.u32 %s24, 16
      %v482 = vld [vmem:[%s435] sm:$0xff]
      %v483 = vld [vmem:[%s435 + $0x8] sm:$0xff]
      %v484 = vld [vmem:[%s421] sm:$0xff]
      %v485 = vld [vmem:[%s421 + $0x8] sm:$0xff]
      %v486 = vld [vmem:[%s421 + $0x10] sm:$0xff]
      %v487 = vld [vmem:[%s421 + $0x18] sm:$0xff]
      %v488 = vld [vmem:[%s421 + $0x20] sm:$0xff]
      %v489 = vld [vmem:[%s421 + $0x28] sm:$0xff]
      %v490 = vld [vmem:[%s421 + $0x30] sm:$0xff]
      %v491 = vld [vmem:[%s421 + $0x38] sm:$0xff]
      %v492 = vld [vmem:[%s421 + $0x40] sm:$0xff]
      %v493 = vld [vmem:[%s421 + $0x48] sm:$0xff]
      %v494 = vld [vmem:[%s421 + $0x50] sm:$0xff]
      %v495 = vld [vmem:[%s421 + $0x58] sm:$0xff]
      %v496 = vld [vmem:[%s421 + $0x60] sm:$0xff]
      %v497 = vld [vmem:[%s421 + $0x68] sm:$0xff]
      %v498 = vld [vmem:[%s421 + $0x70] sm:$0xff]
      %v499 = vld [vmem:[%s421 + $0x78] sm:$0xff]
      %v500 = vld [vmem:[%s421 + $0x80] sm:$0xff]
      %v501 = vld [vmem:[%s421 + $0x88] sm:$0xff]
      %v502 = vld [vmem:[%s421 + $0x90] sm:$0xff]
      %v503 = vld [vmem:[%s421 + $0x98] sm:$0xff]
      %v504 = vld [vmem:[%s421 + $0xa0] sm:$0xff]
      %v505 = vld [vmem:[%s421 + $0xa8] sm:$0xff]
      %v506 = vld [vmem:[%s421 + $0xb0] sm:$0xff]
      %v507 = vld [vmem:[%s421 + $0xb8] sm:$0xff]
      %v508 = vld [vmem:[%s421 + $0xc0] sm:$0xff]
      %v509 = vld [vmem:[%s421 + $0xc8] sm:$0xff]
      %v510 = vld [vmem:[%s421 + $0xd0] sm:$0xff]
      %v511 = vld [vmem:[%s421 + $0xd8] sm:$0xff]
      %v512 = vld [vmem:[%s421 + $0xe0] sm:$0xff]
      %v513 = vld [vmem:[%s421 + $0xe8] sm:$0xff]
      %v514 = vld [vmem:[%s421 + $0xf0] sm:$0xff]
      %v515 = vld [vmem:[%s421 + $0xf8] sm:$0xff]
      %v516 = vld [vmem:[%s452] sm:$0xff]
      %v517 = vld [vmem:[%s452 + $0x8] sm:$0xff]
      %v518 = vld [vmem:[%s3] sm:$0xf]
      %v519 = vld [vmem:[%s3 + $0x4] sm:$0x3]
      %v520 = vld [vmem:[%s3 + $0x8] sm:$0xf]
      %v521 = vld [vmem:[%s3 + $0xc] sm:$0x3]
      %v522 = vld [vmem:[%s3 + $0x10] sm:$0xf]
      %v523 = vld [vmem:[%s3 + $0x14] sm:$0x3]
      %v524 = vstv %s481
      %v525 = vadd.s32 %v524, 1
      %v526 = vadd.s32 %v524, 2
      %v527 = vadd.s32 %v524, 3
      %v528 = vadd.s32 %v524, 4
      %v529 = vadd.s32 %v524, 5
      %v530 = vadd.s32 %v524, 6
      %v531 = vadd.s32 %v524, 7
      %v532 = vadd.s32 %v524, 8
      %v533 = vadd.s32 %v524, 9
      %v534 = vadd.s32 %v524, 10
      %v535 = vadd.s32 %v524, 11
      %v536 = vadd.s32 %v524, 12
      %v537 = vadd.s32 %v524, 13
      %v538 = vadd.s32 %v524, 14
      %v539 = vadd.s32 %v524, 15
      %v540 = vlaneseq
      %v541 = vshrl.u32 %v540, 7
      %v542 = vadd.s32 %v541, 8
      %vm543 = vcmp.ge.s32.totalorder %v524, 1
      %vm544 = vcmp.ge.s32.totalorder %v525, 1
      %vm545 = vcmp.ge.s32.totalorder %v526, 1
      %vm546 = vcmp.ge.s32.totalorder %v527, 1
      %vm547 = vcmp.ge.s32.totalorder %v528, 1
      %vm548 = vcmp.ge.s32.totalorder %v529, 1
      %vm549 = vcmp.ge.s32.totalorder %v530, 1
      %vm550 = vcmp.ge.s32.totalorder %v531, 1
      %vm551 = vcmp.ge.s32.totalorder %v532, 1
      %vm552 = vcmp.ge.s32.totalorder %v533, 1
      %vm553 = vcmp.ge.s32.totalorder %v534, 1
      %vm554 = vcmp.ge.s32.totalorder %v535, 1
      %vm555 = vcmp.ge.s32.totalorder %v536, 1
      %vm556 = vcmp.ge.s32.totalorder %v537, 1
      %vm557 = vcmp.ge.s32.totalorder %v538, 1
      %vm558 = vcmp.ge.s32.totalorder %v539, 1
      %v559 = vrot.slane %v482, 7
      %v560 = vrot.slane %v483, 7
      %v561 = vrot.slane %v484, 7
      %v562 = vrot.slane %v485, 7
      %v563 = vrot.slane %v486, 7
      %v564 = vrot.slane %v487, 7
      %v565 = vrot.slane %v488, 7
      %v566 = vrot.slane %v489, 7
      %v567 = vrot.slane %v490, 7
      %v568 = vrot.slane %v491, 7
      %v569 = vrot.slane %v492, 7
      %v570 = vrot.slane %v493, 7
      %v571 = vrot.slane %v494, 7
      %v572 = vrot.slane %v495, 7
      %v573 = vrot.slane %v496, 7
      %v574 = vrot.slane %v497, 7
      %v575 = vrot.slane %v498, 7
      %v576 = vrot.slane %v499, 7
      %v577 = vrot.slane %v500, 7
      %v578 = vrot.slane %v501, 7
      %v579 = vrot.slane %v502, 7
      %v580 = vrot.slane %v503, 7
      %v581 = vrot.slane %v504, 7
      %v582 = vrot.slane %v505, 7
      %v583 = vrot.slane %v506, 7
      %v584 = vrot.slane %v507, 7
      %v585 = vrot.slane %v508, 7
      %v586 = vrot.slane %v509, 7
      %v587 = vrot.slane %v510, 7
      %v588 = vrot.slane %v511, 7
      %v589 = vrot.slane %v512, 7
      %v590 = vrot.slane %v513, 7
      %v591 = vrot.slane %v517, 7
      %vm592 = vcmp.lt.s32.totalorder %v541, 1
      %v593 = vsel %vm592, %v589, %v590
      %v594 = vsel %vm592, %v588, %v589
      %v595 = vsel %vm592, %v587, %v588
      %v596 = vsel %vm592, %v586, %v587
      %v597 = vsel %vm592, %v585, %v586
      %v598 = vsel %vm592, %v584, %v585
      %v599 = vsel %vm592, %v583, %v584
      %v600 = vsel %vm592, %v582, %v583
      %v601 = vsel %vm592, %v581, %v582
      %v602 = vsel %vm592, %v580, %v581
      %v603 = vsel %vm592, %v579, %v580
      %v604 = vsel %vm592, %v578, %v579
      %v605 = vsel %vm592, %v577, %v578
      %v606 = vsel %vm592, %v576, %v577
      %v607 = vsel %vm592, %v575, %v576
      %v608 = vsel %vm592, %v574, %v575
      %v609 = vsel %vm592, %v573, %v574
      %v610 = vsel %vm592, %v572, %v573
      %v611 = vsel %vm592, %v571, %v572
      %v612 = vsel %vm592, %v570, %v571
      %v613 = vsel %vm592, %v569, %v570
      %v614 = vsel %vm592, %v568, %v569
      %v615 = vsel %vm592, %v567, %v568
      %v616 = vsel %vm592, %v566, %v567
      %v617 = vsel %vm592, %v565, %v566
      %v618 = vsel %vm592, %v564, %v565
      %v619 = vsel %vm592, %v563, %v564
      %v620 = vsel %vm592, %v562, %v563
      %v621 = vsel %vm592, %v561, %v562
      %v622 = vsel %vm592, %v560, %v561
      %v623 = vsel %vm592, %v559, %v560
      %v624 = vsel %vm592, %v591, %v559
      %vm625 = vcmp.ge.s32.totalorder %v541, 1
      %vm626 = vcmp.ge.s32.totalorder %v542, 1
      %vm627 = vmand %vm543, %vm625
      %vm628 = vmand %vm543, %vm626
      %vm629 = vmand %vm544, %vm625
      %vm630 = vmand %vm544, %vm626
      %vm631 = vmand %vm545, %vm625
      %vm632 = vmand %vm545, %vm626
      %vm633 = vmand %vm546, %vm625
      %vm634 = vmand %vm546, %vm626
      %vm635 = vmand %vm547, %vm625
      %vm636 = vmand %vm547, %vm626
      %vm637 = vmand %vm548, %vm625
      %vm638 = vmand %vm548, %vm626
      %vm639 = vmand %vm549, %vm625
      %vm640 = vmand %vm549, %vm626
      %vm641 = vmand %vm550, %vm625
      %vm642 = vmand %vm550, %vm626
      %vm643 = vmand %vm551, %vm625
      %vm644 = vmand %vm551, %vm626
      %vm645 = vmand %vm552, %vm625
      %vm646 = vmand %vm552, %vm626
      %vm647 = vmand %vm553, %vm625
      %vm648 = vmand %vm553, %vm626
      %vm649 = vmand %vm554, %vm625
      %vm650 = vmand %vm554, %vm626
      %vm651 = vmand %vm555, %vm625
      %vm652 = vmand %vm555, %vm626
      %vm653 = vmand %vm556, %vm625
      %vm654 = vmand %vm556, %vm626
      %vm655 = vmand %vm557, %vm625
      %vm656 = vmand %vm557, %vm626
      %vm657 = vmand %vm558, %vm625
      %vm658 = vmand %vm558, %vm626
      %v659 = vsel %vm627, 1, 0
      %v660 = vsel %vm628, 1, 0
      %v661 = vsel %vm629, 1, 0
      %v662 = vsel %vm630, 1, 0
      %v663 = vsel %vm631, 1, 0
      %v664 = vsel %vm632, 1, 0
      %v665 = vsel %vm633, 1, 0
      %v666 = vsel %vm634, 1, 0
      %v667 = vsel %vm635, 1, 0
      %v668 = vsel %vm636, 1, 0
      %v669 = vsel %vm637, 1, 0
      %v670 = vsel %vm638, 1, 0
      %v671 = vsel %vm639, 1, 0
      %v672 = vsel %vm640, 1, 0
      %v673 = vsel %vm641, 1, 0
      %v674 = vsel %vm642, 1, 0
      %v675 = vsel %vm643, 1, 0
      %v676 = vsel %vm644, 1, 0
      %v677 = vsel %vm645, 1, 0
      %v678 = vsel %vm646, 1, 0
      %v679 = vsel %vm647, 1, 0
      %v680 = vsel %vm648, 1, 0
      %v681 = vsel %vm649, 1, 0
      %v682 = vsel %vm650, 1, 0
      %v683 = vsel %vm651, 1, 0
      %v684 = vsel %vm652, 1, 0
      %v685 = vsel %vm653, 1, 0
      %v686 = vsel %vm654, 1, 0
      %v687 = vsel %vm655, 1, 0
      %v688 = vsel %vm656, 1, 0
      %v689 = vsel %vm657, 1, 0
      %v690 = vsel %vm658, 1, 0
      %vm691 = vcmp.eq.s32.totalorder %v659, 1
      %vm692 = vcmp.eq.s32.totalorder %v660, 1
      %vm693 = vcmp.eq.s32.totalorder %v661, 1
      %vm694 = vcmp.eq.s32.totalorder %v662, 1
      %vm695 = vcmp.eq.s32.totalorder %v663, 1
      %vm696 = vcmp.eq.s32.totalorder %v664, 1
      %vm697 = vcmp.eq.s32.totalorder %v665, 1
      %vm698 = vcmp.eq.s32.totalorder %v666, 1
      %vm699 = vcmp.eq.s32.totalorder %v667, 1
      %vm700 = vcmp.eq.s32.totalorder %v668, 1
      %vm701 = vcmp.eq.s32.totalorder %v669, 1
      %vm702 = vcmp.eq.s32.totalorder %v670, 1
      %vm703 = vcmp.eq.s32.totalorder %v671, 1
      %vm704 = vcmp.eq.s32.totalorder %v672, 1
      %vm705 = vcmp.eq.s32.totalorder %v673, 1
      %vm706 = vcmp.eq.s32.totalorder %v674, 1
      %vm707 = vcmp.eq.s32.totalorder %v675, 1
      %vm708 = vcmp.eq.s32.totalorder %v676, 1
      %vm709 = vcmp.eq.s32.totalorder %v677, 1
      %vm710 = vcmp.eq.s32.totalorder %v678, 1
      %vm711 = vcmp.eq.s32.totalorder %v679, 1
      %vm712 = vcmp.eq.s32.totalorder %v680, 1
      %vm713 = vcmp.eq.s32.totalorder %v681, 1
      %vm714 = vcmp.eq.s32.totalorder %v682, 1
      %vm715 = vcmp.eq.s32.totalorder %v683, 1
      %vm716 = vcmp.eq.s32.totalorder %v684, 1
      %vm717 = vcmp.eq.s32.totalorder %v685, 1
      %vm718 = vcmp.eq.s32.totalorder %v686, 1
      %vm719 = vcmp.eq.s32.totalorder %v687, 1
      %vm720 = vcmp.eq.s32.totalorder %v688, 1
      %vm721 = vcmp.eq.s32.totalorder %v689, 1
      %vm722 = vcmp.eq.s32.totalorder %v690, 1
      %v723 = vsel %vm691, %v624, 0.0
      %v724 = vsel %vm692, %v623, 0.0
      %v725 = vsel %vm693, %v622, 0.0
      %v726 = vsel %vm694, %v621, 0.0
      %v727 = vsel %vm695, %v620, 0.0
      %v728 = vsel %vm696, %v619, 0.0
      %v729 = vsel %vm697, %v618, 0.0
      %v730 = vsel %vm698, %v617, 0.0
      %v731 = vsel %vm699, %v616, 0.0
      %v732 = vsel %vm700, %v615, 0.0
      %v733 = vsel %vm701, %v614, 0.0
      %v734 = vsel %vm702, %v613, 0.0
      %v735 = vsel %vm703, %v612, 0.0
      %v736 = vsel %vm704, %v611, 0.0
      %v737 = vsel %vm705, %v610, 0.0
      %v738 = vsel %vm706, %v609, 0.0
      %v739 = vsel %vm707, %v608, 0.0
      %v740 = vsel %vm708, %v607, 0.0
      %v741 = vsel %vm709, %v606, 0.0
      %v742 = vsel %vm710, %v605, 0.0
      %v743 = vsel %vm711, %v604, 0.0
      %v744 = vsel %vm712, %v603, 0.0
      %v745 = vsel %vm713, %v602, 0.0
      %v746 = vsel %vm714, %v601, 0.0
      %v747 = vsel %vm715, %v600, 0.0
      %v748 = vsel %vm716, %v599, 0.0
      %v749 = vsel %vm717, %v598, 0.0
      %v750 = vsel %vm718, %v597, 0.0
      %v751 = vsel %vm719, %v596, 0.0
      %v752 = vsel %vm720, %v595, 0.0
      %v753 = vsel %vm721, %v594, 0.0
      %v754 = vsel %vm722, %v593, 0.0
      %v755 = vpack.c.bf16 %v724, %v723
      %v756 = vpack.c.bf16 %v726, %v725
      %v757 = vpack.c.bf16 %v728, %v727
      %v758 = vpack.c.bf16 %v730, %v729
      %v759 = vpack.c.bf16 %v732, %v731
      %v760 = vpack.c.bf16 %v734, %v733
      %v761 = vpack.c.bf16 %v736, %v735
      %v762 = vpack.c.bf16 %v738, %v737
      %v763 = vpack.c.bf16 %v740, %v739
      %v764 = vpack.c.bf16 %v742, %v741
      %v765 = vpack.c.bf16 %v744, %v743
      %v766 = vpack.c.bf16 %v746, %v745
      %v767 = vpack.c.bf16 %v748, %v747
      %v768 = vpack.c.bf16 %v750, %v749
      %v769 = vpack.c.bf16 %v752, %v751
      %v770 = vpack.c.bf16 %v754, %v753
      %v771 = vsel %vm543, 1, 0
      %v772 = vsel %vm544, 1, 0
      %v773 = vsel %vm545, 1, 0
      %v774 = vsel %vm546, 1, 0
      %v775 = vsel %vm547, 1, 0
      %v776 = vsel %vm548, 1, 0
      %v777 = vsel %vm549, 1, 0
      %v778 = vsel %vm550, 1, 0
      %v779 = vsel %vm551, 1, 0
      %v780 = vsel %vm552, 1, 0
      %v781 = vsel %vm553, 1, 0
      %v782 = vsel %vm554, 1, 0
      %v783 = vsel %vm555, 1, 0
      %v784 = vsel %vm556, 1, 0
      %v785 = vsel %vm557, 1, 0
      %v786 = vsel %vm558, 1, 0
      %vm787 = vcmp.eq.s32.totalorder %v771, 1
      %vm788 = vcmp.eq.s32.totalorder %v772, 1
      %vm789 = vcmp.eq.s32.totalorder %v773, 1
      %vm790 = vcmp.eq.s32.totalorder %v774, 1
      %vm791 = vcmp.eq.s32.totalorder %v775, 1
      %vm792 = vcmp.eq.s32.totalorder %v776, 1
      %vm793 = vcmp.eq.s32.totalorder %v777, 1
      %vm794 = vcmp.eq.s32.totalorder %v778, 1
      %vm795 = vcmp.eq.s32.totalorder %v779, 1
      %vm796 = vcmp.eq.s32.totalorder %v780, 1
      %vm797 = vcmp.eq.s32.totalorder %v781, 1
      %vm798 = vcmp.eq.s32.totalorder %v782, 1
      %vm799 = vcmp.eq.s32.totalorder %v783, 1
      %vm800 = vcmp.eq.s32.totalorder %v784, 1
      %vm801 = vcmp.eq.s32.totalorder %v785, 1
      %vm802 = vcmp.eq.s32.totalorder %v786, 1
      %v803 = vsel %vm787, %v482, 0.0
      %v804 = vsel %vm787, %v483, 0.0
      %v805 = vsel %vm788, %v484, 0.0
      %v806 = vsel %vm788, %v485, 0.0
      %v807 = vsel %vm789, %v486, 0.0
      %v808 = vsel %vm789, %v487, 0.0
      %v809 = vsel %vm790, %v488, 0.0
      %v810 = vsel %vm790, %v489, 0.0
      %v811 = vsel %vm791, %v490, 0.0
      %v812 = vsel %vm791, %v491, 0.0
      %v813 = vsel %vm792, %v492, 0.0
      %v814 = vsel %vm792, %v493, 0.0
      %v815 = vsel %vm793, %v494, 0.0
      %v816 = vsel %vm793, %v495, 0.0
      %v817 = vsel %vm794, %v496, 0.0
      %v818 = vsel %vm794, %v497, 0.0
      %v819 = vsel %vm795, %v498, 0.0
      %v820 = vsel %vm795, %v499, 0.0
      %v821 = vsel %vm796, %v500, 0.0
      %v822 = vsel %vm796, %v501, 0.0
      %v823 = vsel %vm797, %v502, 0.0
      %v824 = vsel %vm797, %v503, 0.0
      %v825 = vsel %vm798, %v504, 0.0
      %v826 = vsel %vm798, %v505, 0.0
      %v827 = vsel %vm799, %v506, 0.0
      %v828 = vsel %vm799, %v507, 0.0
      %v829 = vsel %vm800, %v508, 0.0
      %v830 = vsel %vm800, %v509, 0.0
      %v831 = vsel %vm801, %v510, 0.0
      %v832 = vsel %vm801, %v511, 0.0
      %v833 = vsel %vm802, %v512, 0.0
      %v834 = vsel %vm802, %v513, 0.0
      %v835 = vpack.c.bf16 %v804, %v803
      %v836 = vpack.c.bf16 %v806, %v805
      %v837 = vpack.c.bf16 %v808, %v807
      %v838 = vpack.c.bf16 %v810, %v809
      %v839 = vpack.c.bf16 %v812, %v811
      %v840 = vpack.c.bf16 %v814, %v813
      %v841 = vpack.c.bf16 %v816, %v815
      %v842 = vpack.c.bf16 %v818, %v817
      %v843 = vpack.c.bf16 %v820, %v819
      %v844 = vpack.c.bf16 %v822, %v821
      %v845 = vpack.c.bf16 %v824, %v823
      %v846 = vpack.c.bf16 %v826, %v825
      %v847 = vpack.c.bf16 %v828, %v827
      %v848 = vpack.c.bf16 %v830, %v829
      %v849 = vpack.c.bf16 %v832, %v831
      %v850 = vpack.c.bf16 %v834, %v833
      %v852 = vunpack.c.l.b16 %v518
      %v853 = vpack.c.b16 %v852, %v852
      %v854 = vrot.slane %v853, 2
      %vm855 = vcmask 31744
      %v857 = vsel %vm855, %v835, 0
      %v860 = vsel %vm855, %v836, 0
      %v863 = vsel %vm855, %v837, 0
      %v866 = vsel %vm855, %v838, 0
      %v869 = vsel %vm855, %v839, 0
      %v872 = vsel %vm855, %v840, 0
      %v875 = vsel %vm855, %v841, 0
      %v878 = vsel %vm855, %v842, 0
      %v881 = vsel %vm855, %v843, 0
      %v884 = vsel %vm855, %v844, 0
      %v887 = vsel %vm855, %v845, 0
      %v890 = vsel %vm855, %v846, 0
      %v893 = vsel %vm855, %v847, 0
      %v896 = vsel %vm855, %v848, 0
      %v899 = vsel %vm855, %v849, 0
      %v902 = vsel %vm855, %v850, 0
      %vm904 = vcmask 1041408
      %v906 = vsel %vm904, %v854, 0
      %908 = vmatprep.subr.bf16.mxu0 0
      %909 = vmatpush1.bf16.msra.mxu0 %v906
      %910 = vmatprep.subr.bf16.mxu0 0
      %911 = vmatpush1.bf16.msra.mxu0 0
      %912 = vmatprep.subr.bf16.mxu0 0
      %913 = vmatpush1.bf16.msra.mxu0 0
      %914 = vmatprep.subr.bf16.mxu0 0
      %915 = vmatpush1.bf16.msra.mxu0 0
      %916 = vmatprep.subr.bf16.mxu0 0
      %917 = vmatpush1.bf16.msra.mxu0 0
      %918 = vmatprep.subr.bf16.mxu0 0
      %919 = vmatpush1.bf16.msra.mxu0 0
      %920 = vmatprep.subr.bf16.mxu0 0
      %921 = vmatpush1.bf16.msra.mxu0 0
      %922 = vmatprep.subr.bf16.mxu0 0
      %923 = vmatpush1.bf16.msra.mxu0 0
      %924 = vmatprep.subr.bf16.mxu0 0
      %925 = vmatpush1.bf16.msra.mxu0 0
      %926 = vmatprep.subr.bf16.mxu0 0
      %927 = vmatpush1.bf16.msra.mxu0 0
      %928 = vmatprep.subr.bf16.mxu0 0
      %929 = vmatpush1.bf16.msra.mxu0 0
      %930 = vmatprep.subr.bf16.mxu0 0
      %931 = vmatpush1.bf16.msra.mxu0 0
      %932 = vmatprep.subr.bf16.mxu0 0
      %933 = vmatpush1.bf16.msra.mxu0 0
      %934 = vmatprep.subr.bf16.mxu0 0
      %935 = vmatpush1.bf16.msra.mxu0 0
      %936 = vmatprep.subr.bf16.mxu0 0
      %937 = vmatpush1.bf16.msra.mxu0 0
      %938 = vmatprep.subr.bf16.mxu0 0
      %939 = vmatpush1.bf16.msra.mxu0 0
      %940 = vmatprep.mubr.bf16.mxu0 0
      %941 = vmatmul.mubr.bf16.gmra.mrb[0].mxu0 %v857
      %v942 = vpop.f32.mrb[0].mxu0
      %v943 = vadd.f32 0.0, %v942
      %v944 = vpop.f32.mrb[0].mxu0
      %v945 = vpop.f32.mrb[0].mxu0
      %v946 = vadd.f32 0.0, %v945
      %v947 = vpop.f32.mrb[0].mxu0
      %948 = vmatprep.mubr.bf16.mxu0 0
      %949 = vmatmul.mubr.bf16.gmra.mrb[0].mxu0 %v860
      %v950 = vpop.f32.mrb[0].mxu0
      %v951 = vadd.f32 0.0, %v950
      %v952 = vpop.f32.mrb[0].mxu0
      %v953 = vpop.f32.mrb[0].mxu0
      %v954 = vadd.f32 0.0, %v953
      %v955 = vpop.f32.mrb[0].mxu0
      %956 = vmatprep.mubr.bf16.mxu0 0
      %957 = vmatmul.mubr.bf16.gmra.mrb[0].mxu0 %v863
      %v958 = vpop.f32.mrb[0].mxu0
      %v959 = vadd.f32 0.0, %v958
      %v960 = vpop.f32.mrb[0].mxu0
      %v961 = vpop.f32.mrb[0].mxu0
      %v962 = vadd.f32 0.0, %v961
      %v963 = vpop.f32.mrb[0].mxu0
      %964 = vmatprep.mubr.bf16.mxu0 0
      %965 = vmatmul.mubr.bf16.gmra.mrb[0].mxu0 %v866
      %v966 = vpop.f32.mrb[0].mxu0
      %v967 = vadd.f32 0.0, %v966
      %v968 = vpop.f32.mrb[0].mxu0
      %v969 = vpop.f32.mrb[0].mxu0
      %v970 = vadd.f32 0.0, %v969
      %v971 = vpop.f32.mrb[0].mxu0
      %972 = vmatprep.mubr.bf16.mxu0 0
      %973 = vmatmul.mubr.bf16.gmra.mrb[0].mxu0 %v869
      %v974 = vpop.f32.mrb[0].mxu0
      %v975 = vadd.f32 0.0, %v974
      %v976 = vpop.f32.mrb[0].mxu0
      %v977 = vpop.f32.mrb[0].mxu0
      %v978 = vadd.f32 0.0, %v977
      %v979 = vpop.f32.mrb[0].mxu0
      %980 = vmatprep.mubr.bf16.mxu0 0
      %981 = vmatmul.mubr.bf16.gmra.mrb[0].mxu0 %v872
      %v982 = vpop.f32.mrb[0].mxu0
      %v983 = vadd.f32 0.0, %v982
      %v984 = vpop.f32.mrb[0].mxu0
      %v985 = vpop.f32.mrb[0].mxu0
      %v986 = vadd.f32 0.0, %v985
      %v987 = vpop.f32.mrb[0].mxu0
      %988 = vmatprep.mubr.bf16.mxu0 0
      %989 = vmatmul.mubr.bf16.gmra.mrb[0].mxu0 %v875
      %v990 = vpop.f32.mrb[0].mxu0
      %v991 = vadd.f32 0.0, %v990
      %v992 = vpop.f32.mrb[0].mxu0
      %v993 = vpop.f32.mrb[0].mxu0
      %v994 = vadd.f32 0.0, %v993
      %v995 = vpop.f32.mrb[0].mxu0
      %996 = vmatprep.mubr.bf16.mxu0 0
      %997 = vmatmul.mubr.bf16.gmra.mrb[0].mxu0 %v878
      %v998 = vpop.f32.mrb[0].mxu0
      %v999 = vadd.f32 0.0, %v998
      %v1000 = vpop.f32.mrb[0].mxu0
      %v1001 = vpop.f32.mrb[0].mxu0
      %v1002 = vadd.f32 0.0, %v1001
      %v1003 = vpop.f32.mrb[0].mxu0
      %1004 = vmatprep.mubr.bf16.mxu0 0
      %1005 = vmatmul.mubr.bf16.gmra.mrb[0].mxu0 %v881
      %v1006 = vpop.f32.mrb[0].mxu0
      %v1007 = vadd.f32 0.0, %v1006
      %v1008 = vpop.f32.mrb[0].mxu0
      %v1009 = vpop.f32.mrb[0].mxu0
      %v1010 = vadd.f32 0.0, %v1009
      %v1011 = vpop.f32.mrb[0].mxu0
      %1012 = vmatprep.mubr.bf16.mxu0 0
      %1013 = vmatmul.mubr.bf16.gmra.mrb[0].mxu0 %v884
      %v1014 = vpop.f32.mrb[0].mxu0
      %v1015 = vadd.f32 0.0, %v1014
      %v1016 = vpop.f32.mrb[0].mxu0
      %v1017 = vpop.f32.mrb[0].mxu0
      %v1018 = vadd.f32 0.0, %v1017
      %v1019 = vpop.f32.mrb[0].mxu0
      %1020 = vmatprep.mubr.bf16.mxu0 0
      %1021 = vmatmul.mubr.bf16.gmra.mrb[0].mxu0 %v887
      %v1022 = vpop.f32.mrb[0].mxu0
      %v1023 = vadd.f32 0.0, %v1022
      %v1024 = vpop.f32.mrb[0].mxu0
      %v1025 = vpop.f32.mrb[0].mxu0
      %v1026 = vadd.f32 0.0, %v1025
      %v1027 = vpop.f32.mrb[0].mxu0
      %1028 = vmatprep.mubr.bf16.mxu0 0
      %1029 = vmatmul.mubr.bf16.gmra.mrb[0].mxu0 %v890
      %v1030 = vpop.f32.mrb[0].mxu0
      %v1031 = vadd.f32 0.0, %v1030
      %v1032 = vpop.f32.mrb[0].mxu0
      %v1033 = vpop.f32.mrb[0].mxu0
      %v1034 = vadd.f32 0.0, %v1033
      %v1035 = vpop.f32.mrb[0].mxu0
      %1036 = vmatprep.mubr.bf16.mxu0 0
      %1037 = vmatmul.mubr.bf16.gmra.mrb[0].mxu0 %v893
      %v1038 = vpop.f32.mrb[0].mxu0
      %v1039 = vadd.f32 0.0, %v1038
      %v1040 = vpop.f32.mrb[0].mxu0
      %v1041 = vpop.f32.mrb[0].mxu0
      %v1042 = vadd.f32 0.0, %v1041
      %v1043 = vpop.f32.mrb[0].mxu0
      %1044 = vmatprep.mubr.bf16.mxu0 0
      %1045 = vmatmul.mubr.bf16.gmra.mrb[0].mxu0 %v896
      %v1046 = vpop.f32.mrb[0].mxu0
      %v1047 = vadd.f32 0.0, %v1046
      %v1048 = vpop.f32.mrb[0].mxu0
      %v1049 = vpop.f32.mrb[0].mxu0
      %v1050 = vadd.f32 0.0, %v1049
      %v1051 = vpop.f32.mrb[0].mxu0
      %1052 = vmatprep.mubr.bf16.mxu0 0
      %1053 = vmatmul.mubr.bf16.gmra.mrb[0].mxu0 %v899
      %v1054 = vpop.f32.mrb[0].mxu0
      %v1055 = vadd.f32 0.0, %v1054
      %v1056 = vpop.f32.mrb[0].mxu0
      %v1057 = vpop.f32.mrb[0].mxu0
      %v1058 = vadd.f32 0.0, %v1057
      %v1059 = vpop.f32.mrb[0].mxu0
      %1060 = vmatprep.mubr.bf16.mxu0 0
      %1061 = vmatmul.mubr.bf16.gmra.mrb[0].mxu0 %v902
      %v1062 = vpop.f32.mrb[0].mxu0
      %v1063 = vadd.f32 0.0, %v1062
      %v1064 = vpop.f32.mrb[0].mxu0
      %v1065 = vpop.f32.mrb[0].mxu0
      %v1066 = vadd.f32 0.0, %v1065
      %v1067 = vpop.f32.mrb[0].mxu0
      %1068 = vdwg.mxu0
      %v1070 = vsel %vm855, %v755, 0
      %v1073 = vsel %vm855, %v756, 0
      %v1076 = vsel %vm855, %v757, 0
      %v1079 = vsel %vm855, %v758, 0
      %v1082 = vsel %vm855, %v759, 0
      %v1085 = vsel %vm855, %v760, 0
      %v1088 = vsel %vm855, %v761, 0
      %v1091 = vsel %vm855, %v762, 0
      %v1094 = vsel %vm855, %v763, 0
      %v1097 = vsel %vm855, %v764, 0
      %v1100 = vsel %vm855, %v765, 0
      %v1103 = vsel %vm855, %v766, 0
      %v1106 = vsel %vm855, %v767, 0
      %v1109 = vsel %vm855, %v768, 0
      %v1112 = vsel %vm855, %v769, 0
      %v1115 = vsel %vm855, %v770, 0
      %v1118 = vsel %vm904, %v518, 0
      %1120 = vmatprep.subr.bf16.mxu0 0
      %1121 = vmatpush1.bf16.msra.mxu0 %v1118
      %1122 = vmatprep.subr.bf16.mxu0 0
      %1123 = vmatpush1.bf16.msra.mxu0 0
      %1124 = vmatprep.subr.bf16.mxu0 0
      %1125 = vmatpush1.bf16.msra.mxu0 0
      %1126 = vmatprep.subr.bf16.mxu0 0
      %1127 = vmatpush1.bf16.msra.mxu0 0
      %1128 = vmatprep.subr.bf16.mxu0 0
      %1129 = vmatpush1.bf16.msra.mxu0 0
      %1130 = vmatprep.subr.bf16.mxu0 0
      %1131 = vmatpush1.bf16.msra.mxu0 0
      %1132 = vmatprep.subr.bf16.mxu0 0
      %1133 = vmatpush1.bf16.msra.mxu0 0
      %1134 = vmatprep.subr.bf16.mxu0 0
      %1135 = vmatpush1.bf16.msra.mxu0 0
      %1136 = vmatprep.subr.bf16.mxu0 0
      %1137 = vmatpush1.bf16.msra.mxu0 0
      %1138 = vmatprep.subr.bf16.mxu0 0
      %1139 = vmatpush1.bf16.msra.mxu0 0
      %1140 = vmatprep.subr.bf16.mxu0 0
      %1141 = vmatpush1.bf16.msra.mxu0 0
      %1142 = vmatprep.subr.bf16.mxu0 0
      %1143 = vmatpush1.bf16.msra.mxu0 0
      %1144 = vmatprep.subr.bf16.mxu0 0
      %1145 = vmatpush1.bf16.msra.mxu0 0
      %1146 = vmatprep.subr.bf16.mxu0 0
      %1147 = vmatpush1.bf16.msra.mxu0 0
      %1148 = vmatprep.subr.bf16.mxu0 0
      %1149 = vmatpush1.bf16.msra.mxu0 0
      %1150 = vmatprep.subr.bf16.mxu0 0
      %1151 = vmatpush1.bf16.msra.mxu0 0
      %1152 = vmatprep.mubr.bf16.mxu0 0
      %1153 = vmatmul.mubr.bf16.gmra.mrb[0].mxu0 %v1070
      %v1154 = vpop.f32.mrb[0].mxu0
      %v1155 = vadd.f32 %v943, %v1154
      %v1156 = vpop.f32.mrb[0].mxu0
      %v1157 = vpop.f32.mrb[0].mxu0
      %v1158 = vadd.f32 %v946, %v1157
      %v1159 = vpop.f32.mrb[0].mxu0
      %1160 = vmatprep.mubr.bf16.mxu0 0
      %1161 = vmatmul.mubr.bf16.gmra.mrb[0].mxu0 %v1073
      %v1162 = vpop.f32.mrb[0].mxu0
      %v1163 = vadd.f32 %v951, %v1162
      %v1164 = vpop.f32.mrb[0].mxu0
      %v1165 = vpop.f32.mrb[0].mxu0
      %v1166 = vadd.f32 %v954, %v1165
      %v1167 = vpop.f32.mrb[0].mxu0
      %1168 = vmatprep.mubr.bf16.mxu0 0
      %1169 = vmatmul.mubr.bf16.gmra.mrb[0].mxu0 %v1076
      %v1170 = vpop.f32.mrb[0].mxu0
      %v1171 = vadd.f32 %v959, %v1170
      %v1172 = vpop.f32.mrb[0].mxu0
      %v1173 = vpop.f32.mrb[0].mxu0
      %v1174 = vadd.f32 %v962, %v1173
      %v1175 = vpop.f32.mrb[0].mxu0
      %1176 = vmatprep.mubr.bf16.mxu0 0
      %1177 = vmatmul.mubr.bf16.gmra.mrb[0].mxu0 %v1079
      %v1178 = vpop.f32.mrb[0].mxu0
      %v1179 = vadd.f32 %v967, %v1178
      %v1180 = vpop.f32.mrb[0].mxu0
      %v1181 = vpop.f32.mrb[0].mxu0
      %v1182 = vadd.f32 %v970, %v1181
      %v1183 = vpop.f32.mrb[0].mxu0
      %1184 = vmatprep.mubr.bf16.mxu0 0
      %1185 = vmatmul.mubr.bf16.gmra.mrb[0].mxu0 %v1082
      %v1186 = vpop.f32.mrb[0].mxu0
      %v1187 = vadd.f32 %v975, %v1186
      %v1188 = vpop.f32.mrb[0].mxu0
      %v1189 = vpop.f32.mrb[0].mxu0
      %v1190 = vadd.f32 %v978, %v1189
      %v1191 = vpop.f32.mrb[0].mxu0
      %1192 = vmatprep.mubr.bf16.mxu0 0
      %1193 = vmatmul.mubr.bf16.gmra.mrb[0].mxu0 %v1085
      %v1194 = vpop.f32.mrb[0].mxu0
      %v1195 = vadd.f32 %v983, %v1194
      %v1196 = vpop.f32.mrb[0].mxu0
      %v1197 = vpop.f32.mrb[0].mxu0
      %v1198 = vadd.f32 %v986, %v1197
      %v1199 = vpop.f32.mrb[0].mxu0
      %1200 = vmatprep.mubr.bf16.mxu0 0
      %1201 = vmatmul.mubr.bf16.gmra.mrb[0].mxu0 %v1088
      %v1202 = vpop.f32.mrb[0].mxu0
      %v1203 = vadd.f32 %v991, %v1202
      %v1204 = vpop.f32.mrb[0].mxu0
      %v1205 = vpop.f32.mrb[0].mxu0
      %v1206 = vadd.f32 %v994, %v1205
      %v1207 = vpop.f32.mrb[0].mxu0
      %1208 = vmatprep.mubr.bf16.mxu0 0
      %1209 = vmatmul.mubr.bf16.gmra.mrb[0].mxu0 %v1091
      %v1210 = vpop.f32.mrb[0].mxu0
      %v1211 = vadd.f32 %v999, %v1210
      %v1212 = vpop.f32.mrb[0].mxu0
      %v1213 = vpop.f32.mrb[0].mxu0
      %v1214 = vadd.f32 %v1002, %v1213
      %v1215 = vpop.f32.mrb[0].mxu0
      %1216 = vmatprep.mubr.bf16.mxu0 0
      %1217 = vmatmul.mubr.bf16.gmra.mrb[0].mxu0 %v1094
      %v1218 = vpop.f32.mrb[0].mxu0
      %v1219 = vadd.f32 %v1007, %v1218
      %v1220 = vpop.f32.mrb[0].mxu0
      %v1221 = vpop.f32.mrb[0].mxu0
      %v1222 = vadd.f32 %v1010, %v1221
      %v1223 = vpop.f32.mrb[0].mxu0
      %1224 = vmatprep.mubr.bf16.mxu0 0
      %1225 = vmatmul.mubr.bf16.gmra.mrb[0].mxu0 %v1097
      %v1226 = vpop.f32.mrb[0].mxu0
      %v1227 = vadd.f32 %v1015, %v1226
      %v1228 = vpop.f32.mrb[0].mxu0
      %v1229 = vpop.f32.mrb[0].mxu0
      %v1230 = vadd.f32 %v1018, %v1229
      %v1231 = vpop.f32.mrb[0].mxu0
      %1232 = vmatprep.mubr.bf16.mxu0 0
      %1233 = vmatmul.mubr.bf16.gmra.mrb[0].mxu0 %v1100
      %v1234 = vpop.f32.mrb[0].mxu0
      %v1235 = vadd.f32 %v1023, %v1234
      %v1236 = vpop.f32.mrb[0].mxu0
      %v1237 = vpop.f32.mrb[0].mxu0
      %v1238 = vadd.f32 %v1026, %v1237
      %v1239 = vpop.f32.mrb[0].mxu0
      %1240 = vmatprep.mubr.bf16.mxu0 0
      %1241 = vmatmul.mubr.bf16.gmra.mrb[0].mxu0 %v1103
      %v1242 = vpop.f32.mrb[0].mxu0
      %v1243 = vadd.f32 %v1031, %v1242
      %v1244 = vpop.f32.mrb[0].mxu0
      %v1245 = vpop.f32.mrb[0].mxu0
      %v1246 = vadd.f32 %v1034, %v1245
      %v1247 = vpop.f32.mrb[0].mxu0
      %1248 = vmatprep.mubr.bf16.mxu0 0
      %1249 = vmatmul.mubr.bf16.gmra.mrb[0].mxu0 %v1106
      %v1250 = vpop.f32.mrb[0].mxu0
      %v1251 = vadd.f32 %v1039, %v1250
      %v1252 = vpop.f32.mrb[0].mxu0
      %v1253 = vpop.f32.mrb[0].mxu0
      %v1254 = vadd.f32 %v1042, %v1253
      %v1255 = vpop.f32.mrb[0].mxu0
      %1256 = vmatprep.mubr.bf16.mxu0 0
      %1257 = vmatmul.mubr.bf16.gmra.mrb[0].mxu0 %v1109
      %v1258 = vpop.f32.mrb[0].mxu0
      %v1259 = vadd.f32 %v1047, %v1258
      %v1260 = vpop.f32.mrb[0].mxu0
      %v1261 = vpop.f32.mrb[0].mxu0
      %v1262 = vadd.f32 %v1050, %v1261
      %v1263 = vpop.f32.mrb[0].mxu0
      %1264 = vmatprep.mubr.bf16.mxu0 0
      %1265 = vmatmul.mubr.bf16.gmra.mrb[0].mxu0 %v1112
      %v1266 = vpop.f32.mrb[0].mxu0
      %v1267 = vadd.f32 %v1055, %v1266
      %v1268 = vpop.f32.mrb[0].mxu0
      %v1269 = vpop.f32.mrb[0].mxu0
      %v1270 = vadd.f32 %v1058, %v1269
      %v1271 = vpop.f32.mrb[0].mxu0
      %1272 = vmatprep.mubr.bf16.mxu0 0
      %1273 = vmatmul.mubr.bf16.gmra.mrb[0].mxu0 %v1115
      %v1274 = vpop.f32.mrb[0].mxu0
      %v1275 = vadd.f32 %v1063, %v1274
      %v1276 = vpop.f32.mrb[0].mxu0
      %v1277 = vpop.f32.mrb[0].mxu0
      %v1278 = vadd.f32 %v1066, %v1277
      %v1279 = vpop.f32.mrb[0].mxu0
      %1280 = vdwg.mxu0
      %v1281 = vrot.slane %v482, 1
      %v1282 = vrot.slane %v483, 1
      %v1283 = vrot.slane %v484, 1
      %v1284 = vrot.slane %v485, 1
      %v1285 = vrot.slane %v486, 1
      %v1286 = vrot.slane %v487, 1
      %v1287 = vrot.slane %v488, 1
      %v1288 = vrot.slane %v489, 1
      %v1289 = vrot.slane %v490, 1
      %v1290 = vrot.slane %v491, 1
      %v1291 = vrot.slane %v492, 1
      %v1292 = vrot.slane %v493, 1
      %v1293 = vrot.slane %v494, 1
      %v1294 = vrot.slane %v495, 1
      %v1295 = vrot.slane %v496, 1
      %v1296 = vrot.slane %v497, 1
      %v1297 = vrot.slane %v498, 1
      %v1298 = vrot.slane %v499, 1
      %v1299 = vrot.slane %v500, 1
      %v1300 = vrot.slane %v501, 1
      %v1301 = vrot.slane %v502, 1
      %v1302 = vrot.slane %v503, 1
      %v1303 = vrot.slane %v504, 1
      %v1304 = vrot.slane %v505, 1
      %v1305 = vrot.slane %v506, 1
      %v1306 = vrot.slane %v507, 1
      %v1307 = vrot.slane %v508, 1
      %v1308 = vrot.slane %v509, 1
      %v1309 = vrot.slane %v510, 1
      %v1310 = vrot.slane %v511, 1
      %v1311 = vrot.slane %v512, 1
      %v1312 = vrot.slane %v513, 1
      %v1313 = vrot.slane %v514, 1
      %vm1314 = vcmp.lt.s32.totalorder %v541, 7
      %v1315 = vsel %vm1314, %v1312, %v1313
      %v1316 = vsel %vm1314, %v1311, %v1312
      %v1317 = vsel %vm1314, %v1310, %v1311
      %v1318 = vsel %vm1314, %v1309, %v1310
      %v1319 = vsel %vm1314, %v1308, %v1309
      %v1320 = vsel %vm1314, %v1307, %v1308
      %v1321 = vsel %vm1314, %v1306, %v1307
      %v1322 = vsel %vm1314, %v1305, %v1306
      %v1323 = vsel %vm1314, %v1304, %v1305
      %v1324 = vsel %vm1314, %v1303, %v1304
      %v1325 = vsel %vm1314, %v1302, %v1303
      %v1326 = vsel %vm1314, %v1301, %v1302
      %v1327 = vsel %vm1314, %v1300, %v1301
      %v1328 = vsel %vm1314, %v1299, %v1300
      %v1329 = vsel %vm1314, %v1298, %v1299
      %v1330 = vsel %vm1314, %v1297, %v1298
      %v1331 = vsel %vm1314, %v1296, %v1297
      %v1332 = vsel %vm1314, %v1295, %v1296
      %v1333 = vsel %vm1314, %v1294, %v1295
      %v1334 = vsel %vm1314, %v1293, %v1294
      %v1335 = vsel %vm1314, %v1292, %v1293
      %v1336 = vsel %vm1314, %v1291, %v1292
      %v1337 = vsel %vm1314, %v1290, %v1291
      %v1338 = vsel %vm1314, %v1289, %v1290
      %v1339 = vsel %vm1314, %v1288, %v1289
      %v1340 = vsel %vm1314, %v1287, %v1288
      %v1341 = vsel %vm1314, %v1286, %v1287
      %v1342 = vsel %vm1314, %v1285, %v1286
      %v1343 = vsel %vm1314, %v1284, %v1285
      %v1344 = vsel %vm1314, %v1283, %v1284
      %v1345 = vsel %vm1314, %v1282, %v1283
      %v1346 = vsel %vm1314, %v1281, %v1282
      %vm1347 = vcmp.le.s32.totalorder %v541, 14
      %vm1348 = vcmp.le.s32.totalorder %v542, 14
      %vm1349 = vmand %vm543, %vm1347
      %vm1350 = vmand %vm543, %vm1348
      %vm1351 = vmand %vm544, %vm1347
      %vm1352 = vmand %vm544, %vm1348
      %vm1353 = vmand %vm545, %vm1347
      %vm1354 = vmand %vm545, %vm1348
      %vm1355 = vmand %vm546, %vm1347
      %vm1356 = vmand %vm546, %vm1348
      %vm1357 = vmand %vm547, %vm1347
      %vm1358 = vmand %vm547, %vm1348
      %vm1359 = vmand %vm548, %vm1347
      %vm1360 = vmand %vm548, %vm1348
      %vm1361 = vmand %vm549, %vm1347
      %vm1362 = vmand %vm549, %vm1348
      %vm1363 = vmand %vm550, %vm1347
      %vm1364 = vmand %vm550, %vm1348
      %vm1365 = vmand %vm551, %vm1347
      %vm1366 = vmand %vm551, %vm1348
      %vm1367 = vmand %vm552, %vm1347
      %vm1368 = vmand %vm552, %vm1348
      %vm1369 = vmand %vm553, %vm1347
      %vm1370 = vmand %vm553, %vm1348
      %vm1371 = vmand %vm554, %vm1347
      %vm1372 = vmand %vm554, %vm1348
      %vm1373 = vmand %vm555, %vm1347
      %vm1374 = vmand %vm555, %vm1348
      %vm1375 = vmand %vm556, %vm1347
      %vm1376 = vmand %vm556, %vm1348
      %vm1377 = vmand %vm557, %vm1347
      %vm1378 = vmand %vm557, %vm1348
      %vm1379 = vmand %vm558, %vm1347
      %vm1380 = vmand %vm558, %vm1348
      %v1381 = vsel %vm1349, 1, 0
      %v1382 = vsel %vm1350, 1, 0
      %v1383 = vsel %vm1351, 1, 0
      %v1384 = vsel %vm1352, 1, 0
      %v1385 = vsel %vm1353, 1, 0
      %v1386 = vsel %vm1354, 1, 0
      %v1387 = vsel %vm1355, 1, 0
      %v1388 = vsel %vm1356, 1, 0
      %v1389 = vsel %vm1357, 1, 0
      %v1390 = vsel %vm1358, 1, 0
      %v1391 = vsel %vm1359, 1, 0
      %v1392 = vsel %vm1360, 1, 0
      %v1393 = vsel %vm1361, 1, 0
      %v1394 = vsel %vm1362, 1, 0
      %v1395 = vsel %vm1363, 1, 0
      %v1396 = vsel %vm1364, 1, 0
      %v1397 = vsel %vm1365, 1, 0
      %v1398 = vsel %vm1366, 1, 0
      %v1399 = vsel %vm1367, 1, 0
      %v1400 = vsel %vm1368, 1, 0
      %v1401 = vsel %vm1369, 1, 0
      %v1402 = vsel %vm1370, 1, 0
      %v1403 = vsel %vm1371, 1, 0
      %v1404 = vsel %vm1372, 1, 0
      %v1405 = vsel %vm1373, 1, 0
      %v1406 = vsel %vm1374, 1, 0
      %v1407 = vsel %vm1375, 1, 0
      %v1408 = vsel %vm1376, 1, 0
      %v1409 = vsel %vm1377, 1, 0
      %v1410 = vsel %vm1378, 1, 0
      %v1411 = vsel %vm1379, 1, 0
      %v1412 = vsel %vm1380, 1, 0
      %vm1413 = vcmp.eq.s32.totalorder %v1381, 1
      %vm1414 = vcmp.eq.s32.totalorder %v1382, 1
      %vm1415 = vcmp.eq.s32.totalorder %v1383, 1
      %vm1416 = vcmp.eq.s32.totalorder %v1384, 1
      %vm1417 = vcmp.eq.s32.totalorder %v1385, 1
      %vm1418 = vcmp.eq.s32.totalorder %v1386, 1
      %vm1419 = vcmp.eq.s32.totalorder %v1387, 1
      %vm1420 = vcmp.eq.s32.totalorder %v1388, 1
      %vm1421 = vcmp.eq.s32.totalorder %v1389, 1
      %vm1422 = vcmp.eq.s32.totalorder %v1390, 1
      %vm1423 = vcmp.eq.s32.totalorder %v1391, 1
      %vm1424 = vcmp.eq.s32.totalorder %v1392, 1
      %vm1425 = vcmp.eq.s32.totalorder %v1393, 1
      %vm1426 = vcmp.eq.s32.totalorder %v1394, 1
      %vm1427 = vcmp.eq.s32.totalorder %v1395, 1
      %vm1428 = vcmp.eq.s32.totalorder %v1396, 1
      %vm1429 = vcmp.eq.s32.totalorder %v1397, 1
      %vm1430 = vcmp.eq.s32.totalorder %v1398, 1
      %vm1431 = vcmp.eq.s32.totalorder %v1399, 1
      %vm1432 = vcmp.eq.s32.totalorder %v1400, 1
      %vm1433 = vcmp.eq.s32.totalorder %v1401, 1
      %vm1434 = vcmp.eq.s32.totalorder %v1402, 1
      %vm1435 = vcmp.eq.s32.totalorder %v1403, 1
      %vm1436 = vcmp.eq.s32.totalorder %v1404, 1
      %vm1437 = vcmp.eq.s32.totalorder %v1405, 1
      %vm1438 = vcmp.eq.s32.totalorder %v1406, 1
      %vm1439 = vcmp.eq.s32.totalorder %v1407, 1
      %vm1440 = vcmp.eq.s32.totalorder %v1408, 1
      %vm1441 = vcmp.eq.s32.totalorder %v1409, 1
      %vm1442 = vcmp.eq.s32.totalorder %v1410, 1
      %vm1443 = vcmp.eq.s32.totalorder %v1411, 1
      %vm1444 = vcmp.eq.s32.totalorder %v1412, 1
      %v1445 = vsel %vm1413, %v1346, 0.0
      %v1446 = vsel %vm1414, %v1345, 0.0
      %v1447 = vsel %vm1415, %v1344, 0.0
      %v1448 = vsel %vm1416, %v1343, 0.0
      %v1449 = vsel %vm1417, %v1342, 0.0
      %v1450 = vsel %vm1418, %v1341, 0.0
      %v1451 = vsel %vm1419, %v1340, 0.0
      %v1452 = vsel %vm1420, %v1339, 0.0
      %v1453 = vsel %vm1421, %v1338, 0.0
      %v1454 = vsel %vm1422, %v1337, 0.0
      %v1455 = vsel %vm1423, %v1336, 0.0
      %v1456 = vsel %vm1424, %v1335, 0.0
      %v1457 = vsel %vm1425, %v1334, 0.0
      %v1458 = vsel %vm1426, %v1333, 0.0
      %v1459 = vsel %vm1427, %v1332, 0.0
      %v1460 = vsel %vm1428, %v1331, 0.0
      %v1461 = vsel %vm1429, %v1330, 0.0
      %v1462 = vsel %vm1430, %v1329, 0.0
      %v1463 = vsel %vm1431, %v1328, 0.0
      %v1464 = vsel %vm1432, %v1327, 0.0
      %v1465 = vsel %vm1433, %v1326, 0.0
      %v1466 = vsel %vm1434, %v1325, 0.0
      %v1467 = vsel %vm1435, %v1324, 0.0
      %v1468 = vsel %vm1436, %v1323, 0.0
      %v1469 = vsel %vm1437, %v1322, 0.0
      %v1470 = vsel %vm1438, %v1321, 0.0
      %v1471 = vsel %vm1439, %v1320, 0.0
      %v1472 = vsel %vm1440, %v1319, 0.0
      %v1473 = vsel %vm1441, %v1318, 0.0
      %v1474 = vsel %vm1442, %v1317, 0.0
      %v1475 = vsel %vm1443, %v1316, 0.0
      %v1476 = vsel %vm1444, %v1315, 0.0
      %v1477 = vpack.c.bf16 %v1446, %v1445
      %v1478 = vpack.c.bf16 %v1448, %v1447
      %v1479 = vpack.c.bf16 %v1450, %v1449
      %v1480 = vpack.c.bf16 %v1452, %v1451
      %v1481 = vpack.c.bf16 %v1454, %v1453
      %v1482 = vpack.c.bf16 %v1456, %v1455
      %v1483 = vpack.c.bf16 %v1458, %v1457
      %v1484 = vpack.c.bf16 %v1460, %v1459
      %v1485 = vpack.c.bf16 %v1462, %v1461
      %v1486 = vpack.c.bf16 %v1464, %v1463
      %v1487 = vpack.c.bf16 %v1466, %v1465
      %v1488 = vpack.c.bf16 %v1468, %v1467
      %v1489 = vpack.c.bf16 %v1470, %v1469
      %v1490 = vpack.c.bf16 %v1472, %v1471
      %v1491 = vpack.c.bf16 %v1474, %v1473
      %v1492 = vpack.c.bf16 %v1476, %v1475
      %v1494 = vsel %vm855, %v1477, 0
      %v1497 = vsel %vm855, %v1478, 0
      %v1500 = vsel %vm855, %v1479, 0
      %v1503 = vsel %vm855, %v1480, 0
      %v1506 = vsel %vm855, %v1481, 0
      %v1509 = vsel %vm855, %v1482, 0
      %v1512 = vsel %vm855, %v1483, 0
      %v1515 = vsel %vm855, %v1484, 0
      %v1518 = vsel %vm855, %v1485, 0
      %v1521 = vsel %vm855, %v1486, 0
      %v1524 = vsel %vm855, %v1487, 0
      %v1527 = vsel %vm855, %v1488, 0
      %v1530 = vsel %vm855, %v1489, 0
      %v1533 = vsel %vm855, %v1490, 0
      %v1536 = vsel %vm855, %v1491, 0
      %v1539 = vsel %vm855, %v1492, 0
      %v1542 = vsel %vm904, %v519, 0
      %1544 = vmatprep.subr.bf16.mxu0 0
      %1545 = vmatpush1.bf16.msra.mxu0 %v1542
      %1546 = vmatprep.subr.bf16.mxu0 0
      %1547 = vmatpush1.bf16.msra.mxu0 0
      %1548 = vmatprep.subr.bf16.mxu0 0
      %1549 = vmatpush1.bf16.msra.mxu0 0
      %1550 = vmatprep.subr.bf16.mxu0 0
      %1551 = vmatpush1.bf16.msra.mxu0 0
      %1552 = vmatprep.subr.bf16.mxu0 0
      %1553 = vmatpush1.bf16.msra.mxu0 0
      %1554 = vmatprep.subr.bf16.mxu0 0
      %1555 = vmatpush1.bf16.msra.mxu0 0
      %1556 = vmatprep.subr.bf16.mxu0 0
      %1557 = vmatpush1.bf16.msra.mxu0 0
      %1558 = vmatprep.subr.bf16.mxu0 0
      %1559 = vmatpush1.bf16.msra.mxu0 0
      %1560 = vmatprep.subr.bf16.mxu0 0
      %1561 = vmatpush1.bf16.msra.mxu0 0
      %1562 = vmatprep.subr.bf16.mxu0 0
      %1563 = vmatpush1.bf16.msra.mxu0 0
      %1564 = vmatprep.subr.bf16.mxu0 0
      %1565 = vmatpush1.bf16.msra.mxu0 0
      %1566 = vmatprep.subr.bf16.mxu0 0
      %1567 = vmatpush1.bf16.msra.mxu0 0
      %1568 = vmatprep.subr.bf16.mxu0 0
      %1569 = vmatpush1.bf16.msra.mxu0 0
      %1570 = vmatprep.subr.bf16.mxu0 0
      %1571 = vmatpush1.bf16.msra.mxu0 0
      %1572 = vmatprep.subr.bf16.mxu0 0
      %1573 = vmatpush1.bf16.msra.mxu0 0
      %1574 = vmatprep.subr.bf16.mxu0 0
      %1575 = vmatpush1.bf16.msra.mxu0 0
      %1576 = vmatprep.mubr.bf16.mxu0 0
      %1577 = vmatmul.mubr.bf16.gmra.mrb[0].mxu0 %v1494
      %v1578 = vpop.f32.mrb[0].mxu0
      %v1579 = vadd.f32 0.0, %v1578
      %v1580 = vpop.f32.mrb[0].mxu0
      %v1581 = vpop.f32.mrb[0].mxu0
      %v1582 = vadd.f32 0.0, %v1581
      %v1583 = vpop.f32.mrb[0].mxu0
      %1584 = vmatprep.mubr.bf16.mxu0 0
      %1585 = vmatmul.mubr.bf16.gmra.mrb[0].mxu0 %v1497
      %v1586 = vpop.f32.mrb[0].mxu0
      %v1587 = vadd.f32 0.0, %v1586
      %v1588 = vpop.f32.mrb[0].mxu0
      %v1589 = vpop.f32.mrb[0].mxu0
      %v1590 = vadd.f32 0.0, %v1589
      %v1591 = vpop.f32.mrb[0].mxu0
      %1592 = vmatprep.mubr.bf16.mxu0 0
      %1593 = vmatmul.mubr.bf16.gmra.mrb[0].mxu0 %v1500
      %v1594 = vpop.f32.mrb[0].mxu0
      %v1595 = vadd.f32 0.0, %v1594
      %v1596 = vpop.f32.mrb[0].mxu0
      %v1597 = vpop.f32.mrb[0].mxu0
      %v1598 = vadd.f32 0.0, %v1597
      %v1599 = vpop.f32.mrb[0].mxu0
      %1600 = vmatprep.mubr.bf16.mxu0 0
      %1601 = vmatmul.mubr.bf16.gmra.mrb[0].mxu0 %v1503
      %v1602 = vpop.f32.mrb[0].mxu0
      %v1603 = vadd.f32 0.0, %v1602
      %v1604 = vpop.f32.mrb[0].mxu0
      %v1605 = vpop.f32.mrb[0].mxu0
      %v1606 = vadd.f32 0.0, %v1605
      %v1607 = vpop.f32.mrb[0].mxu0
      %1608 = vmatprep.mubr.bf16.mxu0 0
      %1609 = vmatmul.mubr.bf16.gmra.mrb[0].mxu0 %v1506
      %v1610 = vpop.f32.mrb[0].mxu0
      %v1611 = vadd.f32 0.0, %v1610
      %v1612 = vpop.f32.mrb[0].mxu0
      %v1613 = vpop.f32.mrb[0].mxu0
      %v1614 = vadd.f32 0.0, %v1613
      %v1615 = vpop.f32.mrb[0].mxu0
      %1616 = vmatprep.mubr.bf16.mxu0 0
      %1617 = vmatmul.mubr.bf16.gmra.mrb[0].mxu0 %v1509
      %v1618 = vpop.f32.mrb[0].mxu0
      %v1619 = vadd.f32 0.0, %v1618
      %v1620 = vpop.f32.mrb[0].mxu0
      %v1621 = vpop.f32.mrb[0].mxu0
      %v1622 = vadd.f32 0.0, %v1621
      %v1623 = vpop.f32.mrb[0].mxu0
      %1624 = vmatprep.mubr.bf16.mxu0 0
      %1625 = vmatmul.mubr.bf16.gmra.mrb[0].mxu0 %v1512
      %v1626 = vpop.f32.mrb[0].mxu0
      %v1627 = vadd.f32 0.0, %v1626
      %v1628 = vpop.f32.mrb[0].mxu0
      %v1629 = vpop.f32.mrb[0].mxu0
      %v1630 = vadd.f32 0.0, %v1629
      %v1631 = vpop.f32.mrb[0].mxu0
      %1632 = vmatprep.mubr.bf16.mxu0 0
      %1633 = vmatmul.mubr.bf16.gmra.mrb[0].mxu0 %v1515
      %v1634 = vpop.f32.mrb[0].mxu0
      %v1635 = vadd.f32 0.0, %v1634
      %v1636 = vpop.f32.mrb[0].mxu0
      %v1637 = vpop.f32.mrb[0].mxu0
      %v1638 = vadd.f32 0.0, %v1637
      %v1639 = vpop.f32.mrb[0].mxu0
      %1640 = vmatprep.mubr.bf16.mxu0 0
      %1641 = vmatmul.mubr.bf16.gmra.mrb[0].mxu0 %v1518
      %v1642 = vpop.f32.mrb[0].mxu0
      %v1643 = vadd.f32 0.0, %v1642
      %v1644 = vpop.f32.mrb[0].mxu0
      %v1645 = vpop.f32.mrb[0].mxu0
      %v1646 = vadd.f32 0.0, %v1645
      %v1647 = vpop.f32.mrb[0].mxu0
      %1648 = vmatprep.mubr.bf16.mxu0 0
      %1649 = vmatmul.mubr.bf16.gmra.mrb[0].mxu0 %v1521
      %v1650 = vpop.f32.mrb[0].mxu0
      %v1651 = vadd.f32 0.0, %v1650
      %v1652 = vpop.f32.mrb[0].mxu0
      %v1653 = vpop.f32.mrb[0].mxu0
      %v1654 = vadd.f32 0.0, %v1653
      %v1655 = vpop.f32.mrb[0].mxu0
      %1656 = vmatprep.mubr.bf16.mxu0 0
      %1657 = vmatmul.mubr.bf16.gmra.mrb[0].mxu0 %v1524
      %v1658 = vpop.f32.mrb[0].mxu0
      %v1659 = vadd.f32 0.0, %v1658
      %v1660 = vpop.f32.mrb[0].mxu0
      %v1661 = vpop.f32.mrb[0].mxu0
      %v1662 = vadd.f32 0.0, %v1661
      %v1663 = vpop.f32.mrb[0].mxu0
      %1664 = vmatprep.mubr.bf16.mxu0 0
      %1665 = vmatmul.mubr.bf16.gmra.mrb[0].mxu0 %v1527
      %v1666 = vpop.f32.mrb[0].mxu0
      %v1667 = vadd.f32 0.0, %v1666
      %v1668 = vpop.f32.mrb[0].mxu0
      %v1669 = vpop.f32.mrb[0].mxu0
      %v1670 = vadd.f32 0.0, %v1669
      %v1671 = vpop.f32.mrb[0].mxu0
      %1672 = vmatprep.mubr.bf16.mxu0 0
      %1673 = vmatmul.mubr.bf16.gmra.mrb[0].mxu0 %v1530
      %v1674 = vpop.f32.mrb[0].mxu0
      %v1675 = vadd.f32 0.0, %v1674
      %v1676 = vpop.f32.mrb[0].mxu0
      %v1677 = vpop.f32.mrb[0].mxu0
      %v1678 = vadd.f32 0.0, %v1677
      %v1679 = vpop.f32.mrb[0].mxu0
      %1680 = vmatprep.mubr.bf16.mxu0 0
      %1681 = vmatmul.mubr.bf16.gmra.mrb[0].mxu0 %v1533
      %v1682 = vpop.f32.mrb[0].mxu0
      %v1683 = vadd.f32 0.0, %v1682
      %v1684 = vpop.f32.mrb[0].mxu0
      %v1685 = vpop.f32.mrb[0].mxu0
      %v1686 = vadd.f32 0.0, %v1685
      %v1687 = vpop.f32.mrb[0].mxu0
      %1688 = vmatprep.mubr.bf16.mxu0 0
      %1689 = vmatmul.mubr.bf16.gmra.mrb[0].mxu0 %v1536
      %v1690 = vpop.f32.mrb[0].mxu0
      %v1691 = vadd.f32 0.0, %v1690
      %v1692 = vpop.f32.mrb[0].mxu0
      %v1693 = vpop.f32.mrb[0].mxu0
      %v1694 = vadd.f32 0.0, %v1693
      %v1695 = vpop.f32.mrb[0].mxu0
      %1696 = vmatprep.mubr.bf16.mxu0 0
      %1697 = vmatmul.mubr.bf16.gmra.mrb[0].mxu0 %v1539
      %v1698 = vpop.f32.mrb[0].mxu0
      %v1699 = vadd.f32 0.0, %v1698
      %v1700 = vpop.f32.mrb[0].mxu0
      %v1701 = vpop.f32.mrb[0].mxu0
      %v1702 = vadd.f32 0.0, %v1701
      %v1703 = vpop.f32.mrb[0].mxu0
      %1704 = vdwg.mxu0
      %v1705 = vadd.f32 %v1155, %v1579
      %v1706 = vadd.f32 %v1158, %v1582
      %v1707 = vadd.f32 %v1163, %v1587
      %v1708 = vadd.f32 %v1166, %v1590
      %v1709 = vadd.f32 %v1171, %v1595
      %v1710 = vadd.f32 %v1174, %v1598
      %v1711 = vadd.f32 %v1179, %v1603
      %v1712 = vadd.f32 %v1182, %v1606
      %v1713 = vadd.f32 %v1187, %v1611
      %v1714 = vadd.f32 %v1190, %v1614
      %v1715 = vadd.f32 %v1195, %v1619
      %v1716 = vadd.f32 %v1198, %v1622
      %v1717 = vadd.f32 %v1203, %v1627
      %v1718 = vadd.f32 %v1206, %v1630
      %v1719 = vadd.f32 %v1211, %v1635
      %v1720 = vadd.f32 %v1214, %v1638
      %v1721 = vadd.f32 %v1219, %v1643
      %v1722 = vadd.f32 %v1222, %v1646
      %v1723 = vadd.f32 %v1227, %v1651
      %v1724 = vadd.f32 %v1230, %v1654
      %v1725 = vadd.f32 %v1235, %v1659
      %v1726 = vadd.f32 %v1238, %v1662
      %v1727 = vadd.f32 %v1243, %v1667
      %v1728 = vadd.f32 %v1246, %v1670
      %v1729 = vadd.f32 %v1251, %v1675
      %v1730 = vadd.f32 %v1254, %v1678
      %v1731 = vadd.f32 %v1259, %v1683
      %v1732 = vadd.f32 %v1262, %v1686
      %v1733 = vadd.f32 %v1267, %v1691
      %v1734 = vadd.f32 %v1270, %v1694
      %v1735 = vadd.f32 %v1275, %v1699
      %v1736 = vadd.f32 %v1278, %v1702
      %v1737 = vrot.slane %v514, 7
      %v1738 = vrot.slane %v515, 7
      %v1739 = vsel %vm592, %v1737, %v1738
      %v1740 = vsel %vm592, %v590, %v1737
      %v1741 = vsel %vm625, 1, 0
      %v1742 = vsel %vm626, 1, 0
      %vm1743 = vcmp.eq.s32.totalorder %v1741, 1
      %vm1744 = vcmp.eq.s32.totalorder %v1742, 1
      %v1745 = vsel %vm1743, %v622, 0.0
      %v1746 = vsel %vm1744, %v621, 0.0
      %v1747 = vsel %vm1743, %v620, 0.0
      %v1748 = vsel %vm1744, %v619, 0.0
      %v1749 = vsel %vm1743, %v618, 0.0
      %v1750 = vsel %vm1744, %v617, 0.0
      %v1751 = vsel %vm1743, %v616, 0.0
      %v1752 = vsel %vm1744, %v615, 0.0
      %v1753 = vsel %vm1743, %v614, 0.0
      %v1754 = vsel %vm1744, %v613, 0.0
      %v1755 = vsel %vm1743, %v612, 0.0
      %v1756 = vsel %vm1744, %v611, 0.0
      %v1757 = vsel %vm1743, %v610, 0.0
      %v1758 = vsel %vm1744, %v609, 0.0
      %v1759 = vsel %vm1743, %v608, 0.0
      %v1760 = vsel %vm1744, %v607, 0.0
      %v1761 = vsel %vm1743, %v606, 0.0
      %v1762 = vsel %vm1744, %v605, 0.0
      %v1763 = vsel %vm1743, %v604, 0.0
      %v1764 = vsel %vm1744, %v603, 0.0
      %v1765 = vsel %vm1743, %v602, 0.0
      %v1766 = vsel %vm1744, %v601, 0.0
      %v1767 = vsel %vm1743, %v600, 0.0
      %v1768 = vsel %vm1744, %v599, 0.0
      %v1769 = vsel %vm1743, %v598, 0.0
      %v1770 = vsel %vm1744, %v597, 0.0
      %v1771 = vsel %vm1743, %v596, 0.0
      %v1772 = vsel %vm1744, %v595, 0.0
      %v1773 = vsel %vm1743, %v594, 0.0
      %v1774 = vsel %vm1744, %v593, 0.0
      %v1775 = vsel %vm1743, %v1740, 0.0
      %v1776 = vsel %vm1744, %v1739, 0.0
      %v1777 = vpack.c.bf16 %v1746, %v1745
      %v1778 = vpack.c.bf16 %v1748, %v1747
      %v1779 = vpack.c.bf16 %v1750, %v1749
      %v1780 = vpack.c.bf16 %v1752, %v1751
      %v1781 = vpack.c.bf16 %v1754, %v1753
      %v1782 = vpack.c.bf16 %v1756, %v1755
      %v1783 = vpack.c.bf16 %v1758, %v1757
      %v1784 = vpack.c.bf16 %v1760, %v1759
      %v1785 = vpack.c.bf16 %v1762, %v1761
      %v1786 = vpack.c.bf16 %v1764, %v1763
      %v1787 = vpack.c.bf16 %v1766, %v1765
      %v1788 = vpack.c.bf16 %v1768, %v1767
      %v1789 = vpack.c.bf16 %v1770, %v1769
      %v1790 = vpack.c.bf16 %v1772, %v1771
      %v1791 = vpack.c.bf16 %v1774, %v1773
      %v1792 = vpack.c.bf16 %v1776, %v1775
      %v1794 = vsel %vm855, %v1777, 0
      %v1797 = vsel %vm855, %v1778, 0
      %v1800 = vsel %vm855, %v1779, 0
      %v1803 = vsel %vm855, %v1780, 0
      %v1806 = vsel %vm855, %v1781, 0
      %v1809 = vsel %vm855, %v1782, 0
      %v1812 = vsel %vm855, %v1783, 0
      %v1815 = vsel %vm855, %v1784, 0
      %v1818 = vsel %vm855, %v1785, 0
      %v1821 = vsel %vm855, %v1786, 0
      %v1824 = vsel %vm855, %v1787, 0
      %v1827 = vsel %vm855, %v1788, 0
      %v1830 = vsel %vm855, %v1789, 0
      %v1833 = vsel %vm855, %v1790, 0
      %v1836 = vsel %vm855, %v1791, 0
      %v1839 = vsel %vm855, %v1792, 0
      %v1842 = vsel %vm904, %v520, 0
      %1844 = vmatprep.subr.bf16.mxu0 0
      %1845 = vmatpush1.bf16.msra.mxu0 %v1842
      %1846 = vmatprep.subr.bf16.mxu0 0
      %1847 = vmatpush1.bf16.msra.mxu0 0
      %1848 = vmatprep.subr.bf16.mxu0 0
      %1849 = vmatpush1.bf16.msra.mxu0 0
      %1850 = vmatprep.subr.bf16.mxu0 0
      %1851 = vmatpush1.bf16.msra.mxu0 0
      %1852 = vmatprep.subr.bf16.mxu0 0
      %1853 = vmatpush1.bf16.msra.mxu0 0
      %1854 = vmatprep.subr.bf16.mxu0 0
      %1855 = vmatpush1.bf16.msra.mxu0 0
      %1856 = vmatprep.subr.bf16.mxu0 0
      %1857 = vmatpush1.bf16.msra.mxu0 0
      %1858 = vmatprep.subr.bf16.mxu0 0
      %1859 = vmatpush1.bf16.msra.mxu0 0
      %1860 = vmatprep.subr.bf16.mxu0 0
      %1861 = vmatpush1.bf16.msra.mxu0 0
      %1862 = vmatprep.subr.bf16.mxu0 0
      %1863 = vmatpush1.bf16.msra.mxu0 0
      %1864 = vmatprep.subr.bf16.mxu0 0
      %1865 = vmatpush1.bf16.msra.mxu0 0
      %1866 = vmatprep.subr.bf16.mxu0 0
      %1867 = vmatpush1.bf16.msra.mxu0 0
      %1868 = vmatprep.subr.bf16.mxu0 0
      %1869 = vmatpush1.bf16.msra.mxu0 0
      %1870 = vmatprep.subr.bf16.mxu0 0
      %1871 = vmatpush1.bf16.msra.mxu0 0
      %1872 = vmatprep.subr.bf16.mxu0 0
      %1873 = vmatpush1.bf16.msra.mxu0 0
      %1874 = vmatprep.subr.bf16.mxu0 0
      %1875 = vmatpush1.bf16.msra.mxu0 0
      %1876 = vmatprep.mubr.bf16.mxu0 0
      %1877 = vmatmul.mubr.bf16.gmra.mrb[0].mxu0 %v1794
      %v1878 = vpop.f32.mrb[0].mxu0
      %v1879 = vadd.f32 0.0, %v1878
      %v1880 = vpop.f32.mrb[0].mxu0
      %v1881 = vpop.f32.mrb[0].mxu0
      %v1882 = vadd.f32 0.0, %v1881
      %v1883 = vpop.f32.mrb[0].mxu0
      %1884 = vmatprep.mubr.bf16.mxu0 0
      %1885 = vmatmul.mubr.bf16.gmra.mrb[0].mxu0 %v1797
      %v1886 = vpop.f32.mrb[0].mxu0
      %v1887 = vadd.f32 0.0, %v1886
      %v1888 = vpop.f32.mrb[0].mxu0
      %v1889 = vpop.f32.mrb[0].mxu0
      %v1890 = vadd.f32 0.0, %v1889
      %v1891 = vpop.f32.mrb[0].mxu0
      %1892 = vmatprep.mubr.bf16.mxu0 0
      %1893 = vmatmul.mubr.bf16.gmra.mrb[0].mxu0 %v1800
      %v1894 = vpop.f32.mrb[0].mxu0
      %v1895 = vadd.f32 0.0, %v1894
      %v1896 = vpop.f32.mrb[0].mxu0
      %v1897 = vpop.f32.mrb[0].mxu0
      %v1898 = vadd.f32 0.0, %v1897
      %v1899 = vpop.f32.mrb[0].mxu0
      %1900 = vmatprep.mubr.bf16.mxu0 0
      %1901 = vmatmul.mubr.bf16.gmra.mrb[0].mxu0 %v1803
      %v1902 = vpop.f32.mrb[0].mxu0
      %v1903 = vadd.f32 0.0, %v1902
      %v1904 = vpop.f32.mrb[0].mxu0
      %v1905 = vpop.f32.mrb[0].mxu0
      %v1906 = vadd.f32 0.0, %v1905
      %v1907 = vpop.f32.mrb[0].mxu0
      %1908 = vmatprep.mubr.bf16.mxu0 0
      %1909 = vmatmul.mubr.bf16.gmra.mrb[0].mxu0 %v1806
      %v1910 = vpop.f32.mrb[0].mxu0
      %v1911 = vadd.f32 0.0, %v1910
      %v1912 = vpop.f32.mrb[0].mxu0
      %v1913 = vpop.f32.mrb[0].mxu0
      %v1914 = vadd.f32 0.0, %v1913
      %v1915 = vpop.f32.mrb[0].mxu0
      %1916 = vmatprep.mubr.bf16.mxu0 0
      %1917 = vmatmul.mubr.bf16.gmra.mrb[0].mxu0 %v1809
      %v1918 = vpop.f32.mrb[0].mxu0
      %v1919 = vadd.f32 0.0, %v1918
      %v1920 = vpop.f32.mrb[0].mxu0
      %v1921 = vpop.f32.mrb[0].mxu0
      %v1922 = vadd.f32 0.0, %v1921
      %v1923 = vpop.f32.mrb[0].mxu0
      %1924 = vmatprep.mubr.bf16.mxu0 0
      %1925 = vmatmul.mubr.bf16.gmra.mrb[0].mxu0 %v1812
      %v1926 = vpop.f32.mrb[0].mxu0
      %v1927 = vadd.f32 0.0, %v1926
      %v1928 = vpop.f32.mrb[0].mxu0
      %v1929 = vpop.f32.mrb[0].mxu0
      %v1930 = vadd.f32 0.0, %v1929
      %v1931 = vpop.f32.mrb[0].mxu0
      %1932 = vmatprep.mubr.bf16.mxu0 0
      %1933 = vmatmul.mubr.bf16.gmra.mrb[0].mxu0 %v1815
      %v1934 = vpop.f32.mrb[0].mxu0
      %v1935 = vadd.f32 0.0, %v1934
      %v1936 = vpop.f32.mrb[0].mxu0
      %v1937 = vpop.f32.mrb[0].mxu0
      %v1938 = vadd.f32 0.0, %v1937
      %v1939 = vpop.f32.mrb[0].mxu0
      %1940 = vmatprep.mubr.bf16.mxu0 0
      %1941 = vmatmul.mubr.bf16.gmra.mrb[0].mxu0 %v1818
      %v1942 = vpop.f32.mrb[0].mxu0
      %v1943 = vadd.f32 0.0, %v1942
      %v1944 = vpop.f32.mrb[0].mxu0
      %v1945 = vpop.f32.mrb[0].mxu0
      %v1946 = vadd.f32 0.0, %v1945
      %v1947 = vpop.f32.mrb[0].mxu0
      %1948 = vmatprep.mubr.bf16.mxu0 0
      %1949 = vmatmul.mubr.bf16.gmra.mrb[0].mxu0 %v1821
      %v1950 = vpop.f32.mrb[0].mxu0
      %v1951 = vadd.f32 0.0, %v1950
      %v1952 = vpop.f32.mrb[0].mxu0
      %v1953 = vpop.f32.mrb[0].mxu0
      %v1954 = vadd.f32 0.0, %v1953
      %v1955 = vpop.f32.mrb[0].mxu0
      %1956 = vmatprep.mubr.bf16.mxu0 0
      %1957 = vmatmul.mubr.bf16.gmra.mrb[0].mxu0 %v1824
      %v1958 = vpop.f32.mrb[0].mxu0
      %v1959 = vadd.f32 0.0, %v1958
      %v1960 = vpop.f32.mrb[0].mxu0
      %v1961 = vpop.f32.mrb[0].mxu0
      %v1962 = vadd.f32 0.0, %v1961
      %v1963 = vpop.f32.mrb[0].mxu0
      %1964 = vmatprep.mubr.bf16.mxu0 0
      %1965 = vmatmul.mubr.bf16.gmra.mrb[0].mxu0 %v1827
      %v1966 = vpop.f32.mrb[0].mxu0
      %v1967 = vadd.f32 0.0, %v1966
      %v1968 = vpop.f32.mrb[0].mxu0
      %v1969 = vpop.f32.mrb[0].mxu0
      %v1970 = vadd.f32 0.0, %v1969
      %v1971 = vpop.f32.mrb[0].mxu0
      %1972 = vmatprep.mubr.bf16.mxu0 0
      %1973 = vmatmul.mubr.bf16.gmra.mrb[0].mxu0 %v1830
      %v1974 = vpop.f32.mrb[0].mxu0
      %v1975 = vadd.f32 0.0, %v1974
      %v1976 = vpop.f32.mrb[0].mxu0
      %v1977 = vpop.f32.mrb[0].mxu0
      %v1978 = vadd.f32 0.0, %v1977
      %v1979 = vpop.f32.mrb[0].mxu0
      %1980 = vmatprep.mubr.bf16.mxu0 0
      %1981 = vmatmul.mubr.bf16.gmra.mrb[0].mxu0 %v1833
      %v1982 = vpop.f32.mrb[0].mxu0
      %v1983 = vadd.f32 0.0, %v1982
      %v1984 = vpop.f32.mrb[0].mxu0
      %v1985 = vpop.f32.mrb[0].mxu0
      %v1986 = vadd.f32 0.0, %v1985
      %v1987 = vpop.f32.mrb[0].mxu0
      %1988 = vmatprep.mubr.bf16.mxu0 0
      %1989 = vmatmul.mubr.bf16.gmra.mrb[0].mxu0 %v1836
      %v1990 = vpop.f32.mrb[0].mxu0
      %v1991 = vadd.f32 0.0, %v1990
      %v1992 = vpop.f32.mrb[0].mxu0
      %v1993 = vpop.f32.mrb[0].mxu0
      %v1994 = vadd.f32 0.0, %v1993
      %v1995 = vpop.f32.mrb[0].mxu0
      %1996 = vmatprep.mubr.bf16.mxu0 0
      %1997 = vmatmul.mubr.bf16.gmra.mrb[0].mxu0 %v1839
      %v1998 = vpop.f32.mrb[0].mxu0
      %v1999 = vadd.f32 0.0, %v1998
      %v2000 = vpop.f32.mrb[0].mxu0
      %v2001 = vpop.f32.mrb[0].mxu0
      %v2002 = vadd.f32 0.0, %v2001
      %v2003 = vpop.f32.mrb[0].mxu0
      %2004 = vdwg.mxu0
      %v2005 = vadd.f32 %v1705, %v1879
      %v2006 = vadd.f32 %v1706, %v1882
      %v2007 = vadd.f32 %v1707, %v1887
      %v2008 = vadd.f32 %v1708, %v1890
      %v2009 = vadd.f32 %v1709, %v1895
      %v2010 = vadd.f32 %v1710, %v1898
      %v2011 = vadd.f32 %v1711, %v1903
      %v2012 = vadd.f32 %v1712, %v1906
      %v2013 = vadd.f32 %v1713, %v1911
      %v2014 = vadd.f32 %v1714, %v1914
      %v2015 = vadd.f32 %v1715, %v1919
      %v2016 = vadd.f32 %v1716, %v1922
      %v2017 = vadd.f32 %v1717, %v1927
      %v2018 = vadd.f32 %v1718, %v1930
      %v2019 = vadd.f32 %v1719, %v1935
      %v2020 = vadd.f32 %v1720, %v1938
      %v2021 = vadd.f32 %v1721, %v1943
      %v2022 = vadd.f32 %v1722, %v1946
      %v2023 = vadd.f32 %v1723, %v1951
      %v2024 = vadd.f32 %v1724, %v1954
      %v2025 = vadd.f32 %v1725, %v1959
      %v2026 = vadd.f32 %v1726, %v1962
      %v2027 = vadd.f32 %v1727, %v1967
      %v2028 = vadd.f32 %v1728, %v1970
      %v2029 = vadd.f32 %v1729, %v1975
      %v2030 = vadd.f32 %v1730, %v1978
      %v2031 = vadd.f32 %v1731, %v1983
      %v2032 = vadd.f32 %v1732, %v1986
      %v2033 = vadd.f32 %v1733, %v1991
      %v2034 = vadd.f32 %v1734, %v1994
      %v2035 = vadd.f32 %v1735, %v1999
      %v2036 = vadd.f32 %v1736, %v2002
      %v2037 = vpack.c.bf16 %v485, %v484
      %v2038 = vpack.c.bf16 %v487, %v486
      %v2039 = vpack.c.bf16 %v489, %v488
      %v2040 = vpack.c.bf16 %v491, %v490
      %v2041 = vpack.c.bf16 %v493, %v492
      %v2042 = vpack.c.bf16 %v495, %v494
      %v2043 = vpack.c.bf16 %v497, %v496
      %v2044 = vpack.c.bf16 %v499, %v498
      %v2045 = vpack.c.bf16 %v501, %v500
      %v2046 = vpack.c.bf16 %v503, %v502
      %v2047 = vpack.c.bf16 %v505, %v504
      %v2048 = vpack.c.bf16 %v507, %v506
      %v2049 = vpack.c.bf16 %v509, %v508
      %v2050 = vpack.c.bf16 %v511, %v510
      %v2051 = vpack.c.bf16 %v513, %v512
      %v2052 = vpack.c.bf16 %v515, %v514
      %v2054 = vunpack.c.l.b16 %v520
      %v2055 = vpack.c.b16 %v2054, %v2054
      %v2056 = vrot.slane %v2055, 2
      %v2058 = vsel %vm855, %v2037, 0
      %v2061 = vsel %vm855, %v2038, 0
      %v2064 = vsel %vm855, %v2039, 0
      %v2067 = vsel %vm855, %v2040, 0
      %v2070 = vsel %vm855, %v2041, 0
      %v2073 = vsel %vm855, %v2042, 0
      %v2076 = vsel %vm855, %v2043, 0
      %v2079 = vsel %vm855, %v2044, 0
      %v2082 = vsel %vm855, %v2045, 0
      %v2085 = vsel %vm855, %v2046, 0
      %v2088 = vsel %vm855, %v2047, 0
      %v2091 = vsel %vm855, %v2048, 0
      %v2094 = vsel %vm855, %v2049, 0
      %v2097 = vsel %vm855, %v2050, 0
      %v2100 = vsel %vm855, %v2051, 0
      %v2103 = vsel %vm855, %v2052, 0
      %v2106 = vsel %vm904, %v2056, 0
      %2108 = vmatprep.subr.bf16.mxu0 0
      %2109 = vmatpush1.bf16.msra.mxu0 %v2106
      %2110 = vmatprep.subr.bf16.mxu0 0
      %2111 = vmatpush1.bf16.msra.mxu0 0
      %2112 = vmatprep.subr.bf16.mxu0 0
      %2113 = vmatpush1.bf16.msra.mxu0 0
      %2114 = vmatprep.subr.bf16.mxu0 0
      %2115 = vmatpush1.bf16.msra.mxu0 0
      %2116 = vmatprep.subr.bf16.mxu0 0
      %2117 = vmatpush1.bf16.msra.mxu0 0
      %2118 = vmatprep.subr.bf16.mxu0 0
      %2119 = vmatpush1.bf16.msra.mxu0 0
      %2120 = vmatprep.subr.bf16.mxu0 0
      %2121 = vmatpush1.bf16.msra.mxu0 0
      %2122 = vmatprep.subr.bf16.mxu0 0
      %2123 = vmatpush1.bf16.msra.mxu0 0
      %2124 = vmatprep.subr.bf16.mxu0 0
      %2125 = vmatpush1.bf16.msra.mxu0 0
      %2126 = vmatprep.subr.bf16.mxu0 0
      %2127 = vmatpush1.bf16.msra.mxu0 0
      %2128 = vmatprep.subr.bf16.mxu0 0
      %2129 = vmatpush1.bf16.msra.mxu0 0
      %2130 = vmatprep.subr.bf16.mxu0 0
      %2131 = vmatpush1.bf16.msra.mxu0 0
      %2132 = vmatprep.subr.bf16.mxu0 0
      %2133 = vmatpush1.bf16.msra.mxu0 0
      %2134 = vmatprep.subr.bf16.mxu0 0
      %2135 = vmatpush1.bf16.msra.mxu0 0
      %2136 = vmatprep.subr.bf16.mxu0 0
      %2137 = vmatpush1.bf16.msra.mxu0 0
      %2138 = vmatprep.subr.bf16.mxu0 0
      %2139 = vmatpush1.bf16.msra.mxu0 0
      %2140 = vmatprep.mubr.bf16.mxu0 0
      %2141 = vmatmul.mubr.bf16.gmra.mrb[0].mxu0 %v2058
      %v2142 = vpop.f32.mrb[0].mxu0
      %v2143 = vadd.f32 0.0, %v2142
      %v2144 = vpop.f32.mrb[0].mxu0
      %v2145 = vpop.f32.mrb[0].mxu0
      %v2146 = vadd.f32 0.0, %v2145
      %v2147 = vpop.f32.mrb[0].mxu0
      %2148 = vmatprep.mubr.bf16.mxu0 0
      %2149 = vmatmul.mubr.bf16.gmra.mrb[0].mxu0 %v2061
      %v2150 = vpop.f32.mrb[0].mxu0
      %v2151 = vadd.f32 0.0, %v2150
      %v2152 = vpop.f32.mrb[0].mxu0
      %v2153 = vpop.f32.mrb[0].mxu0
      %v2154 = vadd.f32 0.0, %v2153
      %v2155 = vpop.f32.mrb[0].mxu0
      %2156 = vmatprep.mubr.bf16.mxu0 0
      %2157 = vmatmul.mubr.bf16.gmra.mrb[0].mxu0 %v2064
      %v2158 = vpop.f32.mrb[0].mxu0
      %v2159 = vadd.f32 0.0, %v2158
      %v2160 = vpop.f32.mrb[0].mxu0
      %v2161 = vpop.f32.mrb[0].mxu0
      %v2162 = vadd.f32 0.0, %v2161
      %v2163 = vpop.f32.mrb[0].mxu0
      %2164 = vmatprep.mubr.bf16.mxu0 0
      %2165 = vmatmul.mubr.bf16.gmra.mrb[0].mxu0 %v2067
      %v2166 = vpop.f32.mrb[0].mxu0
      %v2167 = vadd.f32 0.0, %v2166
      %v2168 = vpop.f32.mrb[0].mxu0
      %v2169 = vpop.f32.mrb[0].mxu0
      %v2170 = vadd.f32 0.0, %v2169
      %v2171 = vpop.f32.mrb[0].mxu0
      %2172 = vmatprep.mubr.bf16.mxu0 0
      %2173 = vmatmul.mubr.bf16.gmra.mrb[0].mxu0 %v2070
      %v2174 = vpop.f32.mrb[0].mxu0
      %v2175 = vadd.f32 0.0, %v2174
      %v2176 = vpop.f32.mrb[0].mxu0
      %v2177 = vpop.f32.mrb[0].mxu0
      %v2178 = vadd.f32 0.0, %v2177
      %v2179 = vpop.f32.mrb[0].mxu0
      %2180 = vmatprep.mubr.bf16.mxu0 0
      %2181 = vmatmul.mubr.bf16.gmra.mrb[0].mxu0 %v2073
      %v2182 = vpop.f32.mrb[0].mxu0
      %v2183 = vadd.f32 0.0, %v2182
      %v2184 = vpop.f32.mrb[0].mxu0
      %v2185 = vpop.f32.mrb[0].mxu0
      %v2186 = vadd.f32 0.0, %v2185
      %v2187 = vpop.f32.mrb[0].mxu0
      %2188 = vmatprep.mubr.bf16.mxu0 0
      %2189 = vmatmul.mubr.bf16.gmra.mrb[0].mxu0 %v2076
      %v2190 = vpop.f32.mrb[0].mxu0
      %v2191 = vadd.f32 0.0, %v2190
      %v2192 = vpop.f32.mrb[0].mxu0
      %v2193 = vpop.f32.mrb[0].mxu0
      %v2194 = vadd.f32 0.0, %v2193
      %v2195 = vpop.f32.mrb[0].mxu0
      %2196 = vmatprep.mubr.bf16.mxu0 0
      %2197 = vmatmul.mubr.bf16.gmra.mrb[0].mxu0 %v2079
      %v2198 = vpop.f32.mrb[0].mxu0
      %v2199 = vadd.f32 0.0, %v2198
      %v2200 = vpop.f32.mrb[0].mxu0
      %v2201 = vpop.f32.mrb[0].mxu0
      %v2202 = vadd.f32 0.0, %v2201
      %v2203 = vpop.f32.mrb[0].mxu0
      %2204 = vmatprep.mubr.bf16.mxu0 0
      %2205 = vmatmul.mubr.bf16.gmra.mrb[0].mxu0 %v2082
      %v2206 = vpop.f32.mrb[0].mxu0
      %v2207 = vadd.f32 0.0, %v2206
      %v2208 = vpop.f32.mrb[0].mxu0
      %v2209 = vpop.f32.mrb[0].mxu0
      %v2210 = vadd.f32 0.0, %v2209
      %v2211 = vpop.f32.mrb[0].mxu0
      %2212 = vmatprep.mubr.bf16.mxu0 0
      %2213 = vmatmul.mubr.bf16.gmra.mrb[0].mxu0 %v2085
      %v2214 = vpop.f32.mrb[0].mxu0
      %v2215 = vadd.f32 0.0, %v2214
      %v2216 = vpop.f32.mrb[0].mxu0
      %v2217 = vpop.f32.mrb[0].mxu0
      %v2218 = vadd.f32 0.0, %v2217
      %v2219 = vpop.f32.mrb[0].mxu0
      %2220 = vmatprep.mubr.bf16.mxu0 0
      %2221 = vmatmul.mubr.bf16.gmra.mrb[0].mxu0 %v2088
      %v2222 = vpop.f32.mrb[0].mxu0
      %v2223 = vadd.f32 0.0, %v2222
      %v2224 = vpop.f32.mrb[0].mxu0
      %v2225 = vpop.f32.mrb[0].mxu0
      %v2226 = vadd.f32 0.0, %v2225
      %v2227 = vpop.f32.mrb[0].mxu0
      %2228 = vmatprep.mubr.bf16.mxu0 0
      %2229 = vmatmul.mubr.bf16.gmra.mrb[0].mxu0 %v2091
      %v2230 = vpop.f32.mrb[0].mxu0
      %v2231 = vadd.f32 0.0, %v2230
      %v2232 = vpop.f32.mrb[0].mxu0
      %v2233 = vpop.f32.mrb[0].mxu0
      %v2234 = vadd.f32 0.0, %v2233
      %v2235 = vpop.f32.mrb[0].mxu0
      %2236 = vmatprep.mubr.bf16.mxu0 0
      %2237 = vmatmul.mubr.bf16.gmra.mrb[0].mxu0 %v2094
      %v2238 = vpop.f32.mrb[0].mxu0
      %v2239 = vadd.f32 0.0, %v2238
      %v2240 = vpop.f32.mrb[0].mxu0
      %v2241 = vpop.f32.mrb[0].mxu0
      %v2242 = vadd.f32 0.0, %v2241
      %v2243 = vpop.f32.mrb[0].mxu0
      %2244 = vmatprep.mubr.bf16.mxu0 0
      %2245 = vmatmul.mubr.bf16.gmra.mrb[0].mxu0 %v2097
      %v2246 = vpop.f32.mrb[0].mxu0
      %v2247 = vadd.f32 0.0, %v2246
      %v2248 = vpop.f32.mrb[0].mxu0
      %v2249 = vpop.f32.mrb[0].mxu0
      %v2250 = vadd.f32 0.0, %v2249
      %v2251 = vpop.f32.mrb[0].mxu0
      %2252 = vmatprep.mubr.bf16.mxu0 0
      %2253 = vmatmul.mubr.bf16.gmra.mrb[0].mxu0 %v2100
      %v2254 = vpop.f32.mrb[0].mxu0
      %v2255 = vadd.f32 0.0, %v2254
      %v2256 = vpop.f32.mrb[0].mxu0
      %v2257 = vpop.f32.mrb[0].mxu0
      %v2258 = vadd.f32 0.0, %v2257
      %v2259 = vpop.f32.mrb[0].mxu0
      %2260 = vmatprep.mubr.bf16.mxu0 0
      %2261 = vmatmul.mubr.bf16.gmra.mrb[0].mxu0 %v2103
      %v2262 = vpop.f32.mrb[0].mxu0
      %v2263 = vadd.f32 0.0, %v2262
      %v2264 = vpop.f32.mrb[0].mxu0
      %v2265 = vpop.f32.mrb[0].mxu0
      %v2266 = vadd.f32 0.0, %v2265
      %v2267 = vpop.f32.mrb[0].mxu0
      %2268 = vdwg.mxu0
      %v2269 = vadd.f32 %v2005, %v2143
      %v2270 = vadd.f32 %v2006, %v2146
      %v2271 = vadd.f32 %v2007, %v2151
      %v2272 = vadd.f32 %v2008, %v2154
      %v2273 = vadd.f32 %v2009, %v2159
      %v2274 = vadd.f32 %v2010, %v2162
      %v2275 = vadd.f32 %v2011, %v2167
      %v2276 = vadd.f32 %v2012, %v2170
      %v2277 = vadd.f32 %v2013, %v2175
      %v2278 = vadd.f32 %v2014, %v2178
      %v2279 = vadd.f32 %v2015, %v2183
      %v2280 = vadd.f32 %v2016, %v2186
      %v2281 = vadd.f32 %v2017, %v2191
      %v2282 = vadd.f32 %v2018, %v2194
      %v2283 = vadd.f32 %v2019, %v2199
      %v2284 = vadd.f32 %v2020, %v2202
      %v2285 = vadd.f32 %v2021, %v2207
      %v2286 = vadd.f32 %v2022, %v2210
      %v2287 = vadd.f32 %v2023, %v2215
      %v2288 = vadd.f32 %v2024, %v2218
      %v2289 = vadd.f32 %v2025, %v2223
      %v2290 = vadd.f32 %v2026, %v2226
      %v2291 = vadd.f32 %v2027, %v2231
      %v2292 = vadd.f32 %v2028, %v2234
      %v2293 = vadd.f32 %v2029, %v2239
      %v2294 = vadd.f32 %v2030, %v2242
      %v2295 = vadd.f32 %v2031, %v2247
      %v2296 = vadd.f32 %v2032, %v2250
      %v2297 = vadd.f32 %v2033, %v2255
      %v2298 = vadd.f32 %v2034, %v2258
      %v2299 = vadd.f32 %v2035, %v2263
      %v2300 = vadd.f32 %v2036, %v2266
      %v2301 = vrot.slane %v515, 1
      %v2302 = vrot.slane %v516, 1
      %v2303 = vsel %vm1314, %v2301, %v2302
      %v2304 = vsel %vm1314, %v1313, %v2301
      %v2305 = vsel %vm1347, 1, 0
      %v2306 = vsel %vm1348, 1, 0
      %vm2307 = vcmp.eq.s32.totalorder %v2305, 1
      %vm2308 = vcmp.eq.s32.totalorder %v2306, 1
      %v2309 = vsel %vm2307, %v1344, 0.0
      %v2310 = vsel %vm2308, %v1343, 0.0
      %v2311 = vsel %vm2307, %v1342, 0.0
      %v2312 = vsel %vm2308, %v1341, 0.0
      %v2313 = vsel %vm2307, %v1340, 0.0
      %v2314 = vsel %vm2308, %v1339, 0.0
      %v2315 = vsel %vm2307, %v1338, 0.0
      %v2316 = vsel %vm2308, %v1337, 0.0
      %v2317 = vsel %vm2307, %v1336, 0.0
      %v2318 = vsel %vm2308, %v1335, 0.0
      %v2319 = vsel %vm2307, %v1334, 0.0
      %v2320 = vsel %vm2308, %v1333, 0.0
      %v2321 = vsel %vm2307, %v1332, 0.0
      %v2322 = vsel %vm2308, %v1331, 0.0
      %v2323 = vsel %vm2307, %v1330, 0.0
      %v2324 = vsel %vm2308, %v1329, 0.0
      %v2325 = vsel %vm2307, %v1328, 0.0
      %v2326 = vsel %vm2308, %v1327, 0.0
      %v2327 = vsel %vm2307, %v1326, 0.0
      %v2328 = vsel %vm2308, %v1325, 0.0
      %v2329 = vsel %vm2307, %v1324, 0.0
      %v2330 = vsel %vm2308, %v1323, 0.0
      %v2331 = vsel %vm2307, %v1322, 0.0
      %v2332 = vsel %vm2308, %v1321, 0.0
      %v2333 = vsel %vm2307, %v1320, 0.0
      %v2334 = vsel %vm2308, %v1319, 0.0
      %v2335 = vsel %vm2307, %v1318, 0.0
      %v2336 = vsel %vm2308, %v1317, 0.0
      %v2337 = vsel %vm2307, %v1316, 0.0
      %v2338 = vsel %vm2308, %v1315, 0.0
      %v2339 = vsel %vm2307, %v2304, 0.0
      %v2340 = vsel %vm2308, %v2303, 0.0
      %v2341 = vpack.c.bf16 %v2310, %v2309
      %v2342 = vpack.c.bf16 %v2312, %v2311
      %v2343 = vpack.c.bf16 %v2314, %v2313
      %v2344 = vpack.c.bf16 %v2316, %v2315
      %v2345 = vpack.c.bf16 %v2318, %v2317
      %v2346 = vpack.c.bf16 %v2320, %v2319
      %v2347 = vpack.c.bf16 %v2322, %v2321
      %v2348 = vpack.c.bf16 %v2324, %v2323
      %v2349 = vpack.c.bf16 %v2326, %v2325
      %v2350 = vpack.c.bf16 %v2328, %v2327
      %v2351 = vpack.c.bf16 %v2330, %v2329
      %v2352 = vpack.c.bf16 %v2332, %v2331
      %v2353 = vpack.c.bf16 %v2334, %v2333
      %v2354 = vpack.c.bf16 %v2336, %v2335
      %v2355 = vpack.c.bf16 %v2338, %v2337
      %v2356 = vpack.c.bf16 %v2340, %v2339
      %v2358 = vsel %vm855, %v2341, 0
      %v2361 = vsel %vm855, %v2342, 0
      %v2364 = vsel %vm855, %v2343, 0
      %v2367 = vsel %vm855, %v2344, 0
      %v2370 = vsel %vm855, %v2345, 0
      %v2373 = vsel %vm855, %v2346, 0
      %v2376 = vsel %vm855, %v2347, 0
      %v2379 = vsel %vm855, %v2348, 0
      %v2382 = vsel %vm855, %v2349, 0
      %v2385 = vsel %vm855, %v2350, 0
      %v2388 = vsel %vm855, %v2351, 0
      %v2391 = vsel %vm855, %v2352, 0
      %v2394 = vsel %vm855, %v2353, 0
      %v2397 = vsel %vm855, %v2354, 0
      %v2400 = vsel %vm855, %v2355, 0
      %v2403 = vsel %vm855, %v2356, 0
      %v2406 = vsel %vm904, %v521, 0
      %2408 = vmatprep.subr.bf16.mxu0 0
      %2409 = vmatpush1.bf16.msra.mxu0 %v2406
      %2410 = vmatprep.subr.bf16.mxu0 0
      %2411 = vmatpush1.bf16.msra.mxu0 0
      %2412 = vmatprep.subr.bf16.mxu0 0
      %2413 = vmatpush1.bf16.msra.mxu0 0
      %2414 = vmatprep.subr.bf16.mxu0 0
      %2415 = vmatpush1.bf16.msra.mxu0 0
      %2416 = vmatprep.subr.bf16.mxu0 0
      %2417 = vmatpush1.bf16.msra.mxu0 0
      %2418 = vmatprep.subr.bf16.mxu0 0
      %2419 = vmatpush1.bf16.msra.mxu0 0
      %2420 = vmatprep.subr.bf16.mxu0 0
      %2421 = vmatpush1.bf16.msra.mxu0 0
      %2422 = vmatprep.subr.bf16.mxu0 0
      %2423 = vmatpush1.bf16.msra.mxu0 0
      %2424 = vmatprep.subr.bf16.mxu0 0
      %2425 = vmatpush1.bf16.msra.mxu0 0
      %2426 = vmatprep.subr.bf16.mxu0 0
      %2427 = vmatpush1.bf16.msra.mxu0 0
      %2428 = vmatprep.subr.bf16.mxu0 0
      %2429 = vmatpush1.bf16.msra.mxu0 0
      %2430 = vmatprep.subr.bf16.mxu0 0
      %2431 = vmatpush1.bf16.msra.mxu0 0
      %2432 = vmatprep.subr.bf16.mxu0 0
      %2433 = vmatpush1.bf16.msra.mxu0 0
      %2434 = vmatprep.subr.bf16.mxu0 0
      %2435 = vmatpush1.bf16.msra.mxu0 0
      %2436 = vmatprep.subr.bf16.mxu0 0
      %2437 = vmatpush1.bf16.msra.mxu0 0
      %2438 = vmatprep.subr.bf16.mxu0 0
      %2439 = vmatpush1.bf16.msra.mxu0 0
      %2440 = vmatprep.mubr.bf16.mxu0 0
      %2441 = vmatmul.mubr.bf16.gmra.mrb[0].mxu0 %v2358
      %v2442 = vpop.f32.mrb[0].mxu0
      %v2443 = vadd.f32 0.0, %v2442
      %v2444 = vpop.f32.mrb[0].mxu0
      %v2445 = vpop.f32.mrb[0].mxu0
      %v2446 = vadd.f32 0.0, %v2445
      %v2447 = vpop.f32.mrb[0].mxu0
      %2448 = vmatprep.mubr.bf16.mxu0 0
      %2449 = vmatmul.mubr.bf16.gmra.mrb[0].mxu0 %v2361
      %v2450 = vpop.f32.mrb[0].mxu0
      %v2451 = vadd.f32 0.0, %v2450
      %v2452 = vpop.f32.mrb[0].mxu0
      %v2453 = vpop.f32.mrb[0].mxu0
      %v2454 = vadd.f32 0.0, %v2453
      %v2455 = vpop.f32.mrb[0].mxu0
      %2456 = vmatprep.mubr.bf16.mxu0 0
      %2457 = vmatmul.mubr.bf16.gmra.mrb[0].mxu0 %v2364
      %v2458 = vpop.f32.mrb[0].mxu0
      %v2459 = vadd.f32 0.0, %v2458
      %v2460 = vpop.f32.mrb[0].mxu0
      %v2461 = vpop.f32.mrb[0].mxu0
      %v2462 = vadd.f32 0.0, %v2461
      %v2463 = vpop.f32.mrb[0].mxu0
      %2464 = vmatprep.mubr.bf16.mxu0 0
      %2465 = vmatmul.mubr.bf16.gmra.mrb[0].mxu0 %v2367
      %v2466 = vpop.f32.mrb[0].mxu0
      %v2467 = vadd.f32 0.0, %v2466
      %v2468 = vpop.f32.mrb[0].mxu0
      %v2469 = vpop.f32.mrb[0].mxu0
      %v2470 = vadd.f32 0.0, %v2469
      %v2471 = vpop.f32.mrb[0].mxu0
      %2472 = vmatprep.mubr.bf16.mxu0 0
      %2473 = vmatmul.mubr.bf16.gmra.mrb[0].mxu0 %v2370
      %v2474 = vpop.f32.mrb[0].mxu0
      %v2475 = vadd.f32 0.0, %v2474
      %v2476 = vpop.f32.mrb[0].mxu0
      %v2477 = vpop.f32.mrb[0].mxu0
      %v2478 = vadd.f32 0.0, %v2477
      %v2479 = vpop.f32.mrb[0].mxu0
      %2480 = vmatprep.mubr.bf16.mxu0 0
      %2481 = vmatmul.mubr.bf16.gmra.mrb[0].mxu0 %v2373
      %v2482 = vpop.f32.mrb[0].mxu0
      %v2483 = vadd.f32 0.0, %v2482
      %v2484 = vpop.f32.mrb[0].mxu0
      %v2485 = vpop.f32.mrb[0].mxu0
      %v2486 = vadd.f32 0.0, %v2485
      %v2487 = vpop.f32.mrb[0].mxu0
      %2488 = vmatprep.mubr.bf16.mxu0 0
      %2489 = vmatmul.mubr.bf16.gmra.mrb[0].mxu0 %v2376
      %v2490 = vpop.f32.mrb[0].mxu0
      %v2491 = vadd.f32 0.0, %v2490
      %v2492 = vpop.f32.mrb[0].mxu0
      %v2493 = vpop.f32.mrb[0].mxu0
      %v2494 = vadd.f32 0.0, %v2493
      %v2495 = vpop.f32.mrb[0].mxu0
      %2496 = vmatprep.mubr.bf16.mxu0 0
      %2497 = vmatmul.mubr.bf16.gmra.mrb[0].mxu0 %v2379
      %v2498 = vpop.f32.mrb[0].mxu0
      %v2499 = vadd.f32 0.0, %v2498
      %v2500 = vpop.f32.mrb[0].mxu0
      %v2501 = vpop.f32.mrb[0].mxu0
      %v2502 = vadd.f32 0.0, %v2501
      %v2503 = vpop.f32.mrb[0].mxu0
      %2504 = vmatprep.mubr.bf16.mxu0 0
      %2505 = vmatmul.mubr.bf16.gmra.mrb[0].mxu0 %v2382
      %v2506 = vpop.f32.mrb[0].mxu0
      %v2507 = vadd.f32 0.0, %v2506
      %v2508 = vpop.f32.mrb[0].mxu0
      %v2509 = vpop.f32.mrb[0].mxu0
      %v2510 = vadd.f32 0.0, %v2509
      %v2511 = vpop.f32.mrb[0].mxu0
      %2512 = vmatprep.mubr.bf16.mxu0 0
      %2513 = vmatmul.mubr.bf16.gmra.mrb[0].mxu0 %v2385
      %v2514 = vpop.f32.mrb[0].mxu0
      %v2515 = vadd.f32 0.0, %v2514
      %v2516 = vpop.f32.mrb[0].mxu0
      %v2517 = vpop.f32.mrb[0].mxu0
      %v2518 = vadd.f32 0.0, %v2517
      %v2519 = vpop.f32.mrb[0].mxu0
      %2520 = vmatprep.mubr.bf16.mxu0 0
      %2521 = vmatmul.mubr.bf16.gmra.mrb[0].mxu0 %v2388
      %v2522 = vpop.f32.mrb[0].mxu0
      %v2523 = vadd.f32 0.0, %v2522
      %v2524 = vpop.f32.mrb[0].mxu0
      %v2525 = vpop.f32.mrb[0].mxu0
      %v2526 = vadd.f32 0.0, %v2525
      %v2527 = vpop.f32.mrb[0].mxu0
      %2528 = vmatprep.mubr.bf16.mxu0 0
      %2529 = vmatmul.mubr.bf16.gmra.mrb[0].mxu0 %v2391
      %v2530 = vpop.f32.mrb[0].mxu0
      %v2531 = vadd.f32 0.0, %v2530
      %v2532 = vpop.f32.mrb[0].mxu0
      %v2533 = vpop.f32.mrb[0].mxu0
      %v2534 = vadd.f32 0.0, %v2533
      %v2535 = vpop.f32.mrb[0].mxu0
      %2536 = vmatprep.mubr.bf16.mxu0 0
      %2537 = vmatmul.mubr.bf16.gmra.mrb[0].mxu0 %v2394
      %v2538 = vpop.f32.mrb[0].mxu0
      %v2539 = vadd.f32 0.0, %v2538
      %v2540 = vpop.f32.mrb[0].mxu0
      %v2541 = vpop.f32.mrb[0].mxu0
      %v2542 = vadd.f32 0.0, %v2541
      %v2543 = vpop.f32.mrb[0].mxu0
      %2544 = vmatprep.mubr.bf16.mxu0 0
      %2545 = vmatmul.mubr.bf16.gmra.mrb[0].mxu0 %v2397
      %v2546 = vpop.f32.mrb[0].mxu0
      %v2547 = vadd.f32 0.0, %v2546
      %v2548 = vpop.f32.mrb[0].mxu0
      %v2549 = vpop.f32.mrb[0].mxu0
      %v2550 = vadd.f32 0.0, %v2549
      %v2551 = vpop.f32.mrb[0].mxu0
      %2552 = vmatprep.mubr.bf16.mxu0 0
      %2553 = vmatmul.mubr.bf16.gmra.mrb[0].mxu0 %v2400
      %v2554 = vpop.f32.mrb[0].mxu0
      %v2555 = vadd.f32 0.0, %v2554
      %v2556 = vpop.f32.mrb[0].mxu0
      %v2557 = vpop.f32.mrb[0].mxu0
      %v2558 = vadd.f32 0.0, %v2557
      %v2559 = vpop.f32.mrb[0].mxu0
      %2560 = vmatprep.mubr.bf16.mxu0 0
      %2561 = vmatmul.mubr.bf16.gmra.mrb[0].mxu0 %v2403
      %v2562 = vpop.f32.mrb[0].mxu0
      %v2563 = vadd.f32 0.0, %v2562
      %v2564 = vpop.f32.mrb[0].mxu0
      %v2565 = vpop.f32.mrb[0].mxu0
      %v2566 = vadd.f32 0.0, %v2565
      %v2567 = vpop.f32.mrb[0].mxu0
      %2568 = vdwg.mxu0
      %v2569 = vadd.f32 %v2269, %v2443
      %v2570 = vadd.f32 %v2270, %v2446
      %v2571 = vadd.f32 %v2271, %v2451
      %v2572 = vadd.f32 %v2272, %v2454
      %v2573 = vadd.f32 %v2273, %v2459
      %v2574 = vadd.f32 %v2274, %v2462
      %v2575 = vadd.f32 %v2275, %v2467
      %v2576 = vadd.f32 %v2276, %v2470
      %v2577 = vadd.f32 %v2277, %v2475
      %v2578 = vadd.f32 %v2278, %v2478
      %v2579 = vadd.f32 %v2279, %v2483
      %v2580 = vadd.f32 %v2280, %v2486
      %v2581 = vadd.f32 %v2281, %v2491
      %v2582 = vadd.f32 %v2282, %v2494
      %v2583 = vadd.f32 %v2283, %v2499
      %v2584 = vadd.f32 %v2284, %v2502
      %v2585 = vadd.f32 %v2285, %v2507
      %v2586 = vadd.f32 %v2286, %v2510
      %v2587 = vadd.f32 %v2287, %v2515
      %v2588 = vadd.f32 %v2288, %v2518
      %v2589 = vadd.f32 %v2289, %v2523
      %v2590 = vadd.f32 %v2290, %v2526
      %v2591 = vadd.f32 %v2291, %v2531
      %v2592 = vadd.f32 %v2292, %v2534
      %v2593 = vadd.f32 %v2293, %v2539
      %v2594 = vadd.f32 %v2294, %v2542
      %v2595 = vadd.f32 %v2295, %v2547
      %v2596 = vadd.f32 %v2296, %v2550
      %v2597 = vadd.f32 %v2297, %v2555
      %v2598 = vadd.f32 %v2298, %v2558
      %v2599 = vadd.f32 %v2299, %v2563
      %v2600 = vadd.f32 %v2300, %v2566
      %vm2601 = vcmp.le.s32.totalorder %v524, 14
      %vm2602 = vcmp.le.s32.totalorder %v525, 14
      %vm2603 = vcmp.le.s32.totalorder %v526, 14
      %vm2604 = vcmp.le.s32.totalorder %v527, 14
      %vm2605 = vcmp.le.s32.totalorder %v528, 14
      %vm2606 = vcmp.le.s32.totalorder %v529, 14
      %vm2607 = vcmp.le.s32.totalorder %v530, 14
      %vm2608 = vcmp.le.s32.totalorder %v531, 14
      %vm2609 = vcmp.le.s32.totalorder %v532, 14
      %vm2610 = vcmp.le.s32.totalorder %v533, 14
      %vm2611 = vcmp.le.s32.totalorder %v534, 14
      %vm2612 = vcmp.le.s32.totalorder %v535, 14
      %vm2613 = vcmp.le.s32.totalorder %v536, 14
      %vm2614 = vcmp.le.s32.totalorder %v537, 14
      %vm2615 = vcmp.le.s32.totalorder %v538, 14
      %vm2616 = vcmp.le.s32.totalorder %v539, 14
      %v2617 = vrot.slane %v516, 7
      %v2618 = vsel %vm592, %v2617, %v591
      %v2619 = vsel %vm592, %v1738, %v2617
      %vm2620 = vmand %vm2601, %vm625
      %vm2621 = vmand %vm2601, %vm626
      %vm2622 = vmand %vm2602, %vm625
      %vm2623 = vmand %vm2602, %vm626
      %vm2624 = vmand %vm2603, %vm625
      %vm2625 = vmand %vm2603, %vm626
      %vm2626 = vmand %vm2604, %vm625
      %vm2627 = vmand %vm2604, %vm626
      %vm2628 = vmand %vm2605, %vm625
      %vm2629 = vmand %vm2605, %vm626
      %vm2630 = vmand %vm2606, %vm625
      %vm2631 = vmand %vm2606, %vm626
      %vm2632 = vmand %vm2607, %vm625
      %vm2633 = vmand %vm2607, %vm626
      %vm2634 = vmand %vm2608, %vm625
      %vm2635 = vmand %vm2608, %vm626
      %vm2636 = vmand %vm2609, %vm625
      %vm2637 = vmand %vm2609, %vm626
      %vm2638 = vmand %vm2610, %vm625
      %vm2639 = vmand %vm2610, %vm626
      %vm2640 = vmand %vm2611, %vm625
      %vm2641 = vmand %vm2611, %vm626
      %vm2642 = vmand %vm2612, %vm625
      %vm2643 = vmand %vm2612, %vm626
      %vm2644 = vmand %vm2613, %vm625
      %vm2645 = vmand %vm2613, %vm626
      %vm2646 = vmand %vm2614, %vm625
      %vm2647 = vmand %vm2614, %vm626
      %vm2648 = vmand %vm2615, %vm625
      %vm2649 = vmand %vm2615, %vm626
      %vm2650 = vmand %vm2616, %vm625
      %vm2651 = vmand %vm2616, %vm626
      %v2652 = vsel %vm2620, 1, 0
      %v2653 = vsel %vm2621, 1, 0
      %v2654 = vsel %vm2622, 1, 0
      %v2655 = vsel %vm2623, 1, 0
      %v2656 = vsel %vm2624, 1, 0
      %v2657 = vsel %vm2625, 1, 0
      %v2658 = vsel %vm2626, 1, 0
      %v2659 = vsel %vm2627, 1, 0
      %v2660 = vsel %vm2628, 1, 0
      %v2661 = vsel %vm2629, 1, 0
      %v2662 = vsel %vm2630, 1, 0
      %v2663 = vsel %vm2631, 1, 0
      %v2664 = vsel %vm2632, 1, 0
      %v2665 = vsel %vm2633, 1, 0
      %v2666 = vsel %vm2634, 1, 0
      %v2667 = vsel %vm2635, 1, 0
      %v2668 = vsel %vm2636, 1, 0
      %v2669 = vsel %vm2637, 1, 0
      %v2670 = vsel %vm2638, 1, 0
      %v2671 = vsel %vm2639, 1, 0
      %v2672 = vsel %vm2640, 1, 0
      %v2673 = vsel %vm2641, 1, 0
      %v2674 = vsel %vm2642, 1, 0
      %v2675 = vsel %vm2643, 1, 0
      %v2676 = vsel %vm2644, 1, 0
      %v2677 = vsel %vm2645, 1, 0
      %v2678 = vsel %vm2646, 1, 0
      %v2679 = vsel %vm2647, 1, 0
      %v2680 = vsel %vm2648, 1, 0
      %v2681 = vsel %vm2649, 1, 0
      %v2682 = vsel %vm2650, 1, 0
      %v2683 = vsel %vm2651, 1, 0
      %vm2684 = vcmp.eq.s32.totalorder %v2652, 1
      %vm2685 = vcmp.eq.s32.totalorder %v2653, 1
      %vm2686 = vcmp.eq.s32.totalorder %v2654, 1
      %vm2687 = vcmp.eq.s32.totalorder %v2655, 1
      %vm2688 = vcmp.eq.s32.totalorder %v2656, 1
      %vm2689 = vcmp.eq.s32.totalorder %v2657, 1
      %vm2690 = vcmp.eq.s32.totalorder %v2658, 1
      %vm2691 = vcmp.eq.s32.totalorder %v2659, 1
      %vm2692 = vcmp.eq.s32.totalorder %v2660, 1
      %vm2693 = vcmp.eq.s32.totalorder %v2661, 1
      %vm2694 = vcmp.eq.s32.totalorder %v2662, 1
      %vm2695 = vcmp.eq.s32.totalorder %v2663, 1
      %vm2696 = vcmp.eq.s32.totalorder %v2664, 1
      %vm2697 = vcmp.eq.s32.totalorder %v2665, 1
      %vm2698 = vcmp.eq.s32.totalorder %v2666, 1
      %vm2699 = vcmp.eq.s32.totalorder %v2667, 1
      %vm2700 = vcmp.eq.s32.totalorder %v2668, 1
      %vm2701 = vcmp.eq.s32.totalorder %v2669, 1
      %vm2702 = vcmp.eq.s32.totalorder %v2670, 1
      %vm2703 = vcmp.eq.s32.totalorder %v2671, 1
      %vm2704 = vcmp.eq.s32.totalorder %v2672, 1
      %vm2705 = vcmp.eq.s32.totalorder %v2673, 1
      %vm2706 = vcmp.eq.s32.totalorder %v2674, 1
      %vm2707 = vcmp.eq.s32.totalorder %v2675, 1
      %vm2708 = vcmp.eq.s32.totalorder %v2676, 1
      %vm2709 = vcmp.eq.s32.totalorder %v2677, 1
      %vm2710 = vcmp.eq.s32.totalorder %v2678, 1
      %vm2711 = vcmp.eq.s32.totalorder %v2679, 1
      %vm2712 = vcmp.eq.s32.totalorder %v2680, 1
      %vm2713 = vcmp.eq.s32.totalorder %v2681, 1
      %vm2714 = vcmp.eq.s32.totalorder %v2682, 1
      %vm2715 = vcmp.eq.s32.totalorder %v2683, 1
      %v2716 = vsel %vm2684, %v620, 0.0
      %v2717 = vsel %vm2685, %v619, 0.0
      %v2718 = vsel %vm2686, %v618, 0.0
      %v2719 = vsel %vm2687, %v617, 0.0
      %v2720 = vsel %vm2688, %v616, 0.0
      %v2721 = vsel %vm2689, %v615, 0.0
      %v2722 = vsel %vm2690, %v614, 0.0
      %v2723 = vsel %vm2691, %v613, 0.0
      %v2724 = vsel %vm2692, %v612, 0.0
      %v2725 = vsel %vm2693, %v611, 0.0
      %v2726 = vsel %vm2694, %v610, 0.0
      %v2727 = vsel %vm2695, %v609, 0.0
      %v2728 = vsel %vm2696, %v608, 0.0
      %v2729 = vsel %vm2697, %v607, 0.0
      %v2730 = vsel %vm2698, %v606, 0.0
      %v2731 = vsel %vm2699, %v605, 0.0
      %v2732 = vsel %vm2700, %v604, 0.0
      %v2733 = vsel %vm2701, %v603, 0.0
      %v2734 = vsel %vm2702, %v602, 0.0
      %v2735 = vsel %vm2703, %v601, 0.0
      %v2736 = vsel %vm2704, %v600, 0.0
      %v2737 = vsel %vm2705, %v599, 0.0
      %v2738 = vsel %vm2706, %v598, 0.0
      %v2739 = vsel %vm2707, %v597, 0.0
      %v2740 = vsel %vm2708, %v596, 0.0
      %v2741 = vsel %vm2709, %v595, 0.0
      %v2742 = vsel %vm2710, %v594, 0.0
      %v2743 = vsel %vm2711, %v593, 0.0
      %v2744 = vsel %vm2712, %v1740, 0.0
      %v2745 = vsel %vm2713, %v1739, 0.0
      %v2746 = vsel %vm2714, %v2619, 0.0
      %v2747 = vsel %vm2715, %v2618, 0.0
      %v2748 = vpack.c.bf16 %v2717, %v2716
      %v2749 = vpack.c.bf16 %v2719, %v2718
      %v2750 = vpack.c.bf16 %v2721, %v2720
      %v2751 = vpack.c.bf16 %v2723, %v2722
      %v2752 = vpack.c.bf16 %v2725, %v2724
      %v2753 = vpack.c.bf16 %v2727, %v2726
      %v2754 = vpack.c.bf16 %v2729, %v2728
      %v2755 = vpack.c.bf16 %v2731, %v2730
      %v2756 = vpack.c.bf16 %v2733, %v2732
      %v2757 = vpack.c.bf16 %v2735, %v2734
      %v2758 = vpack.c.bf16 %v2737, %v2736
      %v2759 = vpack.c.bf16 %v2739, %v2738
      %v2760 = vpack.c.bf16 %v2741, %v2740
      %v2761 = vpack.c.bf16 %v2743, %v2742
      %v2762 = vpack.c.bf16 %v2745, %v2744
      %v2763 = vpack.c.bf16 %v2747, %v2746
      %v2765 = vsel %vm855, %v2748, 0
      %v2768 = vsel %vm855, %v2749, 0
      %v2771 = vsel %vm855, %v2750, 0
      %v2774 = vsel %vm855, %v2751, 0
      %v2777 = vsel %vm855, %v2752, 0
      %v2780 = vsel %vm855, %v2753, 0
      %v2783 = vsel %vm855, %v2754, 0
      %v2786 = vsel %vm855, %v2755, 0
      %v2789 = vsel %vm855, %v2756, 0
      %v2792 = vsel %vm855, %v2757, 0
      %v2795 = vsel %vm855, %v2758, 0
      %v2798 = vsel %vm855, %v2759, 0
      %v2801 = vsel %vm855, %v2760, 0
      %v2804 = vsel %vm855, %v2761, 0
      %v2807 = vsel %vm855, %v2762, 0
      %v2810 = vsel %vm855, %v2763, 0
      %v2813 = vsel %vm904, %v522, 0
      %2815 = vmatprep.subr.bf16.mxu0 0
      %2816 = vmatpush1.bf16.msra.mxu0 %v2813
      %2817 = vmatprep.subr.bf16.mxu0 0
      %2818 = vmatpush1.bf16.msra.mxu0 0
      %2819 = vmatprep.subr.bf16.mxu0 0
      %2820 = vmatpush1.bf16.msra.mxu0 0
      %2821 = vmatprep.subr.bf16.mxu0 0
      %2822 = vmatpush1.bf16.msra.mxu0 0
      %2823 = vmatprep.subr.bf16.mxu0 0
      %2824 = vmatpush1.bf16.msra.mxu0 0
      %2825 = vmatprep.subr.bf16.mxu0 0
      %2826 = vmatpush1.bf16.msra.mxu0 0
      %2827 = vmatprep.subr.bf16.mxu0 0
      %2828 = vmatpush1.bf16.msra.mxu0 0
      %2829 = vmatprep.subr.bf16.mxu0 0
      %2830 = vmatpush1.bf16.msra.mxu0 0
      %2831 = vmatprep.subr.bf16.mxu0 0
      %2832 = vmatpush1.bf16.msra.mxu0 0
      %2833 = vmatprep.subr.bf16.mxu0 0
      %2834 = vmatpush1.bf16.msra.mxu0 0
      %2835 = vmatprep.subr.bf16.mxu0 0
      %2836 = vmatpush1.bf16.msra.mxu0 0
      %2837 = vmatprep.subr.bf16.mxu0 0
      %2838 = vmatpush1.bf16.msra.mxu0 0
      %2839 = vmatprep.subr.bf16.mxu0 0
      %2840 = vmatpush1.bf16.msra.mxu0 0
      %2841 = vmatprep.subr.bf16.mxu0 0
      %2842 = vmatpush1.bf16.msra.mxu0 0
      %2843 = vmatprep.subr.bf16.mxu0 0
      %2844 = vmatpush1.bf16.msra.mxu0 0
      %2845 = vmatprep.subr.bf16.mxu0 0
      %2846 = vmatpush1.bf16.msra.mxu0 0
      %2847 = vmatprep.mubr.bf16.mxu0 0
      %2848 = vmatmul.mubr.bf16.gmra.mrb[0].mxu0 %v2765
      %v2849 = vpop.f32.mrb[0].mxu0
      %v2850 = vadd.f32 0.0, %v2849
      %v2851 = vpop.f32.mrb[0].mxu0
      %v2852 = vpop.f32.mrb[0].mxu0
      %v2853 = vadd.f32 0.0, %v2852
      %v2854 = vpop.f32.mrb[0].mxu0
      %2855 = vmatprep.mubr.bf16.mxu0 0
      %2856 = vmatmul.mubr.bf16.gmra.mrb[0].mxu0 %v2768
      %v2857 = vpop.f32.mrb[0].mxu0
      %v2858 = vadd.f32 0.0, %v2857
      %v2859 = vpop.f32.mrb[0].mxu0
      %v2860 = vpop.f32.mrb[0].mxu0
      %v2861 = vadd.f32 0.0, %v2860
      %v2862 = vpop.f32.mrb[0].mxu0
      %2863 = vmatprep.mubr.bf16.mxu0 0
      %2864 = vmatmul.mubr.bf16.gmra.mrb[0].mxu0 %v2771
      %v2865 = vpop.f32.mrb[0].mxu0
      %v2866 = vadd.f32 0.0, %v2865
      %v2867 = vpop.f32.mrb[0].mxu0
      %v2868 = vpop.f32.mrb[0].mxu0
      %v2869 = vadd.f32 0.0, %v2868
      %v2870 = vpop.f32.mrb[0].mxu0
      %2871 = vmatprep.mubr.bf16.mxu0 0
      %2872 = vmatmul.mubr.bf16.gmra.mrb[0].mxu0 %v2774
      %v2873 = vpop.f32.mrb[0].mxu0
      %v2874 = vadd.f32 0.0, %v2873
      %v2875 = vpop.f32.mrb[0].mxu0
      %v2876 = vpop.f32.mrb[0].mxu0
      %v2877 = vadd.f32 0.0, %v2876
      %v2878 = vpop.f32.mrb[0].mxu0
      %2879 = vmatprep.mubr.bf16.mxu0 0
      %2880 = vmatmul.mubr.bf16.gmra.mrb[0].mxu0 %v2777
      %v2881 = vpop.f32.mrb[0].mxu0
      %v2882 = vadd.f32 0.0, %v2881
      %v2883 = vpop.f32.mrb[0].mxu0
      %v2884 = vpop.f32.mrb[0].mxu0
      %v2885 = vadd.f32 0.0, %v2884
      %v2886 = vpop.f32.mrb[0].mxu0
      %2887 = vmatprep.mubr.bf16.mxu0 0
      %2888 = vmatmul.mubr.bf16.gmra.mrb[0].mxu0 %v2780
      %v2889 = vpop.f32.mrb[0].mxu0
      %v2890 = vadd.f32 0.0, %v2889
      %v2891 = vpop.f32.mrb[0].mxu0
      %v2892 = vpop.f32.mrb[0].mxu0
      %v2893 = vadd.f32 0.0, %v2892
      %v2894 = vpop.f32.mrb[0].mxu0
      %2895 = vmatprep.mubr.bf16.mxu0 0
      %2896 = vmatmul.mubr.bf16.gmra.mrb[0].mxu0 %v2783
      %v2897 = vpop.f32.mrb[0].mxu0
      %v2898 = vadd.f32 0.0, %v2897
      %v2899 = vpop.f32.mrb[0].mxu0
      %v2900 = vpop.f32.mrb[0].mxu0
      %v2901 = vadd.f32 0.0, %v2900
      %v2902 = vpop.f32.mrb[0].mxu0
      %2903 = vmatprep.mubr.bf16.mxu0 0
      %2904 = vmatmul.mubr.bf16.gmra.mrb[0].mxu0 %v2786
      %v2905 = vpop.f32.mrb[0].mxu0
      %v2906 = vadd.f32 0.0, %v2905
      %v2907 = vpop.f32.mrb[0].mxu0
      %v2908 = vpop.f32.mrb[0].mxu0
      %v2909 = vadd.f32 0.0, %v2908
      %v2910 = vpop.f32.mrb[0].mxu0
      %2911 = vmatprep.mubr.bf16.mxu0 0
      %2912 = vmatmul.mubr.bf16.gmra.mrb[0].mxu0 %v2789
      %v2913 = vpop.f32.mrb[0].mxu0
      %v2914 = vadd.f32 0.0, %v2913
      %v2915 = vpop.f32.mrb[0].mxu0
      %v2916 = vpop.f32.mrb[0].mxu0
      %v2917 = vadd.f32 0.0, %v2916
      %v2918 = vpop.f32.mrb[0].mxu0
      %2919 = vmatprep.mubr.bf16.mxu0 0
      %2920 = vmatmul.mubr.bf16.gmra.mrb[0].mxu0 %v2792
      %v2921 = vpop.f32.mrb[0].mxu0
      %v2922 = vadd.f32 0.0, %v2921
      %v2923 = vpop.f32.mrb[0].mxu0
      %v2924 = vpop.f32.mrb[0].mxu0
      %v2925 = vadd.f32 0.0, %v2924
      %v2926 = vpop.f32.mrb[0].mxu0
      %2927 = vmatprep.mubr.bf16.mxu0 0
      %2928 = vmatmul.mubr.bf16.gmra.mrb[0].mxu0 %v2795
      %v2929 = vpop.f32.mrb[0].mxu0
      %v2930 = vadd.f32 0.0, %v2929
      %v2931 = vpop.f32.mrb[0].mxu0
      %v2932 = vpop.f32.mrb[0].mxu0
      %v2933 = vadd.f32 0.0, %v2932
      %v2934 = vpop.f32.mrb[0].mxu0
      %2935 = vmatprep.mubr.bf16.mxu0 0
      %2936 = vmatmul.mubr.bf16.gmra.mrb[0].mxu0 %v2798
      %v2937 = vpop.f32.mrb[0].mxu0
      %v2938 = vadd.f32 0.0, %v2937
      %v2939 = vpop.f32.mrb[0].mxu0
      %v2940 = vpop.f32.mrb[0].mxu0
      %v2941 = vadd.f32 0.0, %v2940
      %v2942 = vpop.f32.mrb[0].mxu0
      %2943 = vmatprep.mubr.bf16.mxu0 0
      %2944 = vmatmul.mubr.bf16.gmra.mrb[0].mxu0 %v2801
      %v2945 = vpop.f32.mrb[0].mxu0
      %v2946 = vadd.f32 0.0, %v2945
      %v2947 = vpop.f32.mrb[0].mxu0
      %v2948 = vpop.f32.mrb[0].mxu0
      %v2949 = vadd.f32 0.0, %v2948
      %v2950 = vpop.f32.mrb[0].mxu0
      %2951 = vmatprep.mubr.bf16.mxu0 0
      %2952 = vmatmul.mubr.bf16.gmra.mrb[0].mxu0 %v2804
      %v2953 = vpop.f32.mrb[0].mxu0
      %v2954 = vadd.f32 0.0, %v2953
      %v2955 = vpop.f32.mrb[0].mxu0
      %v2956 = vpop.f32.mrb[0].mxu0
      %v2957 = vadd.f32 0.0, %v2956
      %v2958 = vpop.f32.mrb[0].mxu0
      %2959 = vmatprep.mubr.bf16.mxu0 0
      %2960 = vmatmul.mubr.bf16.gmra.mrb[0].mxu0 %v2807
      %v2961 = vpop.f32.mrb[0].mxu0
      %v2962 = vadd.f32 0.0, %v2961
      %v2963 = vpop.f32.mrb[0].mxu0
      %v2964 = vpop.f32.mrb[0].mxu0
      %v2965 = vadd.f32 0.0, %v2964
      %v2966 = vpop.f32.mrb[0].mxu0
      %2967 = vmatprep.mubr.bf16.mxu0 0
      %2968 = vmatmul.mubr.bf16.gmra.mrb[0].mxu0 %v2810
      %v2969 = vpop.f32.mrb[0].mxu0
      %v2970 = vadd.f32 0.0, %v2969
      %v2971 = vpop.f32.mrb[0].mxu0
      %v2972 = vpop.f32.mrb[0].mxu0
      %v2973 = vadd.f32 0.0, %v2972
      %v2974 = vpop.f32.mrb[0].mxu0
      %2975 = vdwg.mxu0
      %v2976 = vadd.f32 %v2569, %v2850
      %v2977 = vadd.f32 %v2570, %v2853
      %v2978 = vadd.f32 %v2571, %v2858
      %v2979 = vadd.f32 %v2572, %v2861
      %v2980 = vadd.f32 %v2573, %v2866
      %v2981 = vadd.f32 %v2574, %v2869
      %v2982 = vadd.f32 %v2575, %v2874
      %v2983 = vadd.f32 %v2576, %v2877
      %v2984 = vadd.f32 %v2577, %v2882
      %v2985 = vadd.f32 %v2578, %v2885
      %v2986 = vadd.f32 %v2579, %v2890
      %v2987 = vadd.f32 %v2580, %v2893
      %v2988 = vadd.f32 %v2581, %v2898
      %v2989 = vadd.f32 %v2582, %v2901
      %v2990 = vadd.f32 %v2583, %v2906
      %v2991 = vadd.f32 %v2584, %v2909
      %v2992 = vadd.f32 %v2585, %v2914
      %v2993 = vadd.f32 %v2586, %v2917
      %v2994 = vadd.f32 %v2587, %v2922
      %v2995 = vadd.f32 %v2588, %v2925
      %v2996 = vadd.f32 %v2589, %v2930
      %v2997 = vadd.f32 %v2590, %v2933
      %v2998 = vadd.f32 %v2591, %v2938
      %v2999 = vadd.f32 %v2592, %v2941
      %v3000 = vadd.f32 %v2593, %v2946
      %v3001 = vadd.f32 %v2594, %v2949
      %v3002 = vadd.f32 %v2595, %v2954
      %v3003 = vadd.f32 %v2596, %v2957
      %v3004 = vadd.f32 %v2597, %v2962
      %v3005 = vadd.f32 %v2598, %v2965
      %v3006 = vadd.f32 %v2599, %v2970
      %v3007 = vadd.f32 %v2600, %v2973
      %v3008 = vsel %vm2601, 1, 0
      %v3009 = vsel %vm2602, 1, 0
      %v3010 = vsel %vm2603, 1, 0
      %v3011 = vsel %vm2604, 1, 0
      %v3012 = vsel %vm2605, 1, 0
      %v3013 = vsel %vm2606, 1, 0
      %v3014 = vsel %vm2607, 1, 0
      %v3015 = vsel %vm2608, 1, 0
      %v3016 = vsel %vm2609, 1, 0
      %v3017 = vsel %vm2610, 1, 0
      %v3018 = vsel %vm2611, 1, 0
      %v3019 = vsel %vm2612, 1, 0
      %v3020 = vsel %vm2613, 1, 0
      %v3021 = vsel %vm2614, 1, 0
      %v3022 = vsel %vm2615, 1, 0
      %v3023 = vsel %vm2616, 1, 0
      %vm3024 = vcmp.eq.s32.totalorder %v3008, 1
      %vm3025 = vcmp.eq.s32.totalorder %v3009, 1
      %vm3026 = vcmp.eq.s32.totalorder %v3010, 1
      %vm3027 = vcmp.eq.s32.totalorder %v3011, 1
      %vm3028 = vcmp.eq.s32.totalorder %v3012, 1
      %vm3029 = vcmp.eq.s32.totalorder %v3013, 1
      %vm3030 = vcmp.eq.s32.totalorder %v3014, 1
      %vm3031 = vcmp.eq.s32.totalorder %v3015, 1
      %vm3032 = vcmp.eq.s32.totalorder %v3016, 1
      %vm3033 = vcmp.eq.s32.totalorder %v3017, 1
      %vm3034 = vcmp.eq.s32.totalorder %v3018, 1
      %vm3035 = vcmp.eq.s32.totalorder %v3019, 1
      %vm3036 = vcmp.eq.s32.totalorder %v3020, 1
      %vm3037 = vcmp.eq.s32.totalorder %v3021, 1
      %vm3038 = vcmp.eq.s32.totalorder %v3022, 1
      %vm3039 = vcmp.eq.s32.totalorder %v3023, 1
      %v3040 = vsel %vm3024, %v486, 0.0
      %v3041 = vsel %vm3024, %v487, 0.0
      %v3042 = vsel %vm3025, %v488, 0.0
      %v3043 = vsel %vm3025, %v489, 0.0
      %v3044 = vsel %vm3026, %v490, 0.0
      %v3045 = vsel %vm3026, %v491, 0.0
      %v3046 = vsel %vm3027, %v492, 0.0
      %v3047 = vsel %vm3027, %v493, 0.0
      %v3048 = vsel %vm3028, %v494, 0.0
      %v3049 = vsel %vm3028, %v495, 0.0
      %v3050 = vsel %vm3029, %v496, 0.0
      %v3051 = vsel %vm3029, %v497, 0.0
      %v3052 = vsel %vm3030, %v498, 0.0
      %v3053 = vsel %vm3030, %v499, 0.0
      %v3054 = vsel %vm3031, %v500, 0.0
      %v3055 = vsel %vm3031, %v501, 0.0
      %v3056 = vsel %vm3032, %v502, 0.0
      %v3057 = vsel %vm3032, %v503, 0.0
      %v3058 = vsel %vm3033, %v504, 0.0
      %v3059 = vsel %vm3033, %v505, 0.0
      %v3060 = vsel %vm3034, %v506, 0.0
      %v3061 = vsel %vm3034, %v507, 0.0
      %v3062 = vsel %vm3035, %v508, 0.0
      %v3063 = vsel %vm3035, %v509, 0.0
      %v3064 = vsel %vm3036, %v510, 0.0
      %v3065 = vsel %vm3036, %v511, 0.0
      %v3066 = vsel %vm3037, %v512, 0.0
      %v3067 = vsel %vm3037, %v513, 0.0
      %v3068 = vsel %vm3038, %v514, 0.0
      %v3069 = vsel %vm3038, %v515, 0.0
      %v3070 = vsel %vm3039, %v516, 0.0
      %v3071 = vsel %vm3039, %v517, 0.0
      %v3072 = vpack.c.bf16 %v3041, %v3040
      %v3073 = vpack.c.bf16 %v3043, %v3042
      %v3074 = vpack.c.bf16 %v3045, %v3044
      %v3075 = vpack.c.bf16 %v3047, %v3046
      %v3076 = vpack.c.bf16 %v3049, %v3048
      %v3077 = vpack.c.bf16 %v3051, %v3050
      %v3078 = vpack.c.bf16 %v3053, %v3052
      %v3079 = vpack.c.bf16 %v3055, %v3054
      %v3080 = vpack.c.bf16 %v3057, %v3056
      %v3081 = vpack.c.bf16 %v3059, %v3058
      %v3082 = vpack.c.bf16 %v3061, %v3060
      %v3083 = vpack.c.bf16 %v3063, %v3062
      %v3084 = vpack.c.bf16 %v3065, %v3064
      %v3085 = vpack.c.bf16 %v3067, %v3066
      %v3086 = vpack.c.bf16 %v3069, %v3068
      %v3087 = vpack.c.bf16 %v3071, %v3070
      %v3089 = vunpack.c.l.b16 %v522
      %v3090 = vpack.c.b16 %v3089, %v3089
      %v3091 = vrot.slane %v3090, 2
      %v3093 = vsel %vm855, %v3072, 0
      %v3096 = vsel %vm855, %v3073, 0
      %v3099 = vsel %vm855, %v3074, 0
      %v3102 = vsel %vm855, %v3075, 0
      %v3105 = vsel %vm855, %v3076, 0
      %v3108 = vsel %vm855, %v3077, 0
      %v3111 = vsel %vm855, %v3078, 0
      %v3114 = vsel %vm855, %v3079, 0
      %v3117 = vsel %vm855, %v3080, 0
      %v3120 = vsel %vm855, %v3081, 0
      %v3123 = vsel %vm855, %v3082, 0
      %v3126 = vsel %vm855, %v3083, 0
      %v3129 = vsel %vm855, %v3084, 0
      %v3132 = vsel %vm855, %v3085, 0
      %v3135 = vsel %vm855, %v3086, 0
      %v3138 = vsel %vm855, %v3087, 0
      %v3141 = vsel %vm904, %v3091, 0
      %3143 = vmatprep.subr.bf16.mxu0 0
      %3144 = vmatpush1.bf16.msra.mxu0 %v3141
      %3145 = vmatprep.subr.bf16.mxu0 0
      %3146 = vmatpush1.bf16.msra.mxu0 0
      %3147 = vmatprep.subr.bf16.mxu0 0
      %3148 = vmatpush1.bf16.msra.mxu0 0
      %3149 = vmatprep.subr.bf16.mxu0 0
      %3150 = vmatpush1.bf16.msra.mxu0 0
      %3151 = vmatprep.subr.bf16.mxu0 0
      %3152 = vmatpush1.bf16.msra.mxu0 0
      %3153 = vmatprep.subr.bf16.mxu0 0
      %3154 = vmatpush1.bf16.msra.mxu0 0
      %3155 = vmatprep.subr.bf16.mxu0 0
      %3156 = vmatpush1.bf16.msra.mxu0 0
      %3157 = vmatprep.subr.bf16.mxu0 0
      %3158 = vmatpush1.bf16.msra.mxu0 0
      %3159 = vmatprep.subr.bf16.mxu0 0
      %3160 = vmatpush1.bf16.msra.mxu0 0
      %3161 = vmatprep.subr.bf16.mxu0 0
      %3162 = vmatpush1.bf16.msra.mxu0 0
      %3163 = vmatprep.subr.bf16.mxu0 0
      %3164 = vmatpush1.bf16.msra.mxu0 0
      %3165 = vmatprep.subr.bf16.mxu0 0
      %3166 = vmatpush1.bf16.msra.mxu0 0
      %3167 = vmatprep.subr.bf16.mxu0 0
      %3168 = vmatpush1.bf16.msra.mxu0 0
      %3169 = vmatprep.subr.bf16.mxu0 0
      %3170 = vmatpush1.bf16.msra.mxu0 0
      %3171 = vmatprep.subr.bf16.mxu0 0
      %3172 = vmatpush1.bf16.msra.mxu0 0
      %3173 = vmatprep.subr.bf16.mxu0 0
      %3174 = vmatpush1.bf16.msra.mxu0 0
      %3175 = vmatprep.mubr.bf16.mxu0 0
      %3176 = vmatmul.mubr.bf16.gmra.mrb[0].mxu0 %v3093
      %v3177 = vpop.f32.mrb[0].mxu0
      %v3178 = vadd.f32 0.0, %v3177
      %v3179 = vpop.f32.mrb[0].mxu0
      %v3180 = vpop.f32.mrb[0].mxu0
      %v3181 = vadd.f32 0.0, %v3180
      %v3182 = vpop.f32.mrb[0].mxu0
      %3183 = vmatprep.mubr.bf16.mxu0 0
      %3184 = vmatmul.mubr.bf16.gmra.mrb[0].mxu0 %v3096
      %v3185 = vpop.f32.mrb[0].mxu0
      %v3186 = vadd.f32 0.0, %v3185
      %v3187 = vpop.f32.mrb[0].mxu0
      %v3188 = vpop.f32.mrb[0].mxu0
      %v3189 = vadd.f32 0.0, %v3188
      %v3190 = vpop.f32.mrb[0].mxu0
      %3191 = vmatprep.mubr.bf16.mxu0 0
      %3192 = vmatmul.mubr.bf16.gmra.mrb[0].mxu0 %v3099
      %v3193 = vpop.f32.mrb[0].mxu0
      %v3194 = vadd.f32 0.0, %v3193
      %v3195 = vpop.f32.mrb[0].mxu0
      %v3196 = vpop.f32.mrb[0].mxu0
      %v3197 = vadd.f32 0.0, %v3196
      %v3198 = vpop.f32.mrb[0].mxu0
      %3199 = vmatprep.mubr.bf16.mxu0 0
      %3200 = vmatmul.mubr.bf16.gmra.mrb[0].mxu0 %v3102
      %v3201 = vpop.f32.mrb[0].mxu0
      %v3202 = vadd.f32 0.0, %v3201
      %v3203 = vpop.f32.mrb[0].mxu0
      %v3204 = vpop.f32.mrb[0].mxu0
      %v3205 = vadd.f32 0.0, %v3204
      %v3206 = vpop.f32.mrb[0].mxu0
      %3207 = vmatprep.mubr.bf16.mxu0 0
      %3208 = vmatmul.mubr.bf16.gmra.mrb[0].mxu0 %v3105
      %v3209 = vpop.f32.mrb[0].mxu0
      %v3210 = vadd.f32 0.0, %v3209
      %v3211 = vpop.f32.mrb[0].mxu0
      %v3212 = vpop.f32.mrb[0].mxu0
      %v3213 = vadd.f32 0.0, %v3212
      %v3214 = vpop.f32.mrb[0].mxu0
      %3215 = vmatprep.mubr.bf16.mxu0 0
      %3216 = vmatmul.mubr.bf16.gmra.mrb[0].mxu0 %v3108
      %v3217 = vpop.f32.mrb[0].mxu0
      %v3218 = vadd.f32 0.0, %v3217
      %v3219 = vpop.f32.mrb[0].mxu0
      %v3220 = vpop.f32.mrb[0].mxu0
      %v3221 = vadd.f32 0.0, %v3220
      %v3222 = vpop.f32.mrb[0].mxu0
      %3223 = vmatprep.mubr.bf16.mxu0 0
      %3224 = vmatmul.mubr.bf16.gmra.mrb[0].mxu0 %v3111
      %v3225 = vpop.f32.mrb[0].mxu0
      %v3226 = vadd.f32 0.0, %v3225
      %v3227 = vpop.f32.mrb[0].mxu0
      %v3228 = vpop.f32.mrb[0].mxu0
      %v3229 = vadd.f32 0.0, %v3228
      %v3230 = vpop.f32.mrb[0].mxu0
      %3231 = vmatprep.mubr.bf16.mxu0 0
      %3232 = vmatmul.mubr.bf16.gmra.mrb[0].mxu0 %v3114
      %v3233 = vpop.f32.mrb[0].mxu0
      %v3234 = vadd.f32 0.0, %v3233
      %v3235 = vpop.f32.mrb[0].mxu0
      %v3236 = vpop.f32.mrb[0].mxu0
      %v3237 = vadd.f32 0.0, %v3236
      %v3238 = vpop.f32.mrb[0].mxu0
      %3239 = vmatprep.mubr.bf16.mxu0 0
      %3240 = vmatmul.mubr.bf16.gmra.mrb[0].mxu0 %v3117
      %v3241 = vpop.f32.mrb[0].mxu0
      %v3242 = vadd.f32 0.0, %v3241
      %v3243 = vpop.f32.mrb[0].mxu0
      %v3244 = vpop.f32.mrb[0].mxu0
      %v3245 = vadd.f32 0.0, %v3244
      %v3246 = vpop.f32.mrb[0].mxu0
      %3247 = vmatprep.mubr.bf16.mxu0 0
      %3248 = vmatmul.mubr.bf16.gmra.mrb[0].mxu0 %v3120
      %v3249 = vpop.f32.mrb[0].mxu0
      %v3250 = vadd.f32 0.0, %v3249
      %v3251 = vpop.f32.mrb[0].mxu0
      %v3252 = vpop.f32.mrb[0].mxu0
      %v3253 = vadd.f32 0.0, %v3252
      %v3254 = vpop.f32.mrb[0].mxu0
      %3255 = vmatprep.mubr.bf16.mxu0 0
      %3256 = vmatmul.mubr.bf16.gmra.mrb[0].mxu0 %v3123
      %v3257 = vpop.f32.mrb[0].mxu0
      %v3258 = vadd.f32 0.0, %v3257
      %v3259 = vpop.f32.mrb[0].mxu0
      %v3260 = vpop.f32.mrb[0].mxu0
      %v3261 = vadd.f32 0.0, %v3260
      %v3262 = vpop.f32.mrb[0].mxu0
      %3263 = vmatprep.mubr.bf16.mxu0 0
      %3264 = vmatmul.mubr.bf16.gmra.mrb[0].mxu0 %v3126
      %v3265 = vpop.f32.mrb[0].mxu0
      %v3266 = vadd.f32 0.0, %v3265
      %v3267 = vpop.f32.mrb[0].mxu0
      %v3268 = vpop.f32.mrb[0].mxu0
      %v3269 = vadd.f32 0.0, %v3268
      %v3270 = vpop.f32.mrb[0].mxu0
      %3271 = vmatprep.mubr.bf16.mxu0 0
      %3272 = vmatmul.mubr.bf16.gmra.mrb[0].mxu0 %v3129
      %v3273 = vpop.f32.mrb[0].mxu0
      %v3274 = vadd.f32 0.0, %v3273
      %v3275 = vpop.f32.mrb[0].mxu0
      %v3276 = vpop.f32.mrb[0].mxu0
      %v3277 = vadd.f32 0.0, %v3276
      %v3278 = vpop.f32.mrb[0].mxu0
      %3279 = vmatprep.mubr.bf16.mxu0 0
      %3280 = vmatmul.mubr.bf16.gmra.mrb[0].mxu0 %v3132
      %v3281 = vpop.f32.mrb[0].mxu0
      %v3282 = vadd.f32 0.0, %v3281
      %v3283 = vpop.f32.mrb[0].mxu0
      %v3284 = vpop.f32.mrb[0].mxu0
      %v3285 = vadd.f32 0.0, %v3284
      %v3286 = vpop.f32.mrb[0].mxu0
      %3287 = vmatprep.mubr.bf16.mxu0 0
      %3288 = vmatmul.mubr.bf16.gmra.mrb[0].mxu0 %v3135
      %v3289 = vpop.f32.mrb[0].mxu0
      %v3290 = vadd.f32 0.0, %v3289
      %v3291 = vpop.f32.mrb[0].mxu0
      %v3292 = vpop.f32.mrb[0].mxu0
      %v3293 = vadd.f32 0.0, %v3292
      %v3294 = vpop.f32.mrb[0].mxu0
      %3295 = vmatprep.mubr.bf16.mxu0 0
      %3296 = vmatmul.mubr.bf16.gmra.mrb[0].mxu0 %v3138
      %v3297 = vpop.f32.mrb[0].mxu0
      %v3298 = vadd.f32 0.0, %v3297
      %v3299 = vpop.f32.mrb[0].mxu0
      %v3300 = vpop.f32.mrb[0].mxu0
      %v3301 = vadd.f32 0.0, %v3300
      %v3302 = vpop.f32.mrb[0].mxu0
      %3303 = vdwg.mxu0
      %v3304 = vadd.f32 %v2976, %v3178
      %v3305 = vadd.f32 %v2977, %v3181
      %v3306 = vadd.f32 %v2978, %v3186
      %v3307 = vadd.f32 %v2979, %v3189
      %v3308 = vadd.f32 %v2980, %v3194
      %v3309 = vadd.f32 %v2981, %v3197
      %v3310 = vadd.f32 %v2982, %v3202
      %v3311 = vadd.f32 %v2983, %v3205
      %v3312 = vadd.f32 %v2984, %v3210
      %v3313 = vadd.f32 %v2985, %v3213
      %v3314 = vadd.f32 %v2986, %v3218
      %v3315 = vadd.f32 %v2987, %v3221
      %v3316 = vadd.f32 %v2988, %v3226
      %v3317 = vadd.f32 %v2989, %v3229
      %v3318 = vadd.f32 %v2990, %v3234
      %v3319 = vadd.f32 %v2991, %v3237
      %v3320 = vadd.f32 %v2992, %v3242
      %v3321 = vadd.f32 %v2993, %v3245
      %v3322 = vadd.f32 %v2994, %v3250
      %v3323 = vadd.f32 %v2995, %v3253
      %v3324 = vadd.f32 %v2996, %v3258
      %v3325 = vadd.f32 %v2997, %v3261
      %v3326 = vadd.f32 %v2998, %v3266
      %v3327 = vadd.f32 %v2999, %v3269
      %v3328 = vadd.f32 %v3000, %v3274
      %v3329 = vadd.f32 %v3001, %v3277
      %v3330 = vadd.f32 %v3002, %v3282
      %v3331 = vadd.f32 %v3003, %v3285
      %v3332 = vadd.f32 %v3004, %v3290
      %v3333 = vadd.f32 %v3005, %v3293
      %v3334 = vadd.f32 %v3006, %v3298
      %v3335 = vadd.f32 %v3007, %v3301
      %v3336 = vrot.slane %v517, 1
      %v3337 = vsel %vm1314, %v2302, %v3336
      %v3338 = vsel %vm1314, %v3336, %v1281
      %vm3339 = vmand %vm2601, %vm1347
      %vm3340 = vmand %vm2601, %vm1348
      %vm3341 = vmand %vm2602, %vm1347
      %vm3342 = vmand %vm2602, %vm1348
      %vm3343 = vmand %vm2603, %vm1347
      %vm3344 = vmand %vm2603, %vm1348
      %vm3345 = vmand %vm2604, %vm1347
      %vm3346 = vmand %vm2604, %vm1348
      %vm3347 = vmand %vm2605, %vm1347
      %vm3348 = vmand %vm2605, %vm1348
      %vm3349 = vmand %vm2606, %vm1347
      %vm3350 = vmand %vm2606, %vm1348
      %vm3351 = vmand %vm2607, %vm1347
      %vm3352 = vmand %vm2607, %vm1348
      %vm3353 = vmand %vm2608, %vm1347
      %vm3354 = vmand %vm2608, %vm1348
      %vm3355 = vmand %vm2609, %vm1347
      %vm3356 = vmand %vm2609, %vm1348
      %vm3357 = vmand %vm2610, %vm1347
      %vm3358 = vmand %vm2610, %vm1348
      %vm3359 = vmand %vm2611, %vm1347
      %vm3360 = vmand %vm2611, %vm1348
      %vm3361 = vmand %vm2612, %vm1347
      %vm3362 = vmand %vm2612, %vm1348
      %vm3363 = vmand %vm2613, %vm1347
      %vm3364 = vmand %vm2613, %vm1348
      %vm3365 = vmand %vm2614, %vm1347
      %vm3366 = vmand %vm2614, %vm1348
      %vm3367 = vmand %vm2615, %vm1347
      %vm3368 = vmand %vm2615, %vm1348
      %vm3369 = vmand %vm2616, %vm1347
      %vm3370 = vmand %vm2616, %vm1348
      %v3371 = vsel %vm3339, 1, 0
      %v3372 = vsel %vm3340, 1, 0
      %v3373 = vsel %vm3341, 1, 0
      %v3374 = vsel %vm3342, 1, 0
      %v3375 = vsel %vm3343, 1, 0
      %v3376 = vsel %vm3344, 1, 0
      %v3377 = vsel %vm3345, 1, 0
      %v3378 = vsel %vm3346, 1, 0
      %v3379 = vsel %vm3347, 1, 0
      %v3380 = vsel %vm3348, 1, 0
      %v3381 = vsel %vm3349, 1, 0
      %v3382 = vsel %vm3350, 1, 0
      %v3383 = vsel %vm3351, 1, 0
      %v3384 = vsel %vm3352, 1, 0
      %v3385 = vsel %vm3353, 1, 0
      %v3386 = vsel %vm3354, 1, 0
      %v3387 = vsel %vm3355, 1, 0
      %v3388 = vsel %vm3356, 1, 0
      %v3389 = vsel %vm3357, 1, 0
      %v3390 = vsel %vm3358, 1, 0
      %v3391 = vsel %vm3359, 1, 0
      %v3392 = vsel %vm3360, 1, 0
      %v3393 = vsel %vm3361, 1, 0
      %v3394 = vsel %vm3362, 1, 0
      %v3395 = vsel %vm3363, 1, 0
      %v3396 = vsel %vm3364, 1, 0
      %v3397 = vsel %vm3365, 1, 0
      %v3398 = vsel %vm3366, 1, 0
      %v3399 = vsel %vm3367, 1, 0
      %v3400 = vsel %vm3368, 1, 0
      %v3401 = vsel %vm3369, 1, 0
      %v3402 = vsel %vm3370, 1, 0
      %vm3403 = vcmp.eq.s32.totalorder %v3371, 1
      %vm3404 = vcmp.eq.s32.totalorder %v3372, 1
      %vm3405 = vcmp.eq.s32.totalorder %v3373, 1
      %vm3406 = vcmp.eq.s32.totalorder %v3374, 1
      %vm3407 = vcmp.eq.s32.totalorder %v3375, 1
      %vm3408 = vcmp.eq.s32.totalorder %v3376, 1
      %vm3409 = vcmp.eq.s32.totalorder %v3377, 1
      %vm3410 = vcmp.eq.s32.totalorder %v3378, 1
      %vm3411 = vcmp.eq.s32.totalorder %v3379, 1
      %vm3412 = vcmp.eq.s32.totalorder %v3380, 1
      %vm3413 = vcmp.eq.s32.totalorder %v3381, 1
      %vm3414 = vcmp.eq.s32.totalorder %v3382, 1
      %vm3415 = vcmp.eq.s32.totalorder %v3383, 1
      %vm3416 = vcmp.eq.s32.totalorder %v3384, 1
      %vm3417 = vcmp.eq.s32.totalorder %v3385, 1
      %vm3418 = vcmp.eq.s32.totalorder %v3386, 1
      %vm3419 = vcmp.eq.s32.totalorder %v3387, 1
      %vm3420 = vcmp.eq.s32.totalorder %v3388, 1
      %vm3421 = vcmp.eq.s32.totalorder %v3389, 1
      %vm3422 = vcmp.eq.s32.totalorder %v3390, 1
      %vm3423 = vcmp.eq.s32.totalorder %v3391, 1
      %vm3424 = vcmp.eq.s32.totalorder %v3392, 1
      %vm3425 = vcmp.eq.s32.totalorder %v3393, 1
      %vm3426 = vcmp.eq.s32.totalorder %v3394, 1
      %vm3427 = vcmp.eq.s32.totalorder %v3395, 1
      %vm3428 = vcmp.eq.s32.totalorder %v3396, 1
      %vm3429 = vcmp.eq.s32.totalorder %v3397, 1
      %vm3430 = vcmp.eq.s32.totalorder %v3398, 1
      %vm3431 = vcmp.eq.s32.totalorder %v3399, 1
      %vm3432 = vcmp.eq.s32.totalorder %v3400, 1
      %vm3433 = vcmp.eq.s32.totalorder %v3401, 1
      %vm3434 = vcmp.eq.s32.totalorder %v3402, 1
      %v3435 = vsel %vm3403, %v1342, 0.0
      %v3436 = vsel %vm3404, %v1341, 0.0
      %v3437 = vsel %vm3405, %v1340, 0.0
      %v3438 = vsel %vm3406, %v1339, 0.0
      %v3439 = vsel %vm3407, %v1338, 0.0
      %v3440 = vsel %vm3408, %v1337, 0.0
      %v3441 = vsel %vm3409, %v1336, 0.0
      %v3442 = vsel %vm3410, %v1335, 0.0
      %v3443 = vsel %vm3411, %v1334, 0.0
      %v3444 = vsel %vm3412, %v1333, 0.0
      %v3445 = vsel %vm3413, %v1332, 0.0
      %v3446 = vsel %vm3414, %v1331, 0.0
      %v3447 = vsel %vm3415, %v1330, 0.0
      %v3448 = vsel %vm3416, %v1329, 0.0
      %v3449 = vsel %vm3417, %v1328, 0.0
      %v3450 = vsel %vm3418, %v1327, 0.0
      %v3451 = vsel %vm3419, %v1326, 0.0
      %v3452 = vsel %vm3420, %v1325, 0.0
      %v3453 = vsel %vm3421, %v1324, 0.0
      %v3454 = vsel %vm3422, %v1323, 0.0
      %v3455 = vsel %vm3423, %v1322, 0.0
      %v3456 = vsel %vm3424, %v1321, 0.0
      %v3457 = vsel %vm3425, %v1320, 0.0
      %v3458 = vsel %vm3426, %v1319, 0.0
      %v3459 = vsel %vm3427, %v1318, 0.0
      %v3460 = vsel %vm3428, %v1317, 0.0
      %v3461 = vsel %vm3429, %v1316, 0.0
      %v3462 = vsel %vm3430, %v1315, 0.0
      %v3463 = vsel %vm3431, %v2304, 0.0
      %v3464 = vsel %vm3432, %v2303, 0.0
      %v3465 = vsel %vm3433, %v3337, 0.0
      %v3466 = vsel %vm3434, %v3338, 0.0
      %v3467 = vpack.c.bf16 %v3436, %v3435
      %v3468 = vpack.c.bf16 %v3438, %v3437
      %v3469 = vpack.c.bf16 %v3440, %v3439
      %v3470 = vpack.c.bf16 %v3442, %v3441
      %v3471 = vpack.c.bf16 %v3444, %v3443
      %v3472 = vpack.c.bf16 %v3446, %v3445
      %v3473 = vpack.c.bf16 %v3448, %v3447
      %v3474 = vpack.c.bf16 %v3450, %v3449
      %v3475 = vpack.c.bf16 %v3452, %v3451
      %v3476 = vpack.c.bf16 %v3454, %v3453
      %v3477 = vpack.c.bf16 %v3456, %v3455
      %v3478 = vpack.c.bf16 %v3458, %v3457
      %v3479 = vpack.c.bf16 %v3460, %v3459
      %v3480 = vpack.c.bf16 %v3462, %v3461
      %v3481 = vpack.c.bf16 %v3464, %v3463
      %v3482 = vpack.c.bf16 %v3466, %v3465
      %v3484 = vsel %vm855, %v3467, 0
      %v3487 = vsel %vm855, %v3468, 0
      %v3490 = vsel %vm855, %v3469, 0
      %v3493 = vsel %vm855, %v3470, 0
      %v3496 = vsel %vm855, %v3471, 0
      %v3499 = vsel %vm855, %v3472, 0
      %v3502 = vsel %vm855, %v3473, 0
      %v3505 = vsel %vm855, %v3474, 0
      %v3508 = vsel %vm855, %v3475, 0
      %v3511 = vsel %vm855, %v3476, 0
      %v3514 = vsel %vm855, %v3477, 0
      %v3517 = vsel %vm855, %v3478, 0
      %v3520 = vsel %vm855, %v3479, 0
      %v3523 = vsel %vm855, %v3480, 0
      %v3526 = vsel %vm855, %v3481, 0
      %v3529 = vsel %vm855, %v3482, 0
      %v3532 = vsel %vm904, %v523, 0
      %3534 = vmatprep.subr.bf16.mxu0 0
      %3535 = vmatpush1.bf16.msra.mxu0 %v3532
      %3536 = vmatprep.subr.bf16.mxu0 0
      %3537 = vmatpush1.bf16.msra.mxu0 0
      %3538 = vmatprep.subr.bf16.mxu0 0
      %3539 = vmatpush1.bf16.msra.mxu0 0
      %3540 = vmatprep.subr.bf16.mxu0 0
      %3541 = vmatpush1.bf16.msra.mxu0 0
      %3542 = vmatprep.subr.bf16.mxu0 0
      %3543 = vmatpush1.bf16.msra.mxu0 0
      %3544 = vmatprep.subr.bf16.mxu0 0
      %3545 = vmatpush1.bf16.msra.mxu0 0
      %3546 = vmatprep.subr.bf16.mxu0 0
      %3547 = vmatpush1.bf16.msra.mxu0 0
      %3548 = vmatprep.subr.bf16.mxu0 0
      %3549 = vmatpush1.bf16.msra.mxu0 0
      %3550 = vmatprep.subr.bf16.mxu0 0
      %3551 = vmatpush1.bf16.msra.mxu0 0
      %3552 = vmatprep.subr.bf16.mxu0 0
      %3553 = vmatpush1.bf16.msra.mxu0 0
      %3554 = vmatprep.subr.bf16.mxu0 0
      %3555 = vmatpush1.bf16.msra.mxu0 0
      %3556 = vmatprep.subr.bf16.mxu0 0
      %3557 = vmatpush1.bf16.msra.mxu0 0
      %3558 = vmatprep.subr.bf16.mxu0 0
      %3559 = vmatpush1.bf16.msra.mxu0 0
      %3560 = vmatprep.subr.bf16.mxu0 0
      %3561 = vmatpush1.bf16.msra.mxu0 0
      %3562 = vmatprep.subr.bf16.mxu0 0
      %3563 = vmatpush1.bf16.msra.mxu0 0
      %3564 = vmatprep.subr.bf16.mxu0 0
      %3565 = vmatpush1.bf16.msra.mxu0 0
      %3566 = vmatprep.mubr.bf16.mxu0 0
      %3567 = vmatmul.mubr.bf16.gmra.mrb[0].mxu0 %v3484
      %v3568 = vpop.f32.mrb[0].mxu0
      %v3569 = vadd.f32 0.0, %v3568
      %v3570 = vpop.f32.mrb[0].mxu0
      %v3571 = vpop.f32.mrb[0].mxu0
      %v3572 = vadd.f32 0.0, %v3571
      %v3573 = vpop.f32.mrb[0].mxu0
      %3574 = vmatprep.mubr.bf16.mxu0 0
      %3575 = vmatmul.mubr.bf16.gmra.mrb[0].mxu0 %v3487
      %v3576 = vpop.f32.mrb[0].mxu0
      %v3577 = vadd.f32 0.0, %v3576
      %v3578 = vpop.f32.mrb[0].mxu0
      %v3579 = vpop.f32.mrb[0].mxu0
      %v3580 = vadd.f32 0.0, %v3579
      %v3581 = vpop.f32.mrb[0].mxu0
      %3582 = vmatprep.mubr.bf16.mxu0 0
      %3583 = vmatmul.mubr.bf16.gmra.mrb[0].mxu0 %v3490
      %v3584 = vpop.f32.mrb[0].mxu0
      %v3585 = vadd.f32 0.0, %v3584
      %v3586 = vpop.f32.mrb[0].mxu0
      %v3587 = vpop.f32.mrb[0].mxu0
      %v3588 = vadd.f32 0.0, %v3587
      %v3589 = vpop.f32.mrb[0].mxu0
      %3590 = vmatprep.mubr.bf16.mxu0 0
      %3591 = vmatmul.mubr.bf16.gmra.mrb[0].mxu0 %v3493
      %v3592 = vpop.f32.mrb[0].mxu0
      %v3593 = vadd.f32 0.0, %v3592
      %v3594 = vpop.f32.mrb[0].mxu0
      %v3595 = vpop.f32.mrb[0].mxu0
      %v3596 = vadd.f32 0.0, %v3595
      %v3597 = vpop.f32.mrb[0].mxu0
      %3598 = vmatprep.mubr.bf16.mxu0 0
      %3599 = vmatmul.mubr.bf16.gmra.mrb[0].mxu0 %v3496
      %v3600 = vpop.f32.mrb[0].mxu0
      %v3601 = vadd.f32 0.0, %v3600
      %v3602 = vpop.f32.mrb[0].mxu0
      %v3603 = vpop.f32.mrb[0].mxu0
      %v3604 = vadd.f32 0.0, %v3603
      %v3605 = vpop.f32.mrb[0].mxu0
      %3606 = vmatprep.mubr.bf16.mxu0 0
      %3607 = vmatmul.mubr.bf16.gmra.mrb[0].mxu0 %v3499
      %v3608 = vpop.f32.mrb[0].mxu0
      %v3609 = vadd.f32 0.0, %v3608
      %v3610 = vpop.f32.mrb[0].mxu0
      %v3611 = vpop.f32.mrb[0].mxu0
      %v3612 = vadd.f32 0.0, %v3611
      %v3613 = vpop.f32.mrb[0].mxu0
      %3614 = vmatprep.mubr.bf16.mxu0 0
      %3615 = vmatmul.mubr.bf16.gmra.mrb[0].mxu0 %v3502
      %v3616 = vpop.f32.mrb[0].mxu0
      %v3617 = vadd.f32 0.0, %v3616
      %v3618 = vpop.f32.mrb[0].mxu0
      %v3619 = vpop.f32.mrb[0].mxu0
      %v3620 = vadd.f32 0.0, %v3619
      %v3621 = vpop.f32.mrb[0].mxu0
      %3622 = vmatprep.mubr.bf16.mxu0 0
      %3623 = vmatmul.mubr.bf16.gmra.mrb[0].mxu0 %v3505
      %v3624 = vpop.f32.mrb[0].mxu0
      %v3625 = vadd.f32 0.0, %v3624
      %v3626 = vpop.f32.mrb[0].mxu0
      %v3627 = vpop.f32.mrb[0].mxu0
      %v3628 = vadd.f32 0.0, %v3627
      %v3629 = vpop.f32.mrb[0].mxu0
      %3630 = vmatprep.mubr.bf16.mxu0 0
      %3631 = vmatmul.mubr.bf16.gmra.mrb[0].mxu0 %v3508
      %v3632 = vpop.f32.mrb[0].mxu0
      %v3633 = vadd.f32 0.0, %v3632
      %v3634 = vpop.f32.mrb[0].mxu0
      %v3635 = vpop.f32.mrb[0].mxu0
      %v3636 = vadd.f32 0.0, %v3635
      %v3637 = vpop.f32.mrb[0].mxu0
      %3638 = vmatprep.mubr.bf16.mxu0 0
      %3639 = vmatmul.mubr.bf16.gmra.mrb[0].mxu0 %v3511
      %v3640 = vpop.f32.mrb[0].mxu0
      %v3641 = vadd.f32 0.0, %v3640
      %v3642 = vpop.f32.mrb[0].mxu0
      %v3643 = vpop.f32.mrb[0].mxu0
      %v3644 = vadd.f32 0.0, %v3643
      %v3645 = vpop.f32.mrb[0].mxu0
      %3646 = vmatprep.mubr.bf16.mxu0 0
      %3647 = vmatmul.mubr.bf16.gmra.mrb[0].mxu0 %v3514
      %v3648 = vpop.f32.mrb[0].mxu0
      %v3649 = vadd.f32 0.0, %v3648
      %v3650 = vpop.f32.mrb[0].mxu0
      %v3651 = vpop.f32.mrb[0].mxu0
      %v3652 = vadd.f32 0.0, %v3651
      %v3653 = vpop.f32.mrb[0].mxu0
      %3654 = vmatprep.mubr.bf16.mxu0 0
      %3655 = vmatmul.mubr.bf16.gmra.mrb[0].mxu0 %v3517
      %v3656 = vpop.f32.mrb[0].mxu0
      %v3657 = vadd.f32 0.0, %v3656
      %v3658 = vpop.f32.mrb[0].mxu0
      %v3659 = vpop.f32.mrb[0].mxu0
      %v3660 = vadd.f32 0.0, %v3659
      %v3661 = vpop.f32.mrb[0].mxu0
      %3662 = vmatprep.mubr.bf16.mxu0 0
      %3663 = vmatmul.mubr.bf16.gmra.mrb[0].mxu0 %v3520
      %v3664 = vpop.f32.mrb[0].mxu0
      %v3665 = vadd.f32 0.0, %v3664
      %v3666 = vpop.f32.mrb[0].mxu0
      %v3667 = vpop.f32.mrb[0].mxu0
      %v3668 = vadd.f32 0.0, %v3667
      %v3669 = vpop.f32.mrb[0].mxu0
      %3670 = vmatprep.mubr.bf16.mxu0 0
      %3671 = vmatmul.mubr.bf16.gmra.mrb[0].mxu0 %v3523
      %v3672 = vpop.f32.mrb[0].mxu0
      %v3673 = vadd.f32 0.0, %v3672
      %v3674 = vpop.f32.mrb[0].mxu0
      %v3675 = vpop.f32.mrb[0].mxu0
      %v3676 = vadd.f32 0.0, %v3675
      %v3677 = vpop.f32.mrb[0].mxu0
      %3678 = vmatprep.mubr.bf16.mxu0 0
      %3679 = vmatmul.mubr.bf16.gmra.mrb[0].mxu0 %v3526
      %v3680 = vpop.f32.mrb[0].mxu0
      %v3681 = vadd.f32 0.0, %v3680
      %v3682 = vpop.f32.mrb[0].mxu0
      %v3683 = vpop.f32.mrb[0].mxu0
      %v3684 = vadd.f32 0.0, %v3683
      %v3685 = vpop.f32.mrb[0].mxu0
      %3686 = vmatprep.mubr.bf16.mxu0 0
      %3687 = vmatmul.mubr.bf16.gmra.mrb[0].mxu0 %v3529
      %v3688 = vpop.f32.mrb[0].mxu0
      %v3689 = vadd.f32 0.0, %v3688
      %v3690 = vpop.f32.mrb[0].mxu0
      %v3691 = vpop.f32.mrb[0].mxu0
      %v3692 = vadd.f32 0.0, %v3691
      %v3693 = vpop.f32.mrb[0].mxu0
      %3694 = vdwg.mxu0
      %v3695 = vadd.f32 %v3304, %v3569
      %v3696 = vadd.f32 %v3305, %v3572
      %v3697 = vadd.f32 %v3306, %v3577
      %v3698 = vadd.f32 %v3307, %v3580
      %v3699 = vadd.f32 %v3308, %v3585
      %v3700 = vadd.f32 %v3309, %v3588
      %v3701 = vadd.f32 %v3310, %v3593
      %v3702 = vadd.f32 %v3311, %v3596
      %v3703 = vadd.f32 %v3312, %v3601
      %v3704 = vadd.f32 %v3313, %v3604
      %v3705 = vadd.f32 %v3314, %v3609
      %v3706 = vadd.f32 %v3315, %v3612
      %v3707 = vadd.f32 %v3316, %v3617
      %v3708 = vadd.f32 %v3317, %v3620
      %v3709 = vadd.f32 %v3318, %v3625
      %v3710 = vadd.f32 %v3319, %v3628
      %v3711 = vadd.f32 %v3320, %v3633
      %v3712 = vadd.f32 %v3321, %v3636
      %v3713 = vadd.f32 %v3322, %v3641
      %v3714 = vadd.f32 %v3323, %v3644
      %v3715 = vadd.f32 %v3324, %v3649
      %v3716 = vadd.f32 %v3325, %v3652
      %v3717 = vadd.f32 %v3326, %v3657
      %v3718 = vadd.f32 %v3327, %v3660
      %v3719 = vadd.f32 %v3328, %v3665
      %v3720 = vadd.f32 %v3329, %v3668
      %v3721 = vadd.f32 %v3330, %v3673
      %v3722 = vadd.f32 %v3331, %v3676
      %v3723 = vadd.f32 %v3332, %v3681
      %v3724 = vadd.f32 %v3333, %v3684
      %v3725 = vadd.f32 %v3334, %v3689
      %v3726 = vadd.f32 %v3335, %v3692
      %v3727 = vld [vmem:[%s4] sm:$0x1]
      %v3729 = vlaneseq
      %v3730 = vshrl.u32 %v3729, 7
      %v3731 = vsub.s32 0, %v3730
      %v3732 = vrot.slane %v3727, %v3731
      %v3734 = vadd.f32 %v3695, %v3732
      %v3735 = vadd.f32 %v3696, %v3732
      %v3736 = vadd.f32 %v3697, %v3732
      %v3737 = vadd.f32 %v3698, %v3732
      %v3738 = vadd.f32 %v3699, %v3732
      %v3739 = vadd.f32 %v3700, %v3732
      %v3740 = vadd.f32 %v3701, %v3732
      %v3741 = vadd.f32 %v3702, %v3732
      %v3742 = vadd.f32 %v3703, %v3732
      %v3743 = vadd.f32 %v3704, %v3732
      %v3744 = vadd.f32 %v3705, %v3732
      %v3745 = vadd.f32 %v3706, %v3732
      %v3746 = vadd.f32 %v3707, %v3732
      %v3747 = vadd.f32 %v3708, %v3732
      %v3748 = vadd.f32 %v3709, %v3732
      %v3749 = vadd.f32 %v3710, %v3732
      %v3750 = vadd.f32 %v3711, %v3732
      %v3751 = vadd.f32 %v3712, %v3732
      %v3752 = vadd.f32 %v3713, %v3732
      %v3753 = vadd.f32 %v3714, %v3732
      %v3754 = vadd.f32 %v3715, %v3732
      %v3755 = vadd.f32 %v3716, %v3732
      %v3756 = vadd.f32 %v3717, %v3732
      %v3757 = vadd.f32 %v3718, %v3732
      %v3758 = vadd.f32 %v3719, %v3732
      %v3759 = vadd.f32 %v3720, %v3732
      %v3760 = vadd.f32 %v3721, %v3732
      %v3761 = vadd.f32 %v3722, %v3732
      %v3762 = vadd.f32 %v3723, %v3732
      %v3763 = vadd.f32 %v3724, %v3732
      %v3764 = vadd.f32 %v3725, %v3732
      %v3765 = vadd.f32 %v3726, %v3732
      %v3766 = vsel %vm855, %v3734, 0.0
      %v3767 = vsel %vm855, %v3735, 0.0
      %v3768 = vadd.f32 %v3766, %v3767
      %v3769 = vsel %vm855, %v3736, 0.0
      %v3770 = vadd.f32 %v3768, %v3769
      %v3771 = vsel %vm855, %v3737, 0.0
      %v3772 = vadd.f32 %v3770, %v3771
      %v3773 = vsel %vm855, %v3738, 0.0
      %v3774 = vadd.f32 %v3772, %v3773
      %v3775 = vsel %vm855, %v3739, 0.0
      %v3776 = vadd.f32 %v3774, %v3775
      %v3777 = vsel %vm855, %v3740, 0.0
      %v3778 = vadd.f32 %v3776, %v3777
      %v3779 = vsel %vm855, %v3741, 0.0
      %v3780 = vadd.f32 %v3778, %v3779
      %v3781 = vsel %vm855, %v3742, 0.0
      %v3782 = vadd.f32 %v3780, %v3781
      %v3783 = vsel %vm855, %v3743, 0.0
      %v3784 = vadd.f32 %v3782, %v3783
      %v3785 = vsel %vm855, %v3744, 0.0
      %v3786 = vadd.f32 %v3784, %v3785
      %v3787 = vsel %vm855, %v3745, 0.0
      %v3788 = vadd.f32 %v3786, %v3787
      %v3789 = vsel %vm855, %v3746, 0.0
      %v3790 = vadd.f32 %v3788, %v3789
      %v3791 = vsel %vm855, %v3747, 0.0
      %v3792 = vadd.f32 %v3790, %v3791
      %v3793 = vsel %vm855, %v3748, 0.0
      %v3794 = vadd.f32 %v3792, %v3793
      %v3795 = vsel %vm855, %v3749, 0.0
      %v3796 = vadd.f32 %v3794, %v3795
      %v3797 = vsel %vm855, %v3750, 0.0
      %v3798 = vadd.f32 %v3796, %v3797
      %v3799 = vsel %vm855, %v3751, 0.0
      %v3800 = vadd.f32 %v3798, %v3799
      %v3801 = vsel %vm855, %v3752, 0.0
      %v3802 = vadd.f32 %v3800, %v3801
      %v3803 = vsel %vm855, %v3753, 0.0
      %v3804 = vadd.f32 %v3802, %v3803
      %v3805 = vsel %vm855, %v3754, 0.0
      %v3806 = vadd.f32 %v3804, %v3805
      %v3807 = vsel %vm855, %v3755, 0.0
      %v3808 = vadd.f32 %v3806, %v3807
      %v3809 = vsel %vm855, %v3756, 0.0
      %v3810 = vadd.f32 %v3808, %v3809
      %v3811 = vsel %vm855, %v3757, 0.0
      %v3812 = vadd.f32 %v3810, %v3811
      %v3813 = vsel %vm855, %v3758, 0.0
      %v3814 = vadd.f32 %v3812, %v3813
      %v3815 = vsel %vm855, %v3759, 0.0
      %v3816 = vadd.f32 %v3814, %v3815
      %v3817 = vsel %vm855, %v3760, 0.0
      %v3818 = vadd.f32 %v3816, %v3817
      %v3819 = vsel %vm855, %v3761, 0.0
      %v3820 = vadd.f32 %v3818, %v3819
      %v3821 = vsel %vm855, %v3762, 0.0
      %v3822 = vadd.f32 %v3820, %v3821
      %v3823 = vsel %vm855, %v3763, 0.0
      %v3824 = vadd.f32 %v3822, %v3823
      %v3825 = vsel %vm855, %v3764, 0.0
      %v3826 = vadd.f32 %v3824, %v3825
      %v3827 = vsel %vm855, %v3765, 0.0
      %v3828 = vadd.f32 %v3826, %v3827
      %v3829 = vrot.slane %v3828, 4
      %v3830 = vadd.f32 %v3828, %v3829
      %v3831 = vrot.slane %v3830, 2
      %v3832 = vadd.f32 %v3830, %v3831
      %v3833 = vrot.slane %v3832, 1
      %v3834 = vadd.f32 %v3832, %v3833
      %vm3835 = vcmask 24576
      %3836 = vst.msk [vmem:[%s473] sm:$0x1] %vm3835, %v3834
      %v3837 = vmul.f32 %v3734, %v3734
      %v3838 = vmul.f32 %v3735, %v3735
      %v3839 = vmul.f32 %v3736, %v3736
      %v3840 = vmul.f32 %v3737, %v3737
      %v3841 = vmul.f32 %v3738, %v3738
      %v3842 = vmul.f32 %v3739, %v3739
      %v3843 = vmul.f32 %v3740, %v3740
      %v3844 = vmul.f32 %v3741, %v3741
      %v3845 = vmul.f32 %v3742, %v3742
      %v3846 = vmul.f32 %v3743, %v3743
      %v3847 = vmul.f32 %v3744, %v3744
      %v3848 = vmul.f32 %v3745, %v3745
      %v3849 = vmul.f32 %v3746, %v3746
      %v3850 = vmul.f32 %v3747, %v3747
      %v3851 = vmul.f32 %v3748, %v3748
      %v3852 = vmul.f32 %v3749, %v3749
      %v3853 = vmul.f32 %v3750, %v3750
      %v3854 = vmul.f32 %v3751, %v3751
      %v3855 = vmul.f32 %v3752, %v3752
      %v3856 = vmul.f32 %v3753, %v3753
      %v3857 = vmul.f32 %v3754, %v3754
      %v3858 = vmul.f32 %v3755, %v3755
      %v3859 = vmul.f32 %v3756, %v3756
      %v3860 = vmul.f32 %v3757, %v3757
      %v3861 = vmul.f32 %v3758, %v3758
      %v3862 = vmul.f32 %v3759, %v3759
      %v3863 = vmul.f32 %v3760, %v3760
      %v3864 = vmul.f32 %v3761, %v3761
      %v3865 = vmul.f32 %v3762, %v3762
      %v3866 = vmul.f32 %v3763, %v3763
      %v3867 = vmul.f32 %v3764, %v3764
      %v3868 = vmul.f32 %v3765, %v3765
      %v3869 = vsel %vm855, %v3837, 0.0
      %v3870 = vsel %vm855, %v3838, 0.0
      %v3871 = vadd.f32 %v3869, %v3870
      %v3872 = vsel %vm855, %v3839, 0.0
      %v3873 = vadd.f32 %v3871, %v3872
      %v3874 = vsel %vm855, %v3840, 0.0
      %v3875 = vadd.f32 %v3873, %v3874
      %v3876 = vsel %vm855, %v3841, 0.0
      %v3877 = vadd.f32 %v3875, %v3876
      %v3878 = vsel %vm855, %v3842, 0.0
      %v3879 = vadd.f32 %v3877, %v3878
      %v3880 = vsel %vm855, %v3843, 0.0
      %v3881 = vadd.f32 %v3879, %v3880
      %v3882 = vsel %vm855, %v3844, 0.0
      %v3883 = vadd.f32 %v3881, %v3882
      %v3884 = vsel %vm855, %v3845, 0.0
      %v3885 = vadd.f32 %v3883, %v3884
      %v3886 = vsel %vm855, %v3846, 0.0
      %v3887 = vadd.f32 %v3885, %v3886
      %v3888 = vsel %vm855, %v3847, 0.0
      %v3889 = vadd.f32 %v3887, %v3888
      %v3890 = vsel %vm855, %v3848, 0.0
      %v3891 = vadd.f32 %v3889, %v3890
      %v3892 = vsel %vm855, %v3849, 0.0
      %v3893 = vadd.f32 %v3891, %v3892
      %v3894 = vsel %vm855, %v3850, 0.0
      %v3895 = vadd.f32 %v3893, %v3894
      %v3896 = vsel %vm855, %v3851, 0.0
      %v3897 = vadd.f32 %v3895, %v3896
      %v3898 = vsel %vm855, %v3852, 0.0
      %v3899 = vadd.f32 %v3897, %v3898
      %v3900 = vsel %vm855, %v3853, 0.0
      %v3901 = vadd.f32 %v3899, %v3900
      %v3902 = vsel %vm855, %v3854, 0.0
      %v3903 = vadd.f32 %v3901, %v3902
      %v3904 = vsel %vm855, %v3855, 0.0
      %v3905 = vadd.f32 %v3903, %v3904
      %v3906 = vsel %vm855, %v3856, 0.0
      %v3907 = vadd.f32 %v3905, %v3906
      %v3908 = vsel %vm855, %v3857, 0.0
      %v3909 = vadd.f32 %v3907, %v3908
      %v3910 = vsel %vm855, %v3858, 0.0
      %v3911 = vadd.f32 %v3909, %v3910
      %v3912 = vsel %vm855, %v3859, 0.0
      %v3913 = vadd.f32 %v3911, %v3912
      %v3914 = vsel %vm855, %v3860, 0.0
      %v3915 = vadd.f32 %v3913, %v3914
      %v3916 = vsel %vm855, %v3861, 0.0
      %v3917 = vadd.f32 %v3915, %v3916
      %v3918 = vsel %vm855, %v3862, 0.0
      %v3919 = vadd.f32 %v3917, %v3918
      %v3920 = vsel %vm855, %v3863, 0.0
      %v3921 = vadd.f32 %v3919, %v3920
      %v3922 = vsel %vm855, %v3864, 0.0
      %v3923 = vadd.f32 %v3921, %v3922
      %v3924 = vsel %vm855, %v3865, 0.0
      %v3925 = vadd.f32 %v3923, %v3924
      %v3926 = vsel %vm855, %v3866, 0.0
      %v3927 = vadd.f32 %v3925, %v3926
      %v3928 = vsel %vm855, %v3867, 0.0
      %v3929 = vadd.f32 %v3927, %v3928
      %v3930 = vsel %vm855, %v3868, 0.0
      %v3931 = vadd.f32 %v3929, %v3930
      %v3932 = vrot.slane %v3931, 4
      %v3933 = vadd.f32 %v3931, %v3932
      %v3934 = vrot.slane %v3933, 2
      %v3935 = vadd.f32 %v3933, %v3934
      %v3936 = vrot.slane %v3935, 1
      %v3937 = vadd.f32 %v3935, %v3936
      %3938 = vst.msk [vmem:[%s479] sm:$0x1] %vm3835, %v3937
      %v3939 = vpack.c.bf16 %v3735, %v3734
      %v3940 = vpack.c.bf16 %v3737, %v3736
      %v3941 = vpack.c.bf16 %v3739, %v3738
      %v3942 = vpack.c.bf16 %v3741, %v3740
      %v3943 = vpack.c.bf16 %v3743, %v3742
      %v3944 = vpack.c.bf16 %v3745, %v3744
      %v3945 = vpack.c.bf16 %v3747, %v3746
      %v3946 = vpack.c.bf16 %v3749, %v3748
      %v3947 = vpack.c.bf16 %v3751, %v3750
      %v3948 = vpack.c.bf16 %v3753, %v3752
      %v3949 = vpack.c.bf16 %v3755, %v3754
      %v3950 = vpack.c.bf16 %v3757, %v3756
      %v3951 = vpack.c.bf16 %v3759, %v3758
      %v3952 = vpack.c.bf16 %v3761, %v3760
      %v3953 = vpack.c.bf16 %v3763, %v3762
      %v3954 = vpack.c.bf16 %v3765, %v3764
      %v3971 = vunpack.c.l.b16 %v3939
      %v3972 = vunpack.c.h.b16 %v3939
      %v3973 = vunpack.c.l.b16 %v3940
      %v3974 = vunpack.c.h.b16 %v3940
      %v3975 = vunpack.c.l.b16 %v3941
      %v3976 = vunpack.c.h.b16 %v3941
      %v3977 = vunpack.c.l.b16 %v3942
      %v3978 = vunpack.c.h.b16 %v3942
      %v3979 = vunpack.c.l.b16 %v3943
      %v3980 = vunpack.c.h.b16 %v3943
      %v3981 = vunpack.c.l.b16 %v3944
      %v3982 = vunpack.c.h.b16 %v3944
      %v3983 = vunpack.c.l.b16 %v3945
      %v3984 = vunpack.c.h.b16 %v3945
      %v3985 = vunpack.c.l.b16 %v3946
      %v3986 = vunpack.c.h.b16 %v3946
      %v3987 = vunpack.c.l.b16 %v3947
      %v3988 = vunpack.c.h.b16 %v3947
      %v3989 = vunpack.c.l.b16 %v3948
      %v3990 = vunpack.c.h.b16 %v3948
      %v3991 = vunpack.c.l.b16 %v3949
      %v3992 = vunpack.c.h.b16 %v3949
      %v3993 = vunpack.c.l.b16 %v3950
      %v3994 = vunpack.c.h.b16 %v3950
      %v3995 = vunpack.c.l.b16 %v3951
      %v3996 = vunpack.c.h.b16 %v3951
      %v3997 = vunpack.c.l.b16 %v3952
      %v3998 = vunpack.c.h.b16 %v3952
      %v3999 = vunpack.c.l.b16 %v3953
      %v4000 = vunpack.c.h.b16 %v3953
      %v4001 = vunpack.c.l.b16 %v3954
      %v4002 = vunpack.c.h.b16 %v3954
      %v4003 = vpack.c.b16 %v3971, %v3971
      %v4004 = vpack.c.b16 %v3972, %v3972
      %v4005 = vpack.c.b16 %v3973, %v3973
      %v4006 = vpack.c.b16 %v3974, %v3974
      %v4007 = vpack.c.b16 %v3975, %v3975
      %v4008 = vpack.c.b16 %v3976, %v3976
      %v4009 = vpack.c.b16 %v3977, %v3977
      %v4010 = vpack.c.b16 %v3978, %v3978
      %v4011 = vpack.c.b16 %v3979, %v3979
      %v4012 = vpack.c.b16 %v3980, %v3980
      %v4013 = vpack.c.b16 %v3981, %v3981
      %v4014 = vpack.c.b16 %v3982, %v3982
      %v4015 = vpack.c.b16 %v3983, %v3983
      %v4016 = vpack.c.b16 %v3984, %v3984
      %v4017 = vpack.c.b16 %v3985, %v3985
      %v4018 = vpack.c.b16 %v3986, %v3986
      %v4019 = vpack.c.b16 %v3987, %v3987
      %v4020 = vpack.c.b16 %v3988, %v3988
      %v4021 = vpack.c.b16 %v3989, %v3989
      %v4022 = vpack.c.b16 %v3990, %v3990
      %v4023 = vpack.c.b16 %v3991, %v3991
      %v4024 = vpack.c.b16 %v3992, %v3992
      %v4025 = vpack.c.b16 %v3993, %v3993
      %v4026 = vpack.c.b16 %v3994, %v3994
      %v4027 = vpack.c.b16 %v3995, %v3995
      %v4028 = vpack.c.b16 %v3996, %v3996
      %v4029 = vpack.c.b16 %v3997, %v3997
      %v4030 = vpack.c.b16 %v3998, %v3998
      %v4031 = vpack.c.b16 %v3999, %v3999
      %v4032 = vpack.c.b16 %v4000, %v4000
      %v4033 = vpack.c.b16 %v4001, %v4001
      %v4034 = vpack.c.b16 %v4002, %v4002
      %vm4067 = vcmask 27648
      %4068 = vst.msk [vmem:[%s466] sm:$0xf] %vm4067, %v4003
      %4069 = vst.msk [vmem:[%s466 + $0x4] sm:$0xf] %vm4067, %v4004
      %4070 = vst.msk [vmem:[%s466 + $0x8] sm:$0xf] %vm4067, %v4005
      %4071 = vst.msk [vmem:[%s466 + $0xc] sm:$0xf] %vm4067, %v4006
      %4072 = vst.msk [vmem:[%s466 + $0x10] sm:$0xf] %vm4067, %v4007
      %4073 = vst.msk [vmem:[%s466 + $0x14] sm:$0xf] %vm4067, %v4008
      %4074 = vst.msk [vmem:[%s466 + $0x18] sm:$0xf] %vm4067, %v4009
      %4075 = vst.msk [vmem:[%s466 + $0x1c] sm:$0xf] %vm4067, %v4010
      %4076 = vst.msk [vmem:[%s466 + $0x20] sm:$0xf] %vm4067, %v4011
      %4077 = vst.msk [vmem:[%s466 + $0x24] sm:$0xf] %vm4067, %v4012
      %4078 = vst.msk [vmem:[%s466 + $0x28] sm:$0xf] %vm4067, %v4013
      %4079 = vst.msk [vmem:[%s466 + $0x2c] sm:$0xf] %vm4067, %v4014
      %4080 = vst.msk [vmem:[%s466 + $0x30] sm:$0xf] %vm4067, %v4015
      %4081 = vst.msk [vmem:[%s466 + $0x34] sm:$0xf] %vm4067, %v4016
      %4082 = vst.msk [vmem:[%s466 + $0x38] sm:$0xf] %vm4067, %v4017
      %4083 = vst.msk [vmem:[%s466 + $0x3c] sm:$0xf] %vm4067, %v4018
      %4084 = vst.msk [vmem:[%s466 + $0x40] sm:$0xf] %vm4067, %v4019
      %4085 = vst.msk [vmem:[%s466 + $0x44] sm:$0xf] %vm4067, %v4020
      %4086 = vst.msk [vmem:[%s466 + $0x48] sm:$0xf] %vm4067, %v4021
      %4087 = vst.msk [vmem:[%s466 + $0x4c] sm:$0xf] %vm4067, %v4022
      %4088 = vst.msk [vmem:[%s466 + $0x50] sm:$0xf] %vm4067, %v4023
      %4089 = vst.msk [vmem:[%s466 + $0x54] sm:$0xf] %vm4067, %v4024
      %4090 = vst.msk [vmem:[%s466 + $0x58] sm:$0xf] %vm4067, %v4025
      %4091 = vst.msk [vmem:[%s466 + $0x5c] sm:$0xf] %vm4067, %v4026
      %4092 = vst.msk [vmem:[%s466 + $0x60] sm:$0xf] %vm4067, %v4027
      %4093 = vst.msk [vmem:[%s466 + $0x64] sm:$0xf] %vm4067, %v4028
      %4094 = vst.msk [vmem:[%s466 + $0x68] sm:$0xf] %vm4067, %v4029
      %4095 = vst.msk [vmem:[%s466 + $0x6c] sm:$0xf] %vm4067, %v4030
      %4096 = vst.msk [vmem:[%s466 + $0x70] sm:$0xf] %vm4067, %v4031
      %4097 = vst.msk [vmem:[%s466 + $0x74] sm:$0xf] %vm4067, %v4032
      %4098 = vst.msk [vmem:[%s466 + $0x78] sm:$0xf] %vm4067, %v4033
      %4099 = vst.msk [vmem:[%s466 + $0x7c] sm:$0xf] %vm4067, %v4034
      %s4100 = smul.u32 16, %s24
      %p4101 = scmp.lt.s32.totalorder %s23, 1
      %s4102 = scalar_select %p4101, %s23, 1
      %p4103 = scmp.lt.s32.totalorder %s4100, 15
      %s4104 = scalar_select %p4103, %s4100, 15
      %s4105 = smul.addr %s4104, 2
      %s4106 = smul.addr %s4102, 32
      %s4107 = sadd.s32 %s4105, %s4106
      %s4108 = smul.addr %s4107, 4
      %s4109 = scalar_lea.vmem %s5, %s4108
      %p4110 = scmp.lt.s32.totalorder %s23, 1
      %s4111 = scalar_select %p4110, %s23, 1
      %p4112 = scmp.lt.s32.totalorder %s24, 0
      %s4113 = scalar_select %p4112, %s24, 0
      %s4114 = sadd.s32 %s4113, %s4111
      %s4115 = scalar_lea.vmem %s6, %s4114
      %p4116 = scmp.lt.s32.totalorder %s23, 1
      %s4117 = scalar_select %p4116, %s23, 1
      %p4118 = scmp.lt.s32.totalorder %s24, 0
      %s4119 = scalar_select %p4118, %s24, 0
      %s4120 = sadd.s32 %s4119, %s4117
      %s4121 = scalar_lea.vmem %s7, %s4120
      // Predicated region
      $region41: #{resblock_forward.3} parent=39 // pred_check
        %p4122 = pneg %p193
      $region42: #{resblock_forward.3} parent=39 // pred_check_branch
        %4124 = sbr.rel (%p4122) target = $region44
      $region43: #{resblock_forward.3} parent=39 // pred_region
        %s4125 = smul.u32 16, %s24
      $region44: #{resblock_forward.3} parent=39 // pred_fallthru
        _
      // Predicated region
      $region45: #{resblock_forward.3} parent=39 // pred_check
        %p4126 = pneg %p221
      $region46: #{resblock_forward.3} parent=39 // pred_check_branch
        %4128 = sbr.rel (%p4126) target = $region48
      $region47: #{resblock_forward.3} parent=39 // pred_region
        _
      $region48: #{resblock_forward.3} parent=39 // pred_fallthru
        _
      // Predicated region
      $region49: #{resblock_forward.3} parent=39 // pred_check
        %p4129 = pneg %p249
      $region50: #{resblock_forward.3} parent=39 // pred_check_branch
        %4131 = sbr.rel (%p4129) target = $region52
      $region51: #{resblock_forward.3} parent=39 // pred_region
        _
      $region52: #{resblock_forward.3} parent=39 // pred_fallthru
        _
    $region40: #{resblock_forward.3} parent=5 // pred_fallthru
      _
    %p4132 = scmp.le.s32.totalorder 2, %s14
    // Predicated region
    $region53: #{resblock_forward.3} parent=5 // pred_check
      %p4133 = pneg %p4132
    $region54: #{resblock_forward.3} parent=5 // pred_check_branch
      %4135 = sbr.rel (%p4133) target = $region56
    $region55: #{resblock_forward.3} parent=5 // pred_region
      %s4136 = ssub.s32 %s14, 2
      // Predicated region
      $region57: #{resblock_forward.3} parent=55 // pred_check
        %p4137 = pneg %p199
      $region58: #{resblock_forward.3} parent=55 // pred_check_branch
        %4139 = sbr.rel (%p4137) target = $region60
      $region59: #{resblock_forward.3} parent=55 // pred_region
        %s4140 = smul.u32 16, %s26
        %p4141 = scmp.lt.s32.totalorder %s25, 1
        %s4142 = scalar_select %p4141, %s25, 1
        %p4143 = scmp.lt.s32.totalorder %s4140, 15
        %s4144 = scalar_select %p4143, %s4140, 15
        %s4145 = smul.addr %s4144, 2
        %s4146 = smul.addr %s4142, 32
        %s4147 = sadd.s32 %s4145, %s4146
        %s4148 = smul.addr %s4147, 4
        %s4149 = scalar_lea.vmem %s5, %s4148
      $region60: #{resblock_forward.3} parent=55 // pred_fallthru
        _
      // Predicated region
      $region61: #{resblock_forward.3} parent=55 // pred_check
        %p4150 = pneg %p227
      $region62: #{resblock_forward.3} parent=55 // pred_check_branch
        %4152 = sbr.rel (%p4150) target = $region64
      $region63: #{resblock_forward.3} parent=55 // pred_region
        %p4153 = scmp.lt.s32.totalorder %s25, 1
        %s4154 = scalar_select %p4153, %s25, 1
        %p4155 = scmp.lt.s32.totalorder %s26, 0
        %s4156 = scalar_select %p4155, %s26, 0
        %s4157 = sadd.s32 %s4156, %s4154
        %s4158 = scalar_lea.vmem %s6, %s4157
      $region64: #{resblock_forward.3} parent=55 // pred_fallthru
        _
      // Predicated region
      $region65: #{resblock_forward.3} parent=55 // pred_check
        %p4159 = pneg %p255
      $region66: #{resblock_forward.3} parent=55 // pred_check_branch
        %4161 = sbr.rel (%p4159) target = $region68
      $region67: #{resblock_forward.3} parent=55 // pred_region
        %p4162 = scmp.lt.s32.totalorder %s25, 1
        %s4163 = scalar_select %p4162, %s25, 1
        %p4164 = scmp.lt.s32.totalorder %s26, 0
        %s4165 = scalar_select %p4164, %s26, 0
        %s4166 = sadd.s32 %s4165, %s4163
        %s4167 = scalar_lea.vmem %s7, %s4166
      $region68: #{resblock_forward.3} parent=55 // pred_fallthru
        _
    $region56: #{resblock_forward.3} parent=5 // pred_fallthru
      _
  $region6: #{resblock_forward.3} parent=0 // loop_footer
    %s18 = sadd.s32 1, %s14
  $region7: #{resblock_forward.3} parent=0 // loop_footer_branch
    %13 = sbr.rel target = $region3
  $region8: #{resblock_forward.3} parent=0 // loop_exit
    _

</llo_original>
